<compile_context>
chip_gen: v5e
topology: v5e:2x2
jax: 0.10.0
libtpu: 0.0.40
codegen_flags: <defaults>
</compile_context>

<pallas_src>
import functools

import numpy as np
import jax
import jax.numpy as jnp
from jax import lax
from jax.experimental import pallas as pl
from jax.experimental.pallas import tpu as pltpu


_CPAD = 128                 # channel padding = lane width
_IN_LANES = 32              # layer-0 im2col K: 9*3 = 27, padded to 32 lanes
_OUT_LANES = 8              # final output: 3 channels padded to 8 lanes
_ENC = [(3, 16), (16, 32), (32, 64), (64, 128)]
_DEC = [(128, 64), (64, 32), (32, 16), (16, 3)]


# ------------------------------------------------------------------ kernel --

def _fused_ae_kernel(x_ref, w0_ref, b_ref, wenc_ref, wdec_ref, *rest,
                     sizes, rows, b_blk, out_lanes):
    """Whole autoencoder for a block of b_blk samples, fully VMEM-resident.

    x_ref    : (b_blk*HW/4, 32) bf16   host-side im2col of the 3-channel input
    w0_ref   : (32, 128) bf16          layer-0 weights, taps folded into K
    b_ref    : (8, 128) f32            per-layer bias (channel-padded)
    wenc_ref : (3, 1152, 128) bf16     enc layers 1-3, taps stacked along K
    wdec_ref : (4, 128, 1152) bf16     dec layers 4-7, taps stacked along N
    rest     : 6 tap-selection refs (layers 1..6), then o_ref (b_blk*HW, 8) bf16
    """
    t_refs = rest[:6]
    o_ref = rest[6]

    b_all = b_ref[...]                                       # (8, 128) f32

    # ---- layer 0: stride-2 conv as ONE im2col matmul (taps folded into K) --
    z = jnp.dot(x_ref[...], w0_ref[...],
                preferred_element_type=jnp.float32)
    z = z + b_all[0:1, :]
    a = jnp.maximum(z, 0.0).astype(jnp.bfloat16)             # (b_blk*r1, 128)

    # ---- encoder layers 1..3: tap gathers, then one K-stacked channel matmul
    for l in (1, 2, 3):
        r_in, r_out = rows[l], rows[l + 1]
        t_l = t_refs[l - 1]                                  # (9, r_out, r_in)
        w_l = wenc_ref[l - 1]                                # (1152, 128) bf16
        g_rows = []
        for b in range(b_blk):
            a_b = a[b * r_in:(b + 1) * r_in, :]
            g_t = [jnp.dot(t_l[t], a_b,
                           preferred_element_type=jnp.float32)
                   for t in range(9)]                        # exact 0/1 gathers
            g_rows.append(jnp.concatenate(g_t, axis=-1))     # (r_out, 1152)
        g = (jnp.concatenate(g_rows, axis=0) if b_blk > 1 else g_rows[0])
        g = g.astype(jnp.bfloat16)
        z = jnp.dot(g, w_l, preferred_element_type=jnp.float32)
        z = z + b_all[l:l + 1, :]
        a = jnp.maximum(z, 0.0).astype(jnp.bfloat16)         # (b_blk*r_out,128)

    # ---- decoder layers 4..6: one N-stacked channel matmul, then tap gathers
    for l in (4, 5, 6):
        r_in, r_out = rows[l], rows[l + 1]
        t_l = t_refs[l - 1]
        w_l = wdec_ref[l - 4]                                # (128, 1152) bf16
        q = jnp.dot(a, w_l,
                    preferred_element_type=jnp.float32).astype(jnp.bfloat16)
        outs = []
        for b in range(b_blk):
            q_b = q[b * r_in:(b + 1) * r_in, :]
            acc = jnp.dot(t_l[0], q_b[:, 0:128],
                          preferred_element_type=jnp.float32)
            for t in range(1, 9):
                acc = acc + jnp.dot(t_l[t], q_b[:, t * 128:(t + 1) * 128],
                                    preferred_element_type=jnp.float32)
            outs.append(acc)                                 # (r_out, 128) f32
        z = (jnp.concatenate(outs, axis=0) if b_blk > 1 else outs[0])
        z = z + b_all[l:l + 1, :]
        a = jnp.maximum(z, 0.0).astype(jnp.bfloat16)

    # ---- layer 7: ConvTranspose via phase decomposition (no gather matmuls) -
    hi, wi = sizes[7]
    s7 = hi * wi                                             # == rows[7]
    bias7 = b_all[7:8, :]
    q = jnp.dot(a, wdec_ref[3], preferred_element_type=jnp.float32)

    col = lax.broadcasted_iota(jnp.int32, (s7, _CPAD), 0) % wi
    last_col = col == (wi - 1)
    zero_row = jnp.zeros((1, _CPAD), jnp.float32)
    zero_rows_h = jnp.zeros((wi, _CPAD), jnp.float32)

    def shift_w(v):      # v[m, n] -> v[m, n+1]   (0 past the right edge)
        t = jnp.concatenate([v[1:, :], zero_row], axis=0)
        return jnp.where(last_col, 0.0, t)

    def shift_h(v):      # v[m, n] -> v[m+1, n]   (0 past the bottom edge)
        return jnp.concatenate([v[wi:, :], zero_rows_h], axis=0)

    for b in range(b_blk):
        q_b = q[b * s7:(b + 1) * s7, :]
        qt = [q_b[:, t * 128:(t + 1) * 128] for t in range(9)]  # t = kh*3+kw
        p00 = qt[4]
        p01 = qt[3] + shift_w(qt[5])
        p10 = qt[1] + shift_h(qt[7])
        p11 = qt[0] + shift_w(qt[2]) + shift_h(qt[6]) + shift_h(shift_w(qt[8]))
        base = b * 4 * s7
        for idx, p in enumerate((p00, p01, p10, p11)):
            zp = p + bias7
            y = pl.reciprocal(1.0 + jnp.exp(-zp))            # exact sigmoid
            o_ref[base + idx * s7: base + (idx + 1) * s7, :] = (
                y[:, :out_lanes].astype(o_ref.dtype))


# -------------------------------------------------------- host-side packing --

def _spatial_sizes(h, w):
    sizes = [(h, w)]
    for _ in _ENC:
        sizes.append((sizes[-1][0] // 2, sizes[-1][1] // 2))
    for _ in _DEC:
        sizes.append((sizes[-1][0] * 2, sizes[-1][1] * 2))
    return sizes


def _t_mats_np(sizes, rows):
    """Exact 0/1 tap-selection matrices, kept only for the tiny layers 1..6."""
    mats = []
    for l in range(1, 7):
        hi, wi = sizes[l]
        ho, wo = sizes[l + 1]
        t_mat = np.zeros((9, rows[l + 1], rows[l]), np.float32)
        for kh in range(3):
            for kw in range(3):
                ti = kh * 3 + kw
                for oh in range(ho):
                    for ow in range(wo):
                        if l <= 3:                    # stride-2 conv
                            ih, iw = 2 * oh + kh - 1, 2 * ow + kw - 1
                        else:                         # conv-transpose s2 p1 op1
                            u, v = oh + kh, ow + kw
                            if (u % 2 == 0) or (v % 2 == 0):
                                continue
                            ih, iw = (u - 1) // 2, (v - 1) // 2
                        if 0 <= ih < hi and 0 <= iw < wi:
                            t_mat[ti, oh * wo + ow, ih * wi + iw] = 1.0
        mats.append(t_mat)
    return mats


def _pack_params(params):
    # layer 0: taps folded into K, order (kh, kw, ci) -> (32, 128)
    w0, b0 = params["enc"][0]
    w0_k = jnp.transpose(w0, (2, 3, 1, 0)).reshape(27, w0.shape[0])
    w0_p = jnp.pad(w0_k, ((0, _IN_LANES - 27),
                          (0, _CPAD - w0.shape[0]))).astype(jnp.bfloat16)
    biases = [jnp.pad(b0, (0, _CPAD - b0.shape[0]))]

    enc_stacks = []
    for (wgt, b) in params["enc"][1:]:               # OIHW
        cout, cin = wgt.shape[0], wgt.shape[1]
        wt = jnp.transpose(wgt, (2, 3, 1, 0)).reshape(9, cin, cout)
        wt = jnp.pad(wt, ((0, 0), (0, _CPAD - cin), (0, _CPAD - cout)))
        enc_stacks.append(wt.reshape(9 * _CPAD, _CPAD))       # taps along K
        biases.append(jnp.pad(b, (0, _CPAD - cout)))
    w_enc = jnp.stack(enc_stacks).astype(jnp.bfloat16)        # (3, 1152, 128)

    dec_stacks = []
    for (wgt, b) in params["dec"]:                   # IOHW
        cin, cout = wgt.shape[0], wgt.shape[1]
        wf = jnp.flip(wgt, axis=(2, 3))              # tap (kh,kw)->w[...,2-kh,2-kw]
        wt = jnp.transpose(wf, (2, 3, 0, 1)).reshape(9, cin, cout)
        wt = jnp.pad(wt, ((0, 0), (0, _CPAD - cin), (0, _CPAD - cout)))
        dec_stacks.append(jnp.transpose(wt, (1, 0, 2)).reshape(_CPAD, 9 * _CPAD))
        biases.append(jnp.pad(b, (0, _CPAD - cout)))
    w_dec = jnp.stack(dec_stacks).astype(jnp.bfloat16)        # (4, 128, 1152)

    b_all = jnp.stack(biases).astype(jnp.float32)             # (8, 128)
    return w0_p, b_all, w_enc, w_dec


def _pick_block(n):
    """Largest divisor of n (<=8) that still leaves >=2 grid steps."""
    best = 1
    for d in range(1, min(n, 8) + 1):
        if n % d == 0 and (n // d >= 2 or n == 1):
            best = d
    return best


# ----------------------------------------------------------------- forward --

def autoencoder_forward(params, x_nchw):
    n, c, h, w = x_nchw.shape
    assert c == _ENC[0][0] and h % 16 == 0 and w % 16 == 0

    sizes = _spatial_sizes(h, w)
    rows = tuple(max(hh * ww, 8) for (hh, ww) in sizes)

    w0_p, b_all, w_enc, w_dec = _pack_params(params)
    t_mats = [jnp.asarray(m, jnp.bfloat16) for m in _t_mats_np(sizes, rows)]

    # Layer-0 im2col on the host: tiny 3-channel op, K = 27 padded to 32 lanes.
    ho, wo = sizes[1]
    x_nhwc = jnp.transpose(x_nchw, (0, 2, 3, 1))
    xp = jnp.pad(x_nhwc, ((0, 0), (1, 1), (1, 1), (0, 0)))
    cols = [xp[:, kh:kh + 2 * ho:2, kw:kw + 2 * wo:2, :]
            for kh in range(3) for kw in range(3)]
    x_cols = jnp.concatenate(cols, axis=-1).reshape(n * ho * wo, 27)
    x_cols = jnp.pad(x_cols, ((0, 0), (0, _IN_LANES - 27))).astype(jnp.bfloat16)

    b_blk = _pick_block(n)
    s1 = rows[1]                                   # HW/4 rows per sample

    kernel = functools.partial(_fused_ae_kernel, sizes=sizes, rows=rows,
                               b_blk=b_blk, out_lanes=_OUT_LANES)

    in_specs = ([
        pl.BlockSpec((b_blk * s1, _IN_LANES), lambda i: (i, 0)),
        pl.BlockSpec(w0_p.shape, lambda i: (0, 0)),
        pl.BlockSpec(b_all.shape, lambda i: (0, 0)),
        pl.BlockSpec(w_enc.shape, lambda i: (0, 0, 0)),
        pl.BlockSpec(w_dec.shape, lambda i: (0, 0, 0)),
    ] + [pl.BlockSpec(t.shape, lambda i: (0, 0, 0)) for t in t_mats])

    out = pl.pallas_call(
        kernel,
        out_shape=jax.ShapeDtypeStruct((n * h * w, _OUT_LANES), jnp.bfloat16),
        grid_spec=pltpu.PrefetchScalarGridSpec(
            num_scalar_prefetch=0,
            grid=(n // b_blk,),
            in_specs=in_specs,
            out_specs=pl.BlockSpec((b_blk * h * w, _OUT_LANES),
                                   lambda i: (i, 0)),
        ),
        compiler_params=pltpu.CompilerParams(
            dimension_semantics=("parallel",),
            vmem_limit_bytes=32 * 1024 * 1024,
        ),
    )(x_cols, w0_p, b_all, w_enc, w_dec, *t_mats)

    # Host-side depth-to-space of the 4 phase blocks (tiny 3-channel tensor).
    hi, wi = sizes[7]
    y = out.reshape(n, 2, 2, hi, wi, _OUT_LANES)[..., :3].astype(jnp.float32)
    y = jnp.transpose(y, (0, 3, 1, 4, 2, 5)).reshape(n, h, w, 3)
    return jnp.transpose(y, (0, 3, 1, 2))          # NHWC -> NCHW


# ------------------------------------------------------------- init / ref ---

def init_params(key):
    params = {"enc": [], "dec": []}
    for cin, cout in _ENC:
        key, k1, k2 = jax.random.split(key, 3)
        bound = 1.0 / (cin * 9) ** 0.5
        wgt = jax.random.uniform(k1, (cout, cin, 3, 3), jnp.float32, -bound, bound)
        bb = jax.random.uniform(k2, (cout,), jnp.float32, -bound, bound)
        params["enc"].append((wgt, bb))
    for cin, cout in _DEC:
        key, k1, k2 = jax.random.split(key, 3)
        bound = 1.0 / (cin * 9) ** 0.5
        wgt = jax.random.uniform(k1, (cin, cout, 3, 3), jnp.float32, -bound, bound)
        bb = jax.random.uniform(k2, (cout,), jnp.float32, -bound, bound)
        params["dec"].append((wgt, bb))
    return params


def reference_forward(params, x_nchw):
    """Pure-JAX (lax.conv) f32 reference matching the PyTorch module."""
    x = jnp.transpose(x_nchw, (0, 2, 3, 1))
    dn = ("NHWC", "HWIO", "NHWC")
    for (w, b) in params["enc"]:
        whwio = jnp.transpose(w, (2, 3, 1, 0))
        x = lax.conv_general_dilated(
            x, whwio, (2, 2), ((1, 1), (1, 1)), dimension_numbers=dn) + b
        x = jnp.maximum(x, 0.0)
    for i, (w, b) in enumerate(params["dec"]):
        w_eq = jnp.flip(w, axis=(2, 3)).transpose(1, 0, 2, 3)
        whwio = jnp.transpose(w_eq, (2, 3, 1, 0))
        x = lax.conv_general_dilated(
            x, whwio, (1, 1), ((1, 2), (1, 2)),
            lhs_dilation=(2, 2), dimension_numbers=dn) + b
        x = jax.nn.sigmoid(x) if i == len(_DEC) - 1 else jnp.maximum(x, 0.0)
    return jnp.transpose(x, (0, 3, 1, 2))


if __name__ == "__main__":
    key = jax.random.PRNGKey(0)
    kx, kp = jax.random.split(key)
    x = jax.random.uniform(kx, (2, 3, 16, 16), jnp.float32)   # NCHW like PyTorch
    params = init_params(kp)

    out = jax.jit(autoencoder_forward)(params, x)
    out = jax.block_until_ready(out)
    assert out.shape == (2, 3, 16, 16), out.shape

    ref = reference_forward(params, x)
    err = float(jnp.max(jnp.abs(out - ref)))
    # Tolerance sized for bf16 MXU operands (8-bit mantissa) through 8 layers.
    assert err < 3e-2, err

    print("KERNEL_OK")
</pallas_src>

<mosaic_0001>
module attributes {stable_mosaic.version = 11 : i64} {
  func.func @_fused_ae_kernel(%arg0: i32, %arg1: memref<64x32xbf16, #tpu.memory_space<vmem>>, %arg2: memref<32x128xbf16, #tpu.memory_space<vmem>>, %arg3: memref<8x128xf32, #tpu.memory_space<vmem>>, %arg4: memref<3x1152x128xbf16, #tpu.memory_space<vmem>>, %arg5: memref<4x128x1152xbf16, #tpu.memory_space<vmem>>, %arg6: memref<9x16x64xbf16, #tpu.memory_space<vmem>>, %arg7: memref<9x8x16xbf16, #tpu.memory_space<vmem>>, %arg8: memref<9x8x8xbf16, #tpu.memory_space<vmem>>, %arg9: memref<9x8x8xbf16, #tpu.memory_space<vmem>>, %arg10: memref<9x16x8xbf16, #tpu.memory_space<vmem>>, %arg11: memref<9x64x16xbf16, #tpu.memory_space<vmem>>, %arg12: memref<256x8xbf16, #tpu.memory_space<vmem>>) attributes {dimension_semantics = [#tpu.dimension_semantics<parallel>], iteration_bounds = array<i64: 2>, scalar_prefetch = 0 : i64, scratch_operands = 0 : i64, tpu.core_type = #tpu.core_type<tc>, window_params = [{transform_indices = @transform_0, window_bounds = array<i64: 64, 32>}, {pipeline_mode = #tpu.pipeline_mode<synchronous>, transform_indices = @transform_1, window_bounds = array<i64: 32, 128>}, {pipeline_mode = #tpu.pipeline_mode<synchronous>, transform_indices = @transform_2, window_bounds = array<i64: 8, 128>}, {pipeline_mode = #tpu.pipeline_mode<synchronous>, transform_indices = @transform_3, window_bounds = array<i64: 3, 1152, 128>}, {pipeline_mode = #tpu.pipeline_mode<synchronous>, transform_indices = @transform_4, window_bounds = array<i64: 4, 128, 1152>}, {pipeline_mode = #tpu.pipeline_mode<synchronous>, transform_indices = @transform_5, window_bounds = array<i64: 9, 16, 64>}, {pipeline_mode = #tpu.pipeline_mode<synchronous>, transform_indices = @transform_6, window_bounds = array<i64: 9, 8, 16>}, {pipeline_mode = #tpu.pipeline_mode<synchronous>, transform_indices = @transform_7, window_bounds = array<i64: 9, 8, 8>}, {pipeline_mode = #tpu.pipeline_mode<synchronous>, transform_indices = @transform_8, window_bounds = array<i64: 9, 8, 8>}, {pipeline_mode = #tpu.pipeline_mode<synchronous>, transform_indices = @transform_9, window_bounds = array<i64: 9, 16, 8>}, {pipeline_mode = #tpu.pipeline_mode<synchronous>, transform_indices = @transform_10, window_bounds = array<i64: 9, 64, 16>}, {transform_indices = @transform_11, window_bounds = array<i64: 256, 8>}]} {
    %c0 = arith.constant 0 : index
    %c0_0 = arith.constant 0 : index
    %0 = vector.load %arg3[%c0, %c0_0] : memref<8x128xf32, #tpu.memory_space<vmem>>, vector<8x128xf32>
    %c0_1 = arith.constant 0 : index
    %c0_2 = arith.constant 0 : index
    %1 = vector.load %arg1[%c0_1, %c0_2] : memref<64x32xbf16, #tpu.memory_space<vmem>>, vector<64x32xbf16>
    %c0_3 = arith.constant 0 : index
    %c0_4 = arith.constant 0 : index
    %2 = vector.load %arg2[%c0_3, %c0_4] : memref<32x128xbf16, #tpu.memory_space<vmem>>, vector<32x128xbf16>
    %cst = arith.constant dense<0.000000e+00> : vector<64x128xf32>
    %3 = tpu.matmul %1, %2, %cst {dimension_numbers = #tpu.dot_dimension_numbers<[1], [0], [0], [1], [0, 0, 1, 1], [], []>} : vector<64x32xbf16>, vector<32x128xbf16>, vector<64x128xf32> -> vector<64x128xf32>
    %4 = vector.extract_strided_slice %0 {offsets = [0, 0], sizes = [1, 128], strides = [1, 1]} : vector<8x128xf32> to vector<1x128xf32>
    %5 = vector.broadcast %4 : vector<1x128xf32> to vector<64x128xf32>
    %6 = arith.addf %3, %5 : vector<64x128xf32>
    %cst_5 = arith.constant 0.000000e+00 : f32
    %7 = vector.broadcast %cst_5 : f32 to vector<64x128xf32>
    %8 = arith.maximumf %6, %7 : vector<64x128xf32>
    %9 = arith.truncf %8 : vector<64x128xf32> to vector<64x128xbf16>
    %c0_6 = arith.constant 0 : index
    %c0_7 = arith.constant 0 : index
    %c0_8 = arith.constant 0 : index
    %10 = vector.load %arg4[%c0_6, %c0_7, %c0_8] : memref<3x1152x128xbf16, #tpu.memory_space<vmem>>, vector<1x1152x128xbf16>
    %11 = vector.shape_cast %10 : vector<1x1152x128xbf16> to vector<1152x128xbf16>
    %c0_9 = arith.constant 0 : index
    %c0_10 = arith.constant 0 : index
    %c0_11 = arith.constant 0 : index
    %12 = vector.load %arg6[%c0_9, %c0_10, %c0_11] : memref<9x16x64xbf16, #tpu.memory_space<vmem>>, vector<1x16x64xbf16>
    %13 = vector.shape_cast %12 : vector<1x16x64xbf16> to vector<16x64xbf16>
    %cst_12 = arith.constant dense<0.000000e+00> : vector<16x128xf32>
    %14 = tpu.matmul %13, %9, %cst_12 {dimension_numbers = #tpu.dot_dimension_numbers<[1], [0], [0], [1], [0, 0, 1, 1], [], []>} : vector<16x64xbf16>, vector<64x128xbf16>, vector<16x128xf32> -> vector<16x128xf32>
    %c1 = arith.constant 1 : index
    %c0_13 = arith.constant 0 : index
    %c0_14 = arith.constant 0 : index
    %15 = vector.load %arg6[%c1, %c0_13, %c0_14] : memref<9x16x64xbf16, #tpu.memory_space<vmem>>, vector<1x16x64xbf16>
    %16 = vector.shape_cast %15 : vector<1x16x64xbf16> to vector<16x64xbf16>
    %cst_15 = arith.constant dense<0.000000e+00> : vector<16x128xf32>
    %17 = tpu.matmul %16, %9, %cst_15 {dimension_numbers = #tpu.dot_dimension_numbers<[1], [0], [0], [1], [0, 0, 1, 1], [], []>} : vector<16x64xbf16>, vector<64x128xbf16>, vector<16x128xf32> -> vector<16x128xf32>
    %c2 = arith.constant 2 : index
    %c0_16 = arith.constant 0 : index
    %c0_17 = arith.constant 0 : index
    %18 = vector.load %arg6[%c2, %c0_16, %c0_17] : memref<9x16x64xbf16, #tpu.memory_space<vmem>>, vector<1x16x64xbf16>
    %19 = vector.shape_cast %18 : vector<1x16x64xbf16> to vector<16x64xbf16>
    %cst_18 = arith.constant dense<0.000000e+00> : vector<16x128xf32>
    %20 = tpu.matmul %19, %9, %cst_18 {dimension_numbers = #tpu.dot_dimension_numbers<[1], [0], [0], [1], [0, 0, 1, 1], [], []>} : vector<16x64xbf16>, vector<64x128xbf16>, vector<16x128xf32> -> vector<16x128xf32>
    %c3 = arith.constant 3 : index
    %c0_19 = arith.constant 0 : index
    %c0_20 = arith.constant 0 : index
    %21 = vector.load %arg6[%c3, %c0_19, %c0_20] : memref<9x16x64xbf16, #tpu.memory_space<vmem>>, vector<1x16x64xbf16>
    %22 = vector.shape_cast %21 : vector<1x16x64xbf16> to vector<16x64xbf16>
    %cst_21 = arith.constant dense<0.000000e+00> : vector<16x128xf32>
    %23 = tpu.matmul %22, %9, %cst_21 {dimension_numbers = #tpu.dot_dimension_numbers<[1], [0], [0], [1], [0, 0, 1, 1], [], []>} : vector<16x64xbf16>, vector<64x128xbf16>, vector<16x128xf32> -> vector<16x128xf32>
    %c4 = arith.constant 4 : index
    %c0_22 = arith.constant 0 : index
    %c0_23 = arith.constant 0 : index
    %24 = vector.load %arg6[%c4, %c0_22, %c0_23] : memref<9x16x64xbf16, #tpu.memory_space<vmem>>, vector<1x16x64xbf16>
    %25 = vector.shape_cast %24 : vector<1x16x64xbf16> to vector<16x64xbf16>
    %cst_24 = arith.constant dense<0.000000e+00> : vector<16x128xf32>
    %26 = tpu.matmul %25, %9, %cst_24 {dimension_numbers = #tpu.dot_dimension_numbers<[1], [0], [0], [1], [0, 0, 1, 1], [], []>} : vector<16x64xbf16>, vector<64x128xbf16>, vector<16x128xf32> -> vector<16x128xf32>
    %c5 = arith.constant 5 : index
    %c0_25 = arith.constant 0 : index
    %c0_26 = arith.constant 0 : index
    %27 = vector.load %arg6[%c5, %c0_25, %c0_26] : memref<9x16x64xbf16, #tpu.memory_space<vmem>>, vector<1x16x64xbf16>
    %28 = vector.shape_cast %27 : vector<1x16x64xbf16> to vector<16x64xbf16>
    %cst_27 = arith.constant dense<0.000000e+00> : vector<16x128xf32>
    %29 = tpu.matmul %28, %9, %cst_27 {dimension_numbers = #tpu.dot_dimension_numbers<[1], [0], [0], [1], [0, 0, 1, 1], [], []>} : vector<16x64xbf16>, vector<64x128xbf16>, vector<16x128xf32> -> vector<16x128xf32>
    %c6 = arith.constant 6 : index
    %c0_28 = arith.constant 0 : index
    %c0_29 = arith.constant 0 : index
    %30 = vector.load %arg6[%c6, %c0_28, %c0_29] : memref<9x16x64xbf16, #tpu.memory_space<vmem>>, vector<1x16x64xbf16>
    %31 = vector.shape_cast %30 : vector<1x16x64xbf16> to vector<16x64xbf16>
    %cst_30 = arith.constant dense<0.000000e+00> : vector<16x128xf32>
    %32 = tpu.matmul %31, %9, %cst_30 {dimension_numbers = #tpu.dot_dimension_numbers<[1], [0], [0], [1], [0, 0, 1, 1], [], []>} : vector<16x64xbf16>, vector<64x128xbf16>, vector<16x128xf32> -> vector<16x128xf32>
    %c7 = arith.constant 7 : index
    %c0_31 = arith.constant 0 : index
    %c0_32 = arith.constant 0 : index
    %33 = vector.load %arg6[%c7, %c0_31, %c0_32] : memref<9x16x64xbf16, #tpu.memory_space<vmem>>, vector<1x16x64xbf16>
    %34 = vector.shape_cast %33 : vector<1x16x64xbf16> to vector<16x64xbf16>
    %cst_33 = arith.constant dense<0.000000e+00> : vector<16x128xf32>
    %35 = tpu.matmul %34, %9, %cst_33 {dimension_numbers = #tpu.dot_dimension_numbers<[1], [0], [0], [1], [0, 0, 1, 1], [], []>} : vector<16x64xbf16>, vector<64x128xbf16>, vector<16x128xf32> -> vector<16x128xf32>
    %c8 = arith.constant 8 : index
    %c0_34 = arith.constant 0 : index
    %c0_35 = arith.constant 0 : index
    %36 = vector.load %arg6[%c8, %c0_34, %c0_35] : memref<9x16x64xbf16, #tpu.memory_space<vmem>>, vector<1x16x64xbf16>
    %37 = vector.shape_cast %36 : vector<1x16x64xbf16> to vector<16x64xbf16>
    %cst_36 = arith.constant dense<0.000000e+00> : vector<16x128xf32>
    %38 = tpu.matmul %37, %9, %cst_36 {dimension_numbers = #tpu.dot_dimension_numbers<[1], [0], [0], [1], [0, 0, 1, 1], [], []>} : vector<16x64xbf16>, vector<64x128xbf16>, vector<16x128xf32> -> vector<16x128xf32>
    %39 = tpu.concatenate %14, %17, %20, %23, %26, %29, %32, %35, %38 in 1 : vector<16x128xf32>, vector<16x128xf32>, vector<16x128xf32>, vector<16x128xf32>, vector<16x128xf32>, vector<16x128xf32>, vector<16x128xf32>, vector<16x128xf32>, vector<16x128xf32> -> vector<16x1152xf32>
    %40 = arith.truncf %39 : vector<16x1152xf32> to vector<16x1152xbf16>
    %cst_37 = arith.constant dense<0.000000e+00> : vector<16x128xf32>
    %41 = tpu.matmul %40, %11, %cst_37 {dimension_numbers = #tpu.dot_dimension_numbers<[1], [0], [0], [1], [0, 0, 1, 1], [], []>} : vector<16x1152xbf16>, vector<1152x128xbf16>, vector<16x128xf32> -> vector<16x128xf32>
    %42 = vector.extract_strided_slice %0 {offsets = [1, 0], sizes = [1, 128], strides = [1, 1]} : vector<8x128xf32> to vector<1x128xf32>
    %43 = vector.broadcast %42 : vector<1x128xf32> to vector<16x128xf32>
    %44 = arith.addf %41, %43 : vector<16x128xf32>
    %cst_38 = arith.constant 0.000000e+00 : f32
    %45 = vector.broadcast %cst_38 : f32 to vector<16x128xf32>
    %46 = arith.maximumf %44, %45 : vector<16x128xf32>
    %47 = arith.truncf %46 : vector<16x128xf32> to vector<16x128xbf16>
    %c1_39 = arith.constant 1 : index
    %c0_40 = arith.constant 0 : index
    %c0_41 = arith.constant 0 : index
    %48 = vector.load %arg4[%c1_39, %c0_40, %c0_41] : memref<3x1152x128xbf16, #tpu.memory_space<vmem>>, vector<1x1152x128xbf16>
    %49 = vector.shape_cast %48 : vector<1x1152x128xbf16> to vector<1152x128xbf16>
    %c0_42 = arith.constant 0 : index
    %c0_43 = arith.constant 0 : index
    %c0_44 = arith.constant 0 : index
    %50 = vector.load %arg7[%c0_42, %c0_43, %c0_44] : memref<9x8x16xbf16, #tpu.memory_space<vmem>>, vector<1x8x16xbf16>
    %51 = vector.shape_cast %50 : vector<1x8x16xbf16> to vector<8x16xbf16>
    %cst_45 = arith.constant dense<0.000000e+00> : vector<8x128xf32>
    %52 = tpu.matmul %51, %47, %cst_45 {dimension_numbers = #tpu.dot_dimension_numbers<[1], [0], [0], [1], [0, 0, 1, 1], [], []>} : vector<8x16xbf16>, vector<16x128xbf16>, vector<8x128xf32> -> vector<8x128xf32>
    %c1_46 = arith.constant 1 : index
    %c0_47 = arith.constant 0 : index
    %c0_48 = arith.constant 0 : index
    %53 = vector.load %arg7[%c1_46, %c0_47, %c0_48] : memref<9x8x16xbf16, #tpu.memory_space<vmem>>, vector<1x8x16xbf16>
    %54 = vector.shape_cast %53 : vector<1x8x16xbf16> to vector<8x16xbf16>
    %cst_49 = arith.constant dense<0.000000e+00> : vector<8x128xf32>
    %55 = tpu.matmul %54, %47, %cst_49 {dimension_numbers = #tpu.dot_dimension_numbers<[1], [0], [0], [1], [0, 0, 1, 1], [], []>} : vector<8x16xbf16>, vector<16x128xbf16>, vector<8x128xf32> -> vector<8x128xf32>
    %c2_50 = arith.constant 2 : index
    %c0_51 = arith.constant 0 : index
    %c0_52 = arith.constant 0 : index
    %56 = vector.load %arg7[%c2_50, %c0_51, %c0_52] : memref<9x8x16xbf16, #tpu.memory_space<vmem>>, vector<1x8x16xbf16>
    %57 = vector.shape_cast %56 : vector<1x8x16xbf16> to vector<8x16xbf16>
    %cst_53 = arith.constant dense<0.000000e+00> : vector<8x128xf32>
    %58 = tpu.matmul %57, %47, %cst_53 {dimension_numbers = #tpu.dot_dimension_numbers<[1], [0], [0], [1], [0, 0, 1, 1], [], []>} : vector<8x16xbf16>, vector<16x128xbf16>, vector<8x128xf32> -> vector<8x128xf32>
    %c3_54 = arith.constant 3 : index
    %c0_55 = arith.constant 0 : index
    %c0_56 = arith.constant 0 : index
    %59 = vector.load %arg7[%c3_54, %c0_55, %c0_56] : memref<9x8x16xbf16, #tpu.memory_space<vmem>>, vector<1x8x16xbf16>
    %60 = vector.shape_cast %59 : vector<1x8x16xbf16> to vector<8x16xbf16>
    %cst_57 = arith.constant dense<0.000000e+00> : vector<8x128xf32>
    %61 = tpu.matmul %60, %47, %cst_57 {dimension_numbers = #tpu.dot_dimension_numbers<[1], [0], [0], [1], [0, 0, 1, 1], [], []>} : vector<8x16xbf16>, vector<16x128xbf16>, vector<8x128xf32> -> vector<8x128xf32>
    %c4_58 = arith.constant 4 : index
    %c0_59 = arith.constant 0 : index
    %c0_60 = arith.constant 0 : index
    %62 = vector.load %arg7[%c4_58, %c0_59, %c0_60] : memref<9x8x16xbf16, #tpu.memory_space<vmem>>, vector<1x8x16xbf16>
    %63 = vector.shape_cast %62 : vector<1x8x16xbf16> to vector<8x16xbf16>
    %cst_61 = arith.constant dense<0.000000e+00> : vector<8x128xf32>
    %64 = tpu.matmul %63, %47, %cst_61 {dimension_numbers = #tpu.dot_dimension_numbers<[1], [0], [0], [1], [0, 0, 1, 1], [], []>} : vector<8x16xbf16>, vector<16x128xbf16>, vector<8x128xf32> -> vector<8x128xf32>
    %c5_62 = arith.constant 5 : index
    %c0_63 = arith.constant 0 : index
    %c0_64 = arith.constant 0 : index
    %65 = vector.load %arg7[%c5_62, %c0_63, %c0_64] : memref<9x8x16xbf16, #tpu.memory_space<vmem>>, vector<1x8x16xbf16>
    %66 = vector.shape_cast %65 : vector<1x8x16xbf16> to vector<8x16xbf16>
    %cst_65 = arith.constant dense<0.000000e+00> : vector<8x128xf32>
    %67 = tpu.matmul %66, %47, %cst_65 {dimension_numbers = #tpu.dot_dimension_numbers<[1], [0], [0], [1], [0, 0, 1, 1], [], []>} : vector<8x16xbf16>, vector<16x128xbf16>, vector<8x128xf32> -> vector<8x128xf32>
    %c6_66 = arith.constant 6 : index
    %c0_67 = arith.constant 0 : index
    %c0_68 = arith.constant 0 : index
    %68 = vector.load %arg7[%c6_66, %c0_67, %c0_68] : memref<9x8x16xbf16, #tpu.memory_space<vmem>>, vector<1x8x16xbf16>
    %69 = vector.shape_cast %68 : vector<1x8x16xbf16> to vector<8x16xbf16>
    %cst_69 = arith.constant dense<0.000000e+00> : vector<8x128xf32>
    %70 = tpu.matmul %69, %47, %cst_69 {dimension_numbers = #tpu.dot_dimension_numbers<[1], [0], [0], [1], [0, 0, 1, 1], [], []>} : vector<8x16xbf16>, vector<16x128xbf16>, vector<8x128xf32> -> vector<8x128xf32>
    %c7_70 = arith.constant 7 : index
    %c0_71 = arith.constant 0 : index
    %c0_72 = arith.constant 0 : index
    %71 = vector.load %arg7[%c7_70, %c0_71, %c0_72] : memref<9x8x16xbf16, #tpu.memory_space<vmem>>, vector<1x8x16xbf16>
    %72 = vector.shape_cast %71 : vector<1x8x16xbf16> to vector<8x16xbf16>
    %cst_73 = arith.constant dense<0.000000e+00> : vector<8x128xf32>
    %73 = tpu.matmul %72, %47, %cst_73 {dimension_numbers = #tpu.dot_dimension_numbers<[1], [0], [0], [1], [0, 0, 1, 1], [], []>} : vector<8x16xbf16>, vector<16x128xbf16>, vector<8x128xf32> -> vector<8x128xf32>
    %c8_74 = arith.constant 8 : index
    %c0_75 = arith.constant 0 : index
    %c0_76 = arith.constant 0 : index
    %74 = vector.load %arg7[%c8_74, %c0_75, %c0_76] : memref<9x8x16xbf16, #tpu.memory_space<vmem>>, vector<1x8x16xbf16>
    %75 = vector.shape_cast %74 : vector<1x8x16xbf16> to vector<8x16xbf16>
    %cst_77 = arith.constant dense<0.000000e+00> : vector<8x128xf32>
    %76 = tpu.matmul %75, %47, %cst_77 {dimension_numbers = #tpu.dot_dimension_numbers<[1], [0], [0], [1], [0, 0, 1, 1], [], []>} : vector<8x16xbf16>, vector<16x128xbf16>, vector<8x128xf32> -> vector<8x128xf32>
    %77 = tpu.concatenate %52, %55, %58, %61, %64, %67, %70, %73, %76 in 1 : vector<8x128xf32>, vector<8x128xf32>, vector<8x128xf32>, vector<8x128xf32>, vector<8x128xf32>, vector<8x128xf32>, vector<8x128xf32>, vector<8x128xf32>, vector<8x128xf32> -> vector<8x1152xf32>
    %78 = arith.truncf %77 : vector<8x1152xf32> to vector<8x1152xbf16>
    %cst_78 = arith.constant dense<0.000000e+00> : vector<8x128xf32>
    %79 = tpu.matmul %78, %49, %cst_78 {dimension_numbers = #tpu.dot_dimension_numbers<[1], [0], [0], [1], [0, 0, 1, 1], [], []>} : vector<8x1152xbf16>, vector<1152x128xbf16>, vector<8x128xf32> -> vector<8x128xf32>
    %80 = vector.extract_strided_slice %0 {offsets = [2, 0], sizes = [1, 128], strides = [1, 1]} : vector<8x128xf32> to vector<1x128xf32>
    %81 = vector.broadcast %80 : vector<1x128xf32> to vector<8x128xf32>
    %82 = arith.addf %79, %81 : vector<8x128xf32>
    %cst_79 = arith.constant 0.000000e+00 : f32
    %83 = vector.broadcast %cst_79 : f32 to vector<8x128xf32>
    %84 = arith.maximumf %82, %83 : vector<8x128xf32>
    %85 = arith.truncf %84 : vector<8x128xf32> to vector<8x128xbf16>
    %c2_80 = arith.constant 2 : index
    %c0_81 = arith.constant 0 : index
    %c0_82 = arith.constant 0 : index
    %86 = vector.load %arg4[%c2_80, %c0_81, %c0_82] : memref<3x1152x128xbf16, #tpu.memory_space<vmem>>, vector<1x1152x128xbf16>
    %87 = vector.shape_cast %86 : vector<1x1152x128xbf16> to vector<1152x128xbf16>
    %c0_83 = arith.constant 0 : index
    %c0_84 = arith.constant 0 : index
    %c0_85 = arith.constant 0 : index
    %88 = vector.load %arg8[%c0_83, %c0_84, %c0_85] : memref<9x8x8xbf16, #tpu.memory_space<vmem>>, vector<1x8x8xbf16>
    %89 = vector.shape_cast %88 : vector<1x8x8xbf16> to vector<8x8xbf16>
    %cst_86 = arith.constant dense<0.000000e+00> : vector<8x128xf32>
    %90 = tpu.matmul %89, %85, %cst_86 {dimension_numbers = #tpu.dot_dimension_numbers<[1], [0], [0], [1], [0, 0, 1, 1], [], []>} : vector<8x8xbf16>, vector<8x128xbf16>, vector<8x128xf32> -> vector<8x128xf32>
    %c1_87 = arith.constant 1 : index
    %c0_88 = arith.constant 0 : index
    %c0_89 = arith.constant 0 : index
    %91 = vector.load %arg8[%c1_87, %c0_88, %c0_89] : memref<9x8x8xbf16, #tpu.memory_space<vmem>>, vector<1x8x8xbf16>
    %92 = vector.shape_cast %91 : vector<1x8x8xbf16> to vector<8x8xbf16>
    %cst_90 = arith.constant dense<0.000000e+00> : vector<8x128xf32>
    %93 = tpu.matmul %92, %85, %cst_90 {dimension_numbers = #tpu.dot_dimension_numbers<[1], [0], [0], [1], [0, 0, 1, 1], [], []>} : vector<8x8xbf16>, vector<8x128xbf16>, vector<8x128xf32> -> vector<8x128xf32>
    %c2_91 = arith.constant 2 : index
    %c0_92 = arith.constant 0 : index
    %c0_93 = arith.constant 0 : index
    %94 = vector.load %arg8[%c2_91, %c0_92, %c0_93] : memref<9x8x8xbf16, #tpu.memory_space<vmem>>, vector<1x8x8xbf16>
    %95 = vector.shape_cast %94 : vector<1x8x8xbf16> to vector<8x8xbf16>
    %cst_94 = arith.constant dense<0.000000e+00> : vector<8x128xf32>
    %96 = tpu.matmul %95, %85, %cst_94 {dimension_numbers = #tpu.dot_dimension_numbers<[1], [0], [0], [1], [0, 0, 1, 1], [], []>} : vector<8x8xbf16>, vector<8x128xbf16>, vector<8x128xf32> -> vector<8x128xf32>
    %c3_95 = arith.constant 3 : index
    %c0_96 = arith.constant 0 : index
    %c0_97 = arith.constant 0 : index
    %97 = vector.load %arg8[%c3_95, %c0_96, %c0_97] : memref<9x8x8xbf16, #tpu.memory_space<vmem>>, vector<1x8x8xbf16>
    %98 = vector.shape_cast %97 : vector<1x8x8xbf16> to vector<8x8xbf16>
    %cst_98 = arith.constant dense<0.000000e+00> : vector<8x128xf32>
    %99 = tpu.matmul %98, %85, %cst_98 {dimension_numbers = #tpu.dot_dimension_numbers<[1], [0], [0], [1], [0, 0, 1, 1], [], []>} : vector<8x8xbf16>, vector<8x128xbf16>, vector<8x128xf32> -> vector<8x128xf32>
    %c4_99 = arith.constant 4 : index
    %c0_100 = arith.constant 0 : index
    %c0_101 = arith.constant 0 : index
    %100 = vector.load %arg8[%c4_99, %c0_100, %c0_101] : memref<9x8x8xbf16, #tpu.memory_space<vmem>>, vector<1x8x8xbf16>
    %101 = vector.shape_cast %100 : vector<1x8x8xbf16> to vector<8x8xbf16>
    %cst_102 = arith.constant dense<0.000000e+00> : vector<8x128xf32>
    %102 = tpu.matmul %101, %85, %cst_102 {dimension_numbers = #tpu.dot_dimension_numbers<[1], [0], [0], [1], [0, 0, 1, 1], [], []>} : vector<8x8xbf16>, vector<8x128xbf16>, vector<8x128xf32> -> vector<8x128xf32>
    %c5_103 = arith.constant 5 : index
    %c0_104 = arith.constant 0 : index
    %c0_105 = arith.constant 0 : index
    %103 = vector.load %arg8[%c5_103, %c0_104, %c0_105] : memref<9x8x8xbf16, #tpu.memory_space<vmem>>, vector<1x8x8xbf16>
    %104 = vector.shape_cast %103 : vector<1x8x8xbf16> to vector<8x8xbf16>
    %cst_106 = arith.constant dense<0.000000e+00> : vector<8x128xf32>
    %105 = tpu.matmul %104, %85, %cst_106 {dimension_numbers = #tpu.dot_dimension_numbers<[1], [0], [0], [1], [0, 0, 1, 1], [], []>} : vector<8x8xbf16>, vector<8x128xbf16>, vector<8x128xf32> -> vector<8x128xf32>
    %c6_107 = arith.constant 6 : index
    %c0_108 = arith.constant 0 : index
    %c0_109 = arith.constant 0 : index
    %106 = vector.load %arg8[%c6_107, %c0_108, %c0_109] : memref<9x8x8xbf16, #tpu.memory_space<vmem>>, vector<1x8x8xbf16>
    %107 = vector.shape_cast %106 : vector<1x8x8xbf16> to vector<8x8xbf16>
    %cst_110 = arith.constant dense<0.000000e+00> : vector<8x128xf32>
    %108 = tpu.matmul %107, %85, %cst_110 {dimension_numbers = #tpu.dot_dimension_numbers<[1], [0], [0], [1], [0, 0, 1, 1], [], []>} : vector<8x8xbf16>, vector<8x128xbf16>, vector<8x128xf32> -> vector<8x128xf32>
    %c7_111 = arith.constant 7 : index
    %c0_112 = arith.constant 0 : index
    %c0_113 = arith.constant 0 : index
    %109 = vector.load %arg8[%c7_111, %c0_112, %c0_113] : memref<9x8x8xbf16, #tpu.memory_space<vmem>>, vector<1x8x8xbf16>
    %110 = vector.shape_cast %109 : vector<1x8x8xbf16> to vector<8x8xbf16>
    %cst_114 = arith.constant dense<0.000000e+00> : vector<8x128xf32>
    %111 = tpu.matmul %110, %85, %cst_114 {dimension_numbers = #tpu.dot_dimension_numbers<[1], [0], [0], [1], [0, 0, 1, 1], [], []>} : vector<8x8xbf16>, vector<8x128xbf16>, vector<8x128xf32> -> vector<8x128xf32>
    %c8_115 = arith.constant 8 : index
    %c0_116 = arith.constant 0 : index
    %c0_117 = arith.constant 0 : index
    %112 = vector.load %arg8[%c8_115, %c0_116, %c0_117] : memref<9x8x8xbf16, #tpu.memory_space<vmem>>, vector<1x8x8xbf16>
    %113 = vector.shape_cast %112 : vector<1x8x8xbf16> to vector<8x8xbf16>
    %cst_118 = arith.constant dense<0.000000e+00> : vector<8x128xf32>
    %114 = tpu.matmul %113, %85, %cst_118 {dimension_numbers = #tpu.dot_dimension_numbers<[1], [0], [0], [1], [0, 0, 1, 1], [], []>} : vector<8x8xbf16>, vector<8x128xbf16>, vector<8x128xf32> -> vector<8x128xf32>
    %115 = tpu.concatenate %90, %93, %96, %99, %102, %105, %108, %111, %114 in 1 : vector<8x128xf32>, vector<8x128xf32>, vector<8x128xf32>, vector<8x128xf32>, vector<8x128xf32>, vector<8x128xf32>, vector<8x128xf32>, vector<8x128xf32>, vector<8x128xf32> -> vector<8x1152xf32>
    %116 = arith.truncf %115 : vector<8x1152xf32> to vector<8x1152xbf16>
    %cst_119 = arith.constant dense<0.000000e+00> : vector<8x128xf32>
    %117 = tpu.matmul %116, %87, %cst_119 {dimension_numbers = #tpu.dot_dimension_numbers<[1], [0], [0], [1], [0, 0, 1, 1], [], []>} : vector<8x1152xbf16>, vector<1152x128xbf16>, vector<8x128xf32> -> vector<8x128xf32>
    %118 = vector.extract_strided_slice %0 {offsets = [3, 0], sizes = [1, 128], strides = [1, 1]} : vector<8x128xf32> to vector<1x128xf32>
    %119 = vector.broadcast %118 : vector<1x128xf32> to vector<8x128xf32>
    %120 = arith.addf %117, %119 : vector<8x128xf32>
    %cst_120 = arith.constant 0.000000e+00 : f32
    %121 = vector.broadcast %cst_120 : f32 to vector<8x128xf32>
    %122 = arith.maximumf %120, %121 : vector<8x128xf32>
    %123 = arith.truncf %122 : vector<8x128xf32> to vector<8x128xbf16>
    %c0_121 = arith.constant 0 : index
    %c0_122 = arith.constant 0 : index
    %c0_123 = arith.constant 0 : index
    %124 = vector.load %arg5[%c0_121, %c0_122, %c0_123] : memref<4x128x1152xbf16, #tpu.memory_space<vmem>>, vector<1x128x1152xbf16>
    %125 = vector.shape_cast %124 : vector<1x128x1152xbf16> to vector<128x1152xbf16>
    %cst_124 = arith.constant dense<0.000000e+00> : vector<8x1152xf32>
    %126 = tpu.matmul %123, %125, %cst_124 {dimension_numbers = #tpu.dot_dimension_numbers<[1], [0], [0], [1], [0, 0, 1, 1], [], []>} : vector<8x128xbf16>, vector<128x1152xbf16>, vector<8x1152xf32> -> vector<8x1152xf32>
    %127 = arith.truncf %126 : vector<8x1152xf32> to vector<8x1152xbf16>
    %c0_125 = arith.constant 0 : index
    %c0_126 = arith.constant 0 : index
    %c0_127 = arith.constant 0 : index
    %128 = vector.load %arg9[%c0_125, %c0_126, %c0_127] : memref<9x8x8xbf16, #tpu.memory_space<vmem>>, vector<1x8x8xbf16>
    %129 = vector.shape_cast %128 : vector<1x8x8xbf16> to vector<8x8xbf16>
    %130 = vector.extract_strided_slice %127 {offsets = [0, 0], sizes = [8, 128], strides = [1, 1]} : vector<8x1152xbf16> to vector<8x128xbf16>
    %cst_128 = arith.constant dense<0.000000e+00> : vector<8x128xf32>
    %131 = tpu.matmul %129, %130, %cst_128 {dimension_numbers = #tpu.dot_dimension_numbers<[1], [0], [0], [1], [0, 0, 1, 1], [], []>} : vector<8x8xbf16>, vector<8x128xbf16>, vector<8x128xf32> -> vector<8x128xf32>
    %c1_129 = arith.constant 1 : index
    %c0_130 = arith.constant 0 : index
    %c0_131 = arith.constant 0 : index
    %132 = vector.load %arg9[%c1_129, %c0_130, %c0_131] : memref<9x8x8xbf16, #tpu.memory_space<vmem>>, vector<1x8x8xbf16>
    %133 = vector.shape_cast %132 : vector<1x8x8xbf16> to vector<8x8xbf16>
    %134 = vector.extract_strided_slice %127 {offsets = [0, 128], sizes = [8, 128], strides = [1, 1]} : vector<8x1152xbf16> to vector<8x128xbf16>
    %cst_132 = arith.constant dense<0.000000e+00> : vector<8x128xf32>
    %135 = tpu.matmul %133, %134, %cst_132 {dimension_numbers = #tpu.dot_dimension_numbers<[1], [0], [0], [1], [0, 0, 1, 1], [], []>} : vector<8x8xbf16>, vector<8x128xbf16>, vector<8x128xf32> -> vector<8x128xf32>
    %136 = arith.addf %131, %135 : vector<8x128xf32>
    %c2_133 = arith.constant 2 : index
    %c0_134 = arith.constant 0 : index
    %c0_135 = arith.constant 0 : index
    %137 = vector.load %arg9[%c2_133, %c0_134, %c0_135] : memref<9x8x8xbf16, #tpu.memory_space<vmem>>, vector<1x8x8xbf16>
    %138 = vector.shape_cast %137 : vector<1x8x8xbf16> to vector<8x8xbf16>
    %139 = vector.extract_strided_slice %127 {offsets = [0, 256], sizes = [8, 128], strides = [1, 1]} : vector<8x1152xbf16> to vector<8x128xbf16>
    %cst_136 = arith.constant dense<0.000000e+00> : vector<8x128xf32>
    %140 = tpu.matmul %138, %139, %cst_136 {dimension_numbers = #tpu.dot_dimension_numbers<[1], [0], [0], [1], [0, 0, 1, 1], [], []>} : vector<8x8xbf16>, vector<8x128xbf16>, vector<8x128xf32> -> vector<8x128xf32>
    %141 = arith.addf %136, %140 : vector<8x128xf32>
    %c3_137 = arith.constant 3 : index
    %c0_138 = arith.constant 0 : index
    %c0_139 = arith.constant 0 : index
    %142 = vector.load %arg9[%c3_137, %c0_138, %c0_139] : memref<9x8x8xbf16, #tpu.memory_space<vmem>>, vector<1x8x8xbf16>
    %143 = vector.shape_cast %142 : vector<1x8x8xbf16> to vector<8x8xbf16>
    %144 = vector.extract_strided_slice %127 {offsets = [0, 384], sizes = [8, 128], strides = [1, 1]} : vector<8x1152xbf16> to vector<8x128xbf16>
    %cst_140 = arith.constant dense<0.000000e+00> : vector<8x128xf32>
    %145 = tpu.matmul %143, %144, %cst_140 {dimension_numbers = #tpu.dot_dimension_numbers<[1], [0], [0], [1], [0, 0, 1, 1], [], []>} : vector<8x8xbf16>, vector<8x128xbf16>, vector<8x128xf32> -> vector<8x128xf32>
    %146 = arith.addf %141, %145 : vector<8x128xf32>
    %c4_141 = arith.constant 4 : index
    %c0_142 = arith.constant 0 : index
    %c0_143 = arith.constant 0 : index
    %147 = vector.load %arg9[%c4_141, %c0_142, %c0_143] : memref<9x8x8xbf16, #tpu.memory_space<vmem>>, vector<1x8x8xbf16>
    %148 = vector.shape_cast %147 : vector<1x8x8xbf16> to vector<8x8xbf16>
    %149 = vector.extract_strided_slice %127 {offsets = [0, 512], sizes = [8, 128], strides = [1, 1]} : vector<8x1152xbf16> to vector<8x128xbf16>
    %cst_144 = arith.constant dense<0.000000e+00> : vector<8x128xf32>
    %150 = tpu.matmul %148, %149, %cst_144 {dimension_numbers = #tpu.dot_dimension_numbers<[1], [0], [0], [1], [0, 0, 1, 1], [], []>} : vector<8x8xbf16>, vector<8x128xbf16>, vector<8x128xf32> -> vector<8x128xf32>
    %151 = arith.addf %146, %150 : vector<8x128xf32>
    %c5_145 = arith.constant 5 : index
    %c0_146 = arith.constant 0 : index
    %c0_147 = arith.constant 0 : index
    %152 = vector.load %arg9[%c5_145, %c0_146, %c0_147] : memref<9x8x8xbf16, #tpu.memory_space<vmem>>, vector<1x8x8xbf16>
    %153 = vector.shape_cast %152 : vector<1x8x8xbf16> to vector<8x8xbf16>
    %154 = vector.extract_strided_slice %127 {offsets = [0, 640], sizes = [8, 128], strides = [1, 1]} : vector<8x1152xbf16> to vector<8x128xbf16>
    %cst_148 = arith.constant dense<0.000000e+00> : vector<8x128xf32>
    %155 = tpu.matmul %153, %154, %cst_148 {dimension_numbers = #tpu.dot_dimension_numbers<[1], [0], [0], [1], [0, 0, 1, 1], [], []>} : vector<8x8xbf16>, vector<8x128xbf16>, vector<8x128xf32> -> vector<8x128xf32>
    %156 = arith.addf %151, %155 : vector<8x128xf32>
    %c6_149 = arith.constant 6 : index
    %c0_150 = arith.constant 0 : index
    %c0_151 = arith.constant 0 : index
    %157 = vector.load %arg9[%c6_149, %c0_150, %c0_151] : memref<9x8x8xbf16, #tpu.memory_space<vmem>>, vector<1x8x8xbf16>
    %158 = vector.shape_cast %157 : vector<1x8x8xbf16> to vector<8x8xbf16>
    %159 = vector.extract_strided_slice %127 {offsets = [0, 768], sizes = [8, 128], strides = [1, 1]} : vector<8x1152xbf16> to vector<8x128xbf16>
    %cst_152 = arith.constant dense<0.000000e+00> : vector<8x128xf32>
    %160 = tpu.matmul %158, %159, %cst_152 {dimension_numbers = #tpu.dot_dimension_numbers<[1], [0], [0], [1], [0, 0, 1, 1], [], []>} : vector<8x8xbf16>, vector<8x128xbf16>, vector<8x128xf32> -> vector<8x128xf32>
    %161 = arith.addf %156, %160 : vector<8x128xf32>
    %c7_153 = arith.constant 7 : index
    %c0_154 = arith.constant 0 : index
    %c0_155 = arith.constant 0 : index
    %162 = vector.load %arg9[%c7_153, %c0_154, %c0_155] : memref<9x8x8xbf16, #tpu.memory_space<vmem>>, vector<1x8x8xbf16>
    %163 = vector.shape_cast %162 : vector<1x8x8xbf16> to vector<8x8xbf16>
    %164 = vector.extract_strided_slice %127 {offsets = [0, 896], sizes = [8, 128], strides = [1, 1]} : vector<8x1152xbf16> to vector<8x128xbf16>
    %cst_156 = arith.constant dense<0.000000e+00> : vector<8x128xf32>
    %165 = tpu.matmul %163, %164, %cst_156 {dimension_numbers = #tpu.dot_dimension_numbers<[1], [0], [0], [1], [0, 0, 1, 1], [], []>} : vector<8x8xbf16>, vector<8x128xbf16>, vector<8x128xf32> -> vector<8x128xf32>
    %166 = arith.addf %161, %165 : vector<8x128xf32>
    %c8_157 = arith.constant 8 : index
    %c0_158 = arith.constant 0 : index
    %c0_159 = arith.constant 0 : index
    %167 = vector.load %arg9[%c8_157, %c0_158, %c0_159] : memref<9x8x8xbf16, #tpu.memory_space<vmem>>, vector<1x8x8xbf16>
    %168 = vector.shape_cast %167 : vector<1x8x8xbf16> to vector<8x8xbf16>
    %169 = vector.extract_strided_slice %127 {offsets = [0, 1024], sizes = [8, 128], strides = [1, 1]} : vector<8x1152xbf16> to vector<8x128xbf16>
    %cst_160 = arith.constant dense<0.000000e+00> : vector<8x128xf32>
    %170 = tpu.matmul %168, %169, %cst_160 {dimension_numbers = #tpu.dot_dimension_numbers<[1], [0], [0], [1], [0, 0, 1, 1], [], []>} : vector<8x8xbf16>, vector<8x128xbf16>, vector<8x128xf32> -> vector<8x128xf32>
    %171 = arith.addf %166, %170 : vector<8x128xf32>
    %172 = vector.extract_strided_slice %0 {offsets = [4, 0], sizes = [1, 128], strides = [1, 1]} : vector<8x128xf32> to vector<1x128xf32>
    %173 = vector.broadcast %172 : vector<1x128xf32> to vector<8x128xf32>
    %174 = arith.addf %171, %173 : vector<8x128xf32>
    %cst_161 = arith.constant 0.000000e+00 : f32
    %175 = vector.broadcast %cst_161 : f32 to vector<8x128xf32>
    %176 = arith.maximumf %174, %175 : vector<8x128xf32>
    %177 = arith.truncf %176 : vector<8x128xf32> to vector<8x128xbf16>
    %c1_162 = arith.constant 1 : index
    %c0_163 = arith.constant 0 : index
    %c0_164 = arith.constant 0 : index
    %178 = vector.load %arg5[%c1_162, %c0_163, %c0_164] : memref<4x128x1152xbf16, #tpu.memory_space<vmem>>, vector<1x128x1152xbf16>
    %179 = vector.shape_cast %178 : vector<1x128x1152xbf16> to vector<128x1152xbf16>
    %cst_165 = arith.constant dense<0.000000e+00> : vector<8x1152xf32>
    %180 = tpu.matmul %177, %179, %cst_165 {dimension_numbers = #tpu.dot_dimension_numbers<[1], [0], [0], [1], [0, 0, 1, 1], [], []>} : vector<8x128xbf16>, vector<128x1152xbf16>, vector<8x1152xf32> -> vector<8x1152xf32>
    %181 = arith.truncf %180 : vector<8x1152xf32> to vector<8x1152xbf16>
    %c0_166 = arith.constant 0 : index
    %c0_167 = arith.constant 0 : index
    %c0_168 = arith.constant 0 : index
    %182 = vector.load %arg10[%c0_166, %c0_167, %c0_168] : memref<9x16x8xbf16, #tpu.memory_space<vmem>>, vector<1x16x8xbf16>
    %183 = vector.shape_cast %182 : vector<1x16x8xbf16> to vector<16x8xbf16>
    %184 = vector.extract_strided_slice %181 {offsets = [0, 0], sizes = [8, 128], strides = [1, 1]} : vector<8x1152xbf16> to vector<8x128xbf16>
    %cst_169 = arith.constant dense<0.000000e+00> : vector<16x128xf32>
    %185 = tpu.matmul %183, %184, %cst_169 {dimension_numbers = #tpu.dot_dimension_numbers<[1], [0], [0], [1], [0, 0, 1, 1], [], []>} : vector<16x8xbf16>, vector<8x128xbf16>, vector<16x128xf32> -> vector<16x128xf32>
    %c1_170 = arith.constant 1 : index
    %c0_171 = arith.constant 0 : index
    %c0_172 = arith.constant 0 : index
    %186 = vector.load %arg10[%c1_170, %c0_171, %c0_172] : memref<9x16x8xbf16, #tpu.memory_space<vmem>>, vector<1x16x8xbf16>
    %187 = vector.shape_cast %186 : vector<1x16x8xbf16> to vector<16x8xbf16>
    %188 = vector.extract_strided_slice %181 {offsets = [0, 128], sizes = [8, 128], strides = [1, 1]} : vector<8x1152xbf16> to vector<8x128xbf16>
    %cst_173 = arith.constant dense<0.000000e+00> : vector<16x128xf32>
    %189 = tpu.matmul %187, %188, %cst_173 {dimension_numbers = #tpu.dot_dimension_numbers<[1], [0], [0], [1], [0, 0, 1, 1], [], []>} : vector<16x8xbf16>, vector<8x128xbf16>, vector<16x128xf32> -> vector<16x128xf32>
    %190 = arith.addf %185, %189 : vector<16x128xf32>
    %c2_174 = arith.constant 2 : index
    %c0_175 = arith.constant 0 : index
    %c0_176 = arith.constant 0 : index
    %191 = vector.load %arg10[%c2_174, %c0_175, %c0_176] : memref<9x16x8xbf16, #tpu.memory_space<vmem>>, vector<1x16x8xbf16>
    %192 = vector.shape_cast %191 : vector<1x16x8xbf16> to vector<16x8xbf16>
    %193 = vector.extract_strided_slice %181 {offsets = [0, 256], sizes = [8, 128], strides = [1, 1]} : vector<8x1152xbf16> to vector<8x128xbf16>
    %cst_177 = arith.constant dense<0.000000e+00> : vector<16x128xf32>
    %194 = tpu.matmul %192, %193, %cst_177 {dimension_numbers = #tpu.dot_dimension_numbers<[1], [0], [0], [1], [0, 0, 1, 1], [], []>} : vector<16x8xbf16>, vector<8x128xbf16>, vector<16x128xf32> -> vector<16x128xf32>
    %195 = arith.addf %190, %194 : vector<16x128xf32>
    %c3_178 = arith.constant 3 : index
    %c0_179 = arith.constant 0 : index
    %c0_180 = arith.constant 0 : index
    %196 = vector.load %arg10[%c3_178, %c0_179, %c0_180] : memref<9x16x8xbf16, #tpu.memory_space<vmem>>, vector<1x16x8xbf16>
    %197 = vector.shape_cast %196 : vector<1x16x8xbf16> to vector<16x8xbf16>
    %198 = vector.extract_strided_slice %181 {offsets = [0, 384], sizes = [8, 128], strides = [1, 1]} : vector<8x1152xbf16> to vector<8x128xbf16>
    %cst_181 = arith.constant dense<0.000000e+00> : vector<16x128xf32>
    %199 = tpu.matmul %197, %198, %cst_181 {dimension_numbers = #tpu.dot_dimension_numbers<[1], [0], [0], [1], [0, 0, 1, 1], [], []>} : vector<16x8xbf16>, vector<8x128xbf16>, vector<16x128xf32> -> vector<16x128xf32>
    %200 = arith.addf %195, %199 : vector<16x128xf32>
    %c4_182 = arith.constant 4 : index
    %c0_183 = arith.constant 0 : index
    %c0_184 = arith.constant 0 : index
    %201 = vector.load %arg10[%c4_182, %c0_183, %c0_184] : memref<9x16x8xbf16, #tpu.memory_space<vmem>>, vector<1x16x8xbf16>
    %202 = vector.shape_cast %201 : vector<1x16x8xbf16> to vector<16x8xbf16>
    %203 = vector.extract_strided_slice %181 {offsets = [0, 512], sizes = [8, 128], strides = [1, 1]} : vector<8x1152xbf16> to vector<8x128xbf16>
    %cst_185 = arith.constant dense<0.000000e+00> : vector<16x128xf32>
    %204 = tpu.matmul %202, %203, %cst_185 {dimension_numbers = #tpu.dot_dimension_numbers<[1], [0], [0], [1], [0, 0, 1, 1], [], []>} : vector<16x8xbf16>, vector<8x128xbf16>, vector<16x128xf32> -> vector<16x128xf32>
    %205 = arith.addf %200, %204 : vector<16x128xf32>
    %c5_186 = arith.constant 5 : index
    %c0_187 = arith.constant 0 : index
    %c0_188 = arith.constant 0 : index
    %206 = vector.load %arg10[%c5_186, %c0_187, %c0_188] : memref<9x16x8xbf16, #tpu.memory_space<vmem>>, vector<1x16x8xbf16>
    %207 = vector.shape_cast %206 : vector<1x16x8xbf16> to vector<16x8xbf16>
    %208 = vector.extract_strided_slice %181 {offsets = [0, 640], sizes = [8, 128], strides = [1, 1]} : vector<8x1152xbf16> to vector<8x128xbf16>
    %cst_189 = arith.constant dense<0.000000e+00> : vector<16x128xf32>
    %209 = tpu.matmul %207, %208, %cst_189 {dimension_numbers = #tpu.dot_dimension_numbers<[1], [0], [0], [1], [0, 0, 1, 1], [], []>} : vector<16x8xbf16>, vector<8x128xbf16>, vector<16x128xf32> -> vector<16x128xf32>
    %210 = arith.addf %205, %209 : vector<16x128xf32>
    %c6_190 = arith.constant 6 : index
    %c0_191 = arith.constant 0 : index
    %c0_192 = arith.constant 0 : index
    %211 = vector.load %arg10[%c6_190, %c0_191, %c0_192] : memref<9x16x8xbf16, #tpu.memory_space<vmem>>, vector<1x16x8xbf16>
    %212 = vector.shape_cast %211 : vector<1x16x8xbf16> to vector<16x8xbf16>
    %213 = vector.extract_strided_slice %181 {offsets = [0, 768], sizes = [8, 128], strides = [1, 1]} : vector<8x1152xbf16> to vector<8x128xbf16>
    %cst_193 = arith.constant dense<0.000000e+00> : vector<16x128xf32>
    %214 = tpu.matmul %212, %213, %cst_193 {dimension_numbers = #tpu.dot_dimension_numbers<[1], [0], [0], [1], [0, 0, 1, 1], [], []>} : vector<16x8xbf16>, vector<8x128xbf16>, vector<16x128xf32> -> vector<16x128xf32>
    %215 = arith.addf %210, %214 : vector<16x128xf32>
    %c7_194 = arith.constant 7 : index
    %c0_195 = arith.constant 0 : index
    %c0_196 = arith.constant 0 : index
    %216 = vector.load %arg10[%c7_194, %c0_195, %c0_196] : memref<9x16x8xbf16, #tpu.memory_space<vmem>>, vector<1x16x8xbf16>
    %217 = vector.shape_cast %216 : vector<1x16x8xbf16> to vector<16x8xbf16>
    %218 = vector.extract_strided_slice %181 {offsets = [0, 896], sizes = [8, 128], strides = [1, 1]} : vector<8x1152xbf16> to vector<8x128xbf16>
    %cst_197 = arith.constant dense<0.000000e+00> : vector<16x128xf32>
    %219 = tpu.matmul %217, %218, %cst_197 {dimension_numbers = #tpu.dot_dimension_numbers<[1], [0], [0], [1], [0, 0, 1, 1], [], []>} : vector<16x8xbf16>, vector<8x128xbf16>, vector<16x128xf32> -> vector<16x128xf32>
    %220 = arith.addf %215, %219 : vector<16x128xf32>
    %c8_198 = arith.constant 8 : index
    %c0_199 = arith.constant 0 : index
    %c0_200 = arith.constant 0 : index
    %221 = vector.load %arg10[%c8_198, %c0_199, %c0_200] : memref<9x16x8xbf16, #tpu.memory_space<vmem>>, vector<1x16x8xbf16>
    %222 = vector.shape_cast %221 : vector<1x16x8xbf16> to vector<16x8xbf16>
    %223 = vector.extract_strided_slice %181 {offsets = [0, 1024], sizes = [8, 128], strides = [1, 1]} : vector<8x1152xbf16> to vector<8x128xbf16>
    %cst_201 = arith.constant dense<0.000000e+00> : vector<16x128xf32>
    %224 = tpu.matmul %222, %223, %cst_201 {dimension_numbers = #tpu.dot_dimension_numbers<[1], [0], [0], [1], [0, 0, 1, 1], [], []>} : vector<16x8xbf16>, vector<8x128xbf16>, vector<16x128xf32> -> vector<16x128xf32>
    %225 = arith.addf %220, %224 : vector<16x128xf32>
    %226 = vector.extract_strided_slice %0 {offsets = [5, 0], sizes = [1, 128], strides = [1, 1]} : vector<8x128xf32> to vector<1x128xf32>
    %227 = vector.broadcast %226 : vector<1x128xf32> to vector<16x128xf32>
    %228 = arith.addf %225, %227 : vector<16x128xf32>
    %cst_202 = arith.constant 0.000000e+00 : f32
    %229 = vector.broadcast %cst_202 : f32 to vector<16x128xf32>
    %230 = arith.maximumf %228, %229 : vector<16x128xf32>
    %231 = arith.truncf %230 : vector<16x128xf32> to vector<16x128xbf16>
    %c2_203 = arith.constant 2 : index
    %c0_204 = arith.constant 0 : index
    %c0_205 = arith.constant 0 : index
    %232 = vector.load %arg5[%c2_203, %c0_204, %c0_205] : memref<4x128x1152xbf16, #tpu.memory_space<vmem>>, vector<1x128x1152xbf16>
    %233 = vector.shape_cast %232 : vector<1x128x1152xbf16> to vector<128x1152xbf16>
    %cst_206 = arith.constant dense<0.000000e+00> : vector<16x1152xf32>
    %234 = tpu.matmul %231, %233, %cst_206 {dimension_numbers = #tpu.dot_dimension_numbers<[1], [0], [0], [1], [0, 0, 1, 1], [], []>} : vector<16x128xbf16>, vector<128x1152xbf16>, vector<16x1152xf32> -> vector<16x1152xf32>
    %235 = arith.truncf %234 : vector<16x1152xf32> to vector<16x1152xbf16>
    %c0_207 = arith.constant 0 : index
    %c0_208 = arith.constant 0 : index
    %c0_209 = arith.constant 0 : index
    %236 = vector.load %arg11[%c0_207, %c0_208, %c0_209] : memref<9x64x16xbf16, #tpu.memory_space<vmem>>, vector<1x64x16xbf16>
    %237 = vector.shape_cast %236 : vector<1x64x16xbf16> to vector<64x16xbf16>
    %238 = vector.extract_strided_slice %235 {offsets = [0, 0], sizes = [16, 128], strides = [1, 1]} : vector<16x1152xbf16> to vector<16x128xbf16>
    %cst_210 = arith.constant dense<0.000000e+00> : vector<64x128xf32>
    %239 = tpu.matmul %237, %238, %cst_210 {dimension_numbers = #tpu.dot_dimension_numbers<[1], [0], [0], [1], [0, 0, 1, 1], [], []>} : vector<64x16xbf16>, vector<16x128xbf16>, vector<64x128xf32> -> vector<64x128xf32>
    %c1_211 = arith.constant 1 : index
    %c0_212 = arith.constant 0 : index
    %c0_213 = arith.constant 0 : index
    %240 = vector.load %arg11[%c1_211, %c0_212, %c0_213] : memref<9x64x16xbf16, #tpu.memory_space<vmem>>, vector<1x64x16xbf16>
    %241 = vector.shape_cast %240 : vector<1x64x16xbf16> to vector<64x16xbf16>
    %242 = vector.extract_strided_slice %235 {offsets = [0, 128], sizes = [16, 128], strides = [1, 1]} : vector<16x1152xbf16> to vector<16x128xbf16>
    %cst_214 = arith.constant dense<0.000000e+00> : vector<64x128xf32>
    %243 = tpu.matmul %241, %242, %cst_214 {dimension_numbers = #tpu.dot_dimension_numbers<[1], [0], [0], [1], [0, 0, 1, 1], [], []>} : vector<64x16xbf16>, vector<16x128xbf16>, vector<64x128xf32> -> vector<64x128xf32>
    %244 = arith.addf %239, %243 : vector<64x128xf32>
    %c2_215 = arith.constant 2 : index
    %c0_216 = arith.constant 0 : index
    %c0_217 = arith.constant 0 : index
    %245 = vector.load %arg11[%c2_215, %c0_216, %c0_217] : memref<9x64x16xbf16, #tpu.memory_space<vmem>>, vector<1x64x16xbf16>
    %246 = vector.shape_cast %245 : vector<1x64x16xbf16> to vector<64x16xbf16>
    %247 = vector.extract_strided_slice %235 {offsets = [0, 256], sizes = [16, 128], strides = [1, 1]} : vector<16x1152xbf16> to vector<16x128xbf16>
    %cst_218 = arith.constant dense<0.000000e+00> : vector<64x128xf32>
    %248 = tpu.matmul %246, %247, %cst_218 {dimension_numbers = #tpu.dot_dimension_numbers<[1], [0], [0], [1], [0, 0, 1, 1], [], []>} : vector<64x16xbf16>, vector<16x128xbf16>, vector<64x128xf32> -> vector<64x128xf32>
    %249 = arith.addf %244, %248 : vector<64x128xf32>
    %c3_219 = arith.constant 3 : index
    %c0_220 = arith.constant 0 : index
    %c0_221 = arith.constant 0 : index
    %250 = vector.load %arg11[%c3_219, %c0_220, %c0_221] : memref<9x64x16xbf16, #tpu.memory_space<vmem>>, vector<1x64x16xbf16>
    %251 = vector.shape_cast %250 : vector<1x64x16xbf16> to vector<64x16xbf16>
    %252 = vector.extract_strided_slice %235 {offsets = [0, 384], sizes = [16, 128], strides = [1, 1]} : vector<16x1152xbf16> to vector<16x128xbf16>
    %cst_222 = arith.constant dense<0.000000e+00> : vector<64x128xf32>
    %253 = tpu.matmul %251, %252, %cst_222 {dimension_numbers = #tpu.dot_dimension_numbers<[1], [0], [0], [1], [0, 0, 1, 1], [], []>} : vector<64x16xbf16>, vector<16x128xbf16>, vector<64x128xf32> -> vector<64x128xf32>
    %254 = arith.addf %249, %253 : vector<64x128xf32>
    %c4_223 = arith.constant 4 : index
    %c0_224 = arith.constant 0 : index
    %c0_225 = arith.constant 0 : index
    %255 = vector.load %arg11[%c4_223, %c0_224, %c0_225] : memref<9x64x16xbf16, #tpu.memory_space<vmem>>, vector<1x64x16xbf16>
    %256 = vector.shape_cast %255 : vector<1x64x16xbf16> to vector<64x16xbf16>
    %257 = vector.extract_strided_slice %235 {offsets = [0, 512], sizes = [16, 128], strides = [1, 1]} : vector<16x1152xbf16> to vector<16x128xbf16>
    %cst_226 = arith.constant dense<0.000000e+00> : vector<64x128xf32>
    %258 = tpu.matmul %256, %257, %cst_226 {dimension_numbers = #tpu.dot_dimension_numbers<[1], [0], [0], [1], [0, 0, 1, 1], [], []>} : vector<64x16xbf16>, vector<16x128xbf16>, vector<64x128xf32> -> vector<64x128xf32>
    %259 = arith.addf %254, %258 : vector<64x128xf32>
    %c5_227 = arith.constant 5 : index
    %c0_228 = arith.constant 0 : index
    %c0_229 = arith.constant 0 : index
    %260 = vector.load %arg11[%c5_227, %c0_228, %c0_229] : memref<9x64x16xbf16, #tpu.memory_space<vmem>>, vector<1x64x16xbf16>
    %261 = vector.shape_cast %260 : vector<1x64x16xbf16> to vector<64x16xbf16>
    %262 = vector.extract_strided_slice %235 {offsets = [0, 640], sizes = [16, 128], strides = [1, 1]} : vector<16x1152xbf16> to vector<16x128xbf16>
    %cst_230 = arith.constant dense<0.000000e+00> : vector<64x128xf32>
    %263 = tpu.matmul %261, %262, %cst_230 {dimension_numbers = #tpu.dot_dimension_numbers<[1], [0], [0], [1], [0, 0, 1, 1], [], []>} : vector<64x16xbf16>, vector<16x128xbf16>, vector<64x128xf32> -> vector<64x128xf32>
    %264 = arith.addf %259, %263 : vector<64x128xf32>
    %c6_231 = arith.constant 6 : index
    %c0_232 = arith.constant 0 : index
    %c0_233 = arith.constant 0 : index
    %265 = vector.load %arg11[%c6_231, %c0_232, %c0_233] : memref<9x64x16xbf16, #tpu.memory_space<vmem>>, vector<1x64x16xbf16>
    %266 = vector.shape_cast %265 : vector<1x64x16xbf16> to vector<64x16xbf16>
    %267 = vector.extract_strided_slice %235 {offsets = [0, 768], sizes = [16, 128], strides = [1, 1]} : vector<16x1152xbf16> to vector<16x128xbf16>
    %cst_234 = arith.constant dense<0.000000e+00> : vector<64x128xf32>
    %268 = tpu.matmul %266, %267, %cst_234 {dimension_numbers = #tpu.dot_dimension_numbers<[1], [0], [0], [1], [0, 0, 1, 1], [], []>} : vector<64x16xbf16>, vector<16x128xbf16>, vector<64x128xf32> -> vector<64x128xf32>
    %269 = arith.addf %264, %268 : vector<64x128xf32>
    %c7_235 = arith.constant 7 : index
    %c0_236 = arith.constant 0 : index
    %c0_237 = arith.constant 0 : index
    %270 = vector.load %arg11[%c7_235, %c0_236, %c0_237] : memref<9x64x16xbf16, #tpu.memory_space<vmem>>, vector<1x64x16xbf16>
    %271 = vector.shape_cast %270 : vector<1x64x16xbf16> to vector<64x16xbf16>
    %272 = vector.extract_strided_slice %235 {offsets = [0, 896], sizes = [16, 128], strides = [1, 1]} : vector<16x1152xbf16> to vector<16x128xbf16>
    %cst_238 = arith.constant dense<0.000000e+00> : vector<64x128xf32>
    %273 = tpu.matmul %271, %272, %cst_238 {dimension_numbers = #tpu.dot_dimension_numbers<[1], [0], [0], [1], [0, 0, 1, 1], [], []>} : vector<64x16xbf16>, vector<16x128xbf16>, vector<64x128xf32> -> vector<64x128xf32>
    %274 = arith.addf %269, %273 : vector<64x128xf32>
    %c8_239 = arith.constant 8 : index
    %c0_240 = arith.constant 0 : index
    %c0_241 = arith.constant 0 : index
    %275 = vector.load %arg11[%c8_239, %c0_240, %c0_241] : memref<9x64x16xbf16, #tpu.memory_space<vmem>>, vector<1x64x16xbf16>
    %276 = vector.shape_cast %275 : vector<1x64x16xbf16> to vector<64x16xbf16>
    %277 = vector.extract_strided_slice %235 {offsets = [0, 1024], sizes = [16, 128], strides = [1, 1]} : vector<16x1152xbf16> to vector<16x128xbf16>
    %cst_242 = arith.constant dense<0.000000e+00> : vector<64x128xf32>
    %278 = tpu.matmul %276, %277, %cst_242 {dimension_numbers = #tpu.dot_dimension_numbers<[1], [0], [0], [1], [0, 0, 1, 1], [], []>} : vector<64x16xbf16>, vector<16x128xbf16>, vector<64x128xf32> -> vector<64x128xf32>
    %279 = arith.addf %274, %278 : vector<64x128xf32>
    %280 = vector.extract_strided_slice %0 {offsets = [6, 0], sizes = [1, 128], strides = [1, 1]} : vector<8x128xf32> to vector<1x128xf32>
    %281 = vector.broadcast %280 : vector<1x128xf32> to vector<64x128xf32>
    %282 = arith.addf %279, %281 : vector<64x128xf32>
    %cst_243 = arith.constant 0.000000e+00 : f32
    %283 = vector.broadcast %cst_243 : f32 to vector<64x128xf32>
    %284 = arith.maximumf %282, %283 : vector<64x128xf32>
    %285 = arith.truncf %284 : vector<64x128xf32> to vector<64x128xbf16>
    %286 = vector.extract_strided_slice %0 {offsets = [7, 0], sizes = [1, 128], strides = [1, 1]} : vector<8x128xf32> to vector<1x128xf32>
    %c3_244 = arith.constant 3 : index
    %c0_245 = arith.constant 0 : index
    %c0_246 = arith.constant 0 : index
    %287 = vector.load %arg5[%c3_244, %c0_245, %c0_246] : memref<4x128x1152xbf16, #tpu.memory_space<vmem>>, vector<1x128x1152xbf16>
    %288 = vector.shape_cast %287 : vector<1x128x1152xbf16> to vector<128x1152xbf16>
    %cst_247 = arith.constant dense<0.000000e+00> : vector<64x1152xf32>
    %289 = tpu.matmul %285, %288, %cst_247 {dimension_numbers = #tpu.dot_dimension_numbers<[1], [0], [0], [1], [0, 0, 1, 1], [], []>} : vector<64x128xbf16>, vector<128x1152xbf16>, vector<64x1152xf32> -> vector<64x1152xf32>
    %290 = tpu.iota {dimensions = array<i32: 0>} : vector<64x128xi32>
    %c8_i32 = arith.constant 8 : i32
    %c0_i32 = arith.constant 0 : i32
    %291 = arith.cmpi eq, %c8_i32, %c0_i32 : i32
    %c1_i32 = arith.constant 1 : i32
    %292 = arith.select %291, %c1_i32, %c8_i32 : i32
    %293 = vector.broadcast %292 : i32 to vector<64x128xi32>
    %294 = arith.remsi %290, %293 : vector<64x128xi32>
    %c0_i32_248 = arith.constant 0 : i32
    %295 = vector.broadcast %c0_i32_248 : i32 to vector<64x128xi32>
    %296 = arith.cmpi ne, %294, %295 : vector<64x128xi32>
    %c0_i32_249 = arith.constant 0 : i32
    %297 = vector.broadcast %c0_i32_249 : i32 to vector<64x128xi32>
    %298 = arith.cmpi slt, %294, %297 : vector<64x128xi32>
    %c0_i32_250 = arith.constant 0 : i32
    %299 = arith.cmpi slt, %292, %c0_i32_250 : i32
    %300 = vector.broadcast %299 : i1 to vector<64x128xi1>
    %301 = vector.broadcast %300 : vector<64x128xi1> to vector<64x128xi1>
    %302 = arith.xori %298, %301 : vector<64x128xi1>
    %303 = arith.andi %302, %296 : vector<64x128xi1>
    %304 = vector.broadcast %292 : i32 to vector<64x128xi32>
    %305 = arith.addi %294, %304 : vector<64x128xi32>
    %306 = arith.select %303, %305, %294 : vector<64x128xi1>, vector<64x128xi32>
    %c7_i32 = arith.constant 7 : i32
    %307 = vector.broadcast %c7_i32 : i32 to vector<64x128xi32>
    %308 = arith.cmpi eq, %306, %307 : vector<64x128xi32>
    %cst_251 = arith.constant 0.000000e+00 : f32
    %309 = vector.broadcast %cst_251 : f32 to vector<1x128xf32>
    %cst_252 = arith.constant 0.000000e+00 : f32
    %310 = vector.broadcast %cst_252 : f32 to vector<8x128xf32>
    %311 = vector.extract_strided_slice %289 {offsets = [0, 0], sizes = [64, 128], strides = [1, 1]} : vector<64x1152xf32> to vector<64x128xf32>
    %312 = vector.extract_strided_slice %289 {offsets = [0, 128], sizes = [64, 128], strides = [1, 1]} : vector<64x1152xf32> to vector<64x128xf32>
    %313 = vector.extract_strided_slice %289 {offsets = [0, 256], sizes = [64, 128], strides = [1, 1]} : vector<64x1152xf32> to vector<64x128xf32>
    %314 = vector.extract_strided_slice %289 {offsets = [0, 384], sizes = [64, 128], strides = [1, 1]} : vector<64x1152xf32> to vector<64x128xf32>
    %315 = vector.extract_strided_slice %289 {offsets = [0, 512], sizes = [64, 128], strides = [1, 1]} : vector<64x1152xf32> to vector<64x128xf32>
    %316 = vector.extract_strided_slice %289 {offsets = [0, 640], sizes = [64, 128], strides = [1, 1]} : vector<64x1152xf32> to vector<64x128xf32>
    %317 = vector.extract_strided_slice %289 {offsets = [0, 768], sizes = [64, 128], strides = [1, 1]} : vector<64x1152xf32> to vector<64x128xf32>
    %318 = vector.extract_strided_slice %289 {offsets = [0, 896], sizes = [64, 128], strides = [1, 1]} : vector<64x1152xf32> to vector<64x128xf32>
    %319 = vector.extract_strided_slice %289 {offsets = [0, 1024], sizes = [64, 128], strides = [1, 1]} : vector<64x1152xf32> to vector<64x128xf32>
    %320 = vector.extract_strided_slice %316 {offsets = [1, 0], sizes = [63, 128], strides = [1, 1]} : vector<64x128xf32> to vector<63x128xf32>
    %321 = tpu.concatenate %320, %309 in 0 : vector<63x128xf32>, vector<1x128xf32> -> vector<64x128xf32>
    %cst_253 = arith.constant 0.000000e+00 : f32
    %322 = vector.broadcast %cst_253 : f32 to vector<64x128xf32>
    %323 = arith.select %308, %322, %321 : vector<64x128xi1>, vector<64x128xf32>
    %324 = arith.addf %314, %323 : vector<64x128xf32>
    %325 = vector.extract_strided_slice %318 {offsets = [8, 0], sizes = [56, 128], strides = [1, 1]} : vector<64x128xf32> to vector<56x128xf32>
    %326 = tpu.concatenate %325, %310 in 0 : vector<56x128xf32>, vector<8x128xf32> -> vector<64x128xf32>
    %327 = arith.addf %312, %326 : vector<64x128xf32>
    %328 = vector.extract_strided_slice %313 {offsets = [1, 0], sizes = [63, 128], strides = [1, 1]} : vector<64x128xf32> to vector<63x128xf32>
    %329 = tpu.concatenate %328, %309 in 0 : vector<63x128xf32>, vector<1x128xf32> -> vector<64x128xf32>
    %cst_254 = arith.constant 0.000000e+00 : f32
    %330 = vector.broadcast %cst_254 : f32 to vector<64x128xf32>
    %331 = arith.select %308, %330, %329 : vector<64x128xi1>, vector<64x128xf32>
    %332 = arith.addf %311, %331 : vector<64x128xf32>
    %333 = vector.extract_strided_slice %317 {offsets = [8, 0], sizes = [56, 128], strides = [1, 1]} : vector<64x128xf32> to vector<56x128xf32>
    %334 = tpu.concatenate %333, %310 in 0 : vector<56x128xf32>, vector<8x128xf32> -> vector<64x128xf32>
    %335 = arith.addf %332, %334 : vector<64x128xf32>
    %336 = vector.extract_strided_slice %319 {offsets = [1, 0], sizes = [63, 128], strides = [1, 1]} : vector<64x128xf32> to vector<63x128xf32>
    %337 = tpu.concatenate %336, %309 in 0 : vector<63x128xf32>, vector<1x128xf32> -> vector<64x128xf32>
    %cst_255 = arith.constant 0.000000e+00 : f32
    %338 = vector.broadcast %cst_255 : f32 to vector<64x128xf32>
    %339 = arith.select %308, %338, %337 : vector<64x128xi1>, vector<64x128xf32>
    %340 = vector.extract_strided_slice %339 {offsets = [8, 0], sizes = [56, 128], strides = [1, 1]} : vector<64x128xf32> to vector<56x128xf32>
    %341 = tpu.concatenate %340, %310 in 0 : vector<56x128xf32>, vector<8x128xf32> -> vector<64x128xf32>
    %342 = arith.addf %335, %341 : vector<64x128xf32>
    %343 = vector.broadcast %286 : vector<1x128xf32> to vector<64x128xf32>
    %344 = arith.addf %315, %343 : vector<64x128xf32>
    %cst_256 = arith.constant 0.000000e+00 : f32
    %345 = vector.broadcast %cst_256 : f32 to vector<64x128xf32>
    %346 = arith.subf %345, %344 : vector<64x128xf32>
    %347 = math.exp %346 : vector<64x128xf32>
    %cst_257 = arith.constant 1.000000e+00 : f32
    %348 = vector.broadcast %cst_257 : f32 to vector<64x128xf32>
    %349 = arith.addf %348, %347 : vector<64x128xf32>
    %350 = tpu.reciprocal %349 : vector<64x128xf32> -> vector<64x128xf32>
    %351 = vector.extract_strided_slice %350 {offsets = [0, 0], sizes = [64, 8], strides = [1, 1]} : vector<64x128xf32> to vector<64x8xf32>
    %352 = arith.truncf %351 : vector<64x8xf32> to vector<64x8xbf16>
    %c0_258 = arith.constant 0 : index
    %c0_259 = arith.constant 0 : index
    %353 = vector.load %arg12[%c0_258, %c0_259] : memref<256x8xbf16, #tpu.memory_space<vmem>>, vector<64x8xbf16>
    tpu.vector_store %arg12[%c0_258, %c0_259], %352 {strides = array<i32>} : memref<256x8xbf16, #tpu.memory_space<vmem>>, vector<64x8xbf16>,
    %354 = vector.broadcast %286 : vector<1x128xf32> to vector<64x128xf32>
    %355 = arith.addf %324, %354 : vector<64x128xf32>
    %cst_260 = arith.constant 0.000000e+00 : f32
    %356 = vector.broadcast %cst_260 : f32 to vector<64x128xf32>
    %357 = arith.subf %356, %355 : vector<64x128xf32>
    %358 = math.exp %357 : vector<64x128xf32>
    %cst_261 = arith.constant 1.000000e+00 : f32
    %359 = vector.broadcast %cst_261 : f32 to vector<64x128xf32>
    %360 = arith.addf %359, %358 : vector<64x128xf32>
    %361 = tpu.reciprocal %360 : vector<64x128xf32> -> vector<64x128xf32>
    %362 = vector.extract_strided_slice %361 {offsets = [0, 0], sizes = [64, 8], strides = [1, 1]} : vector<64x128xf32> to vector<64x8xf32>
    %363 = arith.truncf %362 : vector<64x8xf32> to vector<64x8xbf16>
    %c64 = arith.constant 64 : index
    %c0_262 = arith.constant 0 : index
    %364 = vector.load %arg12[%c64, %c0_262] : memref<256x8xbf16, #tpu.memory_space<vmem>>, vector<64x8xbf16>
    tpu.vector_store %arg12[%c64, %c0_262], %363 {strides = array<i32>} : memref<256x8xbf16, #tpu.memory_space<vmem>>, vector<64x8xbf16>,
    %365 = vector.broadcast %286 : vector<1x128xf32> to vector<64x128xf32>
    %366 = arith.addf %327, %365 : vector<64x128xf32>
    %cst_263 = arith.constant 0.000000e+00 : f32
    %367 = vector.broadcast %cst_263 : f32 to vector<64x128xf32>
    %368 = arith.subf %367, %366 : vector<64x128xf32>
    %369 = math.exp %368 : vector<64x128xf32>
    %cst_264 = arith.constant 1.000000e+00 : f32
    %370 = vector.broadcast %cst_264 : f32 to vector<64x128xf32>
    %371 = arith.addf %370, %369 : vector<64x128xf32>
    %372 = tpu.reciprocal %371 : vector<64x128xf32> -> vector<64x128xf32>
    %373 = vector.extract_strided_slice %372 {offsets = [0, 0], sizes = [64, 8], strides = [1, 1]} : vector<64x128xf32> to vector<64x8xf32>
    %374 = arith.truncf %373 : vector<64x8xf32> to vector<64x8xbf16>
    %c128 = arith.constant 128 : index
    %c0_265 = arith.constant 0 : index
    %375 = vector.load %arg12[%c128, %c0_265] : memref<256x8xbf16, #tpu.memory_space<vmem>>, vector<64x8xbf16>
    tpu.vector_store %arg12[%c128, %c0_265], %374 {strides = array<i32>} : memref<256x8xbf16, #tpu.memory_space<vmem>>, vector<64x8xbf16>,
    %376 = vector.broadcast %286 : vector<1x128xf32> to vector<64x128xf32>
    %377 = arith.addf %342, %376 : vector<64x128xf32>
    %cst_266 = arith.constant 0.000000e+00 : f32
    %378 = vector.broadcast %cst_266 : f32 to vector<64x128xf32>
    %379 = arith.subf %378, %377 : vector<64x128xf32>
    %380 = math.exp %379 : vector<64x128xf32>
    %cst_267 = arith.constant 1.000000e+00 : f32
    %381 = vector.broadcast %cst_267 : f32 to vector<64x128xf32>
    %382 = arith.addf %381, %380 : vector<64x128xf32>
    %383 = tpu.reciprocal %382 : vector<64x128xf32> -> vector<64x128xf32>
    %384 = vector.extract_strided_slice %383 {offsets = [0, 0], sizes = [64, 8], strides = [1, 1]} : vector<64x128xf32> to vector<64x8xf32>
    %385 = arith.truncf %384 : vector<64x8xf32> to vector<64x8xbf16>
    %c192 = arith.constant 192 : index
    %c0_268 = arith.constant 0 : index
    %386 = vector.load %arg12[%c192, %c0_268] : memref<256x8xbf16, #tpu.memory_space<vmem>>, vector<64x8xbf16>
    tpu.vector_store %arg12[%c192, %c0_268], %385 {strides = array<i32>} : memref<256x8xbf16, #tpu.memory_space<vmem>>, vector<64x8xbf16>,
    return
  }
  func.func @transform_0(%arg0: i32) -> (i32, i32) {
    %c0_i32 = arith.constant 0 : i32
    %c0_i32_0 = arith.constant 0 : i32
    return %arg0, %c0_i32 : i32, i32
  }
  func.func @transform_1(%arg0: i32) -> (i32, i32) {
    %c0_i32 = arith.constant 0 : i32
    %c0_i32_0 = arith.constant 0 : i32
    %c0_i32_1 = arith.constant 0 : i32
    return %c0_i32, %c0_i32_0 : i32, i32
  }
  func.func @transform_2(%arg0: i32) -> (i32, i32) {
    %c0_i32 = arith.constant 0 : i32
    %c0_i32_0 = arith.constant 0 : i32
    %c0_i32_1 = arith.constant 0 : i32
    return %c0_i32, %c0_i32_0 : i32, i32
  }
  func.func @transform_3(%arg0: i32) -> (i32, i32, i32) {
    %c0_i32 = arith.constant 0 : i32
    %c0_i32_0 = arith.constant 0 : i32
    %c0_i32_1 = arith.constant 0 : i32
    %c0_i32_2 = arith.constant 0 : i32
    return %c0_i32, %c0_i32_0, %c0_i32_1 : i32, i32, i32
  }
  func.func @transform_4(%arg0: i32) -> (i32, i32, i32) {
    %c0_i32 = arith.constant 0 : i32
    %c0_i32_0 = arith.constant 0 : i32
    %c0_i32_1 = arith.constant 0 : i32
    %c0_i32_2 = arith.constant 0 : i32
    return %c0_i32, %c0_i32_0, %c0_i32_1 : i32, i32, i32
  }
  func.func @transform_5(%arg0: i32) -> (i32, i32, i32) {
    %c0_i32 = arith.constant 0 : i32
    %c0_i32_0 = arith.constant 0 : i32
    %c0_i32_1 = arith.constant 0 : i32
    %c0_i32_2 = arith.constant 0 : i32
    return %c0_i32, %c0_i32_0, %c0_i32_1 : i32, i32, i32
  }
  func.func @transform_6(%arg0: i32) -> (i32, i32, i32) {
    %c0_i32 = arith.constant 0 : i32
    %c0_i32_0 = arith.constant 0 : i32
    %c0_i32_1 = arith.constant 0 : i32
    %c0_i32_2 = arith.constant 0 : i32
    return %c0_i32, %c0_i32_0, %c0_i32_1 : i32, i32, i32
  }
  func.func @transform_7(%arg0: i32) -> (i32, i32, i32) {
    %c0_i32 = arith.constant 0 : i32
    %c0_i32_0 = arith.constant 0 : i32
    %c0_i32_1 = arith.constant 0 : i32
    %c0_i32_2 = arith.constant 0 : i32
    return %c0_i32, %c0_i32_0, %c0_i32_1 : i32, i32, i32
  }
  func.func @transform_8(%arg0: i32) -> (i32, i32, i32) {
    %c0_i32 = arith.constant 0 : i32
    %c0_i32_0 = arith.constant 0 : i32
    %c0_i32_1 = arith.constant 0 : i32
    %c0_i32_2 = arith.constant 0 : i32
    return %c0_i32, %c0_i32_0, %c0_i32_1 : i32, i32, i32
  }
  func.func @transform_9(%arg0: i32) -> (i32, i32, i32) {
    %c0_i32 = arith.constant 0 : i32
    %c0_i32_0 = arith.constant 0 : i32
    %c0_i32_1 = arith.constant 0 : i32
    %c0_i32_2 = arith.constant 0 : i32
    return %c0_i32, %c0_i32_0, %c0_i32_1 : i32, i32, i32
  }
  func.func @transform_10(%arg0: i32) -> (i32, i32, i32) {
    %c0_i32 = arith.constant 0 : i32
    %c0_i32_0 = arith.constant 0 : i32
    %c0_i32_1 = arith.constant 0 : i32
    %c0_i32_2 = arith.constant 0 : i32
    return %c0_i32, %c0_i32_0, %c0_i32_1 : i32, i32, i32
  }
  func.func @transform_11(%arg0: i32) -> (i32, i32) {
    %c0_i32 = arith.constant 0 : i32
    %c0_i32_0 = arith.constant 0 : i32
    return %arg0, %c0_i32 : i32, i32
  }
}

</mosaic_0001>

<llo_original>
// kernel: autoencoder_forward.1
$region0: #{autoencoder_forward.1}
  #allocation0 [shape = 'u32[]', space=smem, size = 0x4, offset = 0x4, fixed_abs, tag = 'smem constant byte address 0x4 - core index']
  #allocation1 [shape = 'u32[72,128]{1,0:T(1,128)}', space=vmem, size = 0x9000, scoped, tag = 'internal scratch']
  %s0 = inlined_call_operand.vmem [shape: bf16[128,32], index: 0, kind: input, shape index: {}]
  %s1 = inlined_call_operand.vmem [shape: bf16[32,128], index: 1, kind: input, shape index: {}]
  %s2 = inlined_call_operand.vmem [shape: f32[8,128], index: 2, kind: input, shape index: {}]
  %s3 = inlined_call_operand.vmem [shape: bf16[3,1152,128], index: 3, kind: input, shape index: {}]
  %s4 = inlined_call_operand.vmem [shape: bf16[4,128,1152], index: 4, kind: input, shape index: {}]
  %s5 = inlined_call_operand.vmem [shape: bf16[9,16,64], index: 5, kind: input, shape index: {}]
  %s6 = inlined_call_operand.vmem [shape: bf16[9,8,16], index: 6, kind: input, shape index: {}]
  %s7 = inlined_call_operand.vmem [shape: bf16[9,8,8], index: 7, kind: input, shape index: {}]
  %s8 = inlined_call_operand.vmem [shape: bf16[9,8,8], index: 8, kind: input, shape index: {}]
  %s9 = inlined_call_operand.vmem [shape: bf16[9,16,8], index: 9, kind: input, shape index: {}]
  %s10 = inlined_call_operand.vmem [shape: bf16[9,64,16], index: 10, kind: input, shape index: {}]
  %s11 = inlined_call_operand.vmem [shape: bf16[512,8], index: 11, kind: output, shape index: {}]
  %s12 = sld [smem:[#allocation0]]
  $region77: #{autoencoder_forward.1} parent=0
    _
  %s14 = ssub.s32 1, %s12
  %s15 = scalar_select 0, %s14, %s12
  loop: start=0, step=1, limit=4
  $region2: #{autoencoder_forward.1} parent=0 // loop_pre_header
    _
  $region3: #{autoencoder_forward.1} parent=0 // loop_header
    %s17 = sphi 0, %s21
    %p18 = scmp.ge.s32.totalorder %s17, 4
    %s27 = sphi 0, %s29
    %s30 = sphi 0, %s27
    %s31 = sphi 0, %s30
    %s47 = sphi 0, %s31
    %s51 = sphi 0, %s51
    %s53 = sphi 0, %s51
    %s54 = sphi 0, %s53
    %s68 = sphi 0, %s54
    %s72 = sphi 0, %s72
    %s74 = sphi 0, %s72
    %s75 = sphi 0, %s74
    %s89 = sphi 0, %s75
    %s93 = sphi 0, %s93
    %s95 = sphi 0, %s93
    %s96 = sphi 0, %s95
    %s110 = sphi 0, %s96
    %s114 = sphi 0, %s114
    %s116 = sphi 0, %s114
    %s117 = sphi 0, %s116
    %s131 = sphi 0, %s117
    %s135 = sphi 0, %s135
    %s137 = sphi 0, %s135
    %s138 = sphi 0, %s137
    %s152 = sphi 0, %s138
    %s156 = sphi 0, %s156
    %s158 = sphi 0, %s156
    %s159 = sphi 0, %s158
    %s173 = sphi 0, %s159
    %s177 = sphi 0, %s177
    %s179 = sphi 0, %s177
    %s180 = sphi 0, %s179
    %s194 = sphi 0, %s180
    %s198 = sphi 0, %s198
    %s200 = sphi 0, %s198
    %s201 = sphi 0, %s200
    %s215 = sphi 0, %s201
    %s219 = sphi 0, %s219
    %s221 = sphi 0, %s219
    %s222 = sphi 0, %s221
    %s236 = sphi 0, %s222
    %s240 = sphi 0, %s240
    %s242 = sphi 0, %s240
    %s243 = sphi 0, %s242
    %s257 = sphi 0, %s243
    %s263 = sphi 0, %s265
    %s266 = sphi 0, %s263
    %s267 = sphi 0, %s266
    %s283 = sphi 0, %s267
  $region4: #{autoencoder_forward.1} parent=0 // loop_header_branch
    %20 = sbr.rel (%p18) target = $region8
  $region5: #{autoencoder_forward.1} parent=0 // loop_body
    %s22 = ssub.s32 %s17, 1
    %s23 = ssub.s32 %s17, 2
    %s24 = sadd.s32 %s17, 1
    %s25 = ssub.s32 %s17, %s24
    %p26 = scmp.eq.s32.totalorder %s25, 0
    %s28 = sadd.s32 %s27, 1
    %s29 = scalar_select %p26, %s27, %s28
    %p32 = pneg %p26
    %p33 = scmp.eq.s32.totalorder %s17, 1
    %p34 = por %p32, %p33
    %p35 = scmp.ne.s32.totalorder %s27, %s30
    %p36 = scmp.eq.s32.totalorder %s17, 0
    %p37 = por %p35, %p36
    %p38 = scmp.ne.s32.totalorder %s27, %s30
    %p39 = scmp.eq.s32.totalorder %s22, 1
    %p40 = por %p38, %p39
    %p41 = scmp.ne.s32.totalorder %s30, %s31
    %p42 = scmp.eq.s32.totalorder %s22, 0
    %p43 = por %p41, %p42
    %p44 = scmp.ne.s32.totalorder %s30, %s31
    %p45 = scmp.eq.s32.totalorder %s23, 1
    %p46 = por %p44, %p45
    %p48 = scmp.ne.s32.totalorder %s31, %s47
    %p49 = scmp.eq.s32.totalorder %s23, 0
    %p50 = por %p48, %p49
    %s52 = sadd.s32 %s51, 1
    %p55 = scmp.eq.s32.totalorder %s17, 1
    %p56 = scmp.ne.s32.totalorder %s51, %s53
    %p57 = scmp.eq.s32.totalorder %s17, 0
    %p58 = por %p56, %p57
    %p59 = scmp.ne.s32.totalorder %s51, %s53
    %p60 = scmp.eq.s32.totalorder %s22, 1
    %p61 = por %p59, %p60
    %p62 = scmp.ne.s32.totalorder %s53, %s54
    %p63 = scmp.eq.s32.totalorder %s22, 0
    %p64 = por %p62, %p63
    %p65 = scmp.ne.s32.totalorder %s53, %s54
    %p66 = scmp.eq.s32.totalorder %s23, 1
    %p67 = por %p65, %p66
    %p69 = scmp.ne.s32.totalorder %s54, %s68
    %p70 = scmp.eq.s32.totalorder %s23, 0
    %p71 = por %p69, %p70
    %s73 = sadd.s32 %s72, 1
    %p76 = scmp.eq.s32.totalorder %s17, 1
    %p77 = scmp.ne.s32.totalorder %s72, %s74
    %p78 = scmp.eq.s32.totalorder %s17, 0
    %p79 = por %p77, %p78
    %p80 = scmp.ne.s32.totalorder %s72, %s74
    %p81 = scmp.eq.s32.totalorder %s22, 1
    %p82 = por %p80, %p81
    %p83 = scmp.ne.s32.totalorder %s74, %s75
    %p84 = scmp.eq.s32.totalorder %s22, 0
    %p85 = por %p83, %p84
    %p86 = scmp.ne.s32.totalorder %s74, %s75
    %p87 = scmp.eq.s32.totalorder %s23, 1
    %p88 = por %p86, %p87
    %p90 = scmp.ne.s32.totalorder %s75, %s89
    %p91 = scmp.eq.s32.totalorder %s23, 0
    %p92 = por %p90, %p91
    %s94 = sadd.s32 %s93, 1
    %p97 = scmp.eq.s32.totalorder %s17, 1
    %p98 = scmp.ne.s32.totalorder %s93, %s95
    %p99 = scmp.eq.s32.totalorder %s17, 0
    %p100 = por %p98, %p99
    %p101 = scmp.ne.s32.totalorder %s93, %s95
    %p102 = scmp.eq.s32.totalorder %s22, 1
    %p103 = por %p101, %p102
    %p104 = scmp.ne.s32.totalorder %s95, %s96
    %p105 = scmp.eq.s32.totalorder %s22, 0
    %p106 = por %p104, %p105
    %p107 = scmp.ne.s32.totalorder %s95, %s96
    %p108 = scmp.eq.s32.totalorder %s23, 1
    %p109 = por %p107, %p108
    %p111 = scmp.ne.s32.totalorder %s96, %s110
    %p112 = scmp.eq.s32.totalorder %s23, 0
    %p113 = por %p111, %p112
    %s115 = sadd.s32 %s114, 1
    %p118 = scmp.eq.s32.totalorder %s17, 1
    %p119 = scmp.ne.s32.totalorder %s114, %s116
    %p120 = scmp.eq.s32.totalorder %s17, 0
    %p121 = por %p119, %p120
    %p122 = scmp.ne.s32.totalorder %s114, %s116
    %p123 = scmp.eq.s32.totalorder %s22, 1
    %p124 = por %p122, %p123
    %p125 = scmp.ne.s32.totalorder %s116, %s117
    %p126 = scmp.eq.s32.totalorder %s22, 0
    %p127 = por %p125, %p126
    %p128 = scmp.ne.s32.totalorder %s116, %s117
    %p129 = scmp.eq.s32.totalorder %s23, 1
    %p130 = por %p128, %p129
    %p132 = scmp.ne.s32.totalorder %s117, %s131
    %p133 = scmp.eq.s32.totalorder %s23, 0
    %p134 = por %p132, %p133
    %s136 = sadd.s32 %s135, 1
    %p139 = scmp.eq.s32.totalorder %s17, 1
    %p140 = scmp.ne.s32.totalorder %s135, %s137
    %p141 = scmp.eq.s32.totalorder %s17, 0
    %p142 = por %p140, %p141
    %p143 = scmp.ne.s32.totalorder %s135, %s137
    %p144 = scmp.eq.s32.totalorder %s22, 1
    %p145 = por %p143, %p144
    %p146 = scmp.ne.s32.totalorder %s137, %s138
    %p147 = scmp.eq.s32.totalorder %s22, 0
    %p148 = por %p146, %p147
    %p149 = scmp.ne.s32.totalorder %s137, %s138
    %p150 = scmp.eq.s32.totalorder %s23, 1
    %p151 = por %p149, %p150
    %p153 = scmp.ne.s32.totalorder %s138, %s152
    %p154 = scmp.eq.s32.totalorder %s23, 0
    %p155 = por %p153, %p154
    %s157 = sadd.s32 %s156, 1
    %p160 = scmp.eq.s32.totalorder %s17, 1
    %p161 = scmp.ne.s32.totalorder %s156, %s158
    %p162 = scmp.eq.s32.totalorder %s17, 0
    %p163 = por %p161, %p162
    %p164 = scmp.ne.s32.totalorder %s156, %s158
    %p165 = scmp.eq.s32.totalorder %s22, 1
    %p166 = por %p164, %p165
    %p167 = scmp.ne.s32.totalorder %s158, %s159
    %p168 = scmp.eq.s32.totalorder %s22, 0
    %p169 = por %p167, %p168
    %p170 = scmp.ne.s32.totalorder %s158, %s159
    %p171 = scmp.eq.s32.totalorder %s23, 1
    %p172 = por %p170, %p171
    %p174 = scmp.ne.s32.totalorder %s159, %s173
    %p175 = scmp.eq.s32.totalorder %s23, 0
    %p176 = por %p174, %p175
    %s178 = sadd.s32 %s177, 1
    %p181 = scmp.eq.s32.totalorder %s17, 1
    %p182 = scmp.ne.s32.totalorder %s177, %s179
    %p183 = scmp.eq.s32.totalorder %s17, 0
    %p184 = por %p182, %p183
    %p185 = scmp.ne.s32.totalorder %s177, %s179
    %p186 = scmp.eq.s32.totalorder %s22, 1
    %p187 = por %p185, %p186
    %p188 = scmp.ne.s32.totalorder %s179, %s180
    %p189 = scmp.eq.s32.totalorder %s22, 0
    %p190 = por %p188, %p189
    %p191 = scmp.ne.s32.totalorder %s179, %s180
    %p192 = scmp.eq.s32.totalorder %s23, 1
    %p193 = por %p191, %p192
    %p195 = scmp.ne.s32.totalorder %s180, %s194
    %p196 = scmp.eq.s32.totalorder %s23, 0
    %p197 = por %p195, %p196
    %s199 = sadd.s32 %s198, 1
    %p202 = scmp.eq.s32.totalorder %s17, 1
    %p203 = scmp.ne.s32.totalorder %s198, %s200
    %p204 = scmp.eq.s32.totalorder %s17, 0
    %p205 = por %p203, %p204
    %p206 = scmp.ne.s32.totalorder %s198, %s200
    %p207 = scmp.eq.s32.totalorder %s22, 1
    %p208 = por %p206, %p207
    %p209 = scmp.ne.s32.totalorder %s200, %s201
    %p210 = scmp.eq.s32.totalorder %s22, 0
    %p211 = por %p209, %p210
    %p212 = scmp.ne.s32.totalorder %s200, %s201
    %p213 = scmp.eq.s32.totalorder %s23, 1
    %p214 = por %p212, %p213
    %p216 = scmp.ne.s32.totalorder %s201, %s215
    %p217 = scmp.eq.s32.totalorder %s23, 0
    %p218 = por %p216, %p217
    %s220 = sadd.s32 %s219, 1
    %p223 = scmp.eq.s32.totalorder %s17, 1
    %p224 = scmp.ne.s32.totalorder %s219, %s221
    %p225 = scmp.eq.s32.totalorder %s17, 0
    %p226 = por %p224, %p225
    %p227 = scmp.ne.s32.totalorder %s219, %s221
    %p228 = scmp.eq.s32.totalorder %s22, 1
    %p229 = por %p227, %p228
    %p230 = scmp.ne.s32.totalorder %s221, %s222
    %p231 = scmp.eq.s32.totalorder %s22, 0
    %p232 = por %p230, %p231
    %p233 = scmp.ne.s32.totalorder %s221, %s222
    %p234 = scmp.eq.s32.totalorder %s23, 1
    %p235 = por %p233, %p234
    %p237 = scmp.ne.s32.totalorder %s222, %s236
    %p238 = scmp.eq.s32.totalorder %s23, 0
    %p239 = por %p237, %p238
    %s241 = sadd.s32 %s240, 1
    %p244 = scmp.eq.s32.totalorder %s17, 1
    %p245 = scmp.ne.s32.totalorder %s240, %s242
    %p246 = scmp.eq.s32.totalorder %s17, 0
    %p247 = por %p245, %p246
    %p248 = scmp.ne.s32.totalorder %s240, %s242
    %p249 = scmp.eq.s32.totalorder %s22, 1
    %p250 = por %p248, %p249
    %p251 = scmp.ne.s32.totalorder %s242, %s243
    %p252 = scmp.eq.s32.totalorder %s22, 0
    %p253 = por %p251, %p252
    %p254 = scmp.ne.s32.totalorder %s242, %s243
    %p255 = scmp.eq.s32.totalorder %s23, 1
    %p256 = por %p254, %p255
    %p258 = scmp.ne.s32.totalorder %s243, %s257
    %p259 = scmp.eq.s32.totalorder %s23, 0
    %p260 = por %p258, %p259
    %s261 = ssub.s32 %s17, %s24
    %p262 = scmp.eq.s32.totalorder %s261, 0
    %s264 = sadd.s32 %s263, 1
    %s265 = scalar_select %p262, %s263, %s264
    %p268 = pneg %p262
    %p269 = scmp.eq.s32.totalorder %s17, 1
    %p270 = por %p268, %p269
    %p271 = scmp.ne.s32.totalorder %s263, %s266
    %p272 = scmp.eq.s32.totalorder %s17, 0
    %p273 = por %p271, %p272
    %p274 = scmp.ne.s32.totalorder %s263, %s266
    %p275 = scmp.eq.s32.totalorder %s22, 1
    %p276 = por %p274, %p275
    %p277 = scmp.ne.s32.totalorder %s266, %s267
    %p278 = scmp.eq.s32.totalorder %s22, 0
    %p279 = por %p277, %p278
    %p280 = scmp.ne.s32.totalorder %s266, %s267
    %p281 = scmp.eq.s32.totalorder %s23, 1
    %p282 = por %p280, %p281
    %p284 = scmp.ne.s32.totalorder %s267, %s283
    %p285 = scmp.eq.s32.totalorder %s23, 0
    %p286 = por %p284, %p285
    %p287 = scmp.le.s32.totalorder 1, %s17
    %p288 = scmp.lt.s32.totalorder %s17, 3
    %p289 = pnand %p287, %p288
    %p290 = pneg %p289
    // Predicated region
    $region9: #{autoencoder_forward.1} parent=5 // pred_check
      _
    $region10: #{autoencoder_forward.1} parent=5 // pred_check_branch
      %292 = sbr.rel (%p289) target = $region12
    $region11: #{autoencoder_forward.1} parent=5 // pred_region
      %s293 = ssub.s32 %s17, 1
      // Predicated region
      $region13: #{autoencoder_forward.1} parent=11 // pred_check
        %p294 = pneg %p64
      $region14: #{autoencoder_forward.1} parent=11 // pred_check_branch
        %296 = sbr.rel (%p294) target = $region16
      $region15: #{autoencoder_forward.1} parent=11 // pred_region
        _
      $region16: #{autoencoder_forward.1} parent=11 // pred_fallthru
        _
      // Predicated region
      $region17: #{autoencoder_forward.1} parent=11 // pred_check
        %p297 = pneg %p85
      $region18: #{autoencoder_forward.1} parent=11 // pred_check_branch
        %299 = sbr.rel (%p297) target = $region20
      $region19: #{autoencoder_forward.1} parent=11 // pred_region
        _
      $region20: #{autoencoder_forward.1} parent=11 // pred_fallthru
        _
      // Predicated region
      $region21: #{autoencoder_forward.1} parent=11 // pred_check
        %p300 = pneg %p106
      $region22: #{autoencoder_forward.1} parent=11 // pred_check_branch
        %302 = sbr.rel (%p300) target = $region24
      $region23: #{autoencoder_forward.1} parent=11 // pred_region
        _
      $region24: #{autoencoder_forward.1} parent=11 // pred_fallthru
        _
      // Predicated region
      $region25: #{autoencoder_forward.1} parent=11 // pred_check
        %p303 = pneg %p127
      $region26: #{autoencoder_forward.1} parent=11 // pred_check_branch
        %305 = sbr.rel (%p303) target = $region28
      $region27: #{autoencoder_forward.1} parent=11 // pred_region
        _
      $region28: #{autoencoder_forward.1} parent=11 // pred_fallthru
        _
      // Predicated region
      $region29: #{autoencoder_forward.1} parent=11 // pred_check
        %p306 = pneg %p148
      $region30: #{autoencoder_forward.1} parent=11 // pred_check_branch
        %308 = sbr.rel (%p306) target = $region32
      $region31: #{autoencoder_forward.1} parent=11 // pred_region
        _
      $region32: #{autoencoder_forward.1} parent=11 // pred_fallthru
        _
      // Predicated region
      $region33: #{autoencoder_forward.1} parent=11 // pred_check
        %p309 = pneg %p169
      $region34: #{autoencoder_forward.1} parent=11 // pred_check_branch
        %311 = sbr.rel (%p309) target = $region36
      $region35: #{autoencoder_forward.1} parent=11 // pred_region
        _
      $region36: #{autoencoder_forward.1} parent=11 // pred_fallthru
        _
      // Predicated region
      $region37: #{autoencoder_forward.1} parent=11 // pred_check
        %p312 = pneg %p190
      $region38: #{autoencoder_forward.1} parent=11 // pred_check_branch
        %314 = sbr.rel (%p312) target = $region40
      $region39: #{autoencoder_forward.1} parent=11 // pred_region
        _
      $region40: #{autoencoder_forward.1} parent=11 // pred_fallthru
        _
      // Predicated region
      $region41: #{autoencoder_forward.1} parent=11 // pred_check
        %p315 = pneg %p211
      $region42: #{autoencoder_forward.1} parent=11 // pred_check_branch
        %317 = sbr.rel (%p315) target = $region44
      $region43: #{autoencoder_forward.1} parent=11 // pred_region
        _
      $region44: #{autoencoder_forward.1} parent=11 // pred_fallthru
        _
      // Predicated region
      $region45: #{autoencoder_forward.1} parent=11 // pred_check
        %p318 = pneg %p232
      $region46: #{autoencoder_forward.1} parent=11 // pred_check_branch
        %320 = sbr.rel (%p318) target = $region48
      $region47: #{autoencoder_forward.1} parent=11 // pred_region
        _
      $region48: #{autoencoder_forward.1} parent=11 // pred_fallthru
        _
      // Predicated region
      $region49: #{autoencoder_forward.1} parent=11 // pred_check
        %p321 = pneg %p253
      $region50: #{autoencoder_forward.1} parent=11 // pred_check_branch
        %323 = sbr.rel (%p321) target = $region52
      $region51: #{autoencoder_forward.1} parent=11 // pred_region
        _
      $region52: #{autoencoder_forward.1} parent=11 // pred_fallthru
        _
    $region12: #{autoencoder_forward.1} parent=5 // pred_fallthru
      _
    %p324 = scmp.lt.s32.totalorder %s17, 2
    // Predicated region
    $region53: #{autoencoder_forward.1} parent=5 // pred_check
      %p325 = pneg %p324
    $region54: #{autoencoder_forward.1} parent=5 // pred_check_branch
      %327 = sbr.rel (%p325) target = $region56
    $region55: #{autoencoder_forward.1} parent=5 // pred_region
      // Predicated region
      $region57: #{autoencoder_forward.1} parent=55 // pred_check
        %p328 = pneg %p37
      $region58: #{autoencoder_forward.1} parent=55 // pred_check_branch
        %330 = sbr.rel (%p328) target = $region60
      $region59: #{autoencoder_forward.1} parent=55 // pred_region
        %s331 = smul.u32 8, %s17
        %p332 = scmp.lt.s32.totalorder %s331, 15
        %s333 = scalar_select %p332, %s331, 15
        %s334 = smul.addr %s333, 4
        %s335 = scalar_lea.vmem %s0, %s334
        %s336 = smul.u32 8, %s17
      $region60: #{autoencoder_forward.1} parent=55 // pred_fallthru
        _
    $region56: #{autoencoder_forward.1} parent=5 // pred_fallthru
      _
    %p337 = scmp.le.s32.totalorder 1, %s17
    %p338 = scmp.lt.s32.totalorder %s17, 3
    %p339 = pnand %p337, %p338
    %p340 = pneg %p339
    // Predicated region
    $region61: #{autoencoder_forward.1} parent=5 // pred_check
      _
    $region62: #{autoencoder_forward.1} parent=5 // pred_check_branch
      %342 = sbr.rel (%p339) target = $region64
    $region63: #{autoencoder_forward.1} parent=5 // pred_region
      %s343 = ssub.s32 %s17, 1
      %s344 = smul.u32 8, %s22
      %p345 = scmp.lt.s32.totalorder %s344, 15
      %s346 = scalar_select %p345, %s344, 15
      %s347 = smul.addr %s346, 4
      %s348 = scalar_lea.vmem %s0, %s347
      %p349 = pneg %p43
      %p350 = pneg %p40
      %p351 = pneg %p64
      %p352 = pneg %p61
      %p353 = pneg %p85
      %p354 = pneg %p82
      %p355 = pneg %p106
      %p356 = pneg %p103
      %p357 = pneg %p127
      %p358 = pneg %p124
      %p359 = pneg %p148
      %p360 = pneg %p145
      %p361 = pneg %p169
      %p362 = pneg %p166
      %p363 = pneg %p190
      %p364 = pneg %p187
      %p365 = pneg %p211
      %p366 = pneg %p208
      %p367 = pneg %p232
      %p368 = pneg %p229
      %p369 = pneg %p253
      %p370 = pneg %p250
      %p371 = pneg %p279
      %p372 = pneg %p276
      %s373 = smul.u32 32, %s22
      %p374 = scmp.lt.s32.totalorder %s373, 63
      %s375 = scalar_select %p374, %s373, 63
      %s376 = smul.addr %s375, 4
      %s377 = scalar_lea.vmem %s11, %s376
      %s378 = smul.u32 8, %s22
      %p379 = scmp.lt.s32.totalorder %s378, 15
      %s380 = scalar_select %p379, %s378, 15
      %s381 = smul.addr %s380, 4
      %s382 = scalar_lea.vmem %s0, %s381
      %s383 = smul.u32 8, %s22
      %s384 = smul.u32 32, %s22
      %p385 = scmp.lt.s32.totalorder %s384, 63
      %s386 = scalar_select %p385, %s384, 63
      %s387 = smul.addr %s386, 4
      %s388 = scalar_lea.vmem %s11, %s387
      %s389 = smul.u32 32, %s22
      %v391 = vld [vmem:[%s2] sm:$0xff]
      %v392 = vld [vmem:[%s382] sm:$0xf]
      %v393 = vld [vmem:[%s382 + $0x4] sm:$0xf]
      %v394 = vld [vmem:[%s382 + $0x8] sm:$0xf]
      %v395 = vld [vmem:[%s382 + $0xc] sm:$0xf]
      %v396 = vld [vmem:[%s382 + $0x10] sm:$0xf]
      %v397 = vld [vmem:[%s382 + $0x14] sm:$0xf]
      %v398 = vld [vmem:[%s382 + $0x18] sm:$0xf]
      %v399 = vld [vmem:[%s382 + $0x1c] sm:$0xf]
      %v400 = vld [vmem:[%s1] sm:$0xf]
      %v401 = vld [vmem:[%s1 + $0x4] sm:$0xf]
      %v402 = vld [vmem:[%s1 + $0x8] sm:$0xf]
      %v403 = vld [vmem:[%s1 + $0xc] sm:$0xf]
      %v404 = vperm.slane %v391, 0
      %v413 = vunpack.c.l.b16 %v392
      %v414 = vunpack.c.l.b16 %v393
      %v415 = vunpack.c.l.b16 %v394
      %v416 = vunpack.c.l.b16 %v395
      %v417 = vunpack.c.l.b16 %v396
      %v418 = vunpack.c.l.b16 %v397
      %v419 = vunpack.c.l.b16 %v398
      %v420 = vunpack.c.l.b16 %v399
      %v421 = vpack.c.b16 %v414, %v413
      %v422 = vpack.c.b16 %v416, %v415
      %v423 = vpack.c.b16 %v418, %v417
      %v424 = vpack.c.b16 %v420, %v419
      %v429 = vunpack.c.l.b16 %v400
      %v430 = vunpack.c.l.b16 %v401
      %v431 = vunpack.c.l.b16 %v402
      %v432 = vunpack.c.l.b16 %v403
      %v433 = vpack.c.b16 %v430, %v429
      %v434 = vpack.c.b16 %v432, %v431
      %vm437 = vcmask 261120
      %v439 = vsel %vm437, %v421, 0
      %v442 = vsel %vm437, %v422, 0
      %v445 = vsel %vm437, %v423, 0
      %v448 = vsel %vm437, %v424, 0
      %450 = vmatpush.bf16.msra.mxu0 0
      %451 = vmatpush.bf16.msra.mxu0 0
      %452 = vmatpush.bf16.msra.mxu0 0
      %453 = vmatpush.bf16.msra.mxu0 0
      %454 = vmatpush.bf16.msra.mxu0 0
      %455 = vmatpush.bf16.msra.mxu0 0
      %456 = vmatpush.bf16.msra.mxu0 %v434
      %457 = vmatpush.bf16.msra.mxu0 %v433
      %458 = vmatmul.bf16.gmra.mxu0 %v439
      %v459 = vpop.f32.mrf.mxu0
      %v460 = vadd.f32 %v404, %v459
      %v461 = vpop.f32.mrf.mxu0
      %v462 = vadd.f32 %v404, %v461
      %463 = vmatmul.bf16.gmra.mxu0 %v442
      %v464 = vpop.f32.mrf.mxu0
      %v465 = vadd.f32 %v404, %v464
      %v466 = vpop.f32.mrf.mxu0
      %v467 = vadd.f32 %v404, %v466
      %468 = vmatmul.bf16.gmra.mxu0 %v445
      %v469 = vpop.f32.mrf.mxu0
      %v470 = vadd.f32 %v404, %v469
      %v471 = vpop.f32.mrf.mxu0
      %v472 = vadd.f32 %v404, %v471
      %473 = vmatmul.bf16.gmra.mxu0 %v448
      %v474 = vpop.f32.mrf.mxu0
      %v475 = vadd.f32 %v404, %v474
      %v476 = vpop.f32.mrf.mxu0
      %v477 = vadd.f32 %v404, %v476
      %478 = vdwg.mxu0
      %v479 = vmax.f32 %v460, 0.0
      %v480 = vmax.f32 %v462, 0.0
      %v481 = vmax.f32 %v465, 0.0
      %v482 = vmax.f32 %v467, 0.0
      %v483 = vmax.f32 %v470, 0.0
      %v484 = vmax.f32 %v472, 0.0
      %v485 = vmax.f32 %v475, 0.0
      %v486 = vmax.f32 %v477, 0.0
      %v487 = vpack.c.bf16 %v480, %v479
      %v488 = vpack.c.bf16 %v482, %v481
      %v489 = vpack.c.bf16 %v484, %v483
      %v490 = vpack.c.bf16 %v486, %v485
      %v491 = vld [vmem:[%s3] sm:$0xf]
      %v492 = vld [vmem:[%s3 + $0x4] sm:$0xf]
      %v493 = vld [vmem:[%s3 + $0x8] sm:$0xf]
      %v494 = vld [vmem:[%s3 + $0xc] sm:$0xf]
      %v495 = vld [vmem:[%s3 + $0x10] sm:$0xf]
      %v496 = vld [vmem:[%s3 + $0x14] sm:$0xf]
      %v497 = vld [vmem:[%s3 + $0x18] sm:$0xf]
      %v498 = vld [vmem:[%s3 + $0x1c] sm:$0xf]
      %v499 = vld [vmem:[%s3 + $0x20] sm:$0xf]
      %v500 = vld [vmem:[%s3 + $0x24] sm:$0xf]
      %v501 = vld [vmem:[%s3 + $0x28] sm:$0xf]
      %v502 = vld [vmem:[%s3 + $0x2c] sm:$0xf]
      %v503 = vld [vmem:[%s3 + $0x30] sm:$0xf]
      %v504 = vld [vmem:[%s3 + $0x34] sm:$0xf]
      %v505 = vld [vmem:[%s3 + $0x38] sm:$0xf]
      %v506 = vld [vmem:[%s3 + $0x3c] sm:$0xf]
      %v507 = vld [vmem:[%s3 + $0x40] sm:$0xf]
      %v508 = vld [vmem:[%s3 + $0x44] sm:$0xf]
      %v509 = vld [vmem:[%s3 + $0x48] sm:$0xf]
      %v510 = vld [vmem:[%s3 + $0x4c] sm:$0xf]
      %v511 = vld [vmem:[%s3 + $0x50] sm:$0xf]
      %v512 = vld [vmem:[%s3 + $0x54] sm:$0xf]
      %v513 = vld [vmem:[%s3 + $0x58] sm:$0xf]
      %v514 = vld [vmem:[%s3 + $0x5c] sm:$0xf]
      %v515 = vld [vmem:[%s3 + $0x60] sm:$0xf]
      %v516 = vld [vmem:[%s3 + $0x64] sm:$0xf]
      %v517 = vld [vmem:[%s3 + $0x68] sm:$0xf]
      %v518 = vld [vmem:[%s3 + $0x6c] sm:$0xf]
      %v519 = vld [vmem:[%s3 + $0x70] sm:$0xf]
      %v520 = vld [vmem:[%s3 + $0x74] sm:$0xf]
      %v521 = vld [vmem:[%s3 + $0x78] sm:$0xf]
      %v522 = vld [vmem:[%s3 + $0x7c] sm:$0xf]
      %v523 = vld [vmem:[%s3 + $0x80] sm:$0xf]
      %v524 = vld [vmem:[%s3 + $0x84] sm:$0xf]
      %v525 = vld [vmem:[%s3 + $0x88] sm:$0xf]
      %v526 = vld [vmem:[%s3 + $0x8c] sm:$0xf]
      %v527 = vld [vmem:[%s3 + $0x90] sm:$0xf]
      %v528 = vld [vmem:[%s3 + $0x94] sm:$0xf]
      %v529 = vld [vmem:[%s3 + $0x98] sm:$0xf]
      %v530 = vld [vmem:[%s3 + $0x9c] sm:$0xf]
      %v531 = vld [vmem:[%s3 + $0xa0] sm:$0xf]
      %v532 = vld [vmem:[%s3 + $0xa4] sm:$0xf]
      %v533 = vld [vmem:[%s3 + $0xa8] sm:$0xf]
      %v534 = vld [vmem:[%s3 + $0xac] sm:$0xf]
      %v535 = vld [vmem:[%s3 + $0xb0] sm:$0xf]
      %v536 = vld [vmem:[%s3 + $0xb4] sm:$0xf]
      %v537 = vld [vmem:[%s3 + $0xb8] sm:$0xf]
      %v538 = vld [vmem:[%s3 + $0xbc] sm:$0xf]
      %v539 = vld [vmem:[%s3 + $0xc0] sm:$0xf]
      %v540 = vld [vmem:[%s3 + $0xc4] sm:$0xf]
      %v541 = vld [vmem:[%s3 + $0xc8] sm:$0xf]
      %v542 = vld [vmem:[%s3 + $0xcc] sm:$0xf]
      %v543 = vld [vmem:[%s3 + $0xd0] sm:$0xf]
      %v544 = vld [vmem:[%s3 + $0xd4] sm:$0xf]
      %v545 = vld [vmem:[%s3 + $0xd8] sm:$0xf]
      %v546 = vld [vmem:[%s3 + $0xdc] sm:$0xf]
      %v547 = vld [vmem:[%s3 + $0xe0] sm:$0xf]
      %v548 = vld [vmem:[%s3 + $0xe4] sm:$0xf]
      %v549 = vld [vmem:[%s3 + $0xe8] sm:$0xf]
      %v550 = vld [vmem:[%s3 + $0xec] sm:$0xf]
      %v551 = vld [vmem:[%s3 + $0xf0] sm:$0xf]
      %v552 = vld [vmem:[%s3 + $0xf4] sm:$0xf]
      %v553 = vld [vmem:[%s3 + $0xf8] sm:$0xf]
      %v554 = vld [vmem:[%s3 + $0xfc] sm:$0xf]
      %v555 = vld [vmem:[%s3 + $0x100] sm:$0xf]
      %v556 = vld [vmem:[%s3 + $0x104] sm:$0xf]
      %v557 = vld [vmem:[%s3 + $0x108] sm:$0xf]
      %v558 = vld [vmem:[%s3 + $0x10c] sm:$0xf]
      %v559 = vld [vmem:[%s3 + $0x110] sm:$0xf]
      %v560 = vld [vmem:[%s3 + $0x114] sm:$0xf]
      %v561 = vld [vmem:[%s3 + $0x118] sm:$0xf]
      %v562 = vld [vmem:[%s3 + $0x11c] sm:$0xf]
      %v563 = vld [vmem:[%s3 + $0x120] sm:$0xf]
      %v564 = vld [vmem:[%s3 + $0x124] sm:$0xf]
      %v565 = vld [vmem:[%s3 + $0x128] sm:$0xf]
      %v566 = vld [vmem:[%s3 + $0x12c] sm:$0xf]
      %v567 = vld [vmem:[%s3 + $0x130] sm:$0xf]
      %v568 = vld [vmem:[%s3 + $0x134] sm:$0xf]
      %v569 = vld [vmem:[%s3 + $0x138] sm:$0xf]
      %v570 = vld [vmem:[%s3 + $0x13c] sm:$0xf]
      %v571 = vld [vmem:[%s3 + $0x140] sm:$0xf]
      %v572 = vld [vmem:[%s3 + $0x144] sm:$0xf]
      %v573 = vld [vmem:[%s3 + $0x148] sm:$0xf]
      %v574 = vld [vmem:[%s3 + $0x14c] sm:$0xf]
      %v575 = vld [vmem:[%s3 + $0x150] sm:$0xf]
      %v576 = vld [vmem:[%s3 + $0x154] sm:$0xf]
      %v577 = vld [vmem:[%s3 + $0x158] sm:$0xf]
      %v578 = vld [vmem:[%s3 + $0x15c] sm:$0xf]
      %v579 = vld [vmem:[%s3 + $0x160] sm:$0xf]
      %v580 = vld [vmem:[%s3 + $0x164] sm:$0xf]
      %v581 = vld [vmem:[%s3 + $0x168] sm:$0xf]
      %v582 = vld [vmem:[%s3 + $0x16c] sm:$0xf]
      %v583 = vld [vmem:[%s3 + $0x170] sm:$0xf]
      %v584 = vld [vmem:[%s3 + $0x174] sm:$0xf]
      %v585 = vld [vmem:[%s3 + $0x178] sm:$0xf]
      %v586 = vld [vmem:[%s3 + $0x17c] sm:$0xf]
      %v587 = vld [vmem:[%s3 + $0x180] sm:$0xf]
      %v588 = vld [vmem:[%s3 + $0x184] sm:$0xf]
      %v589 = vld [vmem:[%s3 + $0x188] sm:$0xf]
      %v590 = vld [vmem:[%s3 + $0x18c] sm:$0xf]
      %v591 = vld [vmem:[%s3 + $0x190] sm:$0xf]
      %v592 = vld [vmem:[%s3 + $0x194] sm:$0xf]
      %v593 = vld [vmem:[%s3 + $0x198] sm:$0xf]
      %v594 = vld [vmem:[%s3 + $0x19c] sm:$0xf]
      %v595 = vld [vmem:[%s3 + $0x1a0] sm:$0xf]
      %v596 = vld [vmem:[%s3 + $0x1a4] sm:$0xf]
      %v597 = vld [vmem:[%s3 + $0x1a8] sm:$0xf]
      %v598 = vld [vmem:[%s3 + $0x1ac] sm:$0xf]
      %v599 = vld [vmem:[%s3 + $0x1b0] sm:$0xf]
      %v600 = vld [vmem:[%s3 + $0x1b4] sm:$0xf]
      %v601 = vld [vmem:[%s3 + $0x1b8] sm:$0xf]
      %v602 = vld [vmem:[%s3 + $0x1bc] sm:$0xf]
      %v603 = vld [vmem:[%s3 + $0x1c0] sm:$0xf]
      %v604 = vld [vmem:[%s3 + $0x1c4] sm:$0xf]
      %v605 = vld [vmem:[%s3 + $0x1c8] sm:$0xf]
      %v606 = vld [vmem:[%s3 + $0x1cc] sm:$0xf]
      %v607 = vld [vmem:[%s3 + $0x1d0] sm:$0xf]
      %v608 = vld [vmem:[%s3 + $0x1d4] sm:$0xf]
      %v609 = vld [vmem:[%s3 + $0x1d8] sm:$0xf]
      %v610 = vld [vmem:[%s3 + $0x1dc] sm:$0xf]
      %v611 = vld [vmem:[%s3 + $0x1e0] sm:$0xf]
      %v612 = vld [vmem:[%s3 + $0x1e4] sm:$0xf]
      %v613 = vld [vmem:[%s3 + $0x1e8] sm:$0xf]
      %v614 = vld [vmem:[%s3 + $0x1ec] sm:$0xf]
      %v615 = vld [vmem:[%s3 + $0x1f0] sm:$0xf]
      %v616 = vld [vmem:[%s3 + $0x1f4] sm:$0xf]
      %v617 = vld [vmem:[%s3 + $0x1f8] sm:$0xf]
      %v618 = vld [vmem:[%s3 + $0x1fc] sm:$0xf]
      %v619 = vld [vmem:[%s3 + $0x200] sm:$0xf]
      %v620 = vld [vmem:[%s3 + $0x204] sm:$0xf]
      %v621 = vld [vmem:[%s3 + $0x208] sm:$0xf]
      %v622 = vld [vmem:[%s3 + $0x20c] sm:$0xf]
      %v623 = vld [vmem:[%s3 + $0x210] sm:$0xf]
      %v624 = vld [vmem:[%s3 + $0x214] sm:$0xf]
      %v625 = vld [vmem:[%s3 + $0x218] sm:$0xf]
      %v626 = vld [vmem:[%s3 + $0x21c] sm:$0xf]
      %v627 = vld [vmem:[%s3 + $0x220] sm:$0xf]
      %v628 = vld [vmem:[%s3 + $0x224] sm:$0xf]
      %v629 = vld [vmem:[%s3 + $0x228] sm:$0xf]
      %v630 = vld [vmem:[%s3 + $0x22c] sm:$0xf]
      %v631 = vld [vmem:[%s3 + $0x230] sm:$0xf]
      %v632 = vld [vmem:[%s3 + $0x234] sm:$0xf]
      %v633 = vld [vmem:[%s3 + $0x238] sm:$0xf]
      %v634 = vld [vmem:[%s3 + $0x23c] sm:$0xf]
      %v635 = vld [vmem:[%s5] sm:$0xf]
      %v636 = vld [vmem:[%s5 + $0x4] sm:$0xf]
      %v639 = vunpack.c.l.b16 %v635
      %v640 = vunpack.c.l.b16 %v636
      %v641 = vpack.c.b16 %v640, %v639
      %vm642 = vcmask 523264
      %v644 = vsel %vm642, %v641, 0
      %646 = vmatpush.bf16.msra.mxu0 0
      %647 = vmatpush.bf16.msra.mxu0 0
      %648 = vmatpush.bf16.msra.mxu0 0
      %649 = vmatpush.bf16.msra.mxu0 0
      %650 = vmatpush.bf16.msra.mxu0 %v490
      %651 = vmatpush.bf16.msra.mxu0 %v489
      %652 = vmatpush.bf16.msra.mxu0 %v488
      %653 = vmatpush.bf16.msra.mxu0 %v487
      %654 = vmatmul.bf16.gmra.mxu0 %v644
      %v655 = vpop.f32.mrf.mxu0
      %v656 = vadd.f32 0.0, %v655
      %v657 = vpop.f32.mrf.mxu0
      %v658 = vadd.f32 0.0, %v657
      %659 = vdwg.mxu0
      %s660 = scalar_lea.vmem %s5, 8
      %v661 = vld [vmem:[%s660] sm:$0xf]
      %v662 = vld [vmem:[%s660 + $0x4] sm:$0xf]
      %v665 = vunpack.c.l.b16 %v661
      %v666 = vunpack.c.l.b16 %v662
      %v667 = vpack.c.b16 %v666, %v665
      %v669 = vsel %vm642, %v667, 0
      %671 = vmatpush.bf16.msra.mxu0 0
      %672 = vmatpush.bf16.msra.mxu0 0
      %673 = vmatpush.bf16.msra.mxu0 0
      %674 = vmatpush.bf16.msra.mxu0 0
      %675 = vmatpush.bf16.msra.mxu0 %v490
      %676 = vmatpush.bf16.msra.mxu0 %v489
      %677 = vmatpush.bf16.msra.mxu0 %v488
      %678 = vmatpush.bf16.msra.mxu0 %v487
      %679 = vmatmul.bf16.gmra.mxu0 %v669
      %v680 = vpop.f32.mrf.mxu0
      %v681 = vadd.f32 0.0, %v680
      %v682 = vpop.f32.mrf.mxu0
      %v683 = vadd.f32 0.0, %v682
      %684 = vdwg.mxu0
      %s685 = scalar_lea.vmem %s5, 16
      %v686 = vld [vmem:[%s685] sm:$0xf]
      %v687 = vld [vmem:[%s685 + $0x4] sm:$0xf]
      %v690 = vunpack.c.l.b16 %v686
      %v691 = vunpack.c.l.b16 %v687
      %v692 = vpack.c.b16 %v691, %v690
      %v694 = vsel %vm642, %v692, 0
      %696 = vmatpush.bf16.msra.mxu0 0
      %697 = vmatpush.bf16.msra.mxu0 0
      %698 = vmatpush.bf16.msra.mxu0 0
      %699 = vmatpush.bf16.msra.mxu0 0
      %700 = vmatpush.bf16.msra.mxu0 %v490
      %701 = vmatpush.bf16.msra.mxu0 %v489
      %702 = vmatpush.bf16.msra.mxu0 %v488
      %703 = vmatpush.bf16.msra.mxu0 %v487
      %704 = vmatmul.bf16.gmra.mxu0 %v694
      %v705 = vpop.f32.mrf.mxu0
      %v706 = vadd.f32 0.0, %v705
      %v707 = vpop.f32.mrf.mxu0
      %v708 = vadd.f32 0.0, %v707
      %709 = vdwg.mxu0
      %s710 = scalar_lea.vmem %s5, 24
      %v711 = vld [vmem:[%s710] sm:$0xf]
      %v712 = vld [vmem:[%s710 + $0x4] sm:$0xf]
      %v715 = vunpack.c.l.b16 %v711
      %v716 = vunpack.c.l.b16 %v712
      %v717 = vpack.c.b16 %v716, %v715
      %v719 = vsel %vm642, %v717, 0
      %721 = vmatpush.bf16.msra.mxu0 0
      %722 = vmatpush.bf16.msra.mxu0 0
      %723 = vmatpush.bf16.msra.mxu0 0
      %724 = vmatpush.bf16.msra.mxu0 0
      %725 = vmatpush.bf16.msra.mxu0 %v490
      %726 = vmatpush.bf16.msra.mxu0 %v489
      %727 = vmatpush.bf16.msra.mxu0 %v488
      %728 = vmatpush.bf16.msra.mxu0 %v487
      %729 = vmatmul.bf16.gmra.mxu0 %v719
      %v730 = vpop.f32.mrf.mxu0
      %v731 = vadd.f32 0.0, %v730
      %v732 = vpop.f32.mrf.mxu0
      %v733 = vadd.f32 0.0, %v732
      %734 = vdwg.mxu0
      %s735 = scalar_lea.vmem %s5, 32
      %v736 = vld [vmem:[%s735] sm:$0xf]
      %v737 = vld [vmem:[%s735 + $0x4] sm:$0xf]
      %v740 = vunpack.c.l.b16 %v736
      %v741 = vunpack.c.l.b16 %v737
      %v742 = vpack.c.b16 %v741, %v740
      %v744 = vsel %vm642, %v742, 0
      %746 = vmatpush.bf16.msra.mxu0 0
      %747 = vmatpush.bf16.msra.mxu0 0
      %748 = vmatpush.bf16.msra.mxu0 0
      %749 = vmatpush.bf16.msra.mxu0 0
      %750 = vmatpush.bf16.msra.mxu0 %v490
      %751 = vmatpush.bf16.msra.mxu0 %v489
      %752 = vmatpush.bf16.msra.mxu0 %v488
      %753 = vmatpush.bf16.msra.mxu0 %v487
      %754 = vmatmul.bf16.gmra.mxu0 %v744
      %v755 = vpop.f32.mrf.mxu0
      %v756 = vadd.f32 0.0, %v755
      %v757 = vpop.f32.mrf.mxu0
      %v758 = vadd.f32 0.0, %v757
      %759 = vdwg.mxu0
      %s760 = scalar_lea.vmem %s5, 40
      %v761 = vld [vmem:[%s760] sm:$0xf]
      %v762 = vld [vmem:[%s760 + $0x4] sm:$0xf]
      %v765 = vunpack.c.l.b16 %v761
      %v766 = vunpack.c.l.b16 %v762
      %v767 = vpack.c.b16 %v766, %v765
      %v769 = vsel %vm642, %v767, 0
      %771 = vmatpush.bf16.msra.mxu0 0
      %772 = vmatpush.bf16.msra.mxu0 0
      %773 = vmatpush.bf16.msra.mxu0 0
      %774 = vmatpush.bf16.msra.mxu0 0
      %775 = vmatpush.bf16.msra.mxu0 %v490
      %776 = vmatpush.bf16.msra.mxu0 %v489
      %777 = vmatpush.bf16.msra.mxu0 %v488
      %778 = vmatpush.bf16.msra.mxu0 %v487
      %779 = vmatmul.bf16.gmra.mxu0 %v769
      %v780 = vpop.f32.mrf.mxu0
      %v781 = vadd.f32 0.0, %v780
      %v782 = vpop.f32.mrf.mxu0
      %v783 = vadd.f32 0.0, %v782
      %784 = vdwg.mxu0
      %s785 = scalar_lea.vmem %s5, 48
      %v786 = vld [vmem:[%s785] sm:$0xf]
      %v787 = vld [vmem:[%s785 + $0x4] sm:$0xf]
      %v790 = vunpack.c.l.b16 %v786
      %v791 = vunpack.c.l.b16 %v787
      %v792 = vpack.c.b16 %v791, %v790
      %v794 = vsel %vm642, %v792, 0
      %796 = vmatpush.bf16.msra.mxu0 0
      %797 = vmatpush.bf16.msra.mxu0 0
      %798 = vmatpush.bf16.msra.mxu0 0
      %799 = vmatpush.bf16.msra.mxu0 0
      %800 = vmatpush.bf16.msra.mxu0 %v490
      %801 = vmatpush.bf16.msra.mxu0 %v489
      %802 = vmatpush.bf16.msra.mxu0 %v488
      %803 = vmatpush.bf16.msra.mxu0 %v487
      %804 = vmatmul.bf16.gmra.mxu0 %v794
      %v805 = vpop.f32.mrf.mxu0
      %v806 = vadd.f32 0.0, %v805
      %v807 = vpop.f32.mrf.mxu0
      %v808 = vadd.f32 0.0, %v807
      %809 = vdwg.mxu0
      %s810 = scalar_lea.vmem %s5, 56
      %v811 = vld [vmem:[%s810] sm:$0xf]
      %v812 = vld [vmem:[%s810 + $0x4] sm:$0xf]
      %v815 = vunpack.c.l.b16 %v811
      %v816 = vunpack.c.l.b16 %v812
      %v817 = vpack.c.b16 %v816, %v815
      %v819 = vsel %vm642, %v817, 0
      %821 = vmatpush.bf16.msra.mxu0 0
      %822 = vmatpush.bf16.msra.mxu0 0
      %823 = vmatpush.bf16.msra.mxu0 0
      %824 = vmatpush.bf16.msra.mxu0 0
      %825 = vmatpush.bf16.msra.mxu0 %v490
      %826 = vmatpush.bf16.msra.mxu0 %v489
      %827 = vmatpush.bf16.msra.mxu0 %v488
      %828 = vmatpush.bf16.msra.mxu0 %v487
      %829 = vmatmul.bf16.gmra.mxu0 %v819
      %v830 = vpop.f32.mrf.mxu0
      %v831 = vadd.f32 0.0, %v830
      %v832 = vpop.f32.mrf.mxu0
      %v833 = vadd.f32 0.0, %v832
      %834 = vdwg.mxu0
      %s835 = scalar_lea.vmem %s5, 64
      %v836 = vld [vmem:[%s835] sm:$0xf]
      %v837 = vld [vmem:[%s835 + $0x4] sm:$0xf]
      %v840 = vunpack.c.l.b16 %v836
      %v841 = vunpack.c.l.b16 %v837
      %v842 = vpack.c.b16 %v841, %v840
      %v844 = vsel %vm642, %v842, 0
      %846 = vmatpush.bf16.msra.mxu0 0
      %847 = vmatpush.bf16.msra.mxu0 0
      %848 = vmatpush.bf16.msra.mxu0 0
      %849 = vmatpush.bf16.msra.mxu0 0
      %850 = vmatpush.bf16.msra.mxu0 %v490
      %851 = vmatpush.bf16.msra.mxu0 %v489
      %852 = vmatpush.bf16.msra.mxu0 %v488
      %853 = vmatpush.bf16.msra.mxu0 %v487
      %854 = vmatmul.bf16.gmra.mxu0 %v844
      %v855 = vpop.f32.mrf.mxu0
      %v856 = vadd.f32 0.0, %v855
      %v857 = vpop.f32.mrf.mxu0
      %v858 = vadd.f32 0.0, %v857
      %859 = vdwg.mxu0
      %v860 = vpack.c.bf16 %v658, %v656
      %v861 = vpack.c.bf16 %v683, %v681
      %v862 = vpack.c.bf16 %v708, %v706
      %v863 = vpack.c.bf16 %v733, %v731
      %v864 = vpack.c.bf16 %v758, %v756
      %v865 = vpack.c.bf16 %v783, %v781
      %v866 = vpack.c.bf16 %v808, %v806
      %v867 = vpack.c.bf16 %v833, %v831
      %v868 = vpack.c.bf16 %v858, %v856
      %v869 = vperm.slane %v391, 1
      %v1014 = vunpack.c.l.b16 %v491
      %v1015 = vunpack.c.l.b16 %v492
      %v1016 = vunpack.c.l.b16 %v493
      %v1017 = vunpack.c.l.b16 %v494
      %v1018 = vunpack.c.l.b16 %v495
      %v1019 = vunpack.c.l.b16 %v496
      %v1020 = vunpack.c.l.b16 %v497
      %v1021 = vunpack.c.l.b16 %v498
      %v1022 = vunpack.c.l.b16 %v499
      %v1023 = vunpack.c.l.b16 %v500
      %v1024 = vunpack.c.l.b16 %v501
      %v1025 = vunpack.c.l.b16 %v502
      %v1026 = vunpack.c.l.b16 %v503
      %v1027 = vunpack.c.l.b16 %v504
      %v1028 = vunpack.c.l.b16 %v505
      %v1029 = vunpack.c.l.b16 %v506
      %v1030 = vunpack.c.l.b16 %v507
      %v1031 = vunpack.c.l.b16 %v508
      %v1032 = vunpack.c.l.b16 %v509
      %v1033 = vunpack.c.l.b16 %v510
      %v1034 = vunpack.c.l.b16 %v511
      %v1035 = vunpack.c.l.b16 %v512
      %v1036 = vunpack.c.l.b16 %v513
      %v1037 = vunpack.c.l.b16 %v514
      %v1038 = vunpack.c.l.b16 %v515
      %v1039 = vunpack.c.l.b16 %v516
      %v1040 = vunpack.c.l.b16 %v517
      %v1041 = vunpack.c.l.b16 %v518
      %v1042 = vunpack.c.l.b16 %v519
      %v1043 = vunpack.c.l.b16 %v520
      %v1044 = vunpack.c.l.b16 %v521
      %v1045 = vunpack.c.l.b16 %v522
      %v1046 = vunpack.c.l.b16 %v523
      %v1047 = vunpack.c.l.b16 %v524
      %v1048 = vunpack.c.l.b16 %v525
      %v1049 = vunpack.c.l.b16 %v526
      %v1050 = vunpack.c.l.b16 %v527
      %v1051 = vunpack.c.l.b16 %v528
      %v1052 = vunpack.c.l.b16 %v529
      %v1053 = vunpack.c.l.b16 %v530
      %v1054 = vunpack.c.l.b16 %v531
      %v1055 = vunpack.c.l.b16 %v532
      %v1056 = vunpack.c.l.b16 %v533
      %v1057 = vunpack.c.l.b16 %v534
      %v1058 = vunpack.c.l.b16 %v535
      %v1059 = vunpack.c.l.b16 %v536
      %v1060 = vunpack.c.l.b16 %v537
      %v1061 = vunpack.c.l.b16 %v538
      %v1062 = vunpack.c.l.b16 %v539
      %v1063 = vunpack.c.l.b16 %v540
      %v1064 = vunpack.c.l.b16 %v541
      %v1065 = vunpack.c.l.b16 %v542
      %v1066 = vunpack.c.l.b16 %v543
      %v1067 = vunpack.c.l.b16 %v544
      %v1068 = vunpack.c.l.b16 %v545
      %v1069 = vunpack.c.l.b16 %v546
      %v1070 = vunpack.c.l.b16 %v547
      %v1071 = vunpack.c.l.b16 %v548
      %v1072 = vunpack.c.l.b16 %v549
      %v1073 = vunpack.c.l.b16 %v550
      %v1074 = vunpack.c.l.b16 %v551
      %v1075 = vunpack.c.l.b16 %v552
      %v1076 = vunpack.c.l.b16 %v553
      %v1077 = vunpack.c.l.b16 %v554
      %v1078 = vunpack.c.l.b16 %v555
      %v1079 = vunpack.c.l.b16 %v556
      %v1080 = vunpack.c.l.b16 %v557
      %v1081 = vunpack.c.l.b16 %v558
      %v1082 = vunpack.c.l.b16 %v559
      %v1083 = vunpack.c.l.b16 %v560
      %v1084 = vunpack.c.l.b16 %v561
      %v1085 = vunpack.c.l.b16 %v562
      %v1086 = vunpack.c.l.b16 %v563
      %v1087 = vunpack.c.l.b16 %v564
      %v1088 = vunpack.c.l.b16 %v565
      %v1089 = vunpack.c.l.b16 %v566
      %v1090 = vunpack.c.l.b16 %v567
      %v1091 = vunpack.c.l.b16 %v568
      %v1092 = vunpack.c.l.b16 %v569
      %v1093 = vunpack.c.l.b16 %v570
      %v1094 = vunpack.c.l.b16 %v571
      %v1095 = vunpack.c.l.b16 %v572
      %v1096 = vunpack.c.l.b16 %v573
      %v1097 = vunpack.c.l.b16 %v574
      %v1098 = vunpack.c.l.b16 %v575
      %v1099 = vunpack.c.l.b16 %v576
      %v1100 = vunpack.c.l.b16 %v577
      %v1101 = vunpack.c.l.b16 %v578
      %v1102 = vunpack.c.l.b16 %v579
      %v1103 = vunpack.c.l.b16 %v580
      %v1104 = vunpack.c.l.b16 %v581
      %v1105 = vunpack.c.l.b16 %v582
      %v1106 = vunpack.c.l.b16 %v583
      %v1107 = vunpack.c.l.b16 %v584
      %v1108 = vunpack.c.l.b16 %v585
      %v1109 = vunpack.c.l.b16 %v586
      %v1110 = vunpack.c.l.b16 %v587
      %v1111 = vunpack.c.l.b16 %v588
      %v1112 = vunpack.c.l.b16 %v589
      %v1113 = vunpack.c.l.b16 %v590
      %v1114 = vunpack.c.l.b16 %v591
      %v1115 = vunpack.c.l.b16 %v592
      %v1116 = vunpack.c.l.b16 %v593
      %v1117 = vunpack.c.l.b16 %v594
      %v1118 = vunpack.c.l.b16 %v595
      %v1119 = vunpack.c.l.b16 %v596
      %v1120 = vunpack.c.l.b16 %v597
      %v1121 = vunpack.c.l.b16 %v598
      %v1122 = vunpack.c.l.b16 %v599
      %v1123 = vunpack.c.l.b16 %v600
      %v1124 = vunpack.c.l.b16 %v601
      %v1125 = vunpack.c.l.b16 %v602
      %v1126 = vunpack.c.l.b16 %v603
      %v1127 = vunpack.c.l.b16 %v604
      %v1128 = vunpack.c.l.b16 %v605
      %v1129 = vunpack.c.l.b16 %v606
      %v1130 = vunpack.c.l.b16 %v607
      %v1131 = vunpack.c.l.b16 %v608
      %v1132 = vunpack.c.l.b16 %v609
      %v1133 = vunpack.c.l.b16 %v610
      %v1134 = vunpack.c.l.b16 %v611
      %v1135 = vunpack.c.l.b16 %v612
      %v1136 = vunpack.c.l.b16 %v613
      %v1137 = vunpack.c.l.b16 %v614
      %v1138 = vunpack.c.l.b16 %v615
      %v1139 = vunpack.c.l.b16 %v616
      %v1140 = vunpack.c.l.b16 %v617
      %v1141 = vunpack.c.l.b16 %v618
      %v1142 = vunpack.c.l.b16 %v619
      %v1143 = vunpack.c.l.b16 %v620
      %v1144 = vunpack.c.l.b16 %v621
      %v1145 = vunpack.c.l.b16 %v622
      %v1146 = vunpack.c.l.b16 %v623
      %v1147 = vunpack.c.l.b16 %v624
      %v1148 = vunpack.c.l.b16 %v625
      %v1149 = vunpack.c.l.b16 %v626
      %v1150 = vunpack.c.l.b16 %v627
      %v1151 = vunpack.c.l.b16 %v628
      %v1152 = vunpack.c.l.b16 %v629
      %v1153 = vunpack.c.l.b16 %v630
      %v1154 = vunpack.c.l.b16 %v631
      %v1155 = vunpack.c.l.b16 %v632
      %v1156 = vunpack.c.l.b16 %v633
      %v1157 = vunpack.c.l.b16 %v634
      %v1158 = vpack.c.b16 %v1015, %v1014
      %v1159 = vpack.c.b16 %v1017, %v1016
      %v1160 = vpack.c.b16 %v1019, %v1018
      %v1161 = vpack.c.b16 %v1021, %v1020
      %v1162 = vpack.c.b16 %v1023, %v1022
      %v1163 = vpack.c.b16 %v1025, %v1024
      %v1164 = vpack.c.b16 %v1027, %v1026
      %v1165 = vpack.c.b16 %v1029, %v1028
      %v1166 = vpack.c.b16 %v1031, %v1030
      %v1167 = vpack.c.b16 %v1033, %v1032
      %v1168 = vpack.c.b16 %v1035, %v1034
      %v1169 = vpack.c.b16 %v1037, %v1036
      %v1170 = vpack.c.b16 %v1039, %v1038
      %v1171 = vpack.c.b16 %v1041, %v1040
      %v1172 = vpack.c.b16 %v1043, %v1042
      %v1173 = vpack.c.b16 %v1045, %v1044
      %v1174 = vpack.c.b16 %v1047, %v1046
      %v1175 = vpack.c.b16 %v1049, %v1048
      %v1176 = vpack.c.b16 %v1051, %v1050
      %v1177 = vpack.c.b16 %v1053, %v1052
      %v1178 = vpack.c.b16 %v1055, %v1054
      %v1179 = vpack.c.b16 %v1057, %v1056
      %v1180 = vpack.c.b16 %v1059, %v1058
      %v1181 = vpack.c.b16 %v1061, %v1060
      %v1182 = vpack.c.b16 %v1063, %v1062
      %v1183 = vpack.c.b16 %v1065, %v1064
      %v1184 = vpack.c.b16 %v1067, %v1066
      %v1185 = vpack.c.b16 %v1069, %v1068
      %v1186 = vpack.c.b16 %v1071, %v1070
      %v1187 = vpack.c.b16 %v1073, %v1072
      %v1188 = vpack.c.b16 %v1075, %v1074
      %v1189 = vpack.c.b16 %v1077, %v1076
      %v1190 = vpack.c.b16 %v1079, %v1078
      %v1191 = vpack.c.b16 %v1081, %v1080
      %v1192 = vpack.c.b16 %v1083, %v1082
      %v1193 = vpack.c.b16 %v1085, %v1084
      %v1194 = vpack.c.b16 %v1087, %v1086
      %v1195 = vpack.c.b16 %v1089, %v1088
      %v1196 = vpack.c.b16 %v1091, %v1090
      %v1197 = vpack.c.b16 %v1093, %v1092
      %v1198 = vpack.c.b16 %v1095, %v1094
      %v1199 = vpack.c.b16 %v1097, %v1096
      %v1200 = vpack.c.b16 %v1099, %v1098
      %v1201 = vpack.c.b16 %v1101, %v1100
      %v1202 = vpack.c.b16 %v1103, %v1102
      %v1203 = vpack.c.b16 %v1105, %v1104
      %v1204 = vpack.c.b16 %v1107, %v1106
      %v1205 = vpack.c.b16 %v1109, %v1108
      %v1206 = vpack.c.b16 %v1111, %v1110
      %v1207 = vpack.c.b16 %v1113, %v1112
      %v1208 = vpack.c.b16 %v1115, %v1114
      %v1209 = vpack.c.b16 %v1117, %v1116
      %v1210 = vpack.c.b16 %v1119, %v1118
      %v1211 = vpack.c.b16 %v1121, %v1120
      %v1212 = vpack.c.b16 %v1123, %v1122
      %v1213 = vpack.c.b16 %v1125, %v1124
      %v1214 = vpack.c.b16 %v1127, %v1126
      %v1215 = vpack.c.b16 %v1129, %v1128
      %v1216 = vpack.c.b16 %v1131, %v1130
      %v1217 = vpack.c.b16 %v1133, %v1132
      %v1218 = vpack.c.b16 %v1135, %v1134
      %v1219 = vpack.c.b16 %v1137, %v1136
      %v1220 = vpack.c.b16 %v1139, %v1138
      %v1221 = vpack.c.b16 %v1141, %v1140
      %v1222 = vpack.c.b16 %v1143, %v1142
      %v1223 = vpack.c.b16 %v1145, %v1144
      %v1224 = vpack.c.b16 %v1147, %v1146
      %v1225 = vpack.c.b16 %v1149, %v1148
      %v1226 = vpack.c.b16 %v1151, %v1150
      %v1227 = vpack.c.b16 %v1153, %v1152
      %v1228 = vpack.c.b16 %v1155, %v1154
      %v1229 = vpack.c.b16 %v1157, %v1156
      %1302 = vmatpush.bf16.msra.mxu0 %v1165
      %1303 = vmatpush.bf16.msra.mxu0 %v1164
      %1304 = vmatpush.bf16.msra.mxu0 %v1163
      %1305 = vmatpush.bf16.msra.mxu0 %v1162
      %1306 = vmatpush.bf16.msra.mxu0 %v1161
      %1307 = vmatpush.bf16.msra.mxu0 %v1160
      %1308 = vmatpush.bf16.msra.mxu0 %v1159
      %1309 = vmatpush.bf16.msra.mxu0 %v1158
      %1310 = vmatmul.bf16.gmra.mxu0 %v860
      %v1311 = vpop.f32.mrf.mxu0
      %v1312 = vadd.f32 %v869, %v1311
      %v1313 = vpop.f32.mrf.mxu0
      %v1314 = vadd.f32 %v869, %v1313
      %1315 = vdwg.mxu0
      %1316 = vmatpush.bf16.msra.mxu0 %v1173
      %1317 = vmatpush.bf16.msra.mxu0 %v1172
      %1318 = vmatpush.bf16.msra.mxu0 %v1171
      %1319 = vmatpush.bf16.msra.mxu0 %v1170
      %1320 = vmatpush.bf16.msra.mxu0 %v1169
      %1321 = vmatpush.bf16.msra.mxu0 %v1168
      %1322 = vmatpush.bf16.msra.mxu0 %v1167
      %1323 = vmatpush.bf16.msra.mxu0 %v1166
      %1324 = vmatmul.bf16.gmra.mxu0 %v861
      %v1325 = vpop.f32.mrf.mxu0
      %v1326 = vadd.f32 %v1312, %v1325
      %v1327 = vpop.f32.mrf.mxu0
      %v1328 = vadd.f32 %v1314, %v1327
      %1329 = vdwg.mxu0
      %1330 = vmatpush.bf16.msra.mxu0 %v1181
      %1331 = vmatpush.bf16.msra.mxu0 %v1180
      %1332 = vmatpush.bf16.msra.mxu0 %v1179
      %1333 = vmatpush.bf16.msra.mxu0 %v1178
      %1334 = vmatpush.bf16.msra.mxu0 %v1177
      %1335 = vmatpush.bf16.msra.mxu0 %v1176
      %1336 = vmatpush.bf16.msra.mxu0 %v1175
      %1337 = vmatpush.bf16.msra.mxu0 %v1174
      %1338 = vmatmul.bf16.gmra.mxu0 %v862
      %v1339 = vpop.f32.mrf.mxu0
      %v1340 = vadd.f32 %v1326, %v1339
      %v1341 = vpop.f32.mrf.mxu0
      %v1342 = vadd.f32 %v1328, %v1341
      %1343 = vdwg.mxu0
      %1344 = vmatpush.bf16.msra.mxu0 %v1189
      %1345 = vmatpush.bf16.msra.mxu0 %v1188
      %1346 = vmatpush.bf16.msra.mxu0 %v1187
      %1347 = vmatpush.bf16.msra.mxu0 %v1186
      %1348 = vmatpush.bf16.msra.mxu0 %v1185
      %1349 = vmatpush.bf16.msra.mxu0 %v1184
      %1350 = vmatpush.bf16.msra.mxu0 %v1183
      %1351 = vmatpush.bf16.msra.mxu0 %v1182
      %1352 = vmatmul.bf16.gmra.mxu0 %v863
      %v1353 = vpop.f32.mrf.mxu0
      %v1354 = vadd.f32 %v1340, %v1353
      %v1355 = vpop.f32.mrf.mxu0
      %v1356 = vadd.f32 %v1342, %v1355
      %1357 = vdwg.mxu0
      %1358 = vmatpush.bf16.msra.mxu0 %v1197
      %1359 = vmatpush.bf16.msra.mxu0 %v1196
      %1360 = vmatpush.bf16.msra.mxu0 %v1195
      %1361 = vmatpush.bf16.msra.mxu0 %v1194
      %1362 = vmatpush.bf16.msra.mxu0 %v1193
      %1363 = vmatpush.bf16.msra.mxu0 %v1192
      %1364 = vmatpush.bf16.msra.mxu0 %v1191
      %1365 = vmatpush.bf16.msra.mxu0 %v1190
      %1366 = vmatmul.bf16.gmra.mxu0 %v864
      %v1367 = vpop.f32.mrf.mxu0
      %v1368 = vadd.f32 %v1354, %v1367
      %v1369 = vpop.f32.mrf.mxu0
      %v1370 = vadd.f32 %v1356, %v1369
      %1371 = vdwg.mxu0
      %1372 = vmatpush.bf16.msra.mxu0 %v1205
      %1373 = vmatpush.bf16.msra.mxu0 %v1204
      %1374 = vmatpush.bf16.msra.mxu0 %v1203
      %1375 = vmatpush.bf16.msra.mxu0 %v1202
      %1376 = vmatpush.bf16.msra.mxu0 %v1201
      %1377 = vmatpush.bf16.msra.mxu0 %v1200
      %1378 = vmatpush.bf16.msra.mxu0 %v1199
      %1379 = vmatpush.bf16.msra.mxu0 %v1198
      %1380 = vmatmul.bf16.gmra.mxu0 %v865
      %v1381 = vpop.f32.mrf.mxu0
      %v1382 = vadd.f32 %v1368, %v1381
      %v1383 = vpop.f32.mrf.mxu0
      %v1384 = vadd.f32 %v1370, %v1383
      %1385 = vdwg.mxu0
      %1386 = vmatpush.bf16.msra.mxu0 %v1213
      %1387 = vmatpush.bf16.msra.mxu0 %v1212
      %1388 = vmatpush.bf16.msra.mxu0 %v1211
      %1389 = vmatpush.bf16.msra.mxu0 %v1210
      %1390 = vmatpush.bf16.msra.mxu0 %v1209
      %1391 = vmatpush.bf16.msra.mxu0 %v1208
      %1392 = vmatpush.bf16.msra.mxu0 %v1207
      %1393 = vmatpush.bf16.msra.mxu0 %v1206
      %1394 = vmatmul.bf16.gmra.mxu0 %v866
      %v1395 = vpop.f32.mrf.mxu0
      %v1396 = vadd.f32 %v1382, %v1395
      %v1397 = vpop.f32.mrf.mxu0
      %v1398 = vadd.f32 %v1384, %v1397
      %1399 = vdwg.mxu0
      %1400 = vmatpush.bf16.msra.mxu0 %v1221
      %1401 = vmatpush.bf16.msra.mxu0 %v1220
      %1402 = vmatpush.bf16.msra.mxu0 %v1219
      %1403 = vmatpush.bf16.msra.mxu0 %v1218
      %1404 = vmatpush.bf16.msra.mxu0 %v1217
      %1405 = vmatpush.bf16.msra.mxu0 %v1216
      %1406 = vmatpush.bf16.msra.mxu0 %v1215
      %1407 = vmatpush.bf16.msra.mxu0 %v1214
      %1408 = vmatmul.bf16.gmra.mxu0 %v867
      %v1409 = vpop.f32.mrf.mxu0
      %v1410 = vadd.f32 %v1396, %v1409
      %v1411 = vpop.f32.mrf.mxu0
      %v1412 = vadd.f32 %v1398, %v1411
      %1413 = vdwg.mxu0
      %1414 = vmatpush.bf16.msra.mxu0 %v1229
      %1415 = vmatpush.bf16.msra.mxu0 %v1228
      %1416 = vmatpush.bf16.msra.mxu0 %v1227
      %1417 = vmatpush.bf16.msra.mxu0 %v1226
      %1418 = vmatpush.bf16.msra.mxu0 %v1225
      %1419 = vmatpush.bf16.msra.mxu0 %v1224
      %1420 = vmatpush.bf16.msra.mxu0 %v1223
      %1421 = vmatpush.bf16.msra.mxu0 %v1222
      %1422 = vmatmul.bf16.gmra.mxu0 %v868
      %v1423 = vpop.f32.mrf.mxu0
      %v1424 = vadd.f32 %v1410, %v1423
      %v1425 = vpop.f32.mrf.mxu0
      %v1426 = vadd.f32 %v1412, %v1425
      %1427 = vdwg.mxu0
      %v1428 = vmax.f32 %v1424, 0.0
      %v1429 = vmax.f32 %v1426, 0.0
      %v1430 = vpack.c.bf16 %v1429, %v1428
      %s1431 = scalar_lea.vmem %s3, 576
      %v1432 = vld [vmem:[%s1431] sm:$0xf]
      %v1433 = vld [vmem:[%s1431 + $0x4] sm:$0xf]
      %v1434 = vld [vmem:[%s1431 + $0x8] sm:$0xf]
      %v1435 = vld [vmem:[%s1431 + $0xc] sm:$0xf]
      %v1436 = vld [vmem:[%s1431 + $0x10] sm:$0xf]
      %v1437 = vld [vmem:[%s1431 + $0x14] sm:$0xf]
      %v1438 = vld [vmem:[%s1431 + $0x18] sm:$0xf]
      %v1439 = vld [vmem:[%s1431 + $0x1c] sm:$0xf]
      %v1440 = vld [vmem:[%s1431 + $0x20] sm:$0xf]
      %v1441 = vld [vmem:[%s1431 + $0x24] sm:$0xf]
      %v1442 = vld [vmem:[%s1431 + $0x28] sm:$0xf]
      %v1443 = vld [vmem:[%s1431 + $0x2c] sm:$0xf]
      %v1444 = vld [vmem:[%s1431 + $0x30] sm:$0xf]
      %v1445 = vld [vmem:[%s1431 + $0x34] sm:$0xf]
      %v1446 = vld [vmem:[%s1431 + $0x38] sm:$0xf]
      %v1447 = vld [vmem:[%s1431 + $0x3c] sm:$0xf]
      %v1448 = vld [vmem:[%s1431 + $0x40] sm:$0xf]
      %v1449 = vld [vmem:[%s1431 + $0x44] sm:$0xf]
      %v1450 = vld [vmem:[%s1431 + $0x48] sm:$0xf]
      %v1451 = vld [vmem:[%s1431 + $0x4c] sm:$0xf]
      %v1452 = vld [vmem:[%s1431 + $0x50] sm:$0xf]
      %v1453 = vld [vmem:[%s1431 + $0x54] sm:$0xf]
      %v1454 = vld [vmem:[%s1431 + $0x58] sm:$0xf]
      %v1455 = vld [vmem:[%s1431 + $0x5c] sm:$0xf]
      %v1456 = vld [vmem:[%s1431 + $0x60] sm:$0xf]
      %v1457 = vld [vmem:[%s1431 + $0x64] sm:$0xf]
      %v1458 = vld [vmem:[%s1431 + $0x68] sm:$0xf]
      %v1459 = vld [vmem:[%s1431 + $0x6c] sm:$0xf]
      %v1460 = vld [vmem:[%s1431 + $0x70] sm:$0xf]
      %v1461 = vld [vmem:[%s1431 + $0x74] sm:$0xf]
      %v1462 = vld [vmem:[%s1431 + $0x78] sm:$0xf]
      %v1463 = vld [vmem:[%s1431 + $0x7c] sm:$0xf]
      %v1464 = vld [vmem:[%s1431 + $0x80] sm:$0xf]
      %v1465 = vld [vmem:[%s1431 + $0x84] sm:$0xf]
      %v1466 = vld [vmem:[%s1431 + $0x88] sm:$0xf]
      %v1467 = vld [vmem:[%s1431 + $0x8c] sm:$0xf]
      %v1468 = vld [vmem:[%s1431 + $0x90] sm:$0xf]
      %v1469 = vld [vmem:[%s1431 + $0x94] sm:$0xf]
      %v1470 = vld [vmem:[%s1431 + $0x98] sm:$0xf]
      %v1471 = vld [vmem:[%s1431 + $0x9c] sm:$0xf]
      %v1472 = vld [vmem:[%s1431 + $0xa0] sm:$0xf]
      %v1473 = vld [vmem:[%s1431 + $0xa4] sm:$0xf]
      %v1474 = vld [vmem:[%s1431 + $0xa8] sm:$0xf]
      %v1475 = vld [vmem:[%s1431 + $0xac] sm:$0xf]
      %v1476 = vld [vmem:[%s1431 + $0xb0] sm:$0xf]
      %v1477 = vld [vmem:[%s1431 + $0xb4] sm:$0xf]
      %v1478 = vld [vmem:[%s1431 + $0xb8] sm:$0xf]
      %v1479 = vld [vmem:[%s1431 + $0xbc] sm:$0xf]
      %v1480 = vld [vmem:[%s1431 + $0xc0] sm:$0xf]
      %v1481 = vld [vmem:[%s1431 + $0xc4] sm:$0xf]
      %v1482 = vld [vmem:[%s1431 + $0xc8] sm:$0xf]
      %v1483 = vld [vmem:[%s1431 + $0xcc] sm:$0xf]
      %v1484 = vld [vmem:[%s1431 + $0xd0] sm:$0xf]
      %v1485 = vld [vmem:[%s1431 + $0xd4] sm:$0xf]
      %v1486 = vld [vmem:[%s1431 + $0xd8] sm:$0xf]
      %v1487 = vld [vmem:[%s1431 + $0xdc] sm:$0xf]
      %v1488 = vld [vmem:[%s1431 + $0xe0] sm:$0xf]
      %v1489 = vld [vmem:[%s1431 + $0xe4] sm:$0xf]
      %v1490 = vld [vmem:[%s1431 + $0xe8] sm:$0xf]
      %v1491 = vld [vmem:[%s1431 + $0xec] sm:$0xf]
      %v1492 = vld [vmem:[%s1431 + $0xf0] sm:$0xf]
      %v1493 = vld [vmem:[%s1431 + $0xf4] sm:$0xf]
      %v1494 = vld [vmem:[%s1431 + $0xf8] sm:$0xf]
      %v1495 = vld [vmem:[%s1431 + $0xfc] sm:$0xf]
      %v1496 = vld [vmem:[%s1431 + $0x100] sm:$0xf]
      %v1497 = vld [vmem:[%s1431 + $0x104] sm:$0xf]
      %v1498 = vld [vmem:[%s1431 + $0x108] sm:$0xf]
      %v1499 = vld [vmem:[%s1431 + $0x10c] sm:$0xf]
      %v1500 = vld [vmem:[%s1431 + $0x110] sm:$0xf]
      %v1501 = vld [vmem:[%s1431 + $0x114] sm:$0xf]
      %v1502 = vld [vmem:[%s1431 + $0x118] sm:$0xf]
      %v1503 = vld [vmem:[%s1431 + $0x11c] sm:$0xf]
      %v1504 = vld [vmem:[%s1431 + $0x120] sm:$0xf]
      %v1505 = vld [vmem:[%s1431 + $0x124] sm:$0xf]
      %v1506 = vld [vmem:[%s1431 + $0x128] sm:$0xf]
      %v1507 = vld [vmem:[%s1431 + $0x12c] sm:$0xf]
      %v1508 = vld [vmem:[%s1431 + $0x130] sm:$0xf]
      %v1509 = vld [vmem:[%s1431 + $0x134] sm:$0xf]
      %v1510 = vld [vmem:[%s1431 + $0x138] sm:$0xf]
      %v1511 = vld [vmem:[%s1431 + $0x13c] sm:$0xf]
      %v1512 = vld [vmem:[%s1431 + $0x140] sm:$0xf]
      %v1513 = vld [vmem:[%s1431 + $0x144] sm:$0xf]
      %v1514 = vld [vmem:[%s1431 + $0x148] sm:$0xf]
      %v1515 = vld [vmem:[%s1431 + $0x14c] sm:$0xf]
      %v1516 = vld [vmem:[%s1431 + $0x150] sm:$0xf]
      %v1517 = vld [vmem:[%s1431 + $0x154] sm:$0xf]
      %v1518 = vld [vmem:[%s1431 + $0x158] sm:$0xf]
      %v1519 = vld [vmem:[%s1431 + $0x15c] sm:$0xf]
      %v1520 = vld [vmem:[%s1431 + $0x160] sm:$0xf]
      %v1521 = vld [vmem:[%s1431 + $0x164] sm:$0xf]
      %v1522 = vld [vmem:[%s1431 + $0x168] sm:$0xf]
      %v1523 = vld [vmem:[%s1431 + $0x16c] sm:$0xf]
      %v1524 = vld [vmem:[%s1431 + $0x170] sm:$0xf]
      %v1525 = vld [vmem:[%s1431 + $0x174] sm:$0xf]
      %v1526 = vld [vmem:[%s1431 + $0x178] sm:$0xf]
      %v1527 = vld [vmem:[%s1431 + $0x17c] sm:$0xf]
      %v1528 = vld [vmem:[%s1431 + $0x180] sm:$0xf]
      %v1529 = vld [vmem:[%s1431 + $0x184] sm:$0xf]
      %v1530 = vld [vmem:[%s1431 + $0x188] sm:$0xf]
      %v1531 = vld [vmem:[%s1431 + $0x18c] sm:$0xf]
      %v1532 = vld [vmem:[%s1431 + $0x190] sm:$0xf]
      %v1533 = vld [vmem:[%s1431 + $0x194] sm:$0xf]
      %v1534 = vld [vmem:[%s1431 + $0x198] sm:$0xf]
      %v1535 = vld [vmem:[%s1431 + $0x19c] sm:$0xf]
      %v1536 = vld [vmem:[%s1431 + $0x1a0] sm:$0xf]
      %v1537 = vld [vmem:[%s1431 + $0x1a4] sm:$0xf]
      %v1538 = vld [vmem:[%s1431 + $0x1a8] sm:$0xf]
      %v1539 = vld [vmem:[%s1431 + $0x1ac] sm:$0xf]
      %v1540 = vld [vmem:[%s1431 + $0x1b0] sm:$0xf]
      %v1541 = vld [vmem:[%s1431 + $0x1b4] sm:$0xf]
      %v1542 = vld [vmem:[%s1431 + $0x1b8] sm:$0xf]
      %v1543 = vld [vmem:[%s1431 + $0x1bc] sm:$0xf]
      %v1544 = vld [vmem:[%s1431 + $0x1c0] sm:$0xf]
      %v1545 = vld [vmem:[%s1431 + $0x1c4] sm:$0xf]
      %v1546 = vld [vmem:[%s1431 + $0x1c8] sm:$0xf]
      %v1547 = vld [vmem:[%s1431 + $0x1cc] sm:$0xf]
      %v1548 = vld [vmem:[%s1431 + $0x1d0] sm:$0xf]
      %v1549 = vld [vmem:[%s1431 + $0x1d4] sm:$0xf]
      %v1550 = vld [vmem:[%s1431 + $0x1d8] sm:$0xf]
      %v1551 = vld [vmem:[%s1431 + $0x1dc] sm:$0xf]
      %v1552 = vld [vmem:[%s1431 + $0x1e0] sm:$0xf]
      %v1553 = vld [vmem:[%s1431 + $0x1e4] sm:$0xf]
      %v1554 = vld [vmem:[%s1431 + $0x1e8] sm:$0xf]
      %v1555 = vld [vmem:[%s1431 + $0x1ec] sm:$0xf]
      %v1556 = vld [vmem:[%s1431 + $0x1f0] sm:$0xf]
      %v1557 = vld [vmem:[%s1431 + $0x1f4] sm:$0xf]
      %v1558 = vld [vmem:[%s1431 + $0x1f8] sm:$0xf]
      %v1559 = vld [vmem:[%s1431 + $0x1fc] sm:$0xf]
      %v1560 = vld [vmem:[%s1431 + $0x200] sm:$0xf]
      %v1561 = vld [vmem:[%s1431 + $0x204] sm:$0xf]
      %v1562 = vld [vmem:[%s1431 + $0x208] sm:$0xf]
      %v1563 = vld [vmem:[%s1431 + $0x20c] sm:$0xf]
      %v1564 = vld [vmem:[%s1431 + $0x210] sm:$0xf]
      %v1565 = vld [vmem:[%s1431 + $0x214] sm:$0xf]
      %v1566 = vld [vmem:[%s1431 + $0x218] sm:$0xf]
      %v1567 = vld [vmem:[%s1431 + $0x21c] sm:$0xf]
      %v1568 = vld [vmem:[%s1431 + $0x220] sm:$0xf]
      %v1569 = vld [vmem:[%s1431 + $0x224] sm:$0xf]
      %v1570 = vld [vmem:[%s1431 + $0x228] sm:$0xf]
      %v1571 = vld [vmem:[%s1431 + $0x22c] sm:$0xf]
      %v1572 = vld [vmem:[%s1431 + $0x230] sm:$0xf]
      %v1573 = vld [vmem:[%s1431 + $0x234] sm:$0xf]
      %v1574 = vld [vmem:[%s1431 + $0x238] sm:$0xf]
      %v1575 = vld [vmem:[%s1431 + $0x23c] sm:$0xf]
      %v1576 = vld [vmem:[%s6] sm:$0xf]
      %vm1577 = vcmask 130048
      %v1579 = vsel %vm1577, %v1576, 0
      %1581 = vmatpush.bf16.msra.mxu0 0
      %1582 = vmatpush.bf16.msra.mxu0 0
      %1583 = vmatpush.bf16.msra.mxu0 0
      %1584 = vmatpush.bf16.msra.mxu0 0
      %1585 = vmatpush.bf16.msra.mxu0 0
      %1586 = vmatpush.bf16.msra.mxu0 0
      %1587 = vmatpush.bf16.msra.mxu0 0
      %1588 = vmatpush.bf16.msra.mxu0 %v1430
      %1589 = vmatmul.bf16.gmra.mxu0 %v1579
      %v1590 = vpop.f32.mrf.mxu0
      %v1591 = vadd.f32 0.0, %v1590
      %v1592 = vpop.f32.mrf.mxu0
      %1593 = vdwg.mxu0
      %s1594 = scalar_lea.vmem %s6, 4
      %v1595 = vld [vmem:[%s1594] sm:$0xf]
      %v1597 = vsel %vm1577, %v1595, 0
      %1599 = vmatpush.bf16.msra.mxu0 0
      %1600 = vmatpush.bf16.msra.mxu0 0
      %1601 = vmatpush.bf16.msra.mxu0 0
      %1602 = vmatpush.bf16.msra.mxu0 0
      %1603 = vmatpush.bf16.msra.mxu0 0
      %1604 = vmatpush.bf16.msra.mxu0 0
      %1605 = vmatpush.bf16.msra.mxu0 0
      %1606 = vmatpush.bf16.msra.mxu0 %v1430
      %1607 = vmatmul.bf16.gmra.mxu0 %v1597
      %v1608 = vpop.f32.mrf.mxu0
      %v1609 = vadd.f32 0.0, %v1608
      %v1610 = vpop.f32.mrf.mxu0
      %1611 = vdwg.mxu0
      %s1612 = scalar_lea.vmem %s6, 8
      %v1613 = vld [vmem:[%s1612] sm:$0xf]
      %v1615 = vsel %vm1577, %v1613, 0
      %1617 = vmatpush.bf16.msra.mxu0 0
      %1618 = vmatpush.bf16.msra.mxu0 0
      %1619 = vmatpush.bf16.msra.mxu0 0
      %1620 = vmatpush.bf16.msra.mxu0 0
      %1621 = vmatpush.bf16.msra.mxu0 0
      %1622 = vmatpush.bf16.msra.mxu0 0
      %1623 = vmatpush.bf16.msra.mxu0 0
      %1624 = vmatpush.bf16.msra.mxu0 %v1430
      %1625 = vmatmul.bf16.gmra.mxu0 %v1615
      %v1626 = vpop.f32.mrf.mxu0
      %v1627 = vadd.f32 0.0, %v1626
      %v1628 = vpop.f32.mrf.mxu0
      %1629 = vdwg.mxu0
      %s1630 = scalar_lea.vmem %s6, 12
      %v1631 = vld [vmem:[%s1630] sm:$0xf]
      %v1633 = vsel %vm1577, %v1631, 0
      %1635 = vmatpush.bf16.msra.mxu0 0
      %1636 = vmatpush.bf16.msra.mxu0 0
      %1637 = vmatpush.bf16.msra.mxu0 0
      %1638 = vmatpush.bf16.msra.mxu0 0
      %1639 = vmatpush.bf16.msra.mxu0 0
      %1640 = vmatpush.bf16.msra.mxu0 0
      %1641 = vmatpush.bf16.msra.mxu0 0
      %1642 = vmatpush.bf16.msra.mxu0 %v1430
      %1643 = vmatmul.bf16.gmra.mxu0 %v1633
      %v1644 = vpop.f32.mrf.mxu0
      %v1645 = vadd.f32 0.0, %v1644
      %v1646 = vpop.f32.mrf.mxu0
      %1647 = vdwg.mxu0
      %s1648 = scalar_lea.vmem %s6, 16
      %v1649 = vld [vmem:[%s1648] sm:$0xf]
      %v1651 = vsel %vm1577, %v1649, 0
      %1653 = vmatpush.bf16.msra.mxu0 0
      %1654 = vmatpush.bf16.msra.mxu0 0
      %1655 = vmatpush.bf16.msra.mxu0 0
      %1656 = vmatpush.bf16.msra.mxu0 0
      %1657 = vmatpush.bf16.msra.mxu0 0
      %1658 = vmatpush.bf16.msra.mxu0 0
      %1659 = vmatpush.bf16.msra.mxu0 0
      %1660 = vmatpush.bf16.msra.mxu0 %v1430
      %1661 = vmatmul.bf16.gmra.mxu0 %v1651
      %v1662 = vpop.f32.mrf.mxu0
      %v1663 = vadd.f32 0.0, %v1662
      %v1664 = vpop.f32.mrf.mxu0
      %1665 = vdwg.mxu0
      %s1666 = scalar_lea.vmem %s6, 20
      %v1667 = vld [vmem:[%s1666] sm:$0xf]
      %v1669 = vsel %vm1577, %v1667, 0
      %1671 = vmatpush.bf16.msra.mxu0 0
      %1672 = vmatpush.bf16.msra.mxu0 0
      %1673 = vmatpush.bf16.msra.mxu0 0
      %1674 = vmatpush.bf16.msra.mxu0 0
      %1675 = vmatpush.bf16.msra.mxu0 0
      %1676 = vmatpush.bf16.msra.mxu0 0
      %1677 = vmatpush.bf16.msra.mxu0 0
      %1678 = vmatpush.bf16.msra.mxu0 %v1430
      %1679 = vmatmul.bf16.gmra.mxu0 %v1669
      %v1680 = vpop.f32.mrf.mxu0
      %v1681 = vadd.f32 0.0, %v1680
      %v1682 = vpop.f32.mrf.mxu0
      %1683 = vdwg.mxu0
      %s1684 = scalar_lea.vmem %s6, 24
      %v1685 = vld [vmem:[%s1684] sm:$0xf]
      %v1687 = vsel %vm1577, %v1685, 0
      %1689 = vmatpush.bf16.msra.mxu0 0
      %1690 = vmatpush.bf16.msra.mxu0 0
      %1691 = vmatpush.bf16.msra.mxu0 0
      %1692 = vmatpush.bf16.msra.mxu0 0
      %1693 = vmatpush.bf16.msra.mxu0 0
      %1694 = vmatpush.bf16.msra.mxu0 0
      %1695 = vmatpush.bf16.msra.mxu0 0
      %1696 = vmatpush.bf16.msra.mxu0 %v1430
      %1697 = vmatmul.bf16.gmra.mxu0 %v1687
      %v1698 = vpop.f32.mrf.mxu0
      %v1699 = vadd.f32 0.0, %v1698
      %v1700 = vpop.f32.mrf.mxu0
      %1701 = vdwg.mxu0
      %s1702 = scalar_lea.vmem %s6, 28
      %v1703 = vld [vmem:[%s1702] sm:$0xf]
      %v1705 = vsel %vm1577, %v1703, 0
      %1707 = vmatpush.bf16.msra.mxu0 0
      %1708 = vmatpush.bf16.msra.mxu0 0
      %1709 = vmatpush.bf16.msra.mxu0 0
      %1710 = vmatpush.bf16.msra.mxu0 0
      %1711 = vmatpush.bf16.msra.mxu0 0
      %1712 = vmatpush.bf16.msra.mxu0 0
      %1713 = vmatpush.bf16.msra.mxu0 0
      %1714 = vmatpush.bf16.msra.mxu0 %v1430
      %1715 = vmatmul.bf16.gmra.mxu0 %v1705
      %v1716 = vpop.f32.mrf.mxu0
      %v1717 = vadd.f32 0.0, %v1716
      %v1718 = vpop.f32.mrf.mxu0
      %1719 = vdwg.mxu0
      %s1720 = scalar_lea.vmem %s6, 32
      %v1721 = vld [vmem:[%s1720] sm:$0xf]
      %v1723 = vsel %vm1577, %v1721, 0
      %1725 = vmatpush.bf16.msra.mxu0 0
      %1726 = vmatpush.bf16.msra.mxu0 0
      %1727 = vmatpush.bf16.msra.mxu0 0
      %1728 = vmatpush.bf16.msra.mxu0 0
      %1729 = vmatpush.bf16.msra.mxu0 0
      %1730 = vmatpush.bf16.msra.mxu0 0
      %1731 = vmatpush.bf16.msra.mxu0 0
      %1732 = vmatpush.bf16.msra.mxu0 %v1430
      %1733 = vmatmul.bf16.gmra.mxu0 %v1723
      %v1734 = vpop.f32.mrf.mxu0
      %v1735 = vadd.f32 0.0, %v1734
      %v1736 = vpop.f32.mrf.mxu0
      %1737 = vdwg.mxu0
      %v1738 = vpack.c.bf16 %v1591, %v1591
      %v1739 = vpack.c.bf16 %v1609, %v1609
      %v1740 = vpack.c.bf16 %v1627, %v1627
      %v1741 = vpack.c.bf16 %v1645, %v1645
      %v1742 = vpack.c.bf16 %v1663, %v1663
      %v1743 = vpack.c.bf16 %v1681, %v1681
      %v1744 = vpack.c.bf16 %v1699, %v1699
      %v1745 = vpack.c.bf16 %v1717, %v1717
      %v1746 = vpack.c.bf16 %v1735, %v1735
      %v1747 = vperm.slane %v391, 2
      %v1892 = vunpack.c.l.b16 %v1432
      %v1893 = vunpack.c.l.b16 %v1433
      %v1894 = vunpack.c.l.b16 %v1434
      %v1895 = vunpack.c.l.b16 %v1435
      %v1896 = vunpack.c.l.b16 %v1436
      %v1897 = vunpack.c.l.b16 %v1437
      %v1898 = vunpack.c.l.b16 %v1438
      %v1899 = vunpack.c.l.b16 %v1439
      %v1900 = vunpack.c.l.b16 %v1440
      %v1901 = vunpack.c.l.b16 %v1441
      %v1902 = vunpack.c.l.b16 %v1442
      %v1903 = vunpack.c.l.b16 %v1443
      %v1904 = vunpack.c.l.b16 %v1444
      %v1905 = vunpack.c.l.b16 %v1445
      %v1906 = vunpack.c.l.b16 %v1446
      %v1907 = vunpack.c.l.b16 %v1447
      %v1908 = vunpack.c.l.b16 %v1448
      %v1909 = vunpack.c.l.b16 %v1449
      %v1910 = vunpack.c.l.b16 %v1450
      %v1911 = vunpack.c.l.b16 %v1451
      %v1912 = vunpack.c.l.b16 %v1452
      %v1913 = vunpack.c.l.b16 %v1453
      %v1914 = vunpack.c.l.b16 %v1454
      %v1915 = vunpack.c.l.b16 %v1455
      %v1916 = vunpack.c.l.b16 %v1456
      %v1917 = vunpack.c.l.b16 %v1457
      %v1918 = vunpack.c.l.b16 %v1458
      %v1919 = vunpack.c.l.b16 %v1459
      %v1920 = vunpack.c.l.b16 %v1460
      %v1921 = vunpack.c.l.b16 %v1461
      %v1922 = vunpack.c.l.b16 %v1462
      %v1923 = vunpack.c.l.b16 %v1463
      %v1924 = vunpack.c.l.b16 %v1464
      %v1925 = vunpack.c.l.b16 %v1465
      %v1926 = vunpack.c.l.b16 %v1466
      %v1927 = vunpack.c.l.b16 %v1467
      %v1928 = vunpack.c.l.b16 %v1468
      %v1929 = vunpack.c.l.b16 %v1469
      %v1930 = vunpack.c.l.b16 %v1470
      %v1931 = vunpack.c.l.b16 %v1471
      %v1932 = vunpack.c.l.b16 %v1472
      %v1933 = vunpack.c.l.b16 %v1473
      %v1934 = vunpack.c.l.b16 %v1474
      %v1935 = vunpack.c.l.b16 %v1475
      %v1936 = vunpack.c.l.b16 %v1476
      %v1937 = vunpack.c.l.b16 %v1477
      %v1938 = vunpack.c.l.b16 %v1478
      %v1939 = vunpack.c.l.b16 %v1479
      %v1940 = vunpack.c.l.b16 %v1480
      %v1941 = vunpack.c.l.b16 %v1481
      %v1942 = vunpack.c.l.b16 %v1482
      %v1943 = vunpack.c.l.b16 %v1483
      %v1944 = vunpack.c.l.b16 %v1484
      %v1945 = vunpack.c.l.b16 %v1485
      %v1946 = vunpack.c.l.b16 %v1486
      %v1947 = vunpack.c.l.b16 %v1487
      %v1948 = vunpack.c.l.b16 %v1488
      %v1949 = vunpack.c.l.b16 %v1489
      %v1950 = vunpack.c.l.b16 %v1490
      %v1951 = vunpack.c.l.b16 %v1491
      %v1952 = vunpack.c.l.b16 %v1492
      %v1953 = vunpack.c.l.b16 %v1493
      %v1954 = vunpack.c.l.b16 %v1494
      %v1955 = vunpack.c.l.b16 %v1495
      %v1956 = vunpack.c.l.b16 %v1496
      %v1957 = vunpack.c.l.b16 %v1497
      %v1958 = vunpack.c.l.b16 %v1498
      %v1959 = vunpack.c.l.b16 %v1499
      %v1960 = vunpack.c.l.b16 %v1500
      %v1961 = vunpack.c.l.b16 %v1501
      %v1962 = vunpack.c.l.b16 %v1502
      %v1963 = vunpack.c.l.b16 %v1503
      %v1964 = vunpack.c.l.b16 %v1504
      %v1965 = vunpack.c.l.b16 %v1505
      %v1966 = vunpack.c.l.b16 %v1506
      %v1967 = vunpack.c.l.b16 %v1507
      %v1968 = vunpack.c.l.b16 %v1508
      %v1969 = vunpack.c.l.b16 %v1509
      %v1970 = vunpack.c.l.b16 %v1510
      %v1971 = vunpack.c.l.b16 %v1511
      %v1972 = vunpack.c.l.b16 %v1512
      %v1973 = vunpack.c.l.b16 %v1513
      %v1974 = vunpack.c.l.b16 %v1514
      %v1975 = vunpack.c.l.b16 %v1515
      %v1976 = vunpack.c.l.b16 %v1516
      %v1977 = vunpack.c.l.b16 %v1517
      %v1978 = vunpack.c.l.b16 %v1518
      %v1979 = vunpack.c.l.b16 %v1519
      %v1980 = vunpack.c.l.b16 %v1520
      %v1981 = vunpack.c.l.b16 %v1521
      %v1982 = vunpack.c.l.b16 %v1522
      %v1983 = vunpack.c.l.b16 %v1523
      %v1984 = vunpack.c.l.b16 %v1524
      %v1985 = vunpack.c.l.b16 %v1525
      %v1986 = vunpack.c.l.b16 %v1526
      %v1987 = vunpack.c.l.b16 %v1527
      %v1988 = vunpack.c.l.b16 %v1528
      %v1989 = vunpack.c.l.b16 %v1529
      %v1990 = vunpack.c.l.b16 %v1530
      %v1991 = vunpack.c.l.b16 %v1531
      %v1992 = vunpack.c.l.b16 %v1532
      %v1993 = vunpack.c.l.b16 %v1533
      %v1994 = vunpack.c.l.b16 %v1534
      %v1995 = vunpack.c.l.b16 %v1535
      %v1996 = vunpack.c.l.b16 %v1536
      %v1997 = vunpack.c.l.b16 %v1537
      %v1998 = vunpack.c.l.b16 %v1538
      %v1999 = vunpack.c.l.b16 %v1539
      %v2000 = vunpack.c.l.b16 %v1540
      %v2001 = vunpack.c.l.b16 %v1541
      %v2002 = vunpack.c.l.b16 %v1542
      %v2003 = vunpack.c.l.b16 %v1543
      %v2004 = vunpack.c.l.b16 %v1544
      %v2005 = vunpack.c.l.b16 %v1545
      %v2006 = vunpack.c.l.b16 %v1546
      %v2007 = vunpack.c.l.b16 %v1547
      %v2008 = vunpack.c.l.b16 %v1548
      %v2009 = vunpack.c.l.b16 %v1549
      %v2010 = vunpack.c.l.b16 %v1550
      %v2011 = vunpack.c.l.b16 %v1551
      %v2012 = vunpack.c.l.b16 %v1552
      %v2013 = vunpack.c.l.b16 %v1553
      %v2014 = vunpack.c.l.b16 %v1554
      %v2015 = vunpack.c.l.b16 %v1555
      %v2016 = vunpack.c.l.b16 %v1556
      %v2017 = vunpack.c.l.b16 %v1557
      %v2018 = vunpack.c.l.b16 %v1558
      %v2019 = vunpack.c.l.b16 %v1559
      %v2020 = vunpack.c.l.b16 %v1560
      %v2021 = vunpack.c.l.b16 %v1561
      %v2022 = vunpack.c.l.b16 %v1562
      %v2023 = vunpack.c.l.b16 %v1563
      %v2024 = vunpack.c.l.b16 %v1564
      %v2025 = vunpack.c.l.b16 %v1565
      %v2026 = vunpack.c.l.b16 %v1566
      %v2027 = vunpack.c.l.b16 %v1567
      %v2028 = vunpack.c.l.b16 %v1568
      %v2029 = vunpack.c.l.b16 %v1569
      %v2030 = vunpack.c.l.b16 %v1570
      %v2031 = vunpack.c.l.b16 %v1571
      %v2032 = vunpack.c.l.b16 %v1572
      %v2033 = vunpack.c.l.b16 %v1573
      %v2034 = vunpack.c.l.b16 %v1574
      %v2035 = vunpack.c.l.b16 %v1575
      %v2036 = vpack.c.b16 %v1893, %v1892
      %v2037 = vpack.c.b16 %v1895, %v1894
      %v2038 = vpack.c.b16 %v1897, %v1896
      %v2039 = vpack.c.b16 %v1899, %v1898
      %v2040 = vpack.c.b16 %v1901, %v1900
      %v2041 = vpack.c.b16 %v1903, %v1902
      %v2042 = vpack.c.b16 %v1905, %v1904
      %v2043 = vpack.c.b16 %v1907, %v1906
      %v2044 = vpack.c.b16 %v1909, %v1908
      %v2045 = vpack.c.b16 %v1911, %v1910
      %v2046 = vpack.c.b16 %v1913, %v1912
      %v2047 = vpack.c.b16 %v1915, %v1914
      %v2048 = vpack.c.b16 %v1917, %v1916
      %v2049 = vpack.c.b16 %v1919, %v1918
      %v2050 = vpack.c.b16 %v1921, %v1920
      %v2051 = vpack.c.b16 %v1923, %v1922
      %v2052 = vpack.c.b16 %v1925, %v1924
      %v2053 = vpack.c.b16 %v1927, %v1926
      %v2054 = vpack.c.b16 %v1929, %v1928
      %v2055 = vpack.c.b16 %v1931, %v1930
      %v2056 = vpack.c.b16 %v1933, %v1932
      %v2057 = vpack.c.b16 %v1935, %v1934
      %v2058 = vpack.c.b16 %v1937, %v1936
      %v2059 = vpack.c.b16 %v1939, %v1938
      %v2060 = vpack.c.b16 %v1941, %v1940
      %v2061 = vpack.c.b16 %v1943, %v1942
      %v2062 = vpack.c.b16 %v1945, %v1944
      %v2063 = vpack.c.b16 %v1947, %v1946
      %v2064 = vpack.c.b16 %v1949, %v1948
      %v2065 = vpack.c.b16 %v1951, %v1950
      %v2066 = vpack.c.b16 %v1953, %v1952
      %v2067 = vpack.c.b16 %v1955, %v1954
      %v2068 = vpack.c.b16 %v1957, %v1956
      %v2069 = vpack.c.b16 %v1959, %v1958
      %v2070 = vpack.c.b16 %v1961, %v1960
      %v2071 = vpack.c.b16 %v1963, %v1962
      %v2072 = vpack.c.b16 %v1965, %v1964
      %v2073 = vpack.c.b16 %v1967, %v1966
      %v2074 = vpack.c.b16 %v1969, %v1968
      %v2075 = vpack.c.b16 %v1971, %v1970
      %v2076 = vpack.c.b16 %v1973, %v1972
      %v2077 = vpack.c.b16 %v1975, %v1974
      %v2078 = vpack.c.b16 %v1977, %v1976
      %v2079 = vpack.c.b16 %v1979, %v1978
      %v2080 = vpack.c.b16 %v1981, %v1980
      %v2081 = vpack.c.b16 %v1983, %v1982
      %v2082 = vpack.c.b16 %v1985, %v1984
      %v2083 = vpack.c.b16 %v1987, %v1986
      %v2084 = vpack.c.b16 %v1989, %v1988
      %v2085 = vpack.c.b16 %v1991, %v1990
      %v2086 = vpack.c.b16 %v1993, %v1992
      %v2087 = vpack.c.b16 %v1995, %v1994
      %v2088 = vpack.c.b16 %v1997, %v1996
      %v2089 = vpack.c.b16 %v1999, %v1998
      %v2090 = vpack.c.b16 %v2001, %v2000
      %v2091 = vpack.c.b16 %v2003, %v2002
      %v2092 = vpack.c.b16 %v2005, %v2004
      %v2093 = vpack.c.b16 %v2007, %v2006
      %v2094 = vpack.c.b16 %v2009, %v2008
      %v2095 = vpack.c.b16 %v2011, %v2010
      %v2096 = vpack.c.b16 %v2013, %v2012
      %v2097 = vpack.c.b16 %v2015, %v2014
      %v2098 = vpack.c.b16 %v2017, %v2016
      %v2099 = vpack.c.b16 %v2019, %v2018
      %v2100 = vpack.c.b16 %v2021, %v2020
      %v2101 = vpack.c.b16 %v2023, %v2022
      %v2102 = vpack.c.b16 %v2025, %v2024
      %v2103 = vpack.c.b16 %v2027, %v2026
      %v2104 = vpack.c.b16 %v2029, %v2028
      %v2105 = vpack.c.b16 %v2031, %v2030
      %v2106 = vpack.c.b16 %v2033, %v2032
      %v2107 = vpack.c.b16 %v2035, %v2034
      %2180 = vmatpush.bf16.msra.mxu0 %v2043
      %2181 = vmatpush.bf16.msra.mxu0 %v2042
      %2182 = vmatpush.bf16.msra.mxu0 %v2041
      %2183 = vmatpush.bf16.msra.mxu0 %v2040
      %2184 = vmatpush.bf16.msra.mxu0 %v2039
      %2185 = vmatpush.bf16.msra.mxu0 %v2038
      %2186 = vmatpush.bf16.msra.mxu0 %v2037
      %2187 = vmatpush.bf16.msra.mxu0 %v2036
      %2188 = vmatmul.bf16.gmra.mxu0 %v1738
      %v2189 = vpop.f32.mrf.mxu0
      %v2190 = vadd.f32 %v1747, %v2189
      %v2191 = vpop.f32.mrf.mxu0
      %2192 = vdwg.mxu0
      %2193 = vmatpush.bf16.msra.mxu0 %v2051
      %2194 = vmatpush.bf16.msra.mxu0 %v2050
      %2195 = vmatpush.bf16.msra.mxu0 %v2049
      %2196 = vmatpush.bf16.msra.mxu0 %v2048
      %2197 = vmatpush.bf16.msra.mxu0 %v2047
      %2198 = vmatpush.bf16.msra.mxu0 %v2046
      %2199 = vmatpush.bf16.msra.mxu0 %v2045
      %2200 = vmatpush.bf16.msra.mxu0 %v2044
      %2201 = vmatmul.bf16.gmra.mxu0 %v1739
      %v2202 = vpop.f32.mrf.mxu0
      %v2203 = vadd.f32 %v2190, %v2202
      %v2204 = vpop.f32.mrf.mxu0
      %2205 = vdwg.mxu0
      %2206 = vmatpush.bf16.msra.mxu0 %v2059
      %2207 = vmatpush.bf16.msra.mxu0 %v2058
      %2208 = vmatpush.bf16.msra.mxu0 %v2057
      %2209 = vmatpush.bf16.msra.mxu0 %v2056
      %2210 = vmatpush.bf16.msra.mxu0 %v2055
      %2211 = vmatpush.bf16.msra.mxu0 %v2054
      %2212 = vmatpush.bf16.msra.mxu0 %v2053
      %2213 = vmatpush.bf16.msra.mxu0 %v2052
      %2214 = vmatmul.bf16.gmra.mxu0 %v1740
      %v2215 = vpop.f32.mrf.mxu0
      %v2216 = vadd.f32 %v2203, %v2215
      %v2217 = vpop.f32.mrf.mxu0
      %2218 = vdwg.mxu0
      %2219 = vmatpush.bf16.msra.mxu0 %v2067
      %2220 = vmatpush.bf16.msra.mxu0 %v2066
      %2221 = vmatpush.bf16.msra.mxu0 %v2065
      %2222 = vmatpush.bf16.msra.mxu0 %v2064
      %2223 = vmatpush.bf16.msra.mxu0 %v2063
      %2224 = vmatpush.bf16.msra.mxu0 %v2062
      %2225 = vmatpush.bf16.msra.mxu0 %v2061
      %2226 = vmatpush.bf16.msra.mxu0 %v2060
      %2227 = vmatmul.bf16.gmra.mxu0 %v1741
      %v2228 = vpop.f32.mrf.mxu0
      %v2229 = vadd.f32 %v2216, %v2228
      %v2230 = vpop.f32.mrf.mxu0
      %2231 = vdwg.mxu0
      %2232 = vmatpush.bf16.msra.mxu0 %v2075
      %2233 = vmatpush.bf16.msra.mxu0 %v2074
      %2234 = vmatpush.bf16.msra.mxu0 %v2073
      %2235 = vmatpush.bf16.msra.mxu0 %v2072
      %2236 = vmatpush.bf16.msra.mxu0 %v2071
      %2237 = vmatpush.bf16.msra.mxu0 %v2070
      %2238 = vmatpush.bf16.msra.mxu0 %v2069
      %2239 = vmatpush.bf16.msra.mxu0 %v2068
      %2240 = vmatmul.bf16.gmra.mxu0 %v1742
      %v2241 = vpop.f32.mrf.mxu0
      %v2242 = vadd.f32 %v2229, %v2241
      %v2243 = vpop.f32.mrf.mxu0
      %2244 = vdwg.mxu0
      %2245 = vmatpush.bf16.msra.mxu0 %v2083
      %2246 = vmatpush.bf16.msra.mxu0 %v2082
      %2247 = vmatpush.bf16.msra.mxu0 %v2081
      %2248 = vmatpush.bf16.msra.mxu0 %v2080
      %2249 = vmatpush.bf16.msra.mxu0 %v2079
      %2250 = vmatpush.bf16.msra.mxu0 %v2078
      %2251 = vmatpush.bf16.msra.mxu0 %v2077
      %2252 = vmatpush.bf16.msra.mxu0 %v2076
      %2253 = vmatmul.bf16.gmra.mxu0 %v1743
      %v2254 = vpop.f32.mrf.mxu0
      %v2255 = vadd.f32 %v2242, %v2254
      %v2256 = vpop.f32.mrf.mxu0
      %2257 = vdwg.mxu0
      %2258 = vmatpush.bf16.msra.mxu0 %v2091
      %2259 = vmatpush.bf16.msra.mxu0 %v2090
      %2260 = vmatpush.bf16.msra.mxu0 %v2089
      %2261 = vmatpush.bf16.msra.mxu0 %v2088
      %2262 = vmatpush.bf16.msra.mxu0 %v2087
      %2263 = vmatpush.bf16.msra.mxu0 %v2086
      %2264 = vmatpush.bf16.msra.mxu0 %v2085
      %2265 = vmatpush.bf16.msra.mxu0 %v2084
      %2266 = vmatmul.bf16.gmra.mxu0 %v1744
      %v2267 = vpop.f32.mrf.mxu0
      %v2268 = vadd.f32 %v2255, %v2267
      %v2269 = vpop.f32.mrf.mxu0
      %2270 = vdwg.mxu0
      %2271 = vmatpush.bf16.msra.mxu0 %v2099
      %2272 = vmatpush.bf16.msra.mxu0 %v2098
      %2273 = vmatpush.bf16.msra.mxu0 %v2097
      %2274 = vmatpush.bf16.msra.mxu0 %v2096
      %2275 = vmatpush.bf16.msra.mxu0 %v2095
      %2276 = vmatpush.bf16.msra.mxu0 %v2094
      %2277 = vmatpush.bf16.msra.mxu0 %v2093
      %2278 = vmatpush.bf16.msra.mxu0 %v2092
      %2279 = vmatmul.bf16.gmra.mxu0 %v1745
      %v2280 = vpop.f32.mrf.mxu0
      %v2281 = vadd.f32 %v2268, %v2280
      %v2282 = vpop.f32.mrf.mxu0
      %2283 = vdwg.mxu0
      %2284 = vmatpush.bf16.msra.mxu0 %v2107
      %2285 = vmatpush.bf16.msra.mxu0 %v2106
      %2286 = vmatpush.bf16.msra.mxu0 %v2105
      %2287 = vmatpush.bf16.msra.mxu0 %v2104
      %2288 = vmatpush.bf16.msra.mxu0 %v2103
      %2289 = vmatpush.bf16.msra.mxu0 %v2102
      %2290 = vmatpush.bf16.msra.mxu0 %v2101
      %2291 = vmatpush.bf16.msra.mxu0 %v2100
      %2292 = vmatmul.bf16.gmra.mxu0 %v1746
      %v2293 = vpop.f32.mrf.mxu0
      %v2294 = vadd.f32 %v2281, %v2293
      %v2295 = vpop.f32.mrf.mxu0
      %2296 = vdwg.mxu0
      %v2297 = vmax.f32 %v2294, 0.0
      %v2298 = vpack.c.bf16 %v2297, %v2297
      %s2299 = scalar_lea.vmem %s3, 1152
      %v2300 = vld [vmem:[%s2299] sm:$0xf]
      %v2301 = vld [vmem:[%s2299 + $0x4] sm:$0xf]
      %v2302 = vld [vmem:[%s2299 + $0x8] sm:$0xf]
      %v2303 = vld [vmem:[%s2299 + $0xc] sm:$0xf]
      %v2304 = vld [vmem:[%s2299 + $0x10] sm:$0xf]
      %v2305 = vld [vmem:[%s2299 + $0x14] sm:$0xf]
      %v2306 = vld [vmem:[%s2299 + $0x18] sm:$0xf]
      %v2307 = vld [vmem:[%s2299 + $0x1c] sm:$0xf]
      %v2308 = vld [vmem:[%s2299 + $0x20] sm:$0xf]
      %v2309 = vld [vmem:[%s2299 + $0x24] sm:$0xf]
      %v2310 = vld [vmem:[%s2299 + $0x28] sm:$0xf]
      %v2311 = vld [vmem:[%s2299 + $0x2c] sm:$0xf]
      %v2312 = vld [vmem:[%s2299 + $0x30] sm:$0xf]
      %v2313 = vld [vmem:[%s2299 + $0x34] sm:$0xf]
      %v2314 = vld [vmem:[%s2299 + $0x38] sm:$0xf]
      %v2315 = vld [vmem:[%s2299 + $0x3c] sm:$0xf]
      %v2316 = vld [vmem:[%s2299 + $0x40] sm:$0xf]
      %v2317 = vld [vmem:[%s2299 + $0x44] sm:$0xf]
      %v2318 = vld [vmem:[%s2299 + $0x48] sm:$0xf]
      %v2319 = vld [vmem:[%s2299 + $0x4c] sm:$0xf]
      %v2320 = vld [vmem:[%s2299 + $0x50] sm:$0xf]
      %v2321 = vld [vmem:[%s2299 + $0x54] sm:$0xf]
      %v2322 = vld [vmem:[%s2299 + $0x58] sm:$0xf]
      %v2323 = vld [vmem:[%s2299 + $0x5c] sm:$0xf]
      %v2324 = vld [vmem:[%s2299 + $0x60] sm:$0xf]
      %v2325 = vld [vmem:[%s2299 + $0x64] sm:$0xf]
      %v2326 = vld [vmem:[%s2299 + $0x68] sm:$0xf]
      %v2327 = vld [vmem:[%s2299 + $0x6c] sm:$0xf]
      %v2328 = vld [vmem:[%s2299 + $0x70] sm:$0xf]
      %v2329 = vld [vmem:[%s2299 + $0x74] sm:$0xf]
      %v2330 = vld [vmem:[%s2299 + $0x78] sm:$0xf]
      %v2331 = vld [vmem:[%s2299 + $0x7c] sm:$0xf]
      %v2332 = vld [vmem:[%s2299 + $0x80] sm:$0xf]
      %v2333 = vld [vmem:[%s2299 + $0x84] sm:$0xf]
      %v2334 = vld [vmem:[%s2299 + $0x88] sm:$0xf]
      %v2335 = vld [vmem:[%s2299 + $0x8c] sm:$0xf]
      %v2336 = vld [vmem:[%s2299 + $0x90] sm:$0xf]
      %v2337 = vld [vmem:[%s2299 + $0x94] sm:$0xf]
      %v2338 = vld [vmem:[%s2299 + $0x98] sm:$0xf]
      %v2339 = vld [vmem:[%s2299 + $0x9c] sm:$0xf]
      %v2340 = vld [vmem:[%s2299 + $0xa0] sm:$0xf]
      %v2341 = vld [vmem:[%s2299 + $0xa4] sm:$0xf]
      %v2342 = vld [vmem:[%s2299 + $0xa8] sm:$0xf]
      %v2343 = vld [vmem:[%s2299 + $0xac] sm:$0xf]
      %v2344 = vld [vmem:[%s2299 + $0xb0] sm:$0xf]
      %v2345 = vld [vmem:[%s2299 + $0xb4] sm:$0xf]
      %v2346 = vld [vmem:[%s2299 + $0xb8] sm:$0xf]
      %v2347 = vld [vmem:[%s2299 + $0xbc] sm:$0xf]
      %v2348 = vld [vmem:[%s2299 + $0xc0] sm:$0xf]
      %v2349 = vld [vmem:[%s2299 + $0xc4] sm:$0xf]
      %v2350 = vld [vmem:[%s2299 + $0xc8] sm:$0xf]
      %v2351 = vld [vmem:[%s2299 + $0xcc] sm:$0xf]
      %v2352 = vld [vmem:[%s2299 + $0xd0] sm:$0xf]
      %v2353 = vld [vmem:[%s2299 + $0xd4] sm:$0xf]
      %v2354 = vld [vmem:[%s2299 + $0xd8] sm:$0xf]
      %v2355 = vld [vmem:[%s2299 + $0xdc] sm:$0xf]
      %v2356 = vld [vmem:[%s2299 + $0xe0] sm:$0xf]
      %v2357 = vld [vmem:[%s2299 + $0xe4] sm:$0xf]
      %v2358 = vld [vmem:[%s2299 + $0xe8] sm:$0xf]
      %v2359 = vld [vmem:[%s2299 + $0xec] sm:$0xf]
      %v2360 = vld [vmem:[%s2299 + $0xf0] sm:$0xf]
      %v2361 = vld [vmem:[%s2299 + $0xf4] sm:$0xf]
      %v2362 = vld [vmem:[%s2299 + $0xf8] sm:$0xf]
      %v2363 = vld [vmem:[%s2299 + $0xfc] sm:$0xf]
      %v2364 = vld [vmem:[%s2299 + $0x100] sm:$0xf]
      %v2365 = vld [vmem:[%s2299 + $0x104] sm:$0xf]
      %v2366 = vld [vmem:[%s2299 + $0x108] sm:$0xf]
      %v2367 = vld [vmem:[%s2299 + $0x10c] sm:$0xf]
      %v2368 = vld [vmem:[%s2299 + $0x110] sm:$0xf]
      %v2369 = vld [vmem:[%s2299 + $0x114] sm:$0xf]
      %v2370 = vld [vmem:[%s2299 + $0x118] sm:$0xf]
      %v2371 = vld [vmem:[%s2299 + $0x11c] sm:$0xf]
      %v2372 = vld [vmem:[%s2299 + $0x120] sm:$0xf]
      %v2373 = vld [vmem:[%s2299 + $0x124] sm:$0xf]
      %v2374 = vld [vmem:[%s2299 + $0x128] sm:$0xf]
      %v2375 = vld [vmem:[%s2299 + $0x12c] sm:$0xf]
      %v2376 = vld [vmem:[%s2299 + $0x130] sm:$0xf]
      %v2377 = vld [vmem:[%s2299 + $0x134] sm:$0xf]
      %v2378 = vld [vmem:[%s2299 + $0x138] sm:$0xf]
      %v2379 = vld [vmem:[%s2299 + $0x13c] sm:$0xf]
      %v2380 = vld [vmem:[%s2299 + $0x140] sm:$0xf]
      %v2381 = vld [vmem:[%s2299 + $0x144] sm:$0xf]
      %v2382 = vld [vmem:[%s2299 + $0x148] sm:$0xf]
      %v2383 = vld [vmem:[%s2299 + $0x14c] sm:$0xf]
      %v2384 = vld [vmem:[%s2299 + $0x150] sm:$0xf]
      %v2385 = vld [vmem:[%s2299 + $0x154] sm:$0xf]
      %v2386 = vld [vmem:[%s2299 + $0x158] sm:$0xf]
      %v2387 = vld [vmem:[%s2299 + $0x15c] sm:$0xf]
      %v2388 = vld [vmem:[%s2299 + $0x160] sm:$0xf]
      %v2389 = vld [vmem:[%s2299 + $0x164] sm:$0xf]
      %v2390 = vld [vmem:[%s2299 + $0x168] sm:$0xf]
      %v2391 = vld [vmem:[%s2299 + $0x16c] sm:$0xf]
      %v2392 = vld [vmem:[%s2299 + $0x170] sm:$0xf]
      %v2393 = vld [vmem:[%s2299 + $0x174] sm:$0xf]
      %v2394 = vld [vmem:[%s2299 + $0x178] sm:$0xf]
      %v2395 = vld [vmem:[%s2299 + $0x17c] sm:$0xf]
      %v2396 = vld [vmem:[%s2299 + $0x180] sm:$0xf]
      %v2397 = vld [vmem:[%s2299 + $0x184] sm:$0xf]
      %v2398 = vld [vmem:[%s2299 + $0x188] sm:$0xf]
      %v2399 = vld [vmem:[%s2299 + $0x18c] sm:$0xf]
      %v2400 = vld [vmem:[%s2299 + $0x190] sm:$0xf]
      %v2401 = vld [vmem:[%s2299 + $0x194] sm:$0xf]
      %v2402 = vld [vmem:[%s2299 + $0x198] sm:$0xf]
      %v2403 = vld [vmem:[%s2299 + $0x19c] sm:$0xf]
      %v2404 = vld [vmem:[%s2299 + $0x1a0] sm:$0xf]
      %v2405 = vld [vmem:[%s2299 + $0x1a4] sm:$0xf]
      %v2406 = vld [vmem:[%s2299 + $0x1a8] sm:$0xf]
      %v2407 = vld [vmem:[%s2299 + $0x1ac] sm:$0xf]
      %v2408 = vld [vmem:[%s2299 + $0x1b0] sm:$0xf]
      %v2409 = vld [vmem:[%s2299 + $0x1b4] sm:$0xf]
      %v2410 = vld [vmem:[%s2299 + $0x1b8] sm:$0xf]
      %v2411 = vld [vmem:[%s2299 + $0x1bc] sm:$0xf]
      %v2412 = vld [vmem:[%s2299 + $0x1c0] sm:$0xf]
      %v2413 = vld [vmem:[%s2299 + $0x1c4] sm:$0xf]
      %v2414 = vld [vmem:[%s2299 + $0x1c8] sm:$0xf]
      %v2415 = vld [vmem:[%s2299 + $0x1cc] sm:$0xf]
      %v2416 = vld [vmem:[%s2299 + $0x1d0] sm:$0xf]
      %v2417 = vld [vmem:[%s2299 + $0x1d4] sm:$0xf]
      %v2418 = vld [vmem:[%s2299 + $0x1d8] sm:$0xf]
      %v2419 = vld [vmem:[%s2299 + $0x1dc] sm:$0xf]
      %v2420 = vld [vmem:[%s2299 + $0x1e0] sm:$0xf]
      %v2421 = vld [vmem:[%s2299 + $0x1e4] sm:$0xf]
      %v2422 = vld [vmem:[%s2299 + $0x1e8] sm:$0xf]
      %v2423 = vld [vmem:[%s2299 + $0x1ec] sm:$0xf]
      %v2424 = vld [vmem:[%s2299 + $0x1f0] sm:$0xf]
      %v2425 = vld [vmem:[%s2299 + $0x1f4] sm:$0xf]
      %v2426 = vld [vmem:[%s2299 + $0x1f8] sm:$0xf]
      %v2427 = vld [vmem:[%s2299 + $0x1fc] sm:$0xf]
      %v2428 = vld [vmem:[%s2299 + $0x200] sm:$0xf]
      %v2429 = vld [vmem:[%s2299 + $0x204] sm:$0xf]
      %v2430 = vld [vmem:[%s2299 + $0x208] sm:$0xf]
      %v2431 = vld [vmem:[%s2299 + $0x20c] sm:$0xf]
      %v2432 = vld [vmem:[%s2299 + $0x210] sm:$0xf]
      %v2433 = vld [vmem:[%s2299 + $0x214] sm:$0xf]
      %v2434 = vld [vmem:[%s2299 + $0x218] sm:$0xf]
      %v2435 = vld [vmem:[%s2299 + $0x21c] sm:$0xf]
      %v2436 = vld [vmem:[%s2299 + $0x220] sm:$0xf]
      %v2437 = vld [vmem:[%s2299 + $0x224] sm:$0xf]
      %v2438 = vld [vmem:[%s2299 + $0x228] sm:$0xf]
      %v2439 = vld [vmem:[%s2299 + $0x22c] sm:$0xf]
      %v2440 = vld [vmem:[%s2299 + $0x230] sm:$0xf]
      %v2441 = vld [vmem:[%s2299 + $0x234] sm:$0xf]
      %v2442 = vld [vmem:[%s2299 + $0x238] sm:$0xf]
      %v2443 = vld [vmem:[%s2299 + $0x23c] sm:$0xf]
      %v2444 = vld [vmem:[%s7] sm:$0xf]
      %vm2445 = vcmask 64512
      %v2447 = vsel %vm2445, %v2444, 0
      %vm2449 = vcmask 1043456
      %v2451 = vsel %vm2449, %v2298, 0
      %2453 = vmatpush.bf16.msra.mxu0 0
      %2454 = vmatpush.bf16.msra.mxu0 0
      %2455 = vmatpush.bf16.msra.mxu0 0
      %2456 = vmatpush.bf16.msra.mxu0 0
      %2457 = vmatpush.bf16.msra.mxu0 0
      %2458 = vmatpush.bf16.msra.mxu0 0
      %2459 = vmatpush.bf16.msra.mxu0 0
      %2460 = vmatpush.bf16.msra.mxu0 %v2451
      %2461 = vmatmul.bf16.gmra.mxu0 %v2447
      %v2462 = vpop.f32.mrf.mxu0
      %v2463 = vadd.f32 0.0, %v2462
      %v2464 = vpop.f32.mrf.mxu0
      %2465 = vdwg.mxu0
      %s2466 = scalar_lea.vmem %s7, 4
      %v2467 = vld [vmem:[%s2466] sm:$0xf]
      %v2469 = vsel %vm2445, %v2467, 0
      %2471 = vmatpush.bf16.msra.mxu0 0
      %2472 = vmatpush.bf16.msra.mxu0 0
      %2473 = vmatpush.bf16.msra.mxu0 0
      %2474 = vmatpush.bf16.msra.mxu0 0
      %2475 = vmatpush.bf16.msra.mxu0 0
      %2476 = vmatpush.bf16.msra.mxu0 0
      %2477 = vmatpush.bf16.msra.mxu0 0
      %2478 = vmatpush.bf16.msra.mxu0 %v2451
      %2479 = vmatmul.bf16.gmra.mxu0 %v2469
      %v2480 = vpop.f32.mrf.mxu0
      %v2481 = vadd.f32 0.0, %v2480
      %v2482 = vpop.f32.mrf.mxu0
      %2483 = vdwg.mxu0
      %s2484 = scalar_lea.vmem %s7, 8
      %v2485 = vld [vmem:[%s2484] sm:$0xf]
      %v2487 = vsel %vm2445, %v2485, 0
      %2489 = vmatpush.bf16.msra.mxu0 0
      %2490 = vmatpush.bf16.msra.mxu0 0
      %2491 = vmatpush.bf16.msra.mxu0 0
      %2492 = vmatpush.bf16.msra.mxu0 0
      %2493 = vmatpush.bf16.msra.mxu0 0
      %2494 = vmatpush.bf16.msra.mxu0 0
      %2495 = vmatpush.bf16.msra.mxu0 0
      %2496 = vmatpush.bf16.msra.mxu0 %v2451
      %2497 = vmatmul.bf16.gmra.mxu0 %v2487
      %v2498 = vpop.f32.mrf.mxu0
      %v2499 = vadd.f32 0.0, %v2498
      %v2500 = vpop.f32.mrf.mxu0
      %2501 = vdwg.mxu0
      %s2502 = scalar_lea.vmem %s7, 12
      %v2503 = vld [vmem:[%s2502] sm:$0xf]
      %v2505 = vsel %vm2445, %v2503, 0
      %2507 = vmatpush.bf16.msra.mxu0 0
      %2508 = vmatpush.bf16.msra.mxu0 0
      %2509 = vmatpush.bf16.msra.mxu0 0
      %2510 = vmatpush.bf16.msra.mxu0 0
      %2511 = vmatpush.bf16.msra.mxu0 0
      %2512 = vmatpush.bf16.msra.mxu0 0
      %2513 = vmatpush.bf16.msra.mxu0 0
      %2514 = vmatpush.bf16.msra.mxu0 %v2451
      %2515 = vmatmul.bf16.gmra.mxu0 %v2505
      %v2516 = vpop.f32.mrf.mxu0
      %v2517 = vadd.f32 0.0, %v2516
      %v2518 = vpop.f32.mrf.mxu0
      %2519 = vdwg.mxu0
      %s2520 = scalar_lea.vmem %s7, 16
      %v2521 = vld [vmem:[%s2520] sm:$0xf]
      %v2523 = vsel %vm2445, %v2521, 0
      %2525 = vmatpush.bf16.msra.mxu0 0
      %2526 = vmatpush.bf16.msra.mxu0 0
      %2527 = vmatpush.bf16.msra.mxu0 0
      %2528 = vmatpush.bf16.msra.mxu0 0
      %2529 = vmatpush.bf16.msra.mxu0 0
      %2530 = vmatpush.bf16.msra.mxu0 0
      %2531 = vmatpush.bf16.msra.mxu0 0
      %2532 = vmatpush.bf16.msra.mxu0 %v2451
      %2533 = vmatmul.bf16.gmra.mxu0 %v2523
      %v2534 = vpop.f32.mrf.mxu0
      %v2535 = vadd.f32 0.0, %v2534
      %v2536 = vpop.f32.mrf.mxu0
      %2537 = vdwg.mxu0
      %s2538 = scalar_lea.vmem %s7, 20
      %v2539 = vld [vmem:[%s2538] sm:$0xf]
      %v2541 = vsel %vm2445, %v2539, 0
      %2543 = vmatpush.bf16.msra.mxu0 0
      %2544 = vmatpush.bf16.msra.mxu0 0
      %2545 = vmatpush.bf16.msra.mxu0 0
      %2546 = vmatpush.bf16.msra.mxu0 0
      %2547 = vmatpush.bf16.msra.mxu0 0
      %2548 = vmatpush.bf16.msra.mxu0 0
      %2549 = vmatpush.bf16.msra.mxu0 0
      %2550 = vmatpush.bf16.msra.mxu0 %v2451
      %2551 = vmatmul.bf16.gmra.mxu0 %v2541
      %v2552 = vpop.f32.mrf.mxu0
      %v2553 = vadd.f32 0.0, %v2552
      %v2554 = vpop.f32.mrf.mxu0
      %2555 = vdwg.mxu0
      %s2556 = scalar_lea.vmem %s7, 24
      %v2557 = vld [vmem:[%s2556] sm:$0xf]
      %v2559 = vsel %vm2445, %v2557, 0
      %2561 = vmatpush.bf16.msra.mxu0 0
      %2562 = vmatpush.bf16.msra.mxu0 0
      %2563 = vmatpush.bf16.msra.mxu0 0
      %2564 = vmatpush.bf16.msra.mxu0 0
      %2565 = vmatpush.bf16.msra.mxu0 0
      %2566 = vmatpush.bf16.msra.mxu0 0
      %2567 = vmatpush.bf16.msra.mxu0 0
      %2568 = vmatpush.bf16.msra.mxu0 %v2451
      %2569 = vmatmul.bf16.gmra.mxu0 %v2559
      %v2570 = vpop.f32.mrf.mxu0
      %v2571 = vadd.f32 0.0, %v2570
      %v2572 = vpop.f32.mrf.mxu0
      %2573 = vdwg.mxu0
      %s2574 = scalar_lea.vmem %s7, 28
      %v2575 = vld [vmem:[%s2574] sm:$0xf]
      %v2577 = vsel %vm2445, %v2575, 0
      %2579 = vmatpush.bf16.msra.mxu0 0
      %2580 = vmatpush.bf16.msra.mxu0 0
      %2581 = vmatpush.bf16.msra.mxu0 0
      %2582 = vmatpush.bf16.msra.mxu0 0
      %2583 = vmatpush.bf16.msra.mxu0 0
      %2584 = vmatpush.bf16.msra.mxu0 0
      %2585 = vmatpush.bf16.msra.mxu0 0
      %2586 = vmatpush.bf16.msra.mxu0 %v2451
      %2587 = vmatmul.bf16.gmra.mxu0 %v2577
      %v2588 = vpop.f32.mrf.mxu0
      %v2589 = vadd.f32 0.0, %v2588
      %v2590 = vpop.f32.mrf.mxu0
      %2591 = vdwg.mxu0
      %s2592 = scalar_lea.vmem %s7, 32
      %v2593 = vld [vmem:[%s2592] sm:$0xf]
      %v2595 = vsel %vm2445, %v2593, 0
      %2597 = vmatpush.bf16.msra.mxu0 0
      %2598 = vmatpush.bf16.msra.mxu0 0
      %2599 = vmatpush.bf16.msra.mxu0 0
      %2600 = vmatpush.bf16.msra.mxu0 0
      %2601 = vmatpush.bf16.msra.mxu0 0
      %2602 = vmatpush.bf16.msra.mxu0 0
      %2603 = vmatpush.bf16.msra.mxu0 0
      %2604 = vmatpush.bf16.msra.mxu0 %v2451
      %2605 = vmatmul.bf16.gmra.mxu0 %v2595
      %v2606 = vpop.f32.mrf.mxu0
      %v2607 = vadd.f32 0.0, %v2606
      %v2608 = vpop.f32.mrf.mxu0
      %2609 = vdwg.mxu0
      %v2610 = vpack.c.bf16 %v2463, %v2463
      %v2611 = vpack.c.bf16 %v2481, %v2481
      %v2612 = vpack.c.bf16 %v2499, %v2499
      %v2613 = vpack.c.bf16 %v2517, %v2517
      %v2614 = vpack.c.bf16 %v2535, %v2535
      %v2615 = vpack.c.bf16 %v2553, %v2553
      %v2616 = vpack.c.bf16 %v2571, %v2571
      %v2617 = vpack.c.bf16 %v2589, %v2589
      %v2618 = vpack.c.bf16 %v2607, %v2607
      %v2619 = vperm.slane %v391, 3
      %v2764 = vunpack.c.l.b16 %v2300
      %v2765 = vunpack.c.l.b16 %v2301
      %v2766 = vunpack.c.l.b16 %v2302
      %v2767 = vunpack.c.l.b16 %v2303
      %v2768 = vunpack.c.l.b16 %v2304
      %v2769 = vunpack.c.l.b16 %v2305
      %v2770 = vunpack.c.l.b16 %v2306
      %v2771 = vunpack.c.l.b16 %v2307
      %v2772 = vunpack.c.l.b16 %v2308
      %v2773 = vunpack.c.l.b16 %v2309
      %v2774 = vunpack.c.l.b16 %v2310
      %v2775 = vunpack.c.l.b16 %v2311
      %v2776 = vunpack.c.l.b16 %v2312
      %v2777 = vunpack.c.l.b16 %v2313
      %v2778 = vunpack.c.l.b16 %v2314
      %v2779 = vunpack.c.l.b16 %v2315
      %v2780 = vunpack.c.l.b16 %v2316
      %v2781 = vunpack.c.l.b16 %v2317
      %v2782 = vunpack.c.l.b16 %v2318
      %v2783 = vunpack.c.l.b16 %v2319
      %v2784 = vunpack.c.l.b16 %v2320
      %v2785 = vunpack.c.l.b16 %v2321
      %v2786 = vunpack.c.l.b16 %v2322
      %v2787 = vunpack.c.l.b16 %v2323
      %v2788 = vunpack.c.l.b16 %v2324
      %v2789 = vunpack.c.l.b16 %v2325
      %v2790 = vunpack.c.l.b16 %v2326
      %v2791 = vunpack.c.l.b16 %v2327
      %v2792 = vunpack.c.l.b16 %v2328
      %v2793 = vunpack.c.l.b16 %v2329
      %v2794 = vunpack.c.l.b16 %v2330
      %v2795 = vunpack.c.l.b16 %v2331
      %v2796 = vunpack.c.l.b16 %v2332
      %v2797 = vunpack.c.l.b16 %v2333
      %v2798 = vunpack.c.l.b16 %v2334
      %v2799 = vunpack.c.l.b16 %v2335
      %v2800 = vunpack.c.l.b16 %v2336
      %v2801 = vunpack.c.l.b16 %v2337
      %v2802 = vunpack.c.l.b16 %v2338
      %v2803 = vunpack.c.l.b16 %v2339
      %v2804 = vunpack.c.l.b16 %v2340
      %v2805 = vunpack.c.l.b16 %v2341
      %v2806 = vunpack.c.l.b16 %v2342
      %v2807 = vunpack.c.l.b16 %v2343
      %v2808 = vunpack.c.l.b16 %v2344
      %v2809 = vunpack.c.l.b16 %v2345
      %v2810 = vunpack.c.l.b16 %v2346
      %v2811 = vunpack.c.l.b16 %v2347
      %v2812 = vunpack.c.l.b16 %v2348
      %v2813 = vunpack.c.l.b16 %v2349
      %v2814 = vunpack.c.l.b16 %v2350
      %v2815 = vunpack.c.l.b16 %v2351
      %v2816 = vunpack.c.l.b16 %v2352
      %v2817 = vunpack.c.l.b16 %v2353
      %v2818 = vunpack.c.l.b16 %v2354
      %v2819 = vunpack.c.l.b16 %v2355
      %v2820 = vunpack.c.l.b16 %v2356
      %v2821 = vunpack.c.l.b16 %v2357
      %v2822 = vunpack.c.l.b16 %v2358
      %v2823 = vunpack.c.l.b16 %v2359
      %v2824 = vunpack.c.l.b16 %v2360
      %v2825 = vunpack.c.l.b16 %v2361
      %v2826 = vunpack.c.l.b16 %v2362
      %v2827 = vunpack.c.l.b16 %v2363
      %v2828 = vunpack.c.l.b16 %v2364
      %v2829 = vunpack.c.l.b16 %v2365
      %v2830 = vunpack.c.l.b16 %v2366
      %v2831 = vunpack.c.l.b16 %v2367
      %v2832 = vunpack.c.l.b16 %v2368
      %v2833 = vunpack.c.l.b16 %v2369
      %v2834 = vunpack.c.l.b16 %v2370
      %v2835 = vunpack.c.l.b16 %v2371
      %v2836 = vunpack.c.l.b16 %v2372
      %v2837 = vunpack.c.l.b16 %v2373
      %v2838 = vunpack.c.l.b16 %v2374
      %v2839 = vunpack.c.l.b16 %v2375
      %v2840 = vunpack.c.l.b16 %v2376
      %v2841 = vunpack.c.l.b16 %v2377
      %v2842 = vunpack.c.l.b16 %v2378
      %v2843 = vunpack.c.l.b16 %v2379
      %v2844 = vunpack.c.l.b16 %v2380
      %v2845 = vunpack.c.l.b16 %v2381
      %v2846 = vunpack.c.l.b16 %v2382
      %v2847 = vunpack.c.l.b16 %v2383
      %v2848 = vunpack.c.l.b16 %v2384
      %v2849 = vunpack.c.l.b16 %v2385
      %v2850 = vunpack.c.l.b16 %v2386
      %v2851 = vunpack.c.l.b16 %v2387
      %v2852 = vunpack.c.l.b16 %v2388
      %v2853 = vunpack.c.l.b16 %v2389
      %v2854 = vunpack.c.l.b16 %v2390
      %v2855 = vunpack.c.l.b16 %v2391
      %v2856 = vunpack.c.l.b16 %v2392
      %v2857 = vunpack.c.l.b16 %v2393
      %v2858 = vunpack.c.l.b16 %v2394
      %v2859 = vunpack.c.l.b16 %v2395
      %v2860 = vunpack.c.l.b16 %v2396
      %v2861 = vunpack.c.l.b16 %v2397
      %v2862 = vunpack.c.l.b16 %v2398
      %v2863 = vunpack.c.l.b16 %v2399
      %v2864 = vunpack.c.l.b16 %v2400
      %v2865 = vunpack.c.l.b16 %v2401
      %v2866 = vunpack.c.l.b16 %v2402
      %v2867 = vunpack.c.l.b16 %v2403
      %v2868 = vunpack.c.l.b16 %v2404
      %v2869 = vunpack.c.l.b16 %v2405
      %v2870 = vunpack.c.l.b16 %v2406
      %v2871 = vunpack.c.l.b16 %v2407
      %v2872 = vunpack.c.l.b16 %v2408
      %v2873 = vunpack.c.l.b16 %v2409
      %v2874 = vunpack.c.l.b16 %v2410
      %v2875 = vunpack.c.l.b16 %v2411
      %v2876 = vunpack.c.l.b16 %v2412
      %v2877 = vunpack.c.l.b16 %v2413
      %v2878 = vunpack.c.l.b16 %v2414
      %v2879 = vunpack.c.l.b16 %v2415
      %v2880 = vunpack.c.l.b16 %v2416
      %v2881 = vunpack.c.l.b16 %v2417
      %v2882 = vunpack.c.l.b16 %v2418
      %v2883 = vunpack.c.l.b16 %v2419
      %v2884 = vunpack.c.l.b16 %v2420
      %v2885 = vunpack.c.l.b16 %v2421
      %v2886 = vunpack.c.l.b16 %v2422
      %v2887 = vunpack.c.l.b16 %v2423
      %v2888 = vunpack.c.l.b16 %v2424
      %v2889 = vunpack.c.l.b16 %v2425
      %v2890 = vunpack.c.l.b16 %v2426
      %v2891 = vunpack.c.l.b16 %v2427
      %v2892 = vunpack.c.l.b16 %v2428
      %v2893 = vunpack.c.l.b16 %v2429
      %v2894 = vunpack.c.l.b16 %v2430
      %v2895 = vunpack.c.l.b16 %v2431
      %v2896 = vunpack.c.l.b16 %v2432
      %v2897 = vunpack.c.l.b16 %v2433
      %v2898 = vunpack.c.l.b16 %v2434
      %v2899 = vunpack.c.l.b16 %v2435
      %v2900 = vunpack.c.l.b16 %v2436
      %v2901 = vunpack.c.l.b16 %v2437
      %v2902 = vunpack.c.l.b16 %v2438
      %v2903 = vunpack.c.l.b16 %v2439
      %v2904 = vunpack.c.l.b16 %v2440
      %v2905 = vunpack.c.l.b16 %v2441
      %v2906 = vunpack.c.l.b16 %v2442
      %v2907 = vunpack.c.l.b16 %v2443
      %v2908 = vpack.c.b16 %v2765, %v2764
      %v2909 = vpack.c.b16 %v2767, %v2766
      %v2910 = vpack.c.b16 %v2769, %v2768
      %v2911 = vpack.c.b16 %v2771, %v2770
      %v2912 = vpack.c.b16 %v2773, %v2772
      %v2913 = vpack.c.b16 %v2775, %v2774
      %v2914 = vpack.c.b16 %v2777, %v2776
      %v2915 = vpack.c.b16 %v2779, %v2778
      %v2916 = vpack.c.b16 %v2781, %v2780
      %v2917 = vpack.c.b16 %v2783, %v2782
      %v2918 = vpack.c.b16 %v2785, %v2784
      %v2919 = vpack.c.b16 %v2787, %v2786
      %v2920 = vpack.c.b16 %v2789, %v2788
      %v2921 = vpack.c.b16 %v2791, %v2790
      %v2922 = vpack.c.b16 %v2793, %v2792
      %v2923 = vpack.c.b16 %v2795, %v2794
      %v2924 = vpack.c.b16 %v2797, %v2796
      %v2925 = vpack.c.b16 %v2799, %v2798
      %v2926 = vpack.c.b16 %v2801, %v2800
      %v2927 = vpack.c.b16 %v2803, %v2802
      %v2928 = vpack.c.b16 %v2805, %v2804
      %v2929 = vpack.c.b16 %v2807, %v2806
      %v2930 = vpack.c.b16 %v2809, %v2808
      %v2931 = vpack.c.b16 %v2811, %v2810
      %v2932 = vpack.c.b16 %v2813, %v2812
      %v2933 = vpack.c.b16 %v2815, %v2814
      %v2934 = vpack.c.b16 %v2817, %v2816
      %v2935 = vpack.c.b16 %v2819, %v2818
      %v2936 = vpack.c.b16 %v2821, %v2820
      %v2937 = vpack.c.b16 %v2823, %v2822
      %v2938 = vpack.c.b16 %v2825, %v2824
      %v2939 = vpack.c.b16 %v2827, %v2826
      %v2940 = vpack.c.b16 %v2829, %v2828
      %v2941 = vpack.c.b16 %v2831, %v2830
      %v2942 = vpack.c.b16 %v2833, %v2832
      %v2943 = vpack.c.b16 %v2835, %v2834
      %v2944 = vpack.c.b16 %v2837, %v2836
      %v2945 = vpack.c.b16 %v2839, %v2838
      %v2946 = vpack.c.b16 %v2841, %v2840
      %v2947 = vpack.c.b16 %v2843, %v2842
      %v2948 = vpack.c.b16 %v2845, %v2844
      %v2949 = vpack.c.b16 %v2847, %v2846
      %v2950 = vpack.c.b16 %v2849, %v2848
      %v2951 = vpack.c.b16 %v2851, %v2850
      %v2952 = vpack.c.b16 %v2853, %v2852
      %v2953 = vpack.c.b16 %v2855, %v2854
      %v2954 = vpack.c.b16 %v2857, %v2856
      %v2955 = vpack.c.b16 %v2859, %v2858
      %v2956 = vpack.c.b16 %v2861, %v2860
      %v2957 = vpack.c.b16 %v2863, %v2862
      %v2958 = vpack.c.b16 %v2865, %v2864
      %v2959 = vpack.c.b16 %v2867, %v2866
      %v2960 = vpack.c.b16 %v2869, %v2868
      %v2961 = vpack.c.b16 %v2871, %v2870
      %v2962 = vpack.c.b16 %v2873, %v2872
      %v2963 = vpack.c.b16 %v2875, %v2874
      %v2964 = vpack.c.b16 %v2877, %v2876
      %v2965 = vpack.c.b16 %v2879, %v2878
      %v2966 = vpack.c.b16 %v2881, %v2880
      %v2967 = vpack.c.b16 %v2883, %v2882
      %v2968 = vpack.c.b16 %v2885, %v2884
      %v2969 = vpack.c.b16 %v2887, %v2886
      %v2970 = vpack.c.b16 %v2889, %v2888
      %v2971 = vpack.c.b16 %v2891, %v2890
      %v2972 = vpack.c.b16 %v2893, %v2892
      %v2973 = vpack.c.b16 %v2895, %v2894
      %v2974 = vpack.c.b16 %v2897, %v2896
      %v2975 = vpack.c.b16 %v2899, %v2898
      %v2976 = vpack.c.b16 %v2901, %v2900
      %v2977 = vpack.c.b16 %v2903, %v2902
      %v2978 = vpack.c.b16 %v2905, %v2904
      %v2979 = vpack.c.b16 %v2907, %v2906
      %3052 = vmatpush.bf16.msra.mxu0 %v2915
      %3053 = vmatpush.bf16.msra.mxu0 %v2914
      %3054 = vmatpush.bf16.msra.mxu0 %v2913
      %3055 = vmatpush.bf16.msra.mxu0 %v2912
      %3056 = vmatpush.bf16.msra.mxu0 %v2911
      %3057 = vmatpush.bf16.msra.mxu0 %v2910
      %3058 = vmatpush.bf16.msra.mxu0 %v2909
      %3059 = vmatpush.bf16.msra.mxu0 %v2908
      %3060 = vmatmul.bf16.gmra.mxu0 %v2610
      %v3061 = vpop.f32.mrf.mxu0
      %v3062 = vadd.f32 %v2619, %v3061
      %v3063 = vpop.f32.mrf.mxu0
      %3064 = vdwg.mxu0
      %3065 = vmatpush.bf16.msra.mxu0 %v2923
      %3066 = vmatpush.bf16.msra.mxu0 %v2922
      %3067 = vmatpush.bf16.msra.mxu0 %v2921
      %3068 = vmatpush.bf16.msra.mxu0 %v2920
      %3069 = vmatpush.bf16.msra.mxu0 %v2919
      %3070 = vmatpush.bf16.msra.mxu0 %v2918
      %3071 = vmatpush.bf16.msra.mxu0 %v2917
      %3072 = vmatpush.bf16.msra.mxu0 %v2916
      %3073 = vmatmul.bf16.gmra.mxu0 %v2611
      %v3074 = vpop.f32.mrf.mxu0
      %v3075 = vadd.f32 %v3062, %v3074
      %v3076 = vpop.f32.mrf.mxu0
      %3077 = vdwg.mxu0
      %3078 = vmatpush.bf16.msra.mxu0 %v2931
      %3079 = vmatpush.bf16.msra.mxu0 %v2930
      %3080 = vmatpush.bf16.msra.mxu0 %v2929
      %3081 = vmatpush.bf16.msra.mxu0 %v2928
      %3082 = vmatpush.bf16.msra.mxu0 %v2927
      %3083 = vmatpush.bf16.msra.mxu0 %v2926
      %3084 = vmatpush.bf16.msra.mxu0 %v2925
      %3085 = vmatpush.bf16.msra.mxu0 %v2924
      %3086 = vmatmul.bf16.gmra.mxu0 %v2612
      %v3087 = vpop.f32.mrf.mxu0
      %v3088 = vadd.f32 %v3075, %v3087
      %v3089 = vpop.f32.mrf.mxu0
      %3090 = vdwg.mxu0
      %3091 = vmatpush.bf16.msra.mxu0 %v2939
      %3092 = vmatpush.bf16.msra.mxu0 %v2938
      %3093 = vmatpush.bf16.msra.mxu0 %v2937
      %3094 = vmatpush.bf16.msra.mxu0 %v2936
      %3095 = vmatpush.bf16.msra.mxu0 %v2935
      %3096 = vmatpush.bf16.msra.mxu0 %v2934
      %3097 = vmatpush.bf16.msra.mxu0 %v2933
      %3098 = vmatpush.bf16.msra.mxu0 %v2932
      %3099 = vmatmul.bf16.gmra.mxu0 %v2613
      %v3100 = vpop.f32.mrf.mxu0
      %v3101 = vadd.f32 %v3088, %v3100
      %v3102 = vpop.f32.mrf.mxu0
      %3103 = vdwg.mxu0
      %3104 = vmatpush.bf16.msra.mxu0 %v2947
      %3105 = vmatpush.bf16.msra.mxu0 %v2946
      %3106 = vmatpush.bf16.msra.mxu0 %v2945
      %3107 = vmatpush.bf16.msra.mxu0 %v2944
      %3108 = vmatpush.bf16.msra.mxu0 %v2943
      %3109 = vmatpush.bf16.msra.mxu0 %v2942
      %3110 = vmatpush.bf16.msra.mxu0 %v2941
      %3111 = vmatpush.bf16.msra.mxu0 %v2940
      %3112 = vmatmul.bf16.gmra.mxu0 %v2614
      %v3113 = vpop.f32.mrf.mxu0
      %v3114 = vadd.f32 %v3101, %v3113
      %v3115 = vpop.f32.mrf.mxu0
      %3116 = vdwg.mxu0
      %3117 = vmatpush.bf16.msra.mxu0 %v2955
      %3118 = vmatpush.bf16.msra.mxu0 %v2954
      %3119 = vmatpush.bf16.msra.mxu0 %v2953
      %3120 = vmatpush.bf16.msra.mxu0 %v2952
      %3121 = vmatpush.bf16.msra.mxu0 %v2951
      %3122 = vmatpush.bf16.msra.mxu0 %v2950
      %3123 = vmatpush.bf16.msra.mxu0 %v2949
      %3124 = vmatpush.bf16.msra.mxu0 %v2948
      %3125 = vmatmul.bf16.gmra.mxu0 %v2615
      %v3126 = vpop.f32.mrf.mxu0
      %v3127 = vadd.f32 %v3114, %v3126
      %v3128 = vpop.f32.mrf.mxu0
      %3129 = vdwg.mxu0
      %3130 = vmatpush.bf16.msra.mxu0 %v2963
      %3131 = vmatpush.bf16.msra.mxu0 %v2962
      %3132 = vmatpush.bf16.msra.mxu0 %v2961
      %3133 = vmatpush.bf16.msra.mxu0 %v2960
      %3134 = vmatpush.bf16.msra.mxu0 %v2959
      %3135 = vmatpush.bf16.msra.mxu0 %v2958
      %3136 = vmatpush.bf16.msra.mxu0 %v2957
      %3137 = vmatpush.bf16.msra.mxu0 %v2956
      %3138 = vmatmul.bf16.gmra.mxu0 %v2616
      %v3139 = vpop.f32.mrf.mxu0
      %v3140 = vadd.f32 %v3127, %v3139
      %v3141 = vpop.f32.mrf.mxu0
      %3142 = vdwg.mxu0
      %3143 = vmatpush.bf16.msra.mxu0 %v2971
      %3144 = vmatpush.bf16.msra.mxu0 %v2970
      %3145 = vmatpush.bf16.msra.mxu0 %v2969
      %3146 = vmatpush.bf16.msra.mxu0 %v2968
      %3147 = vmatpush.bf16.msra.mxu0 %v2967
      %3148 = vmatpush.bf16.msra.mxu0 %v2966
      %3149 = vmatpush.bf16.msra.mxu0 %v2965
      %3150 = vmatpush.bf16.msra.mxu0 %v2964
      %3151 = vmatmul.bf16.gmra.mxu0 %v2617
      %v3152 = vpop.f32.mrf.mxu0
      %v3153 = vadd.f32 %v3140, %v3152
      %v3154 = vpop.f32.mrf.mxu0
      %3155 = vdwg.mxu0
      %3156 = vmatpush.bf16.msra.mxu0 %v2979
      %3157 = vmatpush.bf16.msra.mxu0 %v2978
      %3158 = vmatpush.bf16.msra.mxu0 %v2977
      %3159 = vmatpush.bf16.msra.mxu0 %v2976
      %3160 = vmatpush.bf16.msra.mxu0 %v2975
      %3161 = vmatpush.bf16.msra.mxu0 %v2974
      %3162 = vmatpush.bf16.msra.mxu0 %v2973
      %3163 = vmatpush.bf16.msra.mxu0 %v2972
      %3164 = vmatmul.bf16.gmra.mxu0 %v2618
      %v3165 = vpop.f32.mrf.mxu0
      %v3166 = vadd.f32 %v3153, %v3165
      %v3167 = vpop.f32.mrf.mxu0
      %3168 = vdwg.mxu0
      %v3169 = vmax.f32 %v3166, 0.0
      %v3170 = vpack.c.bf16 %v3169, %v3169
      %v3171 = vld [vmem:[%s4] sm:$0xff]
      %v3172 = vld [vmem:[%s4 + $0x8] sm:$0xff]
      %v3173 = vld [vmem:[%s4 + $0x10] sm:$0xff]
      %v3174 = vld [vmem:[%s4 + $0x18] sm:$0xff]
      %v3175 = vld [vmem:[%s4 + $0x20] sm:$0xf]
      %v3176 = vld [vmem:[%s4 + $0x24] sm:$0xff]
      %v3177 = vld [vmem:[%s4 + $0x2c] sm:$0xff]
      %v3178 = vld [vmem:[%s4 + $0x34] sm:$0xff]
      %v3179 = vld [vmem:[%s4 + $0x3c] sm:$0xff]
      %v3180 = vld [vmem:[%s4 + $0x44] sm:$0xf]
      %v3181 = vld [vmem:[%s4 + $0x48] sm:$0xff]
      %v3182 = vld [vmem:[%s4 + $0x50] sm:$0xff]
      %v3183 = vld [vmem:[%s4 + $0x58] sm:$0xff]
      %v3184 = vld [vmem:[%s4 + $0x60] sm:$0xff]
      %v3185 = vld [vmem:[%s4 + $0x68] sm:$0xf]
      %v3186 = vld [vmem:[%s4 + $0x6c] sm:$0xff]
      %v3187 = vld [vmem:[%s4 + $0x74] sm:$0xff]
      %v3188 = vld [vmem:[%s4 + $0x7c] sm:$0xff]
      %v3189 = vld [vmem:[%s4 + $0x84] sm:$0xff]
      %v3190 = vld [vmem:[%s4 + $0x8c] sm:$0xf]
      %v3191 = vld [vmem:[%s4 + $0x90] sm:$0xff]
      %v3192 = vld [vmem:[%s4 + $0x98] sm:$0xff]
      %v3193 = vld [vmem:[%s4 + $0xa0] sm:$0xff]
      %v3194 = vld [vmem:[%s4 + $0xa8] sm:$0xff]
      %v3195 = vld [vmem:[%s4 + $0xb0] sm:$0xf]
      %v3196 = vld [vmem:[%s4 + $0xb4] sm:$0xff]
      %v3197 = vld [vmem:[%s4 + $0xbc] sm:$0xff]
      %v3198 = vld [vmem:[%s4 + $0xc4] sm:$0xff]
      %v3199 = vld [vmem:[%s4 + $0xcc] sm:$0xff]
      %v3200 = vld [vmem:[%s4 + $0xd4] sm:$0xf]
      %v3201 = vld [vmem:[%s4 + $0xd8] sm:$0xff]
      %v3202 = vld [vmem:[%s4 + $0xe0] sm:$0xff]
      %v3203 = vld [vmem:[%s4 + $0xe8] sm:$0xff]
      %v3204 = vld [vmem:[%s4 + $0xf0] sm:$0xff]
      %v3205 = vld [vmem:[%s4 + $0xf8] sm:$0xf]
      %v3206 = vld [vmem:[%s4 + $0xfc] sm:$0xff]
      %v3207 = vld [vmem:[%s4 + $0x104] sm:$0xff]
      %v3208 = vld [vmem:[%s4 + $0x10c] sm:$0xff]
      %v3209 = vld [vmem:[%s4 + $0x114] sm:$0xff]
      %v3210 = vld [vmem:[%s4 + $0x11c] sm:$0xf]
      %v3211 = vld [vmem:[%s4 + $0x120] sm:$0xff]
      %v3212 = vld [vmem:[%s4 + $0x128] sm:$0xff]
      %v3213 = vld [vmem:[%s4 + $0x130] sm:$0xff]
      %v3214 = vld [vmem:[%s4 + $0x138] sm:$0xff]
      %v3215 = vld [vmem:[%s4 + $0x140] sm:$0xf]
      %v3216 = vld [vmem:[%s4 + $0x144] sm:$0xff]
      %v3217 = vld [vmem:[%s4 + $0x14c] sm:$0xff]
      %v3218 = vld [vmem:[%s4 + $0x154] sm:$0xff]
      %v3219 = vld [vmem:[%s4 + $0x15c] sm:$0xff]
      %v3220 = vld [vmem:[%s4 + $0x164] sm:$0xf]
      %v3221 = vld [vmem:[%s4 + $0x168] sm:$0xff]
      %v3222 = vld [vmem:[%s4 + $0x170] sm:$0xff]
      %v3223 = vld [vmem:[%s4 + $0x178] sm:$0xff]
      %v3224 = vld [vmem:[%s4 + $0x180] sm:$0xff]
      %v3225 = vld [vmem:[%s4 + $0x188] sm:$0xf]
      %v3226 = vld [vmem:[%s4 + $0x18c] sm:$0xff]
      %v3227 = vld [vmem:[%s4 + $0x194] sm:$0xff]
      %v3228 = vld [vmem:[%s4 + $0x19c] sm:$0xff]
      %v3229 = vld [vmem:[%s4 + $0x1a4] sm:$0xff]
      %v3230 = vld [vmem:[%s4 + $0x1ac] sm:$0xf]
      %v3231 = vld [vmem:[%s4 + $0x1b0] sm:$0xff]
      %v3232 = vld [vmem:[%s4 + $0x1b8] sm:$0xff]
      %v3233 = vld [vmem:[%s4 + $0x1c0] sm:$0xff]
      %v3234 = vld [vmem:[%s4 + $0x1c8] sm:$0xff]
      %v3235 = vld [vmem:[%s4 + $0x1d0] sm:$0xf]
      %v3236 = vld [vmem:[%s4 + $0x1d4] sm:$0xff]
      %v3237 = vld [vmem:[%s4 + $0x1dc] sm:$0xff]
      %v3238 = vld [vmem:[%s4 + $0x1e4] sm:$0xff]
      %v3239 = vld [vmem:[%s4 + $0x1ec] sm:$0xff]
      %v3240 = vld [vmem:[%s4 + $0x1f4] sm:$0xf]
      %v3241 = vld [vmem:[%s4 + $0x1f8] sm:$0xff]
      %v3242 = vld [vmem:[%s4 + $0x200] sm:$0xff]
      %v3243 = vld [vmem:[%s4 + $0x208] sm:$0xff]
      %v3244 = vld [vmem:[%s4 + $0x210] sm:$0xff]
      %v3245 = vld [vmem:[%s4 + $0x218] sm:$0xf]
      %v3246 = vld [vmem:[%s4 + $0x21c] sm:$0xff]
      %v3247 = vld [vmem:[%s4 + $0x224] sm:$0xff]
      %v3248 = vld [vmem:[%s4 + $0x22c] sm:$0xff]
      %v3249 = vld [vmem:[%s4 + $0x234] sm:$0xff]
      %v3250 = vld [vmem:[%s4 + $0x23c] sm:$0xf]
      %v3331 = vunpack.c.l.b16 %v3171
      %v3332 = vunpack.c.h.b16 %v3171
      %v3333 = vunpack.c.l.b16 %v3172
      %v3334 = vunpack.c.h.b16 %v3172
      %v3335 = vunpack.c.l.b16 %v3173
      %v3336 = vunpack.c.h.b16 %v3173
      %v3337 = vunpack.c.l.b16 %v3174
      %v3338 = vunpack.c.h.b16 %v3174
      %v3339 = vunpack.c.l.b16 %v3175
      %v3340 = vunpack.c.l.b16 %v3176
      %v3341 = vunpack.c.h.b16 %v3176
      %v3342 = vunpack.c.l.b16 %v3177
      %v3343 = vunpack.c.h.b16 %v3177
      %v3344 = vunpack.c.l.b16 %v3178
      %v3345 = vunpack.c.h.b16 %v3178
      %v3346 = vunpack.c.l.b16 %v3179
      %v3347 = vunpack.c.h.b16 %v3179
      %v3348 = vunpack.c.l.b16 %v3180
      %v3349 = vunpack.c.l.b16 %v3181
      %v3350 = vunpack.c.h.b16 %v3181
      %v3351 = vunpack.c.l.b16 %v3182
      %v3352 = vunpack.c.h.b16 %v3182
      %v3353 = vunpack.c.l.b16 %v3183
      %v3354 = vunpack.c.h.b16 %v3183
      %v3355 = vunpack.c.l.b16 %v3184
      %v3356 = vunpack.c.h.b16 %v3184
      %v3357 = vunpack.c.l.b16 %v3185
      %v3358 = vunpack.c.l.b16 %v3186
      %v3359 = vunpack.c.h.b16 %v3186
      %v3360 = vunpack.c.l.b16 %v3187
      %v3361 = vunpack.c.h.b16 %v3187
      %v3362 = vunpack.c.l.b16 %v3188
      %v3363 = vunpack.c.h.b16 %v3188
      %v3364 = vunpack.c.l.b16 %v3189
      %v3365 = vunpack.c.h.b16 %v3189
      %v3366 = vunpack.c.l.b16 %v3190
      %v3367 = vunpack.c.l.b16 %v3191
      %v3368 = vunpack.c.h.b16 %v3191
      %v3369 = vunpack.c.l.b16 %v3192
      %v3370 = vunpack.c.h.b16 %v3192
      %v3371 = vunpack.c.l.b16 %v3193
      %v3372 = vunpack.c.h.b16 %v3193
      %v3373 = vunpack.c.l.b16 %v3194
      %v3374 = vunpack.c.h.b16 %v3194
      %v3375 = vunpack.c.l.b16 %v3195
      %v3376 = vunpack.c.l.b16 %v3196
      %v3377 = vunpack.c.h.b16 %v3196
      %v3378 = vunpack.c.l.b16 %v3197
      %v3379 = vunpack.c.h.b16 %v3197
      %v3380 = vunpack.c.l.b16 %v3198
      %v3381 = vunpack.c.h.b16 %v3198
      %v3382 = vunpack.c.l.b16 %v3199
      %v3383 = vunpack.c.h.b16 %v3199
      %v3384 = vunpack.c.l.b16 %v3200
      %v3385 = vunpack.c.l.b16 %v3201
      %v3386 = vunpack.c.h.b16 %v3201
      %v3387 = vunpack.c.l.b16 %v3202
      %v3388 = vunpack.c.h.b16 %v3202
      %v3389 = vunpack.c.l.b16 %v3203
      %v3390 = vunpack.c.h.b16 %v3203
      %v3391 = vunpack.c.l.b16 %v3204
      %v3392 = vunpack.c.h.b16 %v3204
      %v3393 = vunpack.c.l.b16 %v3205
      %v3394 = vunpack.c.l.b16 %v3206
      %v3395 = vunpack.c.h.b16 %v3206
      %v3396 = vunpack.c.l.b16 %v3207
      %v3397 = vunpack.c.h.b16 %v3207
      %v3398 = vunpack.c.l.b16 %v3208
      %v3399 = vunpack.c.h.b16 %v3208
      %v3400 = vunpack.c.l.b16 %v3209
      %v3401 = vunpack.c.h.b16 %v3209
      %v3402 = vunpack.c.l.b16 %v3210
      %v3403 = vunpack.c.l.b16 %v3211
      %v3404 = vunpack.c.h.b16 %v3211
      %v3405 = vunpack.c.l.b16 %v3212
      %v3406 = vunpack.c.h.b16 %v3212
      %v3407 = vunpack.c.l.b16 %v3213
      %v3408 = vunpack.c.h.b16 %v3213
      %v3409 = vunpack.c.l.b16 %v3214
      %v3410 = vunpack.c.h.b16 %v3214
      %v3411 = vunpack.c.l.b16 %v3215
      %v3412 = vunpack.c.l.b16 %v3216
      %v3413 = vunpack.c.h.b16 %v3216
      %v3414 = vunpack.c.l.b16 %v3217
      %v3415 = vunpack.c.h.b16 %v3217
      %v3416 = vunpack.c.l.b16 %v3218
      %v3417 = vunpack.c.h.b16 %v3218
      %v3418 = vunpack.c.l.b16 %v3219
      %v3419 = vunpack.c.h.b16 %v3219
      %v3420 = vunpack.c.l.b16 %v3220
      %v3421 = vunpack.c.l.b16 %v3221
      %v3422 = vunpack.c.h.b16 %v3221
      %v3423 = vunpack.c.l.b16 %v3222
      %v3424 = vunpack.c.h.b16 %v3222
      %v3425 = vunpack.c.l.b16 %v3223
      %v3426 = vunpack.c.h.b16 %v3223
      %v3427 = vunpack.c.l.b16 %v3224
      %v3428 = vunpack.c.h.b16 %v3224
      %v3429 = vunpack.c.l.b16 %v3225
      %v3430 = vunpack.c.l.b16 %v3226
      %v3431 = vunpack.c.h.b16 %v3226
      %v3432 = vunpack.c.l.b16 %v3227
      %v3433 = vunpack.c.h.b16 %v3227
      %v3434 = vunpack.c.l.b16 %v3228
      %v3435 = vunpack.c.h.b16 %v3228
      %v3436 = vunpack.c.l.b16 %v3229
      %v3437 = vunpack.c.h.b16 %v3229
      %v3438 = vunpack.c.l.b16 %v3230
      %v3439 = vunpack.c.l.b16 %v3231
      %v3440 = vunpack.c.h.b16 %v3231
      %v3441 = vunpack.c.l.b16 %v3232
      %v3442 = vunpack.c.h.b16 %v3232
      %v3443 = vunpack.c.l.b16 %v3233
      %v3444 = vunpack.c.h.b16 %v3233
      %v3445 = vunpack.c.l.b16 %v3234
      %v3446 = vunpack.c.h.b16 %v3234
      %v3447 = vunpack.c.l.b16 %v3235
      %v3448 = vunpack.c.l.b16 %v3236
      %v3449 = vunpack.c.h.b16 %v3236
      %v3450 = vunpack.c.l.b16 %v3237
      %v3451 = vunpack.c.h.b16 %v3237
      %v3452 = vunpack.c.l.b16 %v3238
      %v3453 = vunpack.c.h.b16 %v3238
      %v3454 = vunpack.c.l.b16 %v3239
      %v3455 = vunpack.c.h.b16 %v3239
      %v3456 = vunpack.c.l.b16 %v3240
      %v3457 = vunpack.c.l.b16 %v3241
      %v3458 = vunpack.c.h.b16 %v3241
      %v3459 = vunpack.c.l.b16 %v3242
      %v3460 = vunpack.c.h.b16 %v3242
      %v3461 = vunpack.c.l.b16 %v3243
      %v3462 = vunpack.c.h.b16 %v3243
      %v3463 = vunpack.c.l.b16 %v3244
      %v3464 = vunpack.c.h.b16 %v3244
      %v3465 = vunpack.c.l.b16 %v3245
      %v3466 = vunpack.c.l.b16 %v3246
      %v3467 = vunpack.c.h.b16 %v3246
      %v3468 = vunpack.c.l.b16 %v3247
      %v3469 = vunpack.c.h.b16 %v3247
      %v3470 = vunpack.c.l.b16 %v3248
      %v3471 = vunpack.c.h.b16 %v3248
      %v3472 = vunpack.c.l.b16 %v3249
      %v3473 = vunpack.c.h.b16 %v3249
      %v3474 = vunpack.c.l.b16 %v3250
      %v3475 = vpack.c.b16 %v3340, %v3331
      %v3476 = vpack.c.b16 %v3341, %v3332
      %v3477 = vpack.c.b16 %v3342, %v3333
      %v3478 = vpack.c.b16 %v3343, %v3334
      %v3479 = vpack.c.b16 %v3344, %v3335
      %v3480 = vpack.c.b16 %v3345, %v3336
      %v3481 = vpack.c.b16 %v3346, %v3337
      %v3482 = vpack.c.b16 %v3347, %v3338
      %v3483 = vpack.c.b16 %v3348, %v3339
      %v3484 = vpack.c.b16 %v3358, %v3349
      %v3485 = vpack.c.b16 %v3359, %v3350
      %v3486 = vpack.c.b16 %v3360, %v3351
      %v3487 = vpack.c.b16 %v3361, %v3352
      %v3488 = vpack.c.b16 %v3362, %v3353
      %v3489 = vpack.c.b16 %v3363, %v3354
      %v3490 = vpack.c.b16 %v3364, %v3355
      %v3491 = vpack.c.b16 %v3365, %v3356
      %v3492 = vpack.c.b16 %v3366, %v3357
      %v3493 = vpack.c.b16 %v3376, %v3367
      %v3494 = vpack.c.b16 %v3377, %v3368
      %v3495 = vpack.c.b16 %v3378, %v3369
      %v3496 = vpack.c.b16 %v3379, %v3370
      %v3497 = vpack.c.b16 %v3380, %v3371
      %v3498 = vpack.c.b16 %v3381, %v3372
      %v3499 = vpack.c.b16 %v3382, %v3373
      %v3500 = vpack.c.b16 %v3383, %v3374
      %v3501 = vpack.c.b16 %v3384, %v3375
      %v3502 = vpack.c.b16 %v3394, %v3385
      %v3503 = vpack.c.b16 %v3395, %v3386
      %v3504 = vpack.c.b16 %v3396, %v3387
      %v3505 = vpack.c.b16 %v3397, %v3388
      %v3506 = vpack.c.b16 %v3398, %v3389
      %v3507 = vpack.c.b16 %v3399, %v3390
      %v3508 = vpack.c.b16 %v3400, %v3391
      %v3509 = vpack.c.b16 %v3401, %v3392
      %v3510 = vpack.c.b16 %v3402, %v3393
      %v3511 = vpack.c.b16 %v3412, %v3403
      %v3512 = vpack.c.b16 %v3413, %v3404
      %v3513 = vpack.c.b16 %v3414, %v3405
      %v3514 = vpack.c.b16 %v3415, %v3406
      %v3515 = vpack.c.b16 %v3416, %v3407
      %v3516 = vpack.c.b16 %v3417, %v3408
      %v3517 = vpack.c.b16 %v3418, %v3409
      %v3518 = vpack.c.b16 %v3419, %v3410
      %v3519 = vpack.c.b16 %v3420, %v3411
      %v3520 = vpack.c.b16 %v3430, %v3421
      %v3521 = vpack.c.b16 %v3431, %v3422
      %v3522 = vpack.c.b16 %v3432, %v3423
      %v3523 = vpack.c.b16 %v3433, %v3424
      %v3524 = vpack.c.b16 %v3434, %v3425
      %v3525 = vpack.c.b16 %v3435, %v3426
      %v3526 = vpack.c.b16 %v3436, %v3427
      %v3527 = vpack.c.b16 %v3437, %v3428
      %v3528 = vpack.c.b16 %v3438, %v3429
      %v3529 = vpack.c.b16 %v3448, %v3439
      %v3530 = vpack.c.b16 %v3449, %v3440
      %v3531 = vpack.c.b16 %v3450, %v3441
      %v3532 = vpack.c.b16 %v3451, %v3442
      %v3533 = vpack.c.b16 %v3452, %v3443
      %v3534 = vpack.c.b16 %v3453, %v3444
      %v3535 = vpack.c.b16 %v3454, %v3445
      %v3536 = vpack.c.b16 %v3455, %v3446
      %v3537 = vpack.c.b16 %v3456, %v3447
      %v3538 = vpack.c.b16 %v3466, %v3457
      %v3539 = vpack.c.b16 %v3467, %v3458
      %v3540 = vpack.c.b16 %v3468, %v3459
      %v3541 = vpack.c.b16 %v3469, %v3460
      %v3542 = vpack.c.b16 %v3470, %v3461
      %v3543 = vpack.c.b16 %v3471, %v3462
      %v3544 = vpack.c.b16 %v3472, %v3463
      %v3545 = vpack.c.b16 %v3473, %v3464
      %v3546 = vpack.c.b16 %v3474, %v3465
      %3619 = vmatpush.bf16.msra.mxu0 %v3538
      %3620 = vmatpush.bf16.msra.mxu0 %v3529
      %3621 = vmatpush.bf16.msra.mxu0 %v3520
      %3622 = vmatpush.bf16.msra.mxu0 %v3511
      %3623 = vmatpush.bf16.msra.mxu0 %v3502
      %3624 = vmatpush.bf16.msra.mxu0 %v3493
      %3625 = vmatpush.bf16.msra.mxu0 %v3484
      %3626 = vmatpush.bf16.msra.mxu0 %v3475
      %3627 = vmatmul.bf16.gmra.mxu0 %v3170
      %v3628 = vpop.f32.mrf.mxu0
      %v3629 = vadd.f32 0.0, %v3628
      %v3630 = vpop.f32.mrf.mxu0
      %3631 = vdwg.mxu0
      %3632 = vmatpush.bf16.msra.mxu0 %v3539
      %3633 = vmatpush.bf16.msra.mxu0 %v3530
      %3634 = vmatpush.bf16.msra.mxu0 %v3521
      %3635 = vmatpush.bf16.msra.mxu0 %v3512
      %3636 = vmatpush.bf16.msra.mxu0 %v3503
      %3637 = vmatpush.bf16.msra.mxu0 %v3494
      %3638 = vmatpush.bf16.msra.mxu0 %v3485
      %3639 = vmatpush.bf16.msra.mxu0 %v3476
      %3640 = vmatmul.bf16.gmra.mxu0 %v3170
      %v3641 = vpop.f32.mrf.mxu0
      %v3642 = vadd.f32 0.0, %v3641
      %v3643 = vpop.f32.mrf.mxu0
      %3644 = vdwg.mxu0
      %3645 = vmatpush.bf16.msra.mxu0 %v3540
      %3646 = vmatpush.bf16.msra.mxu0 %v3531
      %3647 = vmatpush.bf16.msra.mxu0 %v3522
      %3648 = vmatpush.bf16.msra.mxu0 %v3513
      %3649 = vmatpush.bf16.msra.mxu0 %v3504
      %3650 = vmatpush.bf16.msra.mxu0 %v3495
      %3651 = vmatpush.bf16.msra.mxu0 %v3486
      %3652 = vmatpush.bf16.msra.mxu0 %v3477
      %3653 = vmatmul.bf16.gmra.mxu0 %v3170
      %v3654 = vpop.f32.mrf.mxu0
      %v3655 = vadd.f32 0.0, %v3654
      %v3656 = vpop.f32.mrf.mxu0
      %3657 = vdwg.mxu0
      %3658 = vmatpush.bf16.msra.mxu0 %v3541
      %3659 = vmatpush.bf16.msra.mxu0 %v3532
      %3660 = vmatpush.bf16.msra.mxu0 %v3523
      %3661 = vmatpush.bf16.msra.mxu0 %v3514
      %3662 = vmatpush.bf16.msra.mxu0 %v3505
      %3663 = vmatpush.bf16.msra.mxu0 %v3496
      %3664 = vmatpush.bf16.msra.mxu0 %v3487
      %3665 = vmatpush.bf16.msra.mxu0 %v3478
      %3666 = vmatmul.bf16.gmra.mxu0 %v3170
      %v3667 = vpop.f32.mrf.mxu0
      %v3668 = vadd.f32 0.0, %v3667
      %v3669 = vpop.f32.mrf.mxu0
      %3670 = vdwg.mxu0
      %3671 = vmatpush.bf16.msra.mxu0 %v3542
      %3672 = vmatpush.bf16.msra.mxu0 %v3533
      %3673 = vmatpush.bf16.msra.mxu0 %v3524
      %3674 = vmatpush.bf16.msra.mxu0 %v3515
      %3675 = vmatpush.bf16.msra.mxu0 %v3506
      %3676 = vmatpush.bf16.msra.mxu0 %v3497
      %3677 = vmatpush.bf16.msra.mxu0 %v3488
      %3678 = vmatpush.bf16.msra.mxu0 %v3479
      %3679 = vmatmul.bf16.gmra.mxu0 %v3170
      %v3680 = vpop.f32.mrf.mxu0
      %v3681 = vadd.f32 0.0, %v3680
      %v3682 = vpop.f32.mrf.mxu0
      %3683 = vdwg.mxu0
      %3684 = vmatpush.bf16.msra.mxu0 %v3543
      %3685 = vmatpush.bf16.msra.mxu0 %v3534
      %3686 = vmatpush.bf16.msra.mxu0 %v3525
      %3687 = vmatpush.bf16.msra.mxu0 %v3516
      %3688 = vmatpush.bf16.msra.mxu0 %v3507
      %3689 = vmatpush.bf16.msra.mxu0 %v3498
      %3690 = vmatpush.bf16.msra.mxu0 %v3489
      %3691 = vmatpush.bf16.msra.mxu0 %v3480
      %3692 = vmatmul.bf16.gmra.mxu0 %v3170
      %v3693 = vpop.f32.mrf.mxu0
      %v3694 = vadd.f32 0.0, %v3693
      %v3695 = vpop.f32.mrf.mxu0
      %3696 = vdwg.mxu0
      %3697 = vmatpush.bf16.msra.mxu0 %v3544
      %3698 = vmatpush.bf16.msra.mxu0 %v3535
      %3699 = vmatpush.bf16.msra.mxu0 %v3526
      %3700 = vmatpush.bf16.msra.mxu0 %v3517
      %3701 = vmatpush.bf16.msra.mxu0 %v3508
      %3702 = vmatpush.bf16.msra.mxu0 %v3499
      %3703 = vmatpush.bf16.msra.mxu0 %v3490
      %3704 = vmatpush.bf16.msra.mxu0 %v3481
      %3705 = vmatmul.bf16.gmra.mxu0 %v3170
      %v3706 = vpop.f32.mrf.mxu0
      %v3707 = vadd.f32 0.0, %v3706
      %v3708 = vpop.f32.mrf.mxu0
      %3709 = vdwg.mxu0
      %3710 = vmatpush.bf16.msra.mxu0 %v3545
      %3711 = vmatpush.bf16.msra.mxu0 %v3536
      %3712 = vmatpush.bf16.msra.mxu0 %v3527
      %3713 = vmatpush.bf16.msra.mxu0 %v3518
      %3714 = vmatpush.bf16.msra.mxu0 %v3509
      %3715 = vmatpush.bf16.msra.mxu0 %v3500
      %3716 = vmatpush.bf16.msra.mxu0 %v3491
      %3717 = vmatpush.bf16.msra.mxu0 %v3482
      %3718 = vmatmul.bf16.gmra.mxu0 %v3170
      %v3719 = vpop.f32.mrf.mxu0
      %v3720 = vadd.f32 0.0, %v3719
      %v3721 = vpop.f32.mrf.mxu0
      %3722 = vdwg.mxu0
      %3723 = vmatpush.bf16.msra.mxu0 %v3546
      %3724 = vmatpush.bf16.msra.mxu0 %v3537
      %3725 = vmatpush.bf16.msra.mxu0 %v3528
      %3726 = vmatpush.bf16.msra.mxu0 %v3519
      %3727 = vmatpush.bf16.msra.mxu0 %v3510
      %3728 = vmatpush.bf16.msra.mxu0 %v3501
      %3729 = vmatpush.bf16.msra.mxu0 %v3492
      %3730 = vmatpush.bf16.msra.mxu0 %v3483
      %3731 = vmatmul.bf16.gmra.mxu0 %v3170
      %v3732 = vpop.f32.mrf.mxu0
      %v3733 = vadd.f32 0.0, %v3732
      %v3734 = vpop.f32.mrf.mxu0
      %3735 = vdwg.mxu0
      %v3736 = vpack.c.bf16 %v3642, %v3629
      %v3737 = vpack.c.bf16 %v3668, %v3655
      %v3738 = vpack.c.bf16 %v3694, %v3681
      %v3739 = vpack.c.bf16 %v3720, %v3707
      %v3740 = vpack.c.bf16 %v3733, %v3733
      %v3741 = vld [vmem:[%s8] sm:$0xf]
      %s3742 = scalar_lea.vmem %s8, 4
      %v3743 = vld [vmem:[%s3742] sm:$0xf]
      %v3745 = vunpack.c.h.b16 %v3736
      %v3746 = vpack.c.b16 %v3745, %v3745
      %v3748 = vsel %vm2445, %v3743, 0
      %v3751 = vsel %vm2449, %v3746, 0
      %3753 = vmatpush.bf16.msra.mxu0 0
      %3754 = vmatpush.bf16.msra.mxu0 0
      %3755 = vmatpush.bf16.msra.mxu0 0
      %3756 = vmatpush.bf16.msra.mxu0 0
      %3757 = vmatpush.bf16.msra.mxu0 0
      %3758 = vmatpush.bf16.msra.mxu0 0
      %3759 = vmatpush.bf16.msra.mxu0 0
      %3760 = vmatpush.bf16.msra.mxu0 %v3751
      %3761 = vmatmul.bf16.gmra.mxu0 %v3748
      %v3762 = vpop.f32.mrf.mxu0
      %v3763 = vadd.f32 0.0, %v3762
      %v3764 = vpop.f32.mrf.mxu0
      %3765 = vdwg.mxu0
      %v3767 = vsel %vm2445, %v3741, 0
      %v3770 = vsel %vm2449, %v3736, 0
      %3772 = vmatpush.bf16.msra.mxu0 0
      %3773 = vmatpush.bf16.msra.mxu0 0
      %3774 = vmatpush.bf16.msra.mxu0 0
      %3775 = vmatpush.bf16.msra.mxu0 0
      %3776 = vmatpush.bf16.msra.mxu0 0
      %3777 = vmatpush.bf16.msra.mxu0 0
      %3778 = vmatpush.bf16.msra.mxu0 0
      %3779 = vmatpush.bf16.msra.mxu0 %v3770
      %3780 = vmatmul.bf16.gmra.mxu0 %v3767
      %v3781 = vpop.f32.mrf.mxu0
      %v3782 = vadd.f32 %v3763, %v3781
      %v3783 = vpop.f32.mrf.mxu0
      %3784 = vdwg.mxu0
      %s3785 = scalar_lea.vmem %s8, 8
      %v3786 = vld [vmem:[%s3785] sm:$0xf]
      %v3788 = vsel %vm2445, %v3786, 0
      %v3791 = vsel %vm2449, %v3737, 0
      %3793 = vmatpush.bf16.msra.mxu0 0
      %3794 = vmatpush.bf16.msra.mxu0 0
      %3795 = vmatpush.bf16.msra.mxu0 0
      %3796 = vmatpush.bf16.msra.mxu0 0
      %3797 = vmatpush.bf16.msra.mxu0 0
      %3798 = vmatpush.bf16.msra.mxu0 0
      %3799 = vmatpush.bf16.msra.mxu0 0
      %3800 = vmatpush.bf16.msra.mxu0 %v3791
      %3801 = vmatmul.bf16.gmra.mxu0 %v3788
      %v3802 = vpop.f32.mrf.mxu0
      %v3803 = vadd.f32 0.0, %v3802
      %v3804 = vpop.f32.mrf.mxu0
      %3805 = vdwg.mxu0
      %v3806 = vadd.f32 %v3782, %v3803
      %s3807 = scalar_lea.vmem %s8, 12
      %v3808 = vld [vmem:[%s3807] sm:$0xf]
      %v3810 = vunpack.c.h.b16 %v3737
      %v3811 = vpack.c.b16 %v3810, %v3810
      %v3813 = vsel %vm2445, %v3808, 0
      %v3816 = vsel %vm2449, %v3811, 0
      %3818 = vmatpush.bf16.msra.mxu0 0
      %3819 = vmatpush.bf16.msra.mxu0 0
      %3820 = vmatpush.bf16.msra.mxu0 0
      %3821 = vmatpush.bf16.msra.mxu0 0
      %3822 = vmatpush.bf16.msra.mxu0 0
      %3823 = vmatpush.bf16.msra.mxu0 0
      %3824 = vmatpush.bf16.msra.mxu0 0
      %3825 = vmatpush.bf16.msra.mxu0 %v3816
      %3826 = vmatmul.bf16.gmra.mxu0 %v3813
      %v3827 = vpop.f32.mrf.mxu0
      %v3828 = vadd.f32 0.0, %v3827
      %v3829 = vpop.f32.mrf.mxu0
      %3830 = vdwg.mxu0
      %v3831 = vadd.f32 %v3806, %v3828
      %s3832 = scalar_lea.vmem %s8, 16
      %v3833 = vld [vmem:[%s3832] sm:$0xf]
      %v3835 = vsel %vm2445, %v3833, 0
      %v3838 = vsel %vm2449, %v3738, 0
      %3840 = vmatpush.bf16.msra.mxu0 0
      %3841 = vmatpush.bf16.msra.mxu0 0
      %3842 = vmatpush.bf16.msra.mxu0 0
      %3843 = vmatpush.bf16.msra.mxu0 0
      %3844 = vmatpush.bf16.msra.mxu0 0
      %3845 = vmatpush.bf16.msra.mxu0 0
      %3846 = vmatpush.bf16.msra.mxu0 0
      %3847 = vmatpush.bf16.msra.mxu0 %v3838
      %3848 = vmatmul.bf16.gmra.mxu0 %v3835
      %v3849 = vpop.f32.mrf.mxu0
      %v3850 = vadd.f32 0.0, %v3849
      %v3851 = vpop.f32.mrf.mxu0
      %3852 = vdwg.mxu0
      %v3853 = vadd.f32 %v3831, %v3850
      %s3854 = scalar_lea.vmem %s8, 20
      %v3855 = vld [vmem:[%s3854] sm:$0xf]
      %v3857 = vunpack.c.h.b16 %v3738
      %v3858 = vpack.c.b16 %v3857, %v3857
      %v3860 = vsel %vm2445, %v3855, 0
      %v3863 = vsel %vm2449, %v3858, 0
      %3865 = vmatpush.bf16.msra.mxu0 0
      %3866 = vmatpush.bf16.msra.mxu0 0
      %3867 = vmatpush.bf16.msra.mxu0 0
      %3868 = vmatpush.bf16.msra.mxu0 0
      %3869 = vmatpush.bf16.msra.mxu0 0
      %3870 = vmatpush.bf16.msra.mxu0 0
      %3871 = vmatpush.bf16.msra.mxu0 0
      %3872 = vmatpush.bf16.msra.mxu0 %v3863
      %3873 = vmatmul.bf16.gmra.mxu0 %v3860
      %v3874 = vpop.f32.mrf.mxu0
      %v3875 = vadd.f32 0.0, %v3874
      %v3876 = vpop.f32.mrf.mxu0
      %3877 = vdwg.mxu0
      %v3878 = vadd.f32 %v3853, %v3875
      %s3879 = scalar_lea.vmem %s8, 24
      %v3880 = vld [vmem:[%s3879] sm:$0xf]
      %v3882 = vsel %vm2445, %v3880, 0
      %v3885 = vsel %vm2449, %v3739, 0
      %3887 = vmatpush.bf16.msra.mxu0 0
      %3888 = vmatpush.bf16.msra.mxu0 0
      %3889 = vmatpush.bf16.msra.mxu0 0
      %3890 = vmatpush.bf16.msra.mxu0 0
      %3891 = vmatpush.bf16.msra.mxu0 0
      %3892 = vmatpush.bf16.msra.mxu0 0
      %3893 = vmatpush.bf16.msra.mxu0 0
      %3894 = vmatpush.bf16.msra.mxu0 %v3885
      %3895 = vmatmul.bf16.gmra.mxu0 %v3882
      %v3896 = vpop.f32.mrf.mxu0
      %v3897 = vadd.f32 0.0, %v3896
      %v3898 = vpop.f32.mrf.mxu0
      %3899 = vdwg.mxu0
      %v3900 = vadd.f32 %v3878, %v3897
      %s3901 = scalar_lea.vmem %s8, 28
      %v3902 = vld [vmem:[%s3901] sm:$0xf]
      %v3904 = vunpack.c.h.b16 %v3739
      %v3905 = vpack.c.b16 %v3904, %v3904
      %v3907 = vsel %vm2445, %v3902, 0
      %v3910 = vsel %vm2449, %v3905, 0
      %3912 = vmatpush.bf16.msra.mxu0 0
      %3913 = vmatpush.bf16.msra.mxu0 0
      %3914 = vmatpush.bf16.msra.mxu0 0
      %3915 = vmatpush.bf16.msra.mxu0 0
      %3916 = vmatpush.bf16.msra.mxu0 0
      %3917 = vmatpush.bf16.msra.mxu0 0
      %3918 = vmatpush.bf16.msra.mxu0 0
      %3919 = vmatpush.bf16.msra.mxu0 %v3910
      %3920 = vmatmul.bf16.gmra.mxu0 %v3907
      %v3921 = vpop.f32.mrf.mxu0
      %v3922 = vadd.f32 0.0, %v3921
      %v3923 = vpop.f32.mrf.mxu0
      %3924 = vdwg.mxu0
      %v3925 = vadd.f32 %v3900, %v3922
      %s3926 = scalar_lea.vmem %s8, 32
      %v3927 = vld [vmem:[%s3926] sm:$0xf]
      %v3929 = vsel %vm2445, %v3927, 0
      %v3932 = vsel %vm2449, %v3740, 0
      %3934 = vmatpush.bf16.msra.mxu0 0
      %3935 = vmatpush.bf16.msra.mxu0 0
      %3936 = vmatpush.bf16.msra.mxu0 0
      %3937 = vmatpush.bf16.msra.mxu0 0
      %3938 = vmatpush.bf16.msra.mxu0 0
      %3939 = vmatpush.bf16.msra.mxu0 0
      %3940 = vmatpush.bf16.msra.mxu0 0
      %3941 = vmatpush.bf16.msra.mxu0 %v3932
      %3942 = vmatmul.bf16.gmra.mxu0 %v3929
      %v3943 = vpop.f32.mrf.mxu0
      %v3944 = vadd.f32 0.0, %v3943
      %v3945 = vpop.f32.mrf.mxu0
      %3946 = vdwg.mxu0
      %v3947 = vadd.f32 %v3925, %v3944
      %v3948 = vperm.slane %v391, 4
      %v3949 = vadd.f32 %v3947, %v3948
      %v3950 = vmax.f32 %v3949, 0.0
      %v3951 = vpack.c.bf16 %v3950, %v3950
      %s3952 = scalar_lea.vmem %s4, 576
      %v3953 = vld [vmem:[%s3952] sm:$0xff]
      %v3954 = vld [vmem:[%s3952 + $0x8] sm:$0xff]
      %v3955 = vld [vmem:[%s3952 + $0x10] sm:$0xff]
      %v3956 = vld [vmem:[%s3952 + $0x18] sm:$0xff]
      %v3957 = vld [vmem:[%s3952 + $0x20] sm:$0xf]
      %v3958 = vld [vmem:[%s3952 + $0x24] sm:$0xff]
      %v3959 = vld [vmem:[%s3952 + $0x2c] sm:$0xff]
      %v3960 = vld [vmem:[%s3952 + $0x34] sm:$0xff]
      %v3961 = vld [vmem:[%s3952 + $0x3c] sm:$0xff]
      %v3962 = vld [vmem:[%s3952 + $0x44] sm:$0xf]
      %v3963 = vld [vmem:[%s3952 + $0x48] sm:$0xff]
      %v3964 = vld [vmem:[%s3952 + $0x50] sm:$0xff]
      %v3965 = vld [vmem:[%s3952 + $0x58] sm:$0xff]
      %v3966 = vld [vmem:[%s3952 + $0x60] sm:$0xff]
      %v3967 = vld [vmem:[%s3952 + $0x68] sm:$0xf]
      %v3968 = vld [vmem:[%s3952 + $0x6c] sm:$0xff]
      %v3969 = vld [vmem:[%s3952 + $0x74] sm:$0xff]
      %v3970 = vld [vmem:[%s3952 + $0x7c] sm:$0xff]
      %v3971 = vld [vmem:[%s3952 + $0x84] sm:$0xff]
      %v3972 = vld [vmem:[%s3952 + $0x8c] sm:$0xf]
      %v3973 = vld [vmem:[%s3952 + $0x90] sm:$0xff]
      %v3974 = vld [vmem:[%s3952 + $0x98] sm:$0xff]
      %v3975 = vld [vmem:[%s3952 + $0xa0] sm:$0xff]
      %v3976 = vld [vmem:[%s3952 + $0xa8] sm:$0xff]
      %v3977 = vld [vmem:[%s3952 + $0xb0] sm:$0xf]
      %v3978 = vld [vmem:[%s3952 + $0xb4] sm:$0xff]
      %v3979 = vld [vmem:[%s3952 + $0xbc] sm:$0xff]
      %v3980 = vld [vmem:[%s3952 + $0xc4] sm:$0xff]
      %v3981 = vld [vmem:[%s3952 + $0xcc] sm:$0xff]
      %v3982 = vld [vmem:[%s3952 + $0xd4] sm:$0xf]
      %v3983 = vld [vmem:[%s3952 + $0xd8] sm:$0xff]
      %v3984 = vld [vmem:[%s3952 + $0xe0] sm:$0xff]
      %v3985 = vld [vmem:[%s3952 + $0xe8] sm:$0xff]
      %v3986 = vld [vmem:[%s3952 + $0xf0] sm:$0xff]
      %v3987 = vld [vmem:[%s3952 + $0xf8] sm:$0xf]
      %v3988 = vld [vmem:[%s3952 + $0xfc] sm:$0xff]
      %v3989 = vld [vmem:[%s3952 + $0x104] sm:$0xff]
      %v3990 = vld [vmem:[%s3952 + $0x10c] sm:$0xff]
      %v3991 = vld [vmem:[%s3952 + $0x114] sm:$0xff]
      %v3992 = vld [vmem:[%s3952 + $0x11c] sm:$0xf]
      %v3993 = vld [vmem:[%s3952 + $0x120] sm:$0xff]
      %v3994 = vld [vmem:[%s3952 + $0x128] sm:$0xff]
      %v3995 = vld [vmem:[%s3952 + $0x130] sm:$0xff]
      %v3996 = vld [vmem:[%s3952 + $0x138] sm:$0xff]
      %v3997 = vld [vmem:[%s3952 + $0x140] sm:$0xf]
      %v3998 = vld [vmem:[%s3952 + $0x144] sm:$0xff]
      %v3999 = vld [vmem:[%s3952 + $0x14c] sm:$0xff]
      %v4000 = vld [vmem:[%s3952 + $0x154] sm:$0xff]
      %v4001 = vld [vmem:[%s3952 + $0x15c] sm:$0xff]
      %v4002 = vld [vmem:[%s3952 + $0x164] sm:$0xf]
      %v4003 = vld [vmem:[%s3952 + $0x168] sm:$0xff]
      %v4004 = vld [vmem:[%s3952 + $0x170] sm:$0xff]
      %v4005 = vld [vmem:[%s3952 + $0x178] sm:$0xff]
      %v4006 = vld [vmem:[%s3952 + $0x180] sm:$0xff]
      %v4007 = vld [vmem:[%s3952 + $0x188] sm:$0xf]
      %v4008 = vld [vmem:[%s3952 + $0x18c] sm:$0xff]
      %v4009 = vld [vmem:[%s3952 + $0x194] sm:$0xff]
      %v4010 = vld [vmem:[%s3952 + $0x19c] sm:$0xff]
      %v4011 = vld [vmem:[%s3952 + $0x1a4] sm:$0xff]
      %v4012 = vld [vmem:[%s3952 + $0x1ac] sm:$0xf]
      %v4013 = vld [vmem:[%s3952 + $0x1b0] sm:$0xff]
      %v4014 = vld [vmem:[%s3952 + $0x1b8] sm:$0xff]
      %v4015 = vld [vmem:[%s3952 + $0x1c0] sm:$0xff]
      %v4016 = vld [vmem:[%s3952 + $0x1c8] sm:$0xff]
      %v4017 = vld [vmem:[%s3952 + $0x1d0] sm:$0xf]
      %v4018 = vld [vmem:[%s3952 + $0x1d4] sm:$0xff]
      %v4019 = vld [vmem:[%s3952 + $0x1dc] sm:$0xff]
      %v4020 = vld [vmem:[%s3952 + $0x1e4] sm:$0xff]
      %v4021 = vld [vmem:[%s3952 + $0x1ec] sm:$0xff]
      %v4022 = vld [vmem:[%s3952 + $0x1f4] sm:$0xf]
      %v4023 = vld [vmem:[%s3952 + $0x1f8] sm:$0xff]
      %v4024 = vld [vmem:[%s3952 + $0x200] sm:$0xff]
      %v4025 = vld [vmem:[%s3952 + $0x208] sm:$0xff]
      %v4026 = vld [vmem:[%s3952 + $0x210] sm:$0xff]
      %v4027 = vld [vmem:[%s3952 + $0x218] sm:$0xf]
      %v4028 = vld [vmem:[%s3952 + $0x21c] sm:$0xff]
      %v4029 = vld [vmem:[%s3952 + $0x224] sm:$0xff]
      %v4030 = vld [vmem:[%s3952 + $0x22c] sm:$0xff]
      %v4031 = vld [vmem:[%s3952 + $0x234] sm:$0xff]
      %v4032 = vld [vmem:[%s3952 + $0x23c] sm:$0xf]
      %v4113 = vunpack.c.l.b16 %v3953
      %v4114 = vunpack.c.h.b16 %v3953
      %v4115 = vunpack.c.l.b16 %v3954
      %v4116 = vunpack.c.h.b16 %v3954
      %v4117 = vunpack.c.l.b16 %v3955
      %v4118 = vunpack.c.h.b16 %v3955
      %v4119 = vunpack.c.l.b16 %v3956
      %v4120 = vunpack.c.h.b16 %v3956
      %v4121 = vunpack.c.l.b16 %v3957
      %v4122 = vunpack.c.l.b16 %v3958
      %v4123 = vunpack.c.h.b16 %v3958
      %v4124 = vunpack.c.l.b16 %v3959
      %v4125 = vunpack.c.h.b16 %v3959
      %v4126 = vunpack.c.l.b16 %v3960
      %v4127 = vunpack.c.h.b16 %v3960
      %v4128 = vunpack.c.l.b16 %v3961
      %v4129 = vunpack.c.h.b16 %v3961
      %v4130 = vunpack.c.l.b16 %v3962
      %v4131 = vunpack.c.l.b16 %v3963
      %v4132 = vunpack.c.h.b16 %v3963
      %v4133 = vunpack.c.l.b16 %v3964
      %v4134 = vunpack.c.h.b16 %v3964
      %v4135 = vunpack.c.l.b16 %v3965
      %v4136 = vunpack.c.h.b16 %v3965
      %v4137 = vunpack.c.l.b16 %v3966
      %v4138 = vunpack.c.h.b16 %v3966
      %v4139 = vunpack.c.l.b16 %v3967
      %v4140 = vunpack.c.l.b16 %v3968
      %v4141 = vunpack.c.h.b16 %v3968
      %v4142 = vunpack.c.l.b16 %v3969
      %v4143 = vunpack.c.h.b16 %v3969
      %v4144 = vunpack.c.l.b16 %v3970
      %v4145 = vunpack.c.h.b16 %v3970
      %v4146 = vunpack.c.l.b16 %v3971
      %v4147 = vunpack.c.h.b16 %v3971
      %v4148 = vunpack.c.l.b16 %v3972
      %v4149 = vunpack.c.l.b16 %v3973
      %v4150 = vunpack.c.h.b16 %v3973
      %v4151 = vunpack.c.l.b16 %v3974
      %v4152 = vunpack.c.h.b16 %v3974
      %v4153 = vunpack.c.l.b16 %v3975
      %v4154 = vunpack.c.h.b16 %v3975
      %v4155 = vunpack.c.l.b16 %v3976
      %v4156 = vunpack.c.h.b16 %v3976
      %v4157 = vunpack.c.l.b16 %v3977
      %v4158 = vunpack.c.l.b16 %v3978
      %v4159 = vunpack.c.h.b16 %v3978
      %v4160 = vunpack.c.l.b16 %v3979
      %v4161 = vunpack.c.h.b16 %v3979
      %v4162 = vunpack.c.l.b16 %v3980
      %v4163 = vunpack.c.h.b16 %v3980
      %v4164 = vunpack.c.l.b16 %v3981
      %v4165 = vunpack.c.h.b16 %v3981
      %v4166 = vunpack.c.l.b16 %v3982
      %v4167 = vunpack.c.l.b16 %v3983
      %v4168 = vunpack.c.h.b16 %v3983
      %v4169 = vunpack.c.l.b16 %v3984
      %v4170 = vunpack.c.h.b16 %v3984
      %v4171 = vunpack.c.l.b16 %v3985
      %v4172 = vunpack.c.h.b16 %v3985
      %v4173 = vunpack.c.l.b16 %v3986
      %v4174 = vunpack.c.h.b16 %v3986
      %v4175 = vunpack.c.l.b16 %v3987
      %v4176 = vunpack.c.l.b16 %v3988
      %v4177 = vunpack.c.h.b16 %v3988
      %v4178 = vunpack.c.l.b16 %v3989
      %v4179 = vunpack.c.h.b16 %v3989
      %v4180 = vunpack.c.l.b16 %v3990
      %v4181 = vunpack.c.h.b16 %v3990
      %v4182 = vunpack.c.l.b16 %v3991
      %v4183 = vunpack.c.h.b16 %v3991
      %v4184 = vunpack.c.l.b16 %v3992
      %v4185 = vunpack.c.l.b16 %v3993
      %v4186 = vunpack.c.h.b16 %v3993
      %v4187 = vunpack.c.l.b16 %v3994
      %v4188 = vunpack.c.h.b16 %v3994
      %v4189 = vunpack.c.l.b16 %v3995
      %v4190 = vunpack.c.h.b16 %v3995
      %v4191 = vunpack.c.l.b16 %v3996
      %v4192 = vunpack.c.h.b16 %v3996
      %v4193 = vunpack.c.l.b16 %v3997
      %v4194 = vunpack.c.l.b16 %v3998
      %v4195 = vunpack.c.h.b16 %v3998
      %v4196 = vunpack.c.l.b16 %v3999
      %v4197 = vunpack.c.h.b16 %v3999
      %v4198 = vunpack.c.l.b16 %v4000
      %v4199 = vunpack.c.h.b16 %v4000
      %v4200 = vunpack.c.l.b16 %v4001
      %v4201 = vunpack.c.h.b16 %v4001
      %v4202 = vunpack.c.l.b16 %v4002
      %v4203 = vunpack.c.l.b16 %v4003
      %v4204 = vunpack.c.h.b16 %v4003
      %v4205 = vunpack.c.l.b16 %v4004
      %v4206 = vunpack.c.h.b16 %v4004
      %v4207 = vunpack.c.l.b16 %v4005
      %v4208 = vunpack.c.h.b16 %v4005
      %v4209 = vunpack.c.l.b16 %v4006
      %v4210 = vunpack.c.h.b16 %v4006
      %v4211 = vunpack.c.l.b16 %v4007
      %v4212 = vunpack.c.l.b16 %v4008
      %v4213 = vunpack.c.h.b16 %v4008
      %v4214 = vunpack.c.l.b16 %v4009
      %v4215 = vunpack.c.h.b16 %v4009
      %v4216 = vunpack.c.l.b16 %v4010
      %v4217 = vunpack.c.h.b16 %v4010
      %v4218 = vunpack.c.l.b16 %v4011
      %v4219 = vunpack.c.h.b16 %v4011
      %v4220 = vunpack.c.l.b16 %v4012
      %v4221 = vunpack.c.l.b16 %v4013
      %v4222 = vunpack.c.h.b16 %v4013
      %v4223 = vunpack.c.l.b16 %v4014
      %v4224 = vunpack.c.h.b16 %v4014
      %v4225 = vunpack.c.l.b16 %v4015
      %v4226 = vunpack.c.h.b16 %v4015
      %v4227 = vunpack.c.l.b16 %v4016
      %v4228 = vunpack.c.h.b16 %v4016
      %v4229 = vunpack.c.l.b16 %v4017
      %v4230 = vunpack.c.l.b16 %v4018
      %v4231 = vunpack.c.h.b16 %v4018
      %v4232 = vunpack.c.l.b16 %v4019
      %v4233 = vunpack.c.h.b16 %v4019
      %v4234 = vunpack.c.l.b16 %v4020
      %v4235 = vunpack.c.h.b16 %v4020
      %v4236 = vunpack.c.l.b16 %v4021
      %v4237 = vunpack.c.h.b16 %v4021
      %v4238 = vunpack.c.l.b16 %v4022
      %v4239 = vunpack.c.l.b16 %v4023
      %v4240 = vunpack.c.h.b16 %v4023
      %v4241 = vunpack.c.l.b16 %v4024
      %v4242 = vunpack.c.h.b16 %v4024
      %v4243 = vunpack.c.l.b16 %v4025
      %v4244 = vunpack.c.h.b16 %v4025
      %v4245 = vunpack.c.l.b16 %v4026
      %v4246 = vunpack.c.h.b16 %v4026
      %v4247 = vunpack.c.l.b16 %v4027
      %v4248 = vunpack.c.l.b16 %v4028
      %v4249 = vunpack.c.h.b16 %v4028
      %v4250 = vunpack.c.l.b16 %v4029
      %v4251 = vunpack.c.h.b16 %v4029
      %v4252 = vunpack.c.l.b16 %v4030
      %v4253 = vunpack.c.h.b16 %v4030
      %v4254 = vunpack.c.l.b16 %v4031
      %v4255 = vunpack.c.h.b16 %v4031
      %v4256 = vunpack.c.l.b16 %v4032
      %v4257 = vpack.c.b16 %v4122, %v4113
      %v4258 = vpack.c.b16 %v4123, %v4114
      %v4259 = vpack.c.b16 %v4124, %v4115
      %v4260 = vpack.c.b16 %v4125, %v4116
      %v4261 = vpack.c.b16 %v4126, %v4117
      %v4262 = vpack.c.b16 %v4127, %v4118
      %v4263 = vpack.c.b16 %v4128, %v4119
      %v4264 = vpack.c.b16 %v4129, %v4120
      %v4265 = vpack.c.b16 %v4130, %v4121
      %v4266 = vpack.c.b16 %v4140, %v4131
      %v4267 = vpack.c.b16 %v4141, %v4132
      %v4268 = vpack.c.b16 %v4142, %v4133
      %v4269 = vpack.c.b16 %v4143, %v4134
      %v4270 = vpack.c.b16 %v4144, %v4135
      %v4271 = vpack.c.b16 %v4145, %v4136
      %v4272 = vpack.c.b16 %v4146, %v4137
      %v4273 = vpack.c.b16 %v4147, %v4138
      %v4274 = vpack.c.b16 %v4148, %v4139
      %v4275 = vpack.c.b16 %v4158, %v4149
      %v4276 = vpack.c.b16 %v4159, %v4150
      %v4277 = vpack.c.b16 %v4160, %v4151
      %v4278 = vpack.c.b16 %v4161, %v4152
      %v4279 = vpack.c.b16 %v4162, %v4153
      %v4280 = vpack.c.b16 %v4163, %v4154
      %v4281 = vpack.c.b16 %v4164, %v4155
      %v4282 = vpack.c.b16 %v4165, %v4156
      %v4283 = vpack.c.b16 %v4166, %v4157
      %v4284 = vpack.c.b16 %v4176, %v4167
      %v4285 = vpack.c.b16 %v4177, %v4168
      %v4286 = vpack.c.b16 %v4178, %v4169
      %v4287 = vpack.c.b16 %v4179, %v4170
      %v4288 = vpack.c.b16 %v4180, %v4171
      %v4289 = vpack.c.b16 %v4181, %v4172
      %v4290 = vpack.c.b16 %v4182, %v4173
      %v4291 = vpack.c.b16 %v4183, %v4174
      %v4292 = vpack.c.b16 %v4184, %v4175
      %v4293 = vpack.c.b16 %v4194, %v4185
      %v4294 = vpack.c.b16 %v4195, %v4186
      %v4295 = vpack.c.b16 %v4196, %v4187
      %v4296 = vpack.c.b16 %v4197, %v4188
      %v4297 = vpack.c.b16 %v4198, %v4189
      %v4298 = vpack.c.b16 %v4199, %v4190
      %v4299 = vpack.c.b16 %v4200, %v4191
      %v4300 = vpack.c.b16 %v4201, %v4192
      %v4301 = vpack.c.b16 %v4202, %v4193
      %v4302 = vpack.c.b16 %v4212, %v4203
      %v4303 = vpack.c.b16 %v4213, %v4204
      %v4304 = vpack.c.b16 %v4214, %v4205
      %v4305 = vpack.c.b16 %v4215, %v4206
      %v4306 = vpack.c.b16 %v4216, %v4207
      %v4307 = vpack.c.b16 %v4217, %v4208
      %v4308 = vpack.c.b16 %v4218, %v4209
      %v4309 = vpack.c.b16 %v4219, %v4210
      %v4310 = vpack.c.b16 %v4220, %v4211
      %v4311 = vpack.c.b16 %v4230, %v4221
      %v4312 = vpack.c.b16 %v4231, %v4222
      %v4313 = vpack.c.b16 %v4232, %v4223
      %v4314 = vpack.c.b16 %v4233, %v4224
      %v4315 = vpack.c.b16 %v4234, %v4225
      %v4316 = vpack.c.b16 %v4235, %v4226
      %v4317 = vpack.c.b16 %v4236, %v4227
      %v4318 = vpack.c.b16 %v4237, %v4228
      %v4319 = vpack.c.b16 %v4238, %v4229
      %v4320 = vpack.c.b16 %v4248, %v4239
      %v4321 = vpack.c.b16 %v4249, %v4240
      %v4322 = vpack.c.b16 %v4250, %v4241
      %v4323 = vpack.c.b16 %v4251, %v4242
      %v4324 = vpack.c.b16 %v4252, %v4243
      %v4325 = vpack.c.b16 %v4253, %v4244
      %v4326 = vpack.c.b16 %v4254, %v4245
      %v4327 = vpack.c.b16 %v4255, %v4246
      %v4328 = vpack.c.b16 %v4256, %v4247
      %4401 = vmatpush.bf16.msra.mxu0 %v4320
      %4402 = vmatpush.bf16.msra.mxu0 %v4311
      %4403 = vmatpush.bf16.msra.mxu0 %v4302
      %4404 = vmatpush.bf16.msra.mxu0 %v4293
      %4405 = vmatpush.bf16.msra.mxu0 %v4284
      %4406 = vmatpush.bf16.msra.mxu0 %v4275
      %4407 = vmatpush.bf16.msra.mxu0 %v4266
      %4408 = vmatpush.bf16.msra.mxu0 %v4257
      %4409 = vmatmul.bf16.gmra.mxu0 %v3951
      %v4410 = vpop.f32.mrf.mxu0
      %v4411 = vadd.f32 0.0, %v4410
      %v4412 = vpop.f32.mrf.mxu0
      %4413 = vdwg.mxu0
      %4414 = vmatpush.bf16.msra.mxu0 %v4321
      %4415 = vmatpush.bf16.msra.mxu0 %v4312
      %4416 = vmatpush.bf16.msra.mxu0 %v4303
      %4417 = vmatpush.bf16.msra.mxu0 %v4294
      %4418 = vmatpush.bf16.msra.mxu0 %v4285
      %4419 = vmatpush.bf16.msra.mxu0 %v4276
      %4420 = vmatpush.bf16.msra.mxu0 %v4267
      %4421 = vmatpush.bf16.msra.mxu0 %v4258
      %4422 = vmatmul.bf16.gmra.mxu0 %v3951
      %v4423 = vpop.f32.mrf.mxu0
      %v4424 = vadd.f32 0.0, %v4423
      %v4425 = vpop.f32.mrf.mxu0
      %4426 = vdwg.mxu0
      %4427 = vmatpush.bf16.msra.mxu0 %v4322
      %4428 = vmatpush.bf16.msra.mxu0 %v4313
      %4429 = vmatpush.bf16.msra.mxu0 %v4304
      %4430 = vmatpush.bf16.msra.mxu0 %v4295
      %4431 = vmatpush.bf16.msra.mxu0 %v4286
      %4432 = vmatpush.bf16.msra.mxu0 %v4277
      %4433 = vmatpush.bf16.msra.mxu0 %v4268
      %4434 = vmatpush.bf16.msra.mxu0 %v4259
      %4435 = vmatmul.bf16.gmra.mxu0 %v3951
      %v4436 = vpop.f32.mrf.mxu0
      %v4437 = vadd.f32 0.0, %v4436
      %v4438 = vpop.f32.mrf.mxu0
      %4439 = vdwg.mxu0
      %4440 = vmatpush.bf16.msra.mxu0 %v4323
      %4441 = vmatpush.bf16.msra.mxu0 %v4314
      %4442 = vmatpush.bf16.msra.mxu0 %v4305
      %4443 = vmatpush.bf16.msra.mxu0 %v4296
      %4444 = vmatpush.bf16.msra.mxu0 %v4287
      %4445 = vmatpush.bf16.msra.mxu0 %v4278
      %4446 = vmatpush.bf16.msra.mxu0 %v4269
      %4447 = vmatpush.bf16.msra.mxu0 %v4260
      %4448 = vmatmul.bf16.gmra.mxu0 %v3951
      %v4449 = vpop.f32.mrf.mxu0
      %v4450 = vadd.f32 0.0, %v4449
      %v4451 = vpop.f32.mrf.mxu0
      %4452 = vdwg.mxu0
      %4453 = vmatpush.bf16.msra.mxu0 %v4324
      %4454 = vmatpush.bf16.msra.mxu0 %v4315
      %4455 = vmatpush.bf16.msra.mxu0 %v4306
      %4456 = vmatpush.bf16.msra.mxu0 %v4297
      %4457 = vmatpush.bf16.msra.mxu0 %v4288
      %4458 = vmatpush.bf16.msra.mxu0 %v4279
      %4459 = vmatpush.bf16.msra.mxu0 %v4270
      %4460 = vmatpush.bf16.msra.mxu0 %v4261
      %4461 = vmatmul.bf16.gmra.mxu0 %v3951
      %v4462 = vpop.f32.mrf.mxu0
      %v4463 = vadd.f32 0.0, %v4462
      %v4464 = vpop.f32.mrf.mxu0
      %4465 = vdwg.mxu0
      %4466 = vmatpush.bf16.msra.mxu0 %v4325
      %4467 = vmatpush.bf16.msra.mxu0 %v4316
      %4468 = vmatpush.bf16.msra.mxu0 %v4307
      %4469 = vmatpush.bf16.msra.mxu0 %v4298
      %4470 = vmatpush.bf16.msra.mxu0 %v4289
      %4471 = vmatpush.bf16.msra.mxu0 %v4280
      %4472 = vmatpush.bf16.msra.mxu0 %v4271
      %4473 = vmatpush.bf16.msra.mxu0 %v4262
      %4474 = vmatmul.bf16.gmra.mxu0 %v3951
      %v4475 = vpop.f32.mrf.mxu0
      %v4476 = vadd.f32 0.0, %v4475
      %v4477 = vpop.f32.mrf.mxu0
      %4478 = vdwg.mxu0
      %4479 = vmatpush.bf16.msra.mxu0 %v4326
      %4480 = vmatpush.bf16.msra.mxu0 %v4317
      %4481 = vmatpush.bf16.msra.mxu0 %v4308
      %4482 = vmatpush.bf16.msra.mxu0 %v4299
      %4483 = vmatpush.bf16.msra.mxu0 %v4290
      %4484 = vmatpush.bf16.msra.mxu0 %v4281
      %4485 = vmatpush.bf16.msra.mxu0 %v4272
      %4486 = vmatpush.bf16.msra.mxu0 %v4263
      %4487 = vmatmul.bf16.gmra.mxu0 %v3951
      %v4488 = vpop.f32.mrf.mxu0
      %v4489 = vadd.f32 0.0, %v4488
      %v4490 = vpop.f32.mrf.mxu0
      %4491 = vdwg.mxu0
      %4492 = vmatpush.bf16.msra.mxu0 %v4327
      %4493 = vmatpush.bf16.msra.mxu0 %v4318
      %4494 = vmatpush.bf16.msra.mxu0 %v4309
      %4495 = vmatpush.bf16.msra.mxu0 %v4300
      %4496 = vmatpush.bf16.msra.mxu0 %v4291
      %4497 = vmatpush.bf16.msra.mxu0 %v4282
      %4498 = vmatpush.bf16.msra.mxu0 %v4273
      %4499 = vmatpush.bf16.msra.mxu0 %v4264
      %4500 = vmatmul.bf16.gmra.mxu0 %v3951
      %v4501 = vpop.f32.mrf.mxu0
      %v4502 = vadd.f32 0.0, %v4501
      %v4503 = vpop.f32.mrf.mxu0
      %4504 = vdwg.mxu0
      %4505 = vmatpush.bf16.msra.mxu0 %v4328
      %4506 = vmatpush.bf16.msra.mxu0 %v4319
      %4507 = vmatpush.bf16.msra.mxu0 %v4310
      %4508 = vmatpush.bf16.msra.mxu0 %v4301
      %4509 = vmatpush.bf16.msra.mxu0 %v4292
      %4510 = vmatpush.bf16.msra.mxu0 %v4283
      %4511 = vmatpush.bf16.msra.mxu0 %v4274
      %4512 = vmatpush.bf16.msra.mxu0 %v4265
      %4513 = vmatmul.bf16.gmra.mxu0 %v3951
      %v4514 = vpop.f32.mrf.mxu0
      %v4515 = vadd.f32 0.0, %v4514
      %v4516 = vpop.f32.mrf.mxu0
      %4517 = vdwg.mxu0
      %v4518 = vpack.c.bf16 %v4424, %v4411
      %v4519 = vpack.c.bf16 %v4450, %v4437
      %v4520 = vpack.c.bf16 %v4476, %v4463
      %v4521 = vpack.c.bf16 %v4502, %v4489
      %v4522 = vpack.c.bf16 %v4515, %v4515
      %v4523 = vld [vmem:[%s9] sm:$0xf]
      %v4524 = vld [vmem:[%s9 + $0x4] sm:$0xf]
      %s4525 = scalar_lea.vmem %s9, 8
      %v4526 = vld [vmem:[%s4525] sm:$0xf]
      %v4527 = vld [vmem:[%s4525 + $0x4] sm:$0xf]
      %v4530 = vunpack.c.l.b16 %v4526
      %v4531 = vunpack.c.l.b16 %v4527
      %v4532 = vpack.c.b16 %v4531, %v4530
      %v4534 = vunpack.c.h.b16 %v4518
      %v4535 = vpack.c.b16 %v4534, %v4534
      %v4537 = vsel %vm2445, %v4532, 0
      %v4540 = vsel %vm2449, %v4535, 0
      %4542 = vmatpush.bf16.msra.mxu0 0
      %4543 = vmatpush.bf16.msra.mxu0 0
      %4544 = vmatpush.bf16.msra.mxu0 0
      %4545 = vmatpush.bf16.msra.mxu0 0
      %4546 = vmatpush.bf16.msra.mxu0 0
      %4547 = vmatpush.bf16.msra.mxu0 0
      %4548 = vmatpush.bf16.msra.mxu0 0
      %4549 = vmatpush.bf16.msra.mxu0 %v4540
      %4550 = vmatmul.bf16.gmra.mxu0 %v4537
      %v4551 = vpop.f32.mrf.mxu0
      %v4552 = vadd.f32 0.0, %v4551
      %v4553 = vpop.f32.mrf.mxu0
      %v4554 = vadd.f32 0.0, %v4553
      %4555 = vdwg.mxu0
      %v4558 = vunpack.c.l.b16 %v4523
      %v4559 = vunpack.c.l.b16 %v4524
      %v4560 = vpack.c.b16 %v4559, %v4558
      %v4562 = vsel %vm2445, %v4560, 0
      %v4565 = vsel %vm2449, %v4518, 0
      %4567 = vmatpush.bf16.msra.mxu0 0
      %4568 = vmatpush.bf16.msra.mxu0 0
      %4569 = vmatpush.bf16.msra.mxu0 0
      %4570 = vmatpush.bf16.msra.mxu0 0
      %4571 = vmatpush.bf16.msra.mxu0 0
      %4572 = vmatpush.bf16.msra.mxu0 0
      %4573 = vmatpush.bf16.msra.mxu0 0
      %4574 = vmatpush.bf16.msra.mxu0 %v4565
      %4575 = vmatmul.bf16.gmra.mxu0 %v4562
      %v4576 = vpop.f32.mrf.mxu0
      %v4577 = vadd.f32 %v4552, %v4576
      %v4578 = vpop.f32.mrf.mxu0
      %v4579 = vadd.f32 %v4554, %v4578
      %4580 = vdwg.mxu0
      %s4581 = scalar_lea.vmem %s9, 16
      %v4582 = vld [vmem:[%s4581] sm:$0xf]
      %v4583 = vld [vmem:[%s4581 + $0x4] sm:$0xf]
      %v4586 = vunpack.c.l.b16 %v4582
      %v4587 = vunpack.c.l.b16 %v4583
      %v4588 = vpack.c.b16 %v4587, %v4586
      %v4590 = vsel %vm2445, %v4588, 0
      %v4593 = vsel %vm2449, %v4519, 0
      %4595 = vmatpush.bf16.msra.mxu0 0
      %4596 = vmatpush.bf16.msra.mxu0 0
      %4597 = vmatpush.bf16.msra.mxu0 0
      %4598 = vmatpush.bf16.msra.mxu0 0
      %4599 = vmatpush.bf16.msra.mxu0 0
      %4600 = vmatpush.bf16.msra.mxu0 0
      %4601 = vmatpush.bf16.msra.mxu0 0
      %4602 = vmatpush.bf16.msra.mxu0 %v4593
      %4603 = vmatmul.bf16.gmra.mxu0 %v4590
      %v4604 = vpop.f32.mrf.mxu0
      %v4605 = vadd.f32 0.0, %v4604
      %v4606 = vpop.f32.mrf.mxu0
      %v4607 = vadd.f32 0.0, %v4606
      %4608 = vdwg.mxu0
      %v4609 = vadd.f32 %v4577, %v4605
      %v4610 = vadd.f32 %v4579, %v4607
      %s4611 = scalar_lea.vmem %s9, 24
      %v4612 = vld [vmem:[%s4611] sm:$0xf]
      %v4613 = vld [vmem:[%s4611 + $0x4] sm:$0xf]
      %v4616 = vunpack.c.l.b16 %v4612
      %v4617 = vunpack.c.l.b16 %v4613
      %v4618 = vpack.c.b16 %v4617, %v4616
      %v4620 = vunpack.c.h.b16 %v4519
      %v4621 = vpack.c.b16 %v4620, %v4620
      %v4623 = vsel %vm2445, %v4618, 0
      %v4626 = vsel %vm2449, %v4621, 0
      %4628 = vmatpush.bf16.msra.mxu0 0
      %4629 = vmatpush.bf16.msra.mxu0 0
      %4630 = vmatpush.bf16.msra.mxu0 0
      %4631 = vmatpush.bf16.msra.mxu0 0
      %4632 = vmatpush.bf16.msra.mxu0 0
      %4633 = vmatpush.bf16.msra.mxu0 0
      %4634 = vmatpush.bf16.msra.mxu0 0
      %4635 = vmatpush.bf16.msra.mxu0 %v4626
      %4636 = vmatmul.bf16.gmra.mxu0 %v4623
      %v4637 = vpop.f32.mrf.mxu0
      %v4638 = vadd.f32 0.0, %v4637
      %v4639 = vpop.f32.mrf.mxu0
      %v4640 = vadd.f32 0.0, %v4639
      %4641 = vdwg.mxu0
      %v4642 = vadd.f32 %v4609, %v4638
      %v4643 = vadd.f32 %v4610, %v4640
      %s4644 = scalar_lea.vmem %s9, 32
      %v4645 = vld [vmem:[%s4644] sm:$0xf]
      %v4646 = vld [vmem:[%s4644 + $0x4] sm:$0xf]
      %v4649 = vunpack.c.l.b16 %v4645
      %v4650 = vunpack.c.l.b16 %v4646
      %v4651 = vpack.c.b16 %v4650, %v4649
      %v4653 = vsel %vm2445, %v4651, 0
      %v4656 = vsel %vm2449, %v4520, 0
      %4658 = vmatpush.bf16.msra.mxu0 0
      %4659 = vmatpush.bf16.msra.mxu0 0
      %4660 = vmatpush.bf16.msra.mxu0 0
      %4661 = vmatpush.bf16.msra.mxu0 0
      %4662 = vmatpush.bf16.msra.mxu0 0
      %4663 = vmatpush.bf16.msra.mxu0 0
      %4664 = vmatpush.bf16.msra.mxu0 0
      %4665 = vmatpush.bf16.msra.mxu0 %v4656
      %4666 = vmatmul.bf16.gmra.mxu0 %v4653
      %v4667 = vpop.f32.mrf.mxu0
      %v4668 = vadd.f32 0.0, %v4667
      %v4669 = vpop.f32.mrf.mxu0
      %v4670 = vadd.f32 0.0, %v4669
      %4671 = vdwg.mxu0
      %v4672 = vadd.f32 %v4642, %v4668
      %v4673 = vadd.f32 %v4643, %v4670
      %s4674 = scalar_lea.vmem %s9, 40
      %v4675 = vld [vmem:[%s4674] sm:$0xf]
      %v4676 = vld [vmem:[%s4674 + $0x4] sm:$0xf]
      %v4679 = vunpack.c.l.b16 %v4675
      %v4680 = vunpack.c.l.b16 %v4676
      %v4681 = vpack.c.b16 %v4680, %v4679
      %v4683 = vunpack.c.h.b16 %v4520
      %v4684 = vpack.c.b16 %v4683, %v4683
      %v4686 = vsel %vm2445, %v4681, 0
      %v4689 = vsel %vm2449, %v4684, 0
      %4691 = vmatpush.bf16.msra.mxu0 0
      %4692 = vmatpush.bf16.msra.mxu0 0
      %4693 = vmatpush.bf16.msra.mxu0 0
      %4694 = vmatpush.bf16.msra.mxu0 0
      %4695 = vmatpush.bf16.msra.mxu0 0
      %4696 = vmatpush.bf16.msra.mxu0 0
      %4697 = vmatpush.bf16.msra.mxu0 0
      %4698 = vmatpush.bf16.msra.mxu0 %v4689
      %4699 = vmatmul.bf16.gmra.mxu0 %v4686
      %v4700 = vpop.f32.mrf.mxu0
      %v4701 = vadd.f32 0.0, %v4700
      %v4702 = vpop.f32.mrf.mxu0
      %v4703 = vadd.f32 0.0, %v4702
      %4704 = vdwg.mxu0
      %v4705 = vadd.f32 %v4672, %v4701
      %v4706 = vadd.f32 %v4673, %v4703
      %s4707 = scalar_lea.vmem %s9, 48
      %v4708 = vld [vmem:[%s4707] sm:$0xf]
      %v4709 = vld [vmem:[%s4707 + $0x4] sm:$0xf]
      %v4712 = vunpack.c.l.b16 %v4708
      %v4713 = vunpack.c.l.b16 %v4709
      %v4714 = vpack.c.b16 %v4713, %v4712
      %v4716 = vsel %vm2445, %v4714, 0
      %v4719 = vsel %vm2449, %v4521, 0
      %4721 = vmatpush.bf16.msra.mxu0 0
      %4722 = vmatpush.bf16.msra.mxu0 0
      %4723 = vmatpush.bf16.msra.mxu0 0
      %4724 = vmatpush.bf16.msra.mxu0 0
      %4725 = vmatpush.bf16.msra.mxu0 0
      %4726 = vmatpush.bf16.msra.mxu0 0
      %4727 = vmatpush.bf16.msra.mxu0 0
      %4728 = vmatpush.bf16.msra.mxu0 %v4719
      %4729 = vmatmul.bf16.gmra.mxu0 %v4716
      %v4730 = vpop.f32.mrf.mxu0
      %v4731 = vadd.f32 0.0, %v4730
      %v4732 = vpop.f32.mrf.mxu0
      %v4733 = vadd.f32 0.0, %v4732
      %4734 = vdwg.mxu0
      %v4735 = vadd.f32 %v4705, %v4731
      %v4736 = vadd.f32 %v4706, %v4733
      %s4737 = scalar_lea.vmem %s9, 56
      %v4738 = vld [vmem:[%s4737] sm:$0xf]
      %v4739 = vld [vmem:[%s4737 + $0x4] sm:$0xf]
      %v4742 = vunpack.c.l.b16 %v4738
      %v4743 = vunpack.c.l.b16 %v4739
      %v4744 = vpack.c.b16 %v4743, %v4742
      %v4746 = vunpack.c.h.b16 %v4521
      %v4747 = vpack.c.b16 %v4746, %v4746
      %v4749 = vsel %vm2445, %v4744, 0
      %v4752 = vsel %vm2449, %v4747, 0
      %4754 = vmatpush.bf16.msra.mxu0 0
      %4755 = vmatpush.bf16.msra.mxu0 0
      %4756 = vmatpush.bf16.msra.mxu0 0
      %4757 = vmatpush.bf16.msra.mxu0 0
      %4758 = vmatpush.bf16.msra.mxu0 0
      %4759 = vmatpush.bf16.msra.mxu0 0
      %4760 = vmatpush.bf16.msra.mxu0 0
      %4761 = vmatpush.bf16.msra.mxu0 %v4752
      %4762 = vmatmul.bf16.gmra.mxu0 %v4749
      %v4763 = vpop.f32.mrf.mxu0
      %v4764 = vadd.f32 0.0, %v4763
      %v4765 = vpop.f32.mrf.mxu0
      %v4766 = vadd.f32 0.0, %v4765
      %4767 = vdwg.mxu0
      %v4768 = vadd.f32 %v4735, %v4764
      %v4769 = vadd.f32 %v4736, %v4766
      %s4770 = scalar_lea.vmem %s9, 64
      %v4771 = vld [vmem:[%s4770] sm:$0xf]
      %v4772 = vld [vmem:[%s4770 + $0x4] sm:$0xf]
      %v4775 = vunpack.c.l.b16 %v4771
      %v4776 = vunpack.c.l.b16 %v4772
      %v4777 = vpack.c.b16 %v4776, %v4775
      %v4779 = vsel %vm2445, %v4777, 0
      %v4782 = vsel %vm2449, %v4522, 0
      %4784 = vmatpush.bf16.msra.mxu0 0
      %4785 = vmatpush.bf16.msra.mxu0 0
      %4786 = vmatpush.bf16.msra.mxu0 0
      %4787 = vmatpush.bf16.msra.mxu0 0
      %4788 = vmatpush.bf16.msra.mxu0 0
      %4789 = vmatpush.bf16.msra.mxu0 0
      %4790 = vmatpush.bf16.msra.mxu0 0
      %4791 = vmatpush.bf16.msra.mxu0 %v4782
      %4792 = vmatmul.bf16.gmra.mxu0 %v4779
      %v4793 = vpop.f32.mrf.mxu0
      %v4794 = vadd.f32 0.0, %v4793
      %v4795 = vpop.f32.mrf.mxu0
      %v4796 = vadd.f32 0.0, %v4795
      %4797 = vdwg.mxu0
      %v4798 = vadd.f32 %v4768, %v4794
      %v4799 = vadd.f32 %v4769, %v4796
      %v4800 = vperm.slane %v391, 5
      %v4801 = vadd.f32 %v4798, %v4800
      %v4802 = vadd.f32 %v4799, %v4800
      %v4803 = vmax.f32 %v4801, 0.0
      %v4804 = vmax.f32 %v4802, 0.0
      %v4805 = vpack.c.bf16 %v4804, %v4803
      %s4806 = scalar_lea.vmem %s4, 1152
      %v4807 = vld [vmem:[%s4806] sm:$0xff]
      %v4808 = vld [vmem:[%s4806 + $0x8] sm:$0xff]
      %v4809 = vld [vmem:[%s4806 + $0x10] sm:$0xff]
      %v4810 = vld [vmem:[%s4806 + $0x18] sm:$0xff]
      %v4811 = vld [vmem:[%s4806 + $0x20] sm:$0xf]
      %v4812 = vld [vmem:[%s4806 + $0x24] sm:$0xff]
      %v4813 = vld [vmem:[%s4806 + $0x2c] sm:$0xff]
      %v4814 = vld [vmem:[%s4806 + $0x34] sm:$0xff]
      %v4815 = vld [vmem:[%s4806 + $0x3c] sm:$0xff]
      %v4816 = vld [vmem:[%s4806 + $0x44] sm:$0xf]
      %v4817 = vld [vmem:[%s4806 + $0x48] sm:$0xff]
      %v4818 = vld [vmem:[%s4806 + $0x50] sm:$0xff]
      %v4819 = vld [vmem:[%s4806 + $0x58] sm:$0xff]
      %v4820 = vld [vmem:[%s4806 + $0x60] sm:$0xff]
      %v4821 = vld [vmem:[%s4806 + $0x68] sm:$0xf]
      %v4822 = vld [vmem:[%s4806 + $0x6c] sm:$0xff]
      %v4823 = vld [vmem:[%s4806 + $0x74] sm:$0xff]
      %v4824 = vld [vmem:[%s4806 + $0x7c] sm:$0xff]
      %v4825 = vld [vmem:[%s4806 + $0x84] sm:$0xff]
      %v4826 = vld [vmem:[%s4806 + $0x8c] sm:$0xf]
      %v4827 = vld [vmem:[%s4806 + $0x90] sm:$0xff]
      %v4828 = vld [vmem:[%s4806 + $0x98] sm:$0xff]
      %v4829 = vld [vmem:[%s4806 + $0xa0] sm:$0xff]
      %v4830 = vld [vmem:[%s4806 + $0xa8] sm:$0xff]
      %v4831 = vld [vmem:[%s4806 + $0xb0] sm:$0xf]
      %v4832 = vld [vmem:[%s4806 + $0xb4] sm:$0xff]
      %v4833 = vld [vmem:[%s4806 + $0xbc] sm:$0xff]
      %v4834 = vld [vmem:[%s4806 + $0xc4] sm:$0xff]
      %v4835 = vld [vmem:[%s4806 + $0xcc] sm:$0xff]
      %v4836 = vld [vmem:[%s4806 + $0xd4] sm:$0xf]
      %v4837 = vld [vmem:[%s4806 + $0xd8] sm:$0xff]
      %v4838 = vld [vmem:[%s4806 + $0xe0] sm:$0xff]
      %v4839 = vld [vmem:[%s4806 + $0xe8] sm:$0xff]
      %v4840 = vld [vmem:[%s4806 + $0xf0] sm:$0xff]
      %v4841 = vld [vmem:[%s4806 + $0xf8] sm:$0xf]
      %v4842 = vld [vmem:[%s4806 + $0xfc] sm:$0xff]
      %v4843 = vld [vmem:[%s4806 + $0x104] sm:$0xff]
      %v4844 = vld [vmem:[%s4806 + $0x10c] sm:$0xff]
      %v4845 = vld [vmem:[%s4806 + $0x114] sm:$0xff]
      %v4846 = vld [vmem:[%s4806 + $0x11c] sm:$0xf]
      %v4847 = vld [vmem:[%s4806 + $0x120] sm:$0xff]
      %v4848 = vld [vmem:[%s4806 + $0x128] sm:$0xff]
      %v4849 = vld [vmem:[%s4806 + $0x130] sm:$0xff]
      %v4850 = vld [vmem:[%s4806 + $0x138] sm:$0xff]
      %v4851 = vld [vmem:[%s4806 + $0x140] sm:$0xf]
      %v4852 = vld [vmem:[%s4806 + $0x144] sm:$0xff]
      %v4853 = vld [vmem:[%s4806 + $0x14c] sm:$0xff]
      %v4854 = vld [vmem:[%s4806 + $0x154] sm:$0xff]
      %v4855 = vld [vmem:[%s4806 + $0x15c] sm:$0xff]
      %v4856 = vld [vmem:[%s4806 + $0x164] sm:$0xf]
      %v4857 = vld [vmem:[%s4806 + $0x168] sm:$0xff]
      %v4858 = vld [vmem:[%s4806 + $0x170] sm:$0xff]
      %v4859 = vld [vmem:[%s4806 + $0x178] sm:$0xff]
      %v4860 = vld [vmem:[%s4806 + $0x180] sm:$0xff]
      %v4861 = vld [vmem:[%s4806 + $0x188] sm:$0xf]
      %v4862 = vld [vmem:[%s4806 + $0x18c] sm:$0xff]
      %v4863 = vld [vmem:[%s4806 + $0x194] sm:$0xff]
      %v4864 = vld [vmem:[%s4806 + $0x19c] sm:$0xff]
      %v4865 = vld [vmem:[%s4806 + $0x1a4] sm:$0xff]
      %v4866 = vld [vmem:[%s4806 + $0x1ac] sm:$0xf]
      %v4867 = vld [vmem:[%s4806 + $0x1b0] sm:$0xff]
      %v4868 = vld [vmem:[%s4806 + $0x1b8] sm:$0xff]
      %v4869 = vld [vmem:[%s4806 + $0x1c0] sm:$0xff]
      %v4870 = vld [vmem:[%s4806 + $0x1c8] sm:$0xff]
      %v4871 = vld [vmem:[%s4806 + $0x1d0] sm:$0xf]
      %v4872 = vld [vmem:[%s4806 + $0x1d4] sm:$0xff]
      %v4873 = vld [vmem:[%s4806 + $0x1dc] sm:$0xff]
      %v4874 = vld [vmem:[%s4806 + $0x1e4] sm:$0xff]
      %v4875 = vld [vmem:[%s4806 + $0x1ec] sm:$0xff]
      %v4876 = vld [vmem:[%s4806 + $0x1f4] sm:$0xf]
      %v4877 = vld [vmem:[%s4806 + $0x1f8] sm:$0xff]
      %v4878 = vld [vmem:[%s4806 + $0x200] sm:$0xff]
      %v4879 = vld [vmem:[%s4806 + $0x208] sm:$0xff]
      %v4880 = vld [vmem:[%s4806 + $0x210] sm:$0xff]
      %v4881 = vld [vmem:[%s4806 + $0x218] sm:$0xf]
      %v4882 = vld [vmem:[%s4806 + $0x21c] sm:$0xff]
      %v4883 = vld [vmem:[%s4806 + $0x224] sm:$0xff]
      %v4884 = vld [vmem:[%s4806 + $0x22c] sm:$0xff]
      %v4885 = vld [vmem:[%s4806 + $0x234] sm:$0xff]
      %v4886 = vld [vmem:[%s4806 + $0x23c] sm:$0xf]
      %v4967 = vunpack.c.l.b16 %v4807
      %v4968 = vunpack.c.h.b16 %v4807
      %v4969 = vunpack.c.l.b16 %v4808
      %v4970 = vunpack.c.h.b16 %v4808
      %v4971 = vunpack.c.l.b16 %v4809
      %v4972 = vunpack.c.h.b16 %v4809
      %v4973 = vunpack.c.l.b16 %v4810
      %v4974 = vunpack.c.h.b16 %v4810
      %v4975 = vunpack.c.l.b16 %v4811
      %v4976 = vunpack.c.l.b16 %v4812
      %v4977 = vunpack.c.h.b16 %v4812
      %v4978 = vunpack.c.l.b16 %v4813
      %v4979 = vunpack.c.h.b16 %v4813
      %v4980 = vunpack.c.l.b16 %v4814
      %v4981 = vunpack.c.h.b16 %v4814
      %v4982 = vunpack.c.l.b16 %v4815
      %v4983 = vunpack.c.h.b16 %v4815
      %v4984 = vunpack.c.l.b16 %v4816
      %v4985 = vunpack.c.l.b16 %v4817
      %v4986 = vunpack.c.h.b16 %v4817
      %v4987 = vunpack.c.l.b16 %v4818
      %v4988 = vunpack.c.h.b16 %v4818
      %v4989 = vunpack.c.l.b16 %v4819
      %v4990 = vunpack.c.h.b16 %v4819
      %v4991 = vunpack.c.l.b16 %v4820
      %v4992 = vunpack.c.h.b16 %v4820
      %v4993 = vunpack.c.l.b16 %v4821
      %v4994 = vunpack.c.l.b16 %v4822
      %v4995 = vunpack.c.h.b16 %v4822
      %v4996 = vunpack.c.l.b16 %v4823
      %v4997 = vunpack.c.h.b16 %v4823
      %v4998 = vunpack.c.l.b16 %v4824
      %v4999 = vunpack.c.h.b16 %v4824
      %v5000 = vunpack.c.l.b16 %v4825
      %v5001 = vunpack.c.h.b16 %v4825
      %v5002 = vunpack.c.l.b16 %v4826
      %v5003 = vunpack.c.l.b16 %v4827
      %v5004 = vunpack.c.h.b16 %v4827
      %v5005 = vunpack.c.l.b16 %v4828
      %v5006 = vunpack.c.h.b16 %v4828
      %v5007 = vunpack.c.l.b16 %v4829
      %v5008 = vunpack.c.h.b16 %v4829
      %v5009 = vunpack.c.l.b16 %v4830
      %v5010 = vunpack.c.h.b16 %v4830
      %v5011 = vunpack.c.l.b16 %v4831
      %v5012 = vunpack.c.l.b16 %v4832
      %v5013 = vunpack.c.h.b16 %v4832
      %v5014 = vunpack.c.l.b16 %v4833
      %v5015 = vunpack.c.h.b16 %v4833
      %v5016 = vunpack.c.l.b16 %v4834
      %v5017 = vunpack.c.h.b16 %v4834
      %v5018 = vunpack.c.l.b16 %v4835
      %v5019 = vunpack.c.h.b16 %v4835
      %v5020 = vunpack.c.l.b16 %v4836
      %v5021 = vunpack.c.l.b16 %v4837
      %v5022 = vunpack.c.h.b16 %v4837
      %v5023 = vunpack.c.l.b16 %v4838
      %v5024 = vunpack.c.h.b16 %v4838
      %v5025 = vunpack.c.l.b16 %v4839
      %v5026 = vunpack.c.h.b16 %v4839
      %v5027 = vunpack.c.l.b16 %v4840
      %v5028 = vunpack.c.h.b16 %v4840
      %v5029 = vunpack.c.l.b16 %v4841
      %v5030 = vunpack.c.l.b16 %v4842
      %v5031 = vunpack.c.h.b16 %v4842
      %v5032 = vunpack.c.l.b16 %v4843
      %v5033 = vunpack.c.h.b16 %v4843
      %v5034 = vunpack.c.l.b16 %v4844
      %v5035 = vunpack.c.h.b16 %v4844
      %v5036 = vunpack.c.l.b16 %v4845
      %v5037 = vunpack.c.h.b16 %v4845
      %v5038 = vunpack.c.l.b16 %v4846
      %v5039 = vunpack.c.l.b16 %v4847
      %v5040 = vunpack.c.h.b16 %v4847
      %v5041 = vunpack.c.l.b16 %v4848
      %v5042 = vunpack.c.h.b16 %v4848
      %v5043 = vunpack.c.l.b16 %v4849
      %v5044 = vunpack.c.h.b16 %v4849
      %v5045 = vunpack.c.l.b16 %v4850
      %v5046 = vunpack.c.h.b16 %v4850
      %v5047 = vunpack.c.l.b16 %v4851
      %v5048 = vunpack.c.l.b16 %v4852
      %v5049 = vunpack.c.h.b16 %v4852
      %v5050 = vunpack.c.l.b16 %v4853
      %v5051 = vunpack.c.h.b16 %v4853
      %v5052 = vunpack.c.l.b16 %v4854
      %v5053 = vunpack.c.h.b16 %v4854
      %v5054 = vunpack.c.l.b16 %v4855
      %v5055 = vunpack.c.h.b16 %v4855
      %v5056 = vunpack.c.l.b16 %v4856
      %v5057 = vunpack.c.l.b16 %v4857
      %v5058 = vunpack.c.h.b16 %v4857
      %v5059 = vunpack.c.l.b16 %v4858
      %v5060 = vunpack.c.h.b16 %v4858
      %v5061 = vunpack.c.l.b16 %v4859
      %v5062 = vunpack.c.h.b16 %v4859
      %v5063 = vunpack.c.l.b16 %v4860
      %v5064 = vunpack.c.h.b16 %v4860
      %v5065 = vunpack.c.l.b16 %v4861
      %v5066 = vunpack.c.l.b16 %v4862
      %v5067 = vunpack.c.h.b16 %v4862
      %v5068 = vunpack.c.l.b16 %v4863
      %v5069 = vunpack.c.h.b16 %v4863
      %v5070 = vunpack.c.l.b16 %v4864
      %v5071 = vunpack.c.h.b16 %v4864
      %v5072 = vunpack.c.l.b16 %v4865
      %v5073 = vunpack.c.h.b16 %v4865
      %v5074 = vunpack.c.l.b16 %v4866
      %v5075 = vunpack.c.l.b16 %v4867
      %v5076 = vunpack.c.h.b16 %v4867
      %v5077 = vunpack.c.l.b16 %v4868
      %v5078 = vunpack.c.h.b16 %v4868
      %v5079 = vunpack.c.l.b16 %v4869
      %v5080 = vunpack.c.h.b16 %v4869
      %v5081 = vunpack.c.l.b16 %v4870
      %v5082 = vunpack.c.h.b16 %v4870
      %v5083 = vunpack.c.l.b16 %v4871
      %v5084 = vunpack.c.l.b16 %v4872
      %v5085 = vunpack.c.h.b16 %v4872
      %v5086 = vunpack.c.l.b16 %v4873
      %v5087 = vunpack.c.h.b16 %v4873
      %v5088 = vunpack.c.l.b16 %v4874
      %v5089 = vunpack.c.h.b16 %v4874
      %v5090 = vunpack.c.l.b16 %v4875
      %v5091 = vunpack.c.h.b16 %v4875
      %v5092 = vunpack.c.l.b16 %v4876
      %v5093 = vunpack.c.l.b16 %v4877
      %v5094 = vunpack.c.h.b16 %v4877
      %v5095 = vunpack.c.l.b16 %v4878
      %v5096 = vunpack.c.h.b16 %v4878
      %v5097 = vunpack.c.l.b16 %v4879
      %v5098 = vunpack.c.h.b16 %v4879
      %v5099 = vunpack.c.l.b16 %v4880
      %v5100 = vunpack.c.h.b16 %v4880
      %v5101 = vunpack.c.l.b16 %v4881
      %v5102 = vunpack.c.l.b16 %v4882
      %v5103 = vunpack.c.h.b16 %v4882
      %v5104 = vunpack.c.l.b16 %v4883
      %v5105 = vunpack.c.h.b16 %v4883
      %v5106 = vunpack.c.l.b16 %v4884
      %v5107 = vunpack.c.h.b16 %v4884
      %v5108 = vunpack.c.l.b16 %v4885
      %v5109 = vunpack.c.h.b16 %v4885
      %v5110 = vunpack.c.l.b16 %v4886
      %v5111 = vpack.c.b16 %v4976, %v4967
      %v5112 = vpack.c.b16 %v4977, %v4968
      %v5113 = vpack.c.b16 %v4978, %v4969
      %v5114 = vpack.c.b16 %v4979, %v4970
      %v5115 = vpack.c.b16 %v4980, %v4971
      %v5116 = vpack.c.b16 %v4981, %v4972
      %v5117 = vpack.c.b16 %v4982, %v4973
      %v5118 = vpack.c.b16 %v4983, %v4974
      %v5119 = vpack.c.b16 %v4984, %v4975
      %v5120 = vpack.c.b16 %v4994, %v4985
      %v5121 = vpack.c.b16 %v4995, %v4986
      %v5122 = vpack.c.b16 %v4996, %v4987
      %v5123 = vpack.c.b16 %v4997, %v4988
      %v5124 = vpack.c.b16 %v4998, %v4989
      %v5125 = vpack.c.b16 %v4999, %v4990
      %v5126 = vpack.c.b16 %v5000, %v4991
      %v5127 = vpack.c.b16 %v5001, %v4992
      %v5128 = vpack.c.b16 %v5002, %v4993
      %v5129 = vpack.c.b16 %v5012, %v5003
      %v5130 = vpack.c.b16 %v5013, %v5004
      %v5131 = vpack.c.b16 %v5014, %v5005
      %v5132 = vpack.c.b16 %v5015, %v5006
      %v5133 = vpack.c.b16 %v5016, %v5007
      %v5134 = vpack.c.b16 %v5017, %v5008
      %v5135 = vpack.c.b16 %v5018, %v5009
      %v5136 = vpack.c.b16 %v5019, %v5010
      %v5137 = vpack.c.b16 %v5020, %v5011
      %v5138 = vpack.c.b16 %v5030, %v5021
      %v5139 = vpack.c.b16 %v5031, %v5022
      %v5140 = vpack.c.b16 %v5032, %v5023
      %v5141 = vpack.c.b16 %v5033, %v5024
      %v5142 = vpack.c.b16 %v5034, %v5025
      %v5143 = vpack.c.b16 %v5035, %v5026
      %v5144 = vpack.c.b16 %v5036, %v5027
      %v5145 = vpack.c.b16 %v5037, %v5028
      %v5146 = vpack.c.b16 %v5038, %v5029
      %v5147 = vpack.c.b16 %v5048, %v5039
      %v5148 = vpack.c.b16 %v5049, %v5040
      %v5149 = vpack.c.b16 %v5050, %v5041
      %v5150 = vpack.c.b16 %v5051, %v5042
      %v5151 = vpack.c.b16 %v5052, %v5043
      %v5152 = vpack.c.b16 %v5053, %v5044
      %v5153 = vpack.c.b16 %v5054, %v5045
      %v5154 = vpack.c.b16 %v5055, %v5046
      %v5155 = vpack.c.b16 %v5056, %v5047
      %v5156 = vpack.c.b16 %v5066, %v5057
      %v5157 = vpack.c.b16 %v5067, %v5058
      %v5158 = vpack.c.b16 %v5068, %v5059
      %v5159 = vpack.c.b16 %v5069, %v5060
      %v5160 = vpack.c.b16 %v5070, %v5061
      %v5161 = vpack.c.b16 %v5071, %v5062
      %v5162 = vpack.c.b16 %v5072, %v5063
      %v5163 = vpack.c.b16 %v5073, %v5064
      %v5164 = vpack.c.b16 %v5074, %v5065
      %v5165 = vpack.c.b16 %v5084, %v5075
      %v5166 = vpack.c.b16 %v5085, %v5076
      %v5167 = vpack.c.b16 %v5086, %v5077
      %v5168 = vpack.c.b16 %v5087, %v5078
      %v5169 = vpack.c.b16 %v5088, %v5079
      %v5170 = vpack.c.b16 %v5089, %v5080
      %v5171 = vpack.c.b16 %v5090, %v5081
      %v5172 = vpack.c.b16 %v5091, %v5082
      %v5173 = vpack.c.b16 %v5092, %v5083
      %v5174 = vpack.c.b16 %v5102, %v5093
      %v5175 = vpack.c.b16 %v5103, %v5094
      %v5176 = vpack.c.b16 %v5104, %v5095
      %v5177 = vpack.c.b16 %v5105, %v5096
      %v5178 = vpack.c.b16 %v5106, %v5097
      %v5179 = vpack.c.b16 %v5107, %v5098
      %v5180 = vpack.c.b16 %v5108, %v5099
      %v5181 = vpack.c.b16 %v5109, %v5100
      %v5182 = vpack.c.b16 %v5110, %v5101
      %5255 = vmatpush.bf16.msra.mxu0 %v5174
      %5256 = vmatpush.bf16.msra.mxu0 %v5165
      %5257 = vmatpush.bf16.msra.mxu0 %v5156
      %5258 = vmatpush.bf16.msra.mxu0 %v5147
      %5259 = vmatpush.bf16.msra.mxu0 %v5138
      %5260 = vmatpush.bf16.msra.mxu0 %v5129
      %5261 = vmatpush.bf16.msra.mxu0 %v5120
      %5262 = vmatpush.bf16.msra.mxu0 %v5111
      %5263 = vmatmul.bf16.gmra.mxu0 %v4805
      %v5264 = vpop.f32.mrf.mxu0
      %v5265 = vadd.f32 0.0, %v5264
      %v5266 = vpop.f32.mrf.mxu0
      %v5267 = vadd.f32 0.0, %v5266
      %5268 = vdwg.mxu0
      %5269 = vmatpush.bf16.msra.mxu0 %v5175
      %5270 = vmatpush.bf16.msra.mxu0 %v5166
      %5271 = vmatpush.bf16.msra.mxu0 %v5157
      %5272 = vmatpush.bf16.msra.mxu0 %v5148
      %5273 = vmatpush.bf16.msra.mxu0 %v5139
      %5274 = vmatpush.bf16.msra.mxu0 %v5130
      %5275 = vmatpush.bf16.msra.mxu0 %v5121
      %5276 = vmatpush.bf16.msra.mxu0 %v5112
      %5277 = vmatmul.bf16.gmra.mxu0 %v4805
      %v5278 = vpop.f32.mrf.mxu0
      %v5279 = vadd.f32 0.0, %v5278
      %v5280 = vpop.f32.mrf.mxu0
      %v5281 = vadd.f32 0.0, %v5280
      %5282 = vdwg.mxu0
      %5283 = vmatpush.bf16.msra.mxu0 %v5176
      %5284 = vmatpush.bf16.msra.mxu0 %v5167
      %5285 = vmatpush.bf16.msra.mxu0 %v5158
      %5286 = vmatpush.bf16.msra.mxu0 %v5149
      %5287 = vmatpush.bf16.msra.mxu0 %v5140
      %5288 = vmatpush.bf16.msra.mxu0 %v5131
      %5289 = vmatpush.bf16.msra.mxu0 %v5122
      %5290 = vmatpush.bf16.msra.mxu0 %v5113
      %5291 = vmatmul.bf16.gmra.mxu0 %v4805
      %v5292 = vpop.f32.mrf.mxu0
      %v5293 = vadd.f32 0.0, %v5292
      %v5294 = vpop.f32.mrf.mxu0
      %v5295 = vadd.f32 0.0, %v5294
      %5296 = vdwg.mxu0
      %5297 = vmatpush.bf16.msra.mxu0 %v5177
      %5298 = vmatpush.bf16.msra.mxu0 %v5168
      %5299 = vmatpush.bf16.msra.mxu0 %v5159
      %5300 = vmatpush.bf16.msra.mxu0 %v5150
      %5301 = vmatpush.bf16.msra.mxu0 %v5141
      %5302 = vmatpush.bf16.msra.mxu0 %v5132
      %5303 = vmatpush.bf16.msra.mxu0 %v5123
      %5304 = vmatpush.bf16.msra.mxu0 %v5114
      %5305 = vmatmul.bf16.gmra.mxu0 %v4805
      %v5306 = vpop.f32.mrf.mxu0
      %v5307 = vadd.f32 0.0, %v5306
      %v5308 = vpop.f32.mrf.mxu0
      %v5309 = vadd.f32 0.0, %v5308
      %5310 = vdwg.mxu0
      %5311 = vmatpush.bf16.msra.mxu0 %v5178
      %5312 = vmatpush.bf16.msra.mxu0 %v5169
      %5313 = vmatpush.bf16.msra.mxu0 %v5160
      %5314 = vmatpush.bf16.msra.mxu0 %v5151
      %5315 = vmatpush.bf16.msra.mxu0 %v5142
      %5316 = vmatpush.bf16.msra.mxu0 %v5133
      %5317 = vmatpush.bf16.msra.mxu0 %v5124
      %5318 = vmatpush.bf16.msra.mxu0 %v5115
      %5319 = vmatmul.bf16.gmra.mxu0 %v4805
      %v5320 = vpop.f32.mrf.mxu0
      %v5321 = vadd.f32 0.0, %v5320
      %v5322 = vpop.f32.mrf.mxu0
      %v5323 = vadd.f32 0.0, %v5322
      %5324 = vdwg.mxu0
      %5325 = vmatpush.bf16.msra.mxu0 %v5179
      %5326 = vmatpush.bf16.msra.mxu0 %v5170
      %5327 = vmatpush.bf16.msra.mxu0 %v5161
      %5328 = vmatpush.bf16.msra.mxu0 %v5152
      %5329 = vmatpush.bf16.msra.mxu0 %v5143
      %5330 = vmatpush.bf16.msra.mxu0 %v5134
      %5331 = vmatpush.bf16.msra.mxu0 %v5125
      %5332 = vmatpush.bf16.msra.mxu0 %v5116
      %5333 = vmatmul.bf16.gmra.mxu0 %v4805
      %v5334 = vpop.f32.mrf.mxu0
      %v5335 = vadd.f32 0.0, %v5334
      %v5336 = vpop.f32.mrf.mxu0
      %v5337 = vadd.f32 0.0, %v5336
      %5338 = vdwg.mxu0
      %5339 = vmatpush.bf16.msra.mxu0 %v5180
      %5340 = vmatpush.bf16.msra.mxu0 %v5171
      %5341 = vmatpush.bf16.msra.mxu0 %v5162
      %5342 = vmatpush.bf16.msra.mxu0 %v5153
      %5343 = vmatpush.bf16.msra.mxu0 %v5144
      %5344 = vmatpush.bf16.msra.mxu0 %v5135
      %5345 = vmatpush.bf16.msra.mxu0 %v5126
      %5346 = vmatpush.bf16.msra.mxu0 %v5117
      %5347 = vmatmul.bf16.gmra.mxu0 %v4805
      %v5348 = vpop.f32.mrf.mxu0
      %v5349 = vadd.f32 0.0, %v5348
      %v5350 = vpop.f32.mrf.mxu0
      %v5351 = vadd.f32 0.0, %v5350
      %5352 = vdwg.mxu0
      %5353 = vmatpush.bf16.msra.mxu0 %v5181
      %5354 = vmatpush.bf16.msra.mxu0 %v5172
      %5355 = vmatpush.bf16.msra.mxu0 %v5163
      %5356 = vmatpush.bf16.msra.mxu0 %v5154
      %5357 = vmatpush.bf16.msra.mxu0 %v5145
      %5358 = vmatpush.bf16.msra.mxu0 %v5136
      %5359 = vmatpush.bf16.msra.mxu0 %v5127
      %5360 = vmatpush.bf16.msra.mxu0 %v5118
      %5361 = vmatmul.bf16.gmra.mxu0 %v4805
      %v5362 = vpop.f32.mrf.mxu0
      %v5363 = vadd.f32 0.0, %v5362
      %v5364 = vpop.f32.mrf.mxu0
      %v5365 = vadd.f32 0.0, %v5364
      %5366 = vdwg.mxu0
      %5367 = vmatpush.bf16.msra.mxu0 %v5182
      %5368 = vmatpush.bf16.msra.mxu0 %v5173
      %5369 = vmatpush.bf16.msra.mxu0 %v5164
      %5370 = vmatpush.bf16.msra.mxu0 %v5155
      %5371 = vmatpush.bf16.msra.mxu0 %v5146
      %5372 = vmatpush.bf16.msra.mxu0 %v5137
      %5373 = vmatpush.bf16.msra.mxu0 %v5128
      %5374 = vmatpush.bf16.msra.mxu0 %v5119
      %5375 = vmatmul.bf16.gmra.mxu0 %v4805
      %v5376 = vpop.f32.mrf.mxu0
      %v5377 = vadd.f32 0.0, %v5376
      %v5378 = vpop.f32.mrf.mxu0
      %v5379 = vadd.f32 0.0, %v5378
      %5380 = vdwg.mxu0
      %v5381 = vpack.c.bf16 %v5279, %v5265
      %v5382 = vpack.c.bf16 %v5307, %v5293
      %v5383 = vpack.c.bf16 %v5335, %v5321
      %v5384 = vpack.c.bf16 %v5363, %v5349
      %v5385 = vpack.c.bf16 %v5377, %v5377
      %v5386 = vpack.c.bf16 %v5281, %v5267
      %v5387 = vpack.c.bf16 %v5309, %v5295
      %v5388 = vpack.c.bf16 %v5337, %v5323
      %v5389 = vpack.c.bf16 %v5365, %v5351
      %v5390 = vpack.c.bf16 %v5379, %v5379
      %v5391 = vld [vmem:[%s10] sm:$0xf]
      %v5392 = vld [vmem:[%s10 + $0x4] sm:$0xf]
      %v5393 = vld [vmem:[%s10 + $0x8] sm:$0xf]
      %v5394 = vld [vmem:[%s10 + $0xc] sm:$0xf]
      %v5395 = vld [vmem:[%s10 + $0x10] sm:$0xf]
      %v5396 = vld [vmem:[%s10 + $0x14] sm:$0xf]
      %v5397 = vld [vmem:[%s10 + $0x18] sm:$0xf]
      %v5398 = vld [vmem:[%s10 + $0x1c] sm:$0xf]
      %s5399 = scalar_lea.vmem %s10, 32
      %v5400 = vld [vmem:[%s5399] sm:$0xf]
      %v5401 = vld [vmem:[%s5399 + $0x4] sm:$0xf]
      %v5402 = vld [vmem:[%s5399 + $0x8] sm:$0xf]
      %v5403 = vld [vmem:[%s5399 + $0xc] sm:$0xf]
      %v5404 = vld [vmem:[%s5399 + $0x10] sm:$0xf]
      %v5405 = vld [vmem:[%s5399 + $0x14] sm:$0xf]
      %v5406 = vld [vmem:[%s5399 + $0x18] sm:$0xf]
      %v5407 = vld [vmem:[%s5399 + $0x1c] sm:$0xf]
      %v5416 = vunpack.c.l.b16 %v5400
      %v5417 = vunpack.c.l.b16 %v5401
      %v5418 = vunpack.c.l.b16 %v5402
      %v5419 = vunpack.c.l.b16 %v5403
      %v5420 = vunpack.c.l.b16 %v5404
      %v5421 = vunpack.c.l.b16 %v5405
      %v5422 = vunpack.c.l.b16 %v5406
      %v5423 = vunpack.c.l.b16 %v5407
      %v5424 = vpack.c.b16 %v5417, %v5416
      %v5425 = vpack.c.b16 %v5419, %v5418
      %v5426 = vpack.c.b16 %v5421, %v5420
      %v5427 = vpack.c.b16 %v5423, %v5422
      %v5430 = vunpack.c.h.b16 %v5381
      %v5431 = vunpack.c.h.b16 %v5386
      %v5432 = vpack.c.b16 %v5431, %v5430
      %v5435 = vsel %vm1577, %v5424, 0
      %v5438 = vsel %vm1577, %v5425, 0
      %v5441 = vsel %vm1577, %v5426, 0
      %v5444 = vsel %vm1577, %v5427, 0
      %5446 = vmatpush.bf16.msra.mxu0 0
      %5447 = vmatpush.bf16.msra.mxu0 0
      %5448 = vmatpush.bf16.msra.mxu0 0
      %5449 = vmatpush.bf16.msra.mxu0 0
      %5450 = vmatpush.bf16.msra.mxu0 0
      %5451 = vmatpush.bf16.msra.mxu0 0
      %5452 = vmatpush.bf16.msra.mxu0 0
      %5453 = vmatpush.bf16.msra.mxu0 %v5432
      %5454 = vmatmul.bf16.gmra.mxu0 %v5435
      %v5455 = vpop.f32.mrf.mxu0
      %v5456 = vadd.f32 0.0, %v5455
      %v5457 = vpop.f32.mrf.mxu0
      %v5458 = vadd.f32 0.0, %v5457
      %5459 = vmatmul.bf16.gmra.mxu0 %v5438
      %v5460 = vpop.f32.mrf.mxu0
      %v5461 = vadd.f32 0.0, %v5460
      %v5462 = vpop.f32.mrf.mxu0
      %v5463 = vadd.f32 0.0, %v5462
      %5464 = vmatmul.bf16.gmra.mxu0 %v5441
      %v5465 = vpop.f32.mrf.mxu0
      %v5466 = vadd.f32 0.0, %v5465
      %v5467 = vpop.f32.mrf.mxu0
      %v5468 = vadd.f32 0.0, %v5467
      %5469 = vmatmul.bf16.gmra.mxu0 %v5444
      %v5470 = vpop.f32.mrf.mxu0
      %v5471 = vadd.f32 0.0, %v5470
      %v5472 = vpop.f32.mrf.mxu0
      %v5473 = vadd.f32 0.0, %v5472
      %5474 = vdwg.mxu0
      %v5483 = vunpack.c.l.b16 %v5391
      %v5484 = vunpack.c.l.b16 %v5392
      %v5485 = vunpack.c.l.b16 %v5393
      %v5486 = vunpack.c.l.b16 %v5394
      %v5487 = vunpack.c.l.b16 %v5395
      %v5488 = vunpack.c.l.b16 %v5396
      %v5489 = vunpack.c.l.b16 %v5397
      %v5490 = vunpack.c.l.b16 %v5398
      %v5491 = vpack.c.b16 %v5484, %v5483
      %v5492 = vpack.c.b16 %v5486, %v5485
      %v5493 = vpack.c.b16 %v5488, %v5487
      %v5494 = vpack.c.b16 %v5490, %v5489
      %v5495 = vunpack.c.l.b16 %v5381
      %v5496 = vunpack.c.l.b16 %v5386
      %v5497 = vpack.c.b16 %v5496, %v5495
      %v5500 = vsel %vm1577, %v5491, 0
      %v5503 = vsel %vm1577, %v5492, 0
      %v5506 = vsel %vm1577, %v5493, 0
      %v5509 = vsel %vm1577, %v5494, 0
      %5511 = vmatpush.bf16.msra.mxu0 0
      %5512 = vmatpush.bf16.msra.mxu0 0
      %5513 = vmatpush.bf16.msra.mxu0 0
      %5514 = vmatpush.bf16.msra.mxu0 0
      %5515 = vmatpush.bf16.msra.mxu0 0
      %5516 = vmatpush.bf16.msra.mxu0 0
      %5517 = vmatpush.bf16.msra.mxu0 0
      %5518 = vmatpush.bf16.msra.mxu0 %v5497
      %5519 = vmatmul.bf16.gmra.mxu0 %v5500
      %v5520 = vpop.f32.mrf.mxu0
      %v5521 = vadd.f32 %v5456, %v5520
      %v5522 = vpop.f32.mrf.mxu0
      %v5523 = vadd.f32 %v5458, %v5522
      %5524 = vmatmul.bf16.gmra.mxu0 %v5503
      %v5525 = vpop.f32.mrf.mxu0
      %v5526 = vadd.f32 %v5461, %v5525
      %v5527 = vpop.f32.mrf.mxu0
      %v5528 = vadd.f32 %v5463, %v5527
      %5529 = vmatmul.bf16.gmra.mxu0 %v5506
      %v5530 = vpop.f32.mrf.mxu0
      %v5531 = vadd.f32 %v5466, %v5530
      %v5532 = vpop.f32.mrf.mxu0
      %v5533 = vadd.f32 %v5468, %v5532
      %5534 = vmatmul.bf16.gmra.mxu0 %v5509
      %v5535 = vpop.f32.mrf.mxu0
      %v5536 = vadd.f32 %v5471, %v5535
      %v5537 = vpop.f32.mrf.mxu0
      %v5538 = vadd.f32 %v5473, %v5537
      %5539 = vdwg.mxu0
      %s5540 = scalar_lea.vmem %s10, 64
      %v5541 = vld [vmem:[%s5540] sm:$0xf]
      %v5542 = vld [vmem:[%s5540 + $0x4] sm:$0xf]
      %v5543 = vld [vmem:[%s5540 + $0x8] sm:$0xf]
      %v5544 = vld [vmem:[%s5540 + $0xc] sm:$0xf]
      %v5545 = vld [vmem:[%s5540 + $0x10] sm:$0xf]
      %v5546 = vld [vmem:[%s5540 + $0x14] sm:$0xf]
      %v5547 = vld [vmem:[%s5540 + $0x18] sm:$0xf]
      %v5548 = vld [vmem:[%s5540 + $0x1c] sm:$0xf]
      %v5557 = vunpack.c.l.b16 %v5541
      %v5558 = vunpack.c.l.b16 %v5542
      %v5559 = vunpack.c.l.b16 %v5543
      %v5560 = vunpack.c.l.b16 %v5544
      %v5561 = vunpack.c.l.b16 %v5545
      %v5562 = vunpack.c.l.b16 %v5546
      %v5563 = vunpack.c.l.b16 %v5547
      %v5564 = vunpack.c.l.b16 %v5548
      %v5565 = vpack.c.b16 %v5558, %v5557
      %v5566 = vpack.c.b16 %v5560, %v5559
      %v5567 = vpack.c.b16 %v5562, %v5561
      %v5568 = vpack.c.b16 %v5564, %v5563
      %v5571 = vunpack.c.l.b16 %v5382
      %v5572 = vunpack.c.l.b16 %v5387
      %v5573 = vpack.c.b16 %v5572, %v5571
      %v5576 = vsel %vm1577, %v5565, 0
      %v5579 = vsel %vm1577, %v5566, 0
      %v5582 = vsel %vm1577, %v5567, 0
      %v5585 = vsel %vm1577, %v5568, 0
      %5587 = vmatpush.bf16.msra.mxu0 0
      %5588 = vmatpush.bf16.msra.mxu0 0
      %5589 = vmatpush.bf16.msra.mxu0 0
      %5590 = vmatpush.bf16.msra.mxu0 0
      %5591 = vmatpush.bf16.msra.mxu0 0
      %5592 = vmatpush.bf16.msra.mxu0 0
      %5593 = vmatpush.bf16.msra.mxu0 0
      %5594 = vmatpush.bf16.msra.mxu0 %v5573
      %5595 = vmatmul.bf16.gmra.mxu0 %v5576
      %v5596 = vpop.f32.mrf.mxu0
      %v5597 = vadd.f32 0.0, %v5596
      %v5598 = vpop.f32.mrf.mxu0
      %v5599 = vadd.f32 0.0, %v5598
      %5600 = vmatmul.bf16.gmra.mxu0 %v5579
      %v5601 = vpop.f32.mrf.mxu0
      %v5602 = vadd.f32 0.0, %v5601
      %v5603 = vpop.f32.mrf.mxu0
      %v5604 = vadd.f32 0.0, %v5603
      %5605 = vmatmul.bf16.gmra.mxu0 %v5582
      %v5606 = vpop.f32.mrf.mxu0
      %v5607 = vadd.f32 0.0, %v5606
      %v5608 = vpop.f32.mrf.mxu0
      %v5609 = vadd.f32 0.0, %v5608
      %5610 = vmatmul.bf16.gmra.mxu0 %v5585
      %v5611 = vpop.f32.mrf.mxu0
      %v5612 = vadd.f32 0.0, %v5611
      %v5613 = vpop.f32.mrf.mxu0
      %v5614 = vadd.f32 0.0, %v5613
      %5615 = vdwg.mxu0
      %v5616 = vadd.f32 %v5521, %v5597
      %v5617 = vadd.f32 %v5523, %v5599
      %v5618 = vadd.f32 %v5526, %v5602
      %v5619 = vadd.f32 %v5528, %v5604
      %v5620 = vadd.f32 %v5531, %v5607
      %v5621 = vadd.f32 %v5533, %v5609
      %v5622 = vadd.f32 %v5536, %v5612
      %v5623 = vadd.f32 %v5538, %v5614
      %s5624 = scalar_lea.vmem %s10, 96
      %v5625 = vld [vmem:[%s5624] sm:$0xf]
      %v5626 = vld [vmem:[%s5624 + $0x4] sm:$0xf]
      %v5627 = vld [vmem:[%s5624 + $0x8] sm:$0xf]
      %v5628 = vld [vmem:[%s5624 + $0xc] sm:$0xf]
      %v5629 = vld [vmem:[%s5624 + $0x10] sm:$0xf]
      %v5630 = vld [vmem:[%s5624 + $0x14] sm:$0xf]
      %v5631 = vld [vmem:[%s5624 + $0x18] sm:$0xf]
      %v5632 = vld [vmem:[%s5624 + $0x1c] sm:$0xf]
      %v5641 = vunpack.c.l.b16 %v5625
      %v5642 = vunpack.c.l.b16 %v5626
      %v5643 = vunpack.c.l.b16 %v5627
      %v5644 = vunpack.c.l.b16 %v5628
      %v5645 = vunpack.c.l.b16 %v5629
      %v5646 = vunpack.c.l.b16 %v5630
      %v5647 = vunpack.c.l.b16 %v5631
      %v5648 = vunpack.c.l.b16 %v5632
      %v5649 = vpack.c.b16 %v5642, %v5641
      %v5650 = vpack.c.b16 %v5644, %v5643
      %v5651 = vpack.c.b16 %v5646, %v5645
      %v5652 = vpack.c.b16 %v5648, %v5647
      %v5653 = vunpack.c.h.b16 %v5382
      %v5654 = vunpack.c.h.b16 %v5387
      %v5655 = vpack.c.b16 %v5654, %v5653
      %v5658 = vsel %vm1577, %v5649, 0
      %v5661 = vsel %vm1577, %v5650, 0
      %v5664 = vsel %vm1577, %v5651, 0
      %v5667 = vsel %vm1577, %v5652, 0
      %5669 = vmatpush.bf16.msra.mxu0 0
      %5670 = vmatpush.bf16.msra.mxu0 0
      %5671 = vmatpush.bf16.msra.mxu0 0
      %5672 = vmatpush.bf16.msra.mxu0 0
      %5673 = vmatpush.bf16.msra.mxu0 0
      %5674 = vmatpush.bf16.msra.mxu0 0
      %5675 = vmatpush.bf16.msra.mxu0 0
      %5676 = vmatpush.bf16.msra.mxu0 %v5655
      %5677 = vmatmul.bf16.gmra.mxu0 %v5658
      %v5678 = vpop.f32.mrf.mxu0
      %v5679 = vadd.f32 0.0, %v5678
      %v5680 = vpop.f32.mrf.mxu0
      %v5681 = vadd.f32 0.0, %v5680
      %5682 = vmatmul.bf16.gmra.mxu0 %v5661
      %v5683 = vpop.f32.mrf.mxu0
      %v5684 = vadd.f32 0.0, %v5683
      %v5685 = vpop.f32.mrf.mxu0
      %v5686 = vadd.f32 0.0, %v5685
      %5687 = vmatmul.bf16.gmra.mxu0 %v5664
      %v5688 = vpop.f32.mrf.mxu0
      %v5689 = vadd.f32 0.0, %v5688
      %v5690 = vpop.f32.mrf.mxu0
      %v5691 = vadd.f32 0.0, %v5690
      %5692 = vmatmul.bf16.gmra.mxu0 %v5667
      %v5693 = vpop.f32.mrf.mxu0
      %v5694 = vadd.f32 0.0, %v5693
      %v5695 = vpop.f32.mrf.mxu0
      %v5696 = vadd.f32 0.0, %v5695
      %5697 = vdwg.mxu0
      %v5698 = vadd.f32 %v5616, %v5679
      %v5699 = vadd.f32 %v5617, %v5681
      %v5700 = vadd.f32 %v5618, %v5684
      %v5701 = vadd.f32 %v5619, %v5686
      %v5702 = vadd.f32 %v5620, %v5689
      %v5703 = vadd.f32 %v5621, %v5691
      %v5704 = vadd.f32 %v5622, %v5694
      %v5705 = vadd.f32 %v5623, %v5696
      %s5706 = scalar_lea.vmem %s10, 128
      %v5707 = vld [vmem:[%s5706] sm:$0xf]
      %v5708 = vld [vmem:[%s5706 + $0x4] sm:$0xf]
      %v5709 = vld [vmem:[%s5706 + $0x8] sm:$0xf]
      %v5710 = vld [vmem:[%s5706 + $0xc] sm:$0xf]
      %v5711 = vld [vmem:[%s5706 + $0x10] sm:$0xf]
      %v5712 = vld [vmem:[%s5706 + $0x14] sm:$0xf]
      %v5713 = vld [vmem:[%s5706 + $0x18] sm:$0xf]
      %v5714 = vld [vmem:[%s5706 + $0x1c] sm:$0xf]
      %v5723 = vunpack.c.l.b16 %v5707
      %v5724 = vunpack.c.l.b16 %v5708
      %v5725 = vunpack.c.l.b16 %v5709
      %v5726 = vunpack.c.l.b16 %v5710
      %v5727 = vunpack.c.l.b16 %v5711
      %v5728 = vunpack.c.l.b16 %v5712
      %v5729 = vunpack.c.l.b16 %v5713
      %v5730 = vunpack.c.l.b16 %v5714
      %v5731 = vpack.c.b16 %v5724, %v5723
      %v5732 = vpack.c.b16 %v5726, %v5725
      %v5733 = vpack.c.b16 %v5728, %v5727
      %v5734 = vpack.c.b16 %v5730, %v5729
      %v5737 = vunpack.c.l.b16 %v5383
      %v5738 = vunpack.c.l.b16 %v5388
      %v5739 = vpack.c.b16 %v5738, %v5737
      %v5742 = vsel %vm1577, %v5731, 0
      %v5745 = vsel %vm1577, %v5732, 0
      %v5748 = vsel %vm1577, %v5733, 0
      %v5751 = vsel %vm1577, %v5734, 0
      %5753 = vmatpush.bf16.msra.mxu0 0
      %5754 = vmatpush.bf16.msra.mxu0 0
      %5755 = vmatpush.bf16.msra.mxu0 0
      %5756 = vmatpush.bf16.msra.mxu0 0
      %5757 = vmatpush.bf16.msra.mxu0 0
      %5758 = vmatpush.bf16.msra.mxu0 0
      %5759 = vmatpush.bf16.msra.mxu0 0
      %5760 = vmatpush.bf16.msra.mxu0 %v5739
      %5761 = vmatmul.bf16.gmra.mxu0 %v5742
      %v5762 = vpop.f32.mrf.mxu0
      %v5763 = vadd.f32 0.0, %v5762
      %v5764 = vpop.f32.mrf.mxu0
      %v5765 = vadd.f32 0.0, %v5764
      %5766 = vmatmul.bf16.gmra.mxu0 %v5745
      %v5767 = vpop.f32.mrf.mxu0
      %v5768 = vadd.f32 0.0, %v5767
      %v5769 = vpop.f32.mrf.mxu0
      %v5770 = vadd.f32 0.0, %v5769
      %5771 = vmatmul.bf16.gmra.mxu0 %v5748
      %v5772 = vpop.f32.mrf.mxu0
      %v5773 = vadd.f32 0.0, %v5772
      %v5774 = vpop.f32.mrf.mxu0
      %v5775 = vadd.f32 0.0, %v5774
      %5776 = vmatmul.bf16.gmra.mxu0 %v5751
      %v5777 = vpop.f32.mrf.mxu0
      %v5778 = vadd.f32 0.0, %v5777
      %v5779 = vpop.f32.mrf.mxu0
      %v5780 = vadd.f32 0.0, %v5779
      %5781 = vdwg.mxu0
      %v5782 = vadd.f32 %v5698, %v5763
      %v5783 = vadd.f32 %v5699, %v5765
      %v5784 = vadd.f32 %v5700, %v5768
      %v5785 = vadd.f32 %v5701, %v5770
      %v5786 = vadd.f32 %v5702, %v5773
      %v5787 = vadd.f32 %v5703, %v5775
      %v5788 = vadd.f32 %v5704, %v5778
      %v5789 = vadd.f32 %v5705, %v5780
      %s5790 = scalar_lea.vmem %s10, 160
      %v5791 = vld [vmem:[%s5790] sm:$0xf]
      %v5792 = vld [vmem:[%s5790 + $0x4] sm:$0xf]
      %v5793 = vld [vmem:[%s5790 + $0x8] sm:$0xf]
      %v5794 = vld [vmem:[%s5790 + $0xc] sm:$0xf]
      %v5795 = vld [vmem:[%s5790 + $0x10] sm:$0xf]
      %v5796 = vld [vmem:[%s5790 + $0x14] sm:$0xf]
      %v5797 = vld [vmem:[%s5790 + $0x18] sm:$0xf]
      %v5798 = vld [vmem:[%s5790 + $0x1c] sm:$0xf]
      %v5807 = vunpack.c.l.b16 %v5791
      %v5808 = vunpack.c.l.b16 %v5792
      %v5809 = vunpack.c.l.b16 %v5793
      %v5810 = vunpack.c.l.b16 %v5794
      %v5811 = vunpack.c.l.b16 %v5795
      %v5812 = vunpack.c.l.b16 %v5796
      %v5813 = vunpack.c.l.b16 %v5797
      %v5814 = vunpack.c.l.b16 %v5798
      %v5815 = vpack.c.b16 %v5808, %v5807
      %v5816 = vpack.c.b16 %v5810, %v5809
      %v5817 = vpack.c.b16 %v5812, %v5811
      %v5818 = vpack.c.b16 %v5814, %v5813
      %v5819 = vunpack.c.h.b16 %v5383
      %v5820 = vunpack.c.h.b16 %v5388
      %v5821 = vpack.c.b16 %v5820, %v5819
      %v5824 = vsel %vm1577, %v5815, 0
      %v5827 = vsel %vm1577, %v5816, 0
      %v5830 = vsel %vm1577, %v5817, 0
      %v5833 = vsel %vm1577, %v5818, 0
      %5835 = vmatpush.bf16.msra.mxu0 0
      %5836 = vmatpush.bf16.msra.mxu0 0
      %5837 = vmatpush.bf16.msra.mxu0 0
      %5838 = vmatpush.bf16.msra.mxu0 0
      %5839 = vmatpush.bf16.msra.mxu0 0
      %5840 = vmatpush.bf16.msra.mxu0 0
      %5841 = vmatpush.bf16.msra.mxu0 0
      %5842 = vmatpush.bf16.msra.mxu0 %v5821
      %5843 = vmatmul.bf16.gmra.mxu0 %v5824
      %v5844 = vpop.f32.mrf.mxu0
      %v5845 = vadd.f32 0.0, %v5844
      %v5846 = vpop.f32.mrf.mxu0
      %v5847 = vadd.f32 0.0, %v5846
      %5848 = vmatmul.bf16.gmra.mxu0 %v5827
      %v5849 = vpop.f32.mrf.mxu0
      %v5850 = vadd.f32 0.0, %v5849
      %v5851 = vpop.f32.mrf.mxu0
      %v5852 = vadd.f32 0.0, %v5851
      %5853 = vmatmul.bf16.gmra.mxu0 %v5830
      %v5854 = vpop.f32.mrf.mxu0
      %v5855 = vadd.f32 0.0, %v5854
      %v5856 = vpop.f32.mrf.mxu0
      %v5857 = vadd.f32 0.0, %v5856
      %5858 = vmatmul.bf16.gmra.mxu0 %v5833
      %v5859 = vpop.f32.mrf.mxu0
      %v5860 = vadd.f32 0.0, %v5859
      %v5861 = vpop.f32.mrf.mxu0
      %v5862 = vadd.f32 0.0, %v5861
      %5863 = vdwg.mxu0
      %v5864 = vadd.f32 %v5782, %v5845
      %v5865 = vadd.f32 %v5783, %v5847
      %v5866 = vadd.f32 %v5784, %v5850
      %v5867 = vadd.f32 %v5785, %v5852
      %v5868 = vadd.f32 %v5786, %v5855
      %v5869 = vadd.f32 %v5787, %v5857
      %v5870 = vadd.f32 %v5788, %v5860
      %v5871 = vadd.f32 %v5789, %v5862
      %s5872 = scalar_lea.vmem %s10, 192
      %v5873 = vld [vmem:[%s5872] sm:$0xf]
      %v5874 = vld [vmem:[%s5872 + $0x4] sm:$0xf]
      %v5875 = vld [vmem:[%s5872 + $0x8] sm:$0xf]
      %v5876 = vld [vmem:[%s5872 + $0xc] sm:$0xf]
      %v5877 = vld [vmem:[%s5872 + $0x10] sm:$0xf]
      %v5878 = vld [vmem:[%s5872 + $0x14] sm:$0xf]
      %v5879 = vld [vmem:[%s5872 + $0x18] sm:$0xf]
      %v5880 = vld [vmem:[%s5872 + $0x1c] sm:$0xf]
      %v5889 = vunpack.c.l.b16 %v5873
      %v5890 = vunpack.c.l.b16 %v5874
      %v5891 = vunpack.c.l.b16 %v5875
      %v5892 = vunpack.c.l.b16 %v5876
      %v5893 = vunpack.c.l.b16 %v5877
      %v5894 = vunpack.c.l.b16 %v5878
      %v5895 = vunpack.c.l.b16 %v5879
      %v5896 = vunpack.c.l.b16 %v5880
      %v5897 = vpack.c.b16 %v5890, %v5889
      %v5898 = vpack.c.b16 %v5892, %v5891
      %v5899 = vpack.c.b16 %v5894, %v5893
      %v5900 = vpack.c.b16 %v5896, %v5895
      %v5903 = vunpack.c.l.b16 %v5384
      %v5904 = vunpack.c.l.b16 %v5389
      %v5905 = vpack.c.b16 %v5904, %v5903
      %v5908 = vsel %vm1577, %v5897, 0
      %v5911 = vsel %vm1577, %v5898, 0
      %v5914 = vsel %vm1577, %v5899, 0
      %v5917 = vsel %vm1577, %v5900, 0
      %5919 = vmatpush.bf16.msra.mxu0 0
      %5920 = vmatpush.bf16.msra.mxu0 0
      %5921 = vmatpush.bf16.msra.mxu0 0
      %5922 = vmatpush.bf16.msra.mxu0 0
      %5923 = vmatpush.bf16.msra.mxu0 0
      %5924 = vmatpush.bf16.msra.mxu0 0
      %5925 = vmatpush.bf16.msra.mxu0 0
      %5926 = vmatpush.bf16.msra.mxu0 %v5905
      %5927 = vmatmul.bf16.gmra.mxu0 %v5908
      %v5928 = vpop.f32.mrf.mxu0
      %v5929 = vadd.f32 0.0, %v5928
      %v5930 = vpop.f32.mrf.mxu0
      %v5931 = vadd.f32 0.0, %v5930
      %5932 = vmatmul.bf16.gmra.mxu0 %v5911
      %v5933 = vpop.f32.mrf.mxu0
      %v5934 = vadd.f32 0.0, %v5933
      %v5935 = vpop.f32.mrf.mxu0
      %v5936 = vadd.f32 0.0, %v5935
      %5937 = vmatmul.bf16.gmra.mxu0 %v5914
      %v5938 = vpop.f32.mrf.mxu0
      %v5939 = vadd.f32 0.0, %v5938
      %v5940 = vpop.f32.mrf.mxu0
      %v5941 = vadd.f32 0.0, %v5940
      %5942 = vmatmul.bf16.gmra.mxu0 %v5917
      %v5943 = vpop.f32.mrf.mxu0
      %v5944 = vadd.f32 0.0, %v5943
      %v5945 = vpop.f32.mrf.mxu0
      %v5946 = vadd.f32 0.0, %v5945
      %5947 = vdwg.mxu0
      %v5948 = vadd.f32 %v5864, %v5929
      %v5949 = vadd.f32 %v5865, %v5931
      %v5950 = vadd.f32 %v5866, %v5934
      %v5951 = vadd.f32 %v5867, %v5936
      %v5952 = vadd.f32 %v5868, %v5939
      %v5953 = vadd.f32 %v5869, %v5941
      %v5954 = vadd.f32 %v5870, %v5944
      %v5955 = vadd.f32 %v5871, %v5946
      %s5956 = scalar_lea.vmem %s10, 224
      %v5957 = vld [vmem:[%s5956] sm:$0xf]
      %v5958 = vld [vmem:[%s5956 + $0x4] sm:$0xf]
      %v5959 = vld [vmem:[%s5956 + $0x8] sm:$0xf]
      %v5960 = vld [vmem:[%s5956 + $0xc] sm:$0xf]
      %v5961 = vld [vmem:[%s5956 + $0x10] sm:$0xf]
      %v5962 = vld [vmem:[%s5956 + $0x14] sm:$0xf]
      %v5963 = vld [vmem:[%s5956 + $0x18] sm:$0xf]
      %v5964 = vld [vmem:[%s5956 + $0x1c] sm:$0xf]
      %v5973 = vunpack.c.l.b16 %v5957
      %v5974 = vunpack.c.l.b16 %v5958
      %v5975 = vunpack.c.l.b16 %v5959
      %v5976 = vunpack.c.l.b16 %v5960
      %v5977 = vunpack.c.l.b16 %v5961
      %v5978 = vunpack.c.l.b16 %v5962
      %v5979 = vunpack.c.l.b16 %v5963
      %v5980 = vunpack.c.l.b16 %v5964
      %v5981 = vpack.c.b16 %v5974, %v5973
      %v5982 = vpack.c.b16 %v5976, %v5975
      %v5983 = vpack.c.b16 %v5978, %v5977
      %v5984 = vpack.c.b16 %v5980, %v5979
      %v5985 = vunpack.c.h.b16 %v5384
      %v5986 = vunpack.c.h.b16 %v5389
      %v5987 = vpack.c.b16 %v5986, %v5985
      %v5990 = vsel %vm1577, %v5981, 0
      %v5993 = vsel %vm1577, %v5982, 0
      %v5996 = vsel %vm1577, %v5983, 0
      %v5999 = vsel %vm1577, %v5984, 0
      %6001 = vmatpush.bf16.msra.mxu0 0
      %6002 = vmatpush.bf16.msra.mxu0 0
      %6003 = vmatpush.bf16.msra.mxu0 0
      %6004 = vmatpush.bf16.msra.mxu0 0
      %6005 = vmatpush.bf16.msra.mxu0 0
      %6006 = vmatpush.bf16.msra.mxu0 0
      %6007 = vmatpush.bf16.msra.mxu0 0
      %6008 = vmatpush.bf16.msra.mxu0 %v5987
      %6009 = vmatmul.bf16.gmra.mxu0 %v5990
      %v6010 = vpop.f32.mrf.mxu0
      %v6011 = vadd.f32 0.0, %v6010
      %v6012 = vpop.f32.mrf.mxu0
      %v6013 = vadd.f32 0.0, %v6012
      %6014 = vmatmul.bf16.gmra.mxu0 %v5993
      %v6015 = vpop.f32.mrf.mxu0
      %v6016 = vadd.f32 0.0, %v6015
      %v6017 = vpop.f32.mrf.mxu0
      %v6018 = vadd.f32 0.0, %v6017
      %6019 = vmatmul.bf16.gmra.mxu0 %v5996
      %v6020 = vpop.f32.mrf.mxu0
      %v6021 = vadd.f32 0.0, %v6020
      %v6022 = vpop.f32.mrf.mxu0
      %v6023 = vadd.f32 0.0, %v6022
      %6024 = vmatmul.bf16.gmra.mxu0 %v5999
      %v6025 = vpop.f32.mrf.mxu0
      %v6026 = vadd.f32 0.0, %v6025
      %v6027 = vpop.f32.mrf.mxu0
      %v6028 = vadd.f32 0.0, %v6027
      %6029 = vdwg.mxu0
      %v6030 = vadd.f32 %v5948, %v6011
      %v6031 = vadd.f32 %v5949, %v6013
      %v6032 = vadd.f32 %v5950, %v6016
      %v6033 = vadd.f32 %v5951, %v6018
      %v6034 = vadd.f32 %v5952, %v6021
      %v6035 = vadd.f32 %v5953, %v6023
      %v6036 = vadd.f32 %v5954, %v6026
      %v6037 = vadd.f32 %v5955, %v6028
      %s6038 = scalar_lea.vmem %s10, 256
      %v6039 = vld [vmem:[%s6038] sm:$0xf]
      %v6040 = vld [vmem:[%s6038 + $0x4] sm:$0xf]
      %v6041 = vld [vmem:[%s6038 + $0x8] sm:$0xf]
      %v6042 = vld [vmem:[%s6038 + $0xc] sm:$0xf]
      %v6043 = vld [vmem:[%s6038 + $0x10] sm:$0xf]
      %v6044 = vld [vmem:[%s6038 + $0x14] sm:$0xf]
      %v6045 = vld [vmem:[%s6038 + $0x18] sm:$0xf]
      %v6046 = vld [vmem:[%s6038 + $0x1c] sm:$0xf]
      %v6055 = vunpack.c.l.b16 %v6039
      %v6056 = vunpack.c.l.b16 %v6040
      %v6057 = vunpack.c.l.b16 %v6041
      %v6058 = vunpack.c.l.b16 %v6042
      %v6059 = vunpack.c.l.b16 %v6043
      %v6060 = vunpack.c.l.b16 %v6044
      %v6061 = vunpack.c.l.b16 %v6045
      %v6062 = vunpack.c.l.b16 %v6046
      %v6063 = vpack.c.b16 %v6056, %v6055
      %v6064 = vpack.c.b16 %v6058, %v6057
      %v6065 = vpack.c.b16 %v6060, %v6059
      %v6066 = vpack.c.b16 %v6062, %v6061
      %v6069 = vunpack.c.l.b16 %v5385
      %v6070 = vunpack.c.l.b16 %v5390
      %v6071 = vpack.c.b16 %v6070, %v6069
      %v6074 = vsel %vm1577, %v6063, 0
      %v6077 = vsel %vm1577, %v6064, 0
      %v6080 = vsel %vm1577, %v6065, 0
      %v6083 = vsel %vm1577, %v6066, 0
      %6085 = vmatpush.bf16.msra.mxu0 0
      %6086 = vmatpush.bf16.msra.mxu0 0
      %6087 = vmatpush.bf16.msra.mxu0 0
      %6088 = vmatpush.bf16.msra.mxu0 0
      %6089 = vmatpush.bf16.msra.mxu0 0
      %6090 = vmatpush.bf16.msra.mxu0 0
      %6091 = vmatpush.bf16.msra.mxu0 0
      %6092 = vmatpush.bf16.msra.mxu0 %v6071
      %6093 = vmatmul.bf16.gmra.mxu0 %v6074
      %v6094 = vpop.f32.mrf.mxu0
      %v6095 = vadd.f32 0.0, %v6094
      %v6096 = vpop.f32.mrf.mxu0
      %v6097 = vadd.f32 0.0, %v6096
      %6098 = vmatmul.bf16.gmra.mxu0 %v6077
      %v6099 = vpop.f32.mrf.mxu0
      %v6100 = vadd.f32 0.0, %v6099
      %v6101 = vpop.f32.mrf.mxu0
      %v6102 = vadd.f32 0.0, %v6101
      %6103 = vmatmul.bf16.gmra.mxu0 %v6080
      %v6104 = vpop.f32.mrf.mxu0
      %v6105 = vadd.f32 0.0, %v6104
      %v6106 = vpop.f32.mrf.mxu0
      %v6107 = vadd.f32 0.0, %v6106
      %6108 = vmatmul.bf16.gmra.mxu0 %v6083
      %v6109 = vpop.f32.mrf.mxu0
      %v6110 = vadd.f32 0.0, %v6109
      %v6111 = vpop.f32.mrf.mxu0
      %v6112 = vadd.f32 0.0, %v6111
      %6113 = vdwg.mxu0
      %v6114 = vadd.f32 %v6030, %v6095
      %v6115 = vadd.f32 %v6031, %v6097
      %v6116 = vadd.f32 %v6032, %v6100
      %v6117 = vadd.f32 %v6033, %v6102
      %v6118 = vadd.f32 %v6034, %v6105
      %v6119 = vadd.f32 %v6035, %v6107
      %v6120 = vadd.f32 %v6036, %v6110
      %v6121 = vadd.f32 %v6037, %v6112
      %v6122 = vperm.slane %v391, 6
      %v6123 = vadd.f32 %v6114, %v6122
      %v6124 = vadd.f32 %v6115, %v6122
      %v6125 = vadd.f32 %v6116, %v6122
      %v6126 = vadd.f32 %v6117, %v6122
      %v6127 = vadd.f32 %v6118, %v6122
      %v6128 = vadd.f32 %v6119, %v6122
      %v6129 = vadd.f32 %v6120, %v6122
      %v6130 = vadd.f32 %v6121, %v6122
      %v6131 = vmax.f32 %v6123, 0.0
      %v6132 = vmax.f32 %v6124, 0.0
      %v6133 = vmax.f32 %v6125, 0.0
      %v6134 = vmax.f32 %v6126, 0.0
      %v6135 = vmax.f32 %v6127, 0.0
      %v6136 = vmax.f32 %v6128, 0.0
      %v6137 = vmax.f32 %v6129, 0.0
      %v6138 = vmax.f32 %v6130, 0.0
      %v6139 = vpack.c.bf16 %v6132, %v6131
      %v6140 = vpack.c.bf16 %v6134, %v6133
      %v6141 = vpack.c.bf16 %v6136, %v6135
      %v6142 = vpack.c.bf16 %v6138, %v6137
      %s6143 = scalar_lea.vmem %s4, 1728
      %v6144 = vld [vmem:[%s6143] sm:$0xff]
      %v6145 = vld [vmem:[%s6143 + $0x8] sm:$0xff]
      %v6146 = vld [vmem:[%s6143 + $0x10] sm:$0xff]
      %v6147 = vld [vmem:[%s6143 + $0x18] sm:$0xff]
      %v6148 = vld [vmem:[%s6143 + $0x20] sm:$0xf]
      %v6149 = vld [vmem:[%s6143 + $0x24] sm:$0xff]
      %v6150 = vld [vmem:[%s6143 + $0x2c] sm:$0xff]
      %v6151 = vld [vmem:[%s6143 + $0x34] sm:$0xff]
      %v6152 = vld [vmem:[%s6143 + $0x3c] sm:$0xff]
      %v6153 = vld [vmem:[%s6143 + $0x44] sm:$0xf]
      %v6154 = vld [vmem:[%s6143 + $0x48] sm:$0xff]
      %v6155 = vld [vmem:[%s6143 + $0x50] sm:$0xff]
      %v6156 = vld [vmem:[%s6143 + $0x58] sm:$0xff]
      %v6157 = vld [vmem:[%s6143 + $0x60] sm:$0xff]
      %v6158 = vld [vmem:[%s6143 + $0x68] sm:$0xf]
      %v6159 = vld [vmem:[%s6143 + $0x6c] sm:$0xff]
      %v6160 = vld [vmem:[%s6143 + $0x74] sm:$0xff]
      %v6161 = vld [vmem:[%s6143 + $0x7c] sm:$0xff]
      %v6162 = vld [vmem:[%s6143 + $0x84] sm:$0xff]
      %v6163 = vld [vmem:[%s6143 + $0x8c] sm:$0xf]
      %v6164 = vld [vmem:[%s6143 + $0x90] sm:$0xff]
      %v6165 = vld [vmem:[%s6143 + $0x98] sm:$0xff]
      %v6166 = vld [vmem:[%s6143 + $0xa0] sm:$0xff]
      %v6167 = vld [vmem:[%s6143 + $0xa8] sm:$0xff]
      %v6168 = vld [vmem:[%s6143 + $0xb0] sm:$0xf]
      %v6169 = vld [vmem:[%s6143 + $0xb4] sm:$0xff]
      %v6170 = vld [vmem:[%s6143 + $0xbc] sm:$0xff]
      %v6171 = vld [vmem:[%s6143 + $0xc4] sm:$0xff]
      %v6172 = vld [vmem:[%s6143 + $0xcc] sm:$0xff]
      %v6173 = vld [vmem:[%s6143 + $0xd4] sm:$0xf]
      %v6174 = vld [vmem:[%s6143 + $0xd8] sm:$0xff]
      %v6175 = vld [vmem:[%s6143 + $0xe0] sm:$0xff]
      %v6176 = vld [vmem:[%s6143 + $0xe8] sm:$0xff]
      %v6177 = vld [vmem:[%s6143 + $0xf0] sm:$0xff]
      %v6178 = vld [vmem:[%s6143 + $0xf8] sm:$0xf]
      %v6179 = vld [vmem:[%s6143 + $0xfc] sm:$0xff]
      %v6180 = vld [vmem:[%s6143 + $0x104] sm:$0xff]
      %v6181 = vld [vmem:[%s6143 + $0x10c] sm:$0xff]
      %v6182 = vld [vmem:[%s6143 + $0x114] sm:$0xff]
      %v6183 = vld [vmem:[%s6143 + $0x11c] sm:$0xf]
      %v6184 = vld [vmem:[%s6143 + $0x120] sm:$0xff]
      %v6185 = vld [vmem:[%s6143 + $0x128] sm:$0xff]
      %v6186 = vld [vmem:[%s6143 + $0x130] sm:$0xff]
      %v6187 = vld [vmem:[%s6143 + $0x138] sm:$0xff]
      %v6188 = vld [vmem:[%s6143 + $0x140] sm:$0xf]
      %v6189 = vld [vmem:[%s6143 + $0x144] sm:$0xff]
      %v6190 = vld [vmem:[%s6143 + $0x14c] sm:$0xff]
      %v6191 = vld [vmem:[%s6143 + $0x154] sm:$0xff]
      %v6192 = vld [vmem:[%s6143 + $0x15c] sm:$0xff]
      %v6193 = vld [vmem:[%s6143 + $0x164] sm:$0xf]
      %v6194 = vld [vmem:[%s6143 + $0x168] sm:$0xff]
      %v6195 = vld [vmem:[%s6143 + $0x170] sm:$0xff]
      %v6196 = vld [vmem:[%s6143 + $0x178] sm:$0xff]
      %v6197 = vld [vmem:[%s6143 + $0x180] sm:$0xff]
      %v6198 = vld [vmem:[%s6143 + $0x188] sm:$0xf]
      %v6199 = vld [vmem:[%s6143 + $0x18c] sm:$0xff]
      %v6200 = vld [vmem:[%s6143 + $0x194] sm:$0xff]
      %v6201 = vld [vmem:[%s6143 + $0x19c] sm:$0xff]
      %v6202 = vld [vmem:[%s6143 + $0x1a4] sm:$0xff]
      %v6203 = vld [vmem:[%s6143 + $0x1ac] sm:$0xf]
      %v6204 = vld [vmem:[%s6143 + $0x1b0] sm:$0xff]
      %v6205 = vld [vmem:[%s6143 + $0x1b8] sm:$0xff]
      %v6206 = vld [vmem:[%s6143 + $0x1c0] sm:$0xff]
      %v6207 = vld [vmem:[%s6143 + $0x1c8] sm:$0xff]
      %v6208 = vld [vmem:[%s6143 + $0x1d0] sm:$0xf]
      %v6209 = vld [vmem:[%s6143 + $0x1d4] sm:$0xff]
      %v6210 = vld [vmem:[%s6143 + $0x1dc] sm:$0xff]
      %v6211 = vld [vmem:[%s6143 + $0x1e4] sm:$0xff]
      %v6212 = vld [vmem:[%s6143 + $0x1ec] sm:$0xff]
      %v6213 = vld [vmem:[%s6143 + $0x1f4] sm:$0xf]
      %v6214 = vld [vmem:[%s6143 + $0x1f8] sm:$0xff]
      %v6215 = vld [vmem:[%s6143 + $0x200] sm:$0xff]
      %v6216 = vld [vmem:[%s6143 + $0x208] sm:$0xff]
      %v6217 = vld [vmem:[%s6143 + $0x210] sm:$0xff]
      %v6218 = vld [vmem:[%s6143 + $0x218] sm:$0xf]
      %v6219 = vld [vmem:[%s6143 + $0x21c] sm:$0xff]
      %v6220 = vld [vmem:[%s6143 + $0x224] sm:$0xff]
      %v6221 = vld [vmem:[%s6143 + $0x22c] sm:$0xff]
      %v6222 = vld [vmem:[%s6143 + $0x234] sm:$0xff]
      %v6223 = vld [vmem:[%s6143 + $0x23c] sm:$0xf]
      %v6304 = vunpack.c.l.b16 %v6144
      %v6305 = vunpack.c.h.b16 %v6144
      %v6306 = vunpack.c.l.b16 %v6145
      %v6307 = vunpack.c.h.b16 %v6145
      %v6308 = vunpack.c.l.b16 %v6146
      %v6309 = vunpack.c.h.b16 %v6146
      %v6310 = vunpack.c.l.b16 %v6147
      %v6311 = vunpack.c.h.b16 %v6147
      %v6312 = vunpack.c.l.b16 %v6148
      %v6313 = vunpack.c.l.b16 %v6149
      %v6314 = vunpack.c.h.b16 %v6149
      %v6315 = vunpack.c.l.b16 %v6150
      %v6316 = vunpack.c.h.b16 %v6150
      %v6317 = vunpack.c.l.b16 %v6151
      %v6318 = vunpack.c.h.b16 %v6151
      %v6319 = vunpack.c.l.b16 %v6152
      %v6320 = vunpack.c.h.b16 %v6152
      %v6321 = vunpack.c.l.b16 %v6153
      %v6322 = vunpack.c.l.b16 %v6154
      %v6323 = vunpack.c.h.b16 %v6154
      %v6324 = vunpack.c.l.b16 %v6155
      %v6325 = vunpack.c.h.b16 %v6155
      %v6326 = vunpack.c.l.b16 %v6156
      %v6327 = vunpack.c.h.b16 %v6156
      %v6328 = vunpack.c.l.b16 %v6157
      %v6329 = vunpack.c.h.b16 %v6157
      %v6330 = vunpack.c.l.b16 %v6158
      %v6331 = vunpack.c.l.b16 %v6159
      %v6332 = vunpack.c.h.b16 %v6159
      %v6333 = vunpack.c.l.b16 %v6160
      %v6334 = vunpack.c.h.b16 %v6160
      %v6335 = vunpack.c.l.b16 %v6161
      %v6336 = vunpack.c.h.b16 %v6161
      %v6337 = vunpack.c.l.b16 %v6162
      %v6338 = vunpack.c.h.b16 %v6162
      %v6339 = vunpack.c.l.b16 %v6163
      %v6340 = vunpack.c.l.b16 %v6164
      %v6341 = vunpack.c.h.b16 %v6164
      %v6342 = vunpack.c.l.b16 %v6165
      %v6343 = vunpack.c.h.b16 %v6165
      %v6344 = vunpack.c.l.b16 %v6166
      %v6345 = vunpack.c.h.b16 %v6166
      %v6346 = vunpack.c.l.b16 %v6167
      %v6347 = vunpack.c.h.b16 %v6167
      %v6348 = vunpack.c.l.b16 %v6168
      %v6349 = vunpack.c.l.b16 %v6169
      %v6350 = vunpack.c.h.b16 %v6169
      %v6351 = vunpack.c.l.b16 %v6170
      %v6352 = vunpack.c.h.b16 %v6170
      %v6353 = vunpack.c.l.b16 %v6171
      %v6354 = vunpack.c.h.b16 %v6171
      %v6355 = vunpack.c.l.b16 %v6172
      %v6356 = vunpack.c.h.b16 %v6172
      %v6357 = vunpack.c.l.b16 %v6173
      %v6358 = vunpack.c.l.b16 %v6174
      %v6359 = vunpack.c.h.b16 %v6174
      %v6360 = vunpack.c.l.b16 %v6175
      %v6361 = vunpack.c.h.b16 %v6175
      %v6362 = vunpack.c.l.b16 %v6176
      %v6363 = vunpack.c.h.b16 %v6176
      %v6364 = vunpack.c.l.b16 %v6177
      %v6365 = vunpack.c.h.b16 %v6177
      %v6366 = vunpack.c.l.b16 %v6178
      %v6367 = vunpack.c.l.b16 %v6179
      %v6368 = vunpack.c.h.b16 %v6179
      %v6369 = vunpack.c.l.b16 %v6180
      %v6370 = vunpack.c.h.b16 %v6180
      %v6371 = vunpack.c.l.b16 %v6181
      %v6372 = vunpack.c.h.b16 %v6181
      %v6373 = vunpack.c.l.b16 %v6182
      %v6374 = vunpack.c.h.b16 %v6182
      %v6375 = vunpack.c.l.b16 %v6183
      %v6376 = vunpack.c.l.b16 %v6184
      %v6377 = vunpack.c.h.b16 %v6184
      %v6378 = vunpack.c.l.b16 %v6185
      %v6379 = vunpack.c.h.b16 %v6185
      %v6380 = vunpack.c.l.b16 %v6186
      %v6381 = vunpack.c.h.b16 %v6186
      %v6382 = vunpack.c.l.b16 %v6187
      %v6383 = vunpack.c.h.b16 %v6187
      %v6384 = vunpack.c.l.b16 %v6188
      %v6385 = vunpack.c.l.b16 %v6189
      %v6386 = vunpack.c.h.b16 %v6189
      %v6387 = vunpack.c.l.b16 %v6190
      %v6388 = vunpack.c.h.b16 %v6190
      %v6389 = vunpack.c.l.b16 %v6191
      %v6390 = vunpack.c.h.b16 %v6191
      %v6391 = vunpack.c.l.b16 %v6192
      %v6392 = vunpack.c.h.b16 %v6192
      %v6393 = vunpack.c.l.b16 %v6193
      %v6394 = vunpack.c.l.b16 %v6194
      %v6395 = vunpack.c.h.b16 %v6194
      %v6396 = vunpack.c.l.b16 %v6195
      %v6397 = vunpack.c.h.b16 %v6195
      %v6398 = vunpack.c.l.b16 %v6196
      %v6399 = vunpack.c.h.b16 %v6196
      %v6400 = vunpack.c.l.b16 %v6197
      %v6401 = vunpack.c.h.b16 %v6197
      %v6402 = vunpack.c.l.b16 %v6198
      %v6403 = vunpack.c.l.b16 %v6199
      %v6404 = vunpack.c.h.b16 %v6199
      %v6405 = vunpack.c.l.b16 %v6200
      %v6406 = vunpack.c.h.b16 %v6200
      %v6407 = vunpack.c.l.b16 %v6201
      %v6408 = vunpack.c.h.b16 %v6201
      %v6409 = vunpack.c.l.b16 %v6202
      %v6410 = vunpack.c.h.b16 %v6202
      %v6411 = vunpack.c.l.b16 %v6203
      %v6412 = vunpack.c.l.b16 %v6204
      %v6413 = vunpack.c.h.b16 %v6204
      %v6414 = vunpack.c.l.b16 %v6205
      %v6415 = vunpack.c.h.b16 %v6205
      %v6416 = vunpack.c.l.b16 %v6206
      %v6417 = vunpack.c.h.b16 %v6206
      %v6418 = vunpack.c.l.b16 %v6207
      %v6419 = vunpack.c.h.b16 %v6207
      %v6420 = vunpack.c.l.b16 %v6208
      %v6421 = vunpack.c.l.b16 %v6209
      %v6422 = vunpack.c.h.b16 %v6209
      %v6423 = vunpack.c.l.b16 %v6210
      %v6424 = vunpack.c.h.b16 %v6210
      %v6425 = vunpack.c.l.b16 %v6211
      %v6426 = vunpack.c.h.b16 %v6211
      %v6427 = vunpack.c.l.b16 %v6212
      %v6428 = vunpack.c.h.b16 %v6212
      %v6429 = vunpack.c.l.b16 %v6213
      %v6430 = vunpack.c.l.b16 %v6214
      %v6431 = vunpack.c.h.b16 %v6214
      %v6432 = vunpack.c.l.b16 %v6215
      %v6433 = vunpack.c.h.b16 %v6215
      %v6434 = vunpack.c.l.b16 %v6216
      %v6435 = vunpack.c.h.b16 %v6216
      %v6436 = vunpack.c.l.b16 %v6217
      %v6437 = vunpack.c.h.b16 %v6217
      %v6438 = vunpack.c.l.b16 %v6218
      %v6439 = vunpack.c.l.b16 %v6219
      %v6440 = vunpack.c.h.b16 %v6219
      %v6441 = vunpack.c.l.b16 %v6220
      %v6442 = vunpack.c.h.b16 %v6220
      %v6443 = vunpack.c.l.b16 %v6221
      %v6444 = vunpack.c.h.b16 %v6221
      %v6445 = vunpack.c.l.b16 %v6222
      %v6446 = vunpack.c.h.b16 %v6222
      %v6447 = vunpack.c.l.b16 %v6223
      %v6448 = vpack.c.b16 %v6313, %v6304
      %v6449 = vpack.c.b16 %v6314, %v6305
      %v6450 = vpack.c.b16 %v6315, %v6306
      %v6451 = vpack.c.b16 %v6316, %v6307
      %v6452 = vpack.c.b16 %v6317, %v6308
      %v6453 = vpack.c.b16 %v6318, %v6309
      %v6454 = vpack.c.b16 %v6319, %v6310
      %v6455 = vpack.c.b16 %v6320, %v6311
      %v6456 = vpack.c.b16 %v6321, %v6312
      %v6457 = vpack.c.b16 %v6331, %v6322
      %v6458 = vpack.c.b16 %v6332, %v6323
      %v6459 = vpack.c.b16 %v6333, %v6324
      %v6460 = vpack.c.b16 %v6334, %v6325
      %v6461 = vpack.c.b16 %v6335, %v6326
      %v6462 = vpack.c.b16 %v6336, %v6327
      %v6463 = vpack.c.b16 %v6337, %v6328
      %v6464 = vpack.c.b16 %v6338, %v6329
      %v6465 = vpack.c.b16 %v6339, %v6330
      %v6466 = vpack.c.b16 %v6349, %v6340
      %v6467 = vpack.c.b16 %v6350, %v6341
      %v6468 = vpack.c.b16 %v6351, %v6342
      %v6469 = vpack.c.b16 %v6352, %v6343
      %v6470 = vpack.c.b16 %v6353, %v6344
      %v6471 = vpack.c.b16 %v6354, %v6345
      %v6472 = vpack.c.b16 %v6355, %v6346
      %v6473 = vpack.c.b16 %v6356, %v6347
      %v6474 = vpack.c.b16 %v6357, %v6348
      %v6475 = vpack.c.b16 %v6367, %v6358
      %v6476 = vpack.c.b16 %v6368, %v6359
      %v6477 = vpack.c.b16 %v6369, %v6360
      %v6478 = vpack.c.b16 %v6370, %v6361
      %v6479 = vpack.c.b16 %v6371, %v6362
      %v6480 = vpack.c.b16 %v6372, %v6363
      %v6481 = vpack.c.b16 %v6373, %v6364
      %v6482 = vpack.c.b16 %v6374, %v6365
      %v6483 = vpack.c.b16 %v6375, %v6366
      %v6484 = vpack.c.b16 %v6385, %v6376
      %v6485 = vpack.c.b16 %v6386, %v6377
      %v6486 = vpack.c.b16 %v6387, %v6378
      %v6487 = vpack.c.b16 %v6388, %v6379
      %v6488 = vpack.c.b16 %v6389, %v6380
      %v6489 = vpack.c.b16 %v6390, %v6381
      %v6490 = vpack.c.b16 %v6391, %v6382
      %v6491 = vpack.c.b16 %v6392, %v6383
      %v6492 = vpack.c.b16 %v6393, %v6384
      %v6493 = vpack.c.b16 %v6403, %v6394
      %v6494 = vpack.c.b16 %v6404, %v6395
      %v6495 = vpack.c.b16 %v6405, %v6396
      %v6496 = vpack.c.b16 %v6406, %v6397
      %v6497 = vpack.c.b16 %v6407, %v6398
      %v6498 = vpack.c.b16 %v6408, %v6399
      %v6499 = vpack.c.b16 %v6409, %v6400
      %v6500 = vpack.c.b16 %v6410, %v6401
      %v6501 = vpack.c.b16 %v6411, %v6402
      %v6502 = vpack.c.b16 %v6421, %v6412
      %v6503 = vpack.c.b16 %v6422, %v6413
      %v6504 = vpack.c.b16 %v6423, %v6414
      %v6505 = vpack.c.b16 %v6424, %v6415
      %v6506 = vpack.c.b16 %v6425, %v6416
      %v6507 = vpack.c.b16 %v6426, %v6417
      %v6508 = vpack.c.b16 %v6427, %v6418
      %v6509 = vpack.c.b16 %v6428, %v6419
      %v6510 = vpack.c.b16 %v6429, %v6420
      %v6511 = vpack.c.b16 %v6439, %v6430
      %v6512 = vpack.c.b16 %v6440, %v6431
      %v6513 = vpack.c.b16 %v6441, %v6432
      %v6514 = vpack.c.b16 %v6442, %v6433
      %v6515 = vpack.c.b16 %v6443, %v6434
      %v6516 = vpack.c.b16 %v6444, %v6435
      %v6517 = vpack.c.b16 %v6445, %v6436
      %v6518 = vpack.c.b16 %v6446, %v6437
      %v6519 = vpack.c.b16 %v6447, %v6438
      %6592 = vmatpush.bf16.msra.mxu0 %v6511
      %6593 = vmatpush.bf16.msra.mxu0 %v6502
      %6594 = vmatpush.bf16.msra.mxu0 %v6493
      %6595 = vmatpush.bf16.msra.mxu0 %v6484
      %6596 = vmatpush.bf16.msra.mxu0 %v6475
      %6597 = vmatpush.bf16.msra.mxu0 %v6466
      %6598 = vmatpush.bf16.msra.mxu0 %v6457
      %6599 = vmatpush.bf16.msra.mxu0 %v6448
      %6600 = vmatmul.bf16.gmra.mxu0 %v6139
      %v6601 = vpop.f32.mrf.mxu0
      %v6602 = vadd.f32 0.0, %v6601
      %v6603 = vpop.f32.mrf.mxu0
      %v6604 = vadd.f32 0.0, %v6603
      %6605 = vmatmul.bf16.gmra.mxu0 %v6140
      %v6606 = vpop.f32.mrf.mxu0
      %v6607 = vadd.f32 0.0, %v6606
      %v6608 = vpop.f32.mrf.mxu0
      %v6609 = vadd.f32 0.0, %v6608
      %6610 = vmatmul.bf16.gmra.mxu0 %v6141
      %v6611 = vpop.f32.mrf.mxu0
      %v6612 = vadd.f32 0.0, %v6611
      %v6613 = vpop.f32.mrf.mxu0
      %v6614 = vadd.f32 0.0, %v6613
      %6615 = vmatmul.bf16.gmra.mxu0 %v6142
      %v6616 = vpop.f32.mrf.mxu0
      %v6617 = vadd.f32 0.0, %v6616
      %v6618 = vpop.f32.mrf.mxu0
      %v6619 = vadd.f32 0.0, %v6618
      %6620 = vdwg.mxu0
      %6621 = vmatpush.bf16.msra.mxu0 %v6512
      %6622 = vmatpush.bf16.msra.mxu0 %v6503
      %6623 = vmatpush.bf16.msra.mxu0 %v6494
      %6624 = vmatpush.bf16.msra.mxu0 %v6485
      %6625 = vmatpush.bf16.msra.mxu0 %v6476
      %6626 = vmatpush.bf16.msra.mxu0 %v6467
      %6627 = vmatpush.bf16.msra.mxu0 %v6458
      %6628 = vmatpush.bf16.msra.mxu0 %v6449
      %6629 = vmatmul.bf16.gmra.mxu0 %v6139
      %v6630 = vpop.f32.mrf.mxu0
      %v6631 = vadd.f32 0.0, %v6630
      %v6632 = vpop.f32.mrf.mxu0
      %v6633 = vadd.f32 0.0, %v6632
      %6634 = vmatmul.bf16.gmra.mxu0 %v6140
      %v6635 = vpop.f32.mrf.mxu0
      %v6636 = vadd.f32 0.0, %v6635
      %v6637 = vpop.f32.mrf.mxu0
      %v6638 = vadd.f32 0.0, %v6637
      %6639 = vmatmul.bf16.gmra.mxu0 %v6141
      %v6640 = vpop.f32.mrf.mxu0
      %v6641 = vadd.f32 0.0, %v6640
      %v6642 = vpop.f32.mrf.mxu0
      %v6643 = vadd.f32 0.0, %v6642
      %6644 = vmatmul.bf16.gmra.mxu0 %v6142
      %v6645 = vpop.f32.mrf.mxu0
      %v6646 = vadd.f32 0.0, %v6645
      %v6647 = vpop.f32.mrf.mxu0
      %v6648 = vadd.f32 0.0, %v6647
      %6649 = vdwg.mxu0
      %6650 = vmatpush.bf16.msra.mxu0 %v6513
      %6651 = vmatpush.bf16.msra.mxu0 %v6504
      %6652 = vmatpush.bf16.msra.mxu0 %v6495
      %6653 = vmatpush.bf16.msra.mxu0 %v6486
      %6654 = vmatpush.bf16.msra.mxu0 %v6477
      %6655 = vmatpush.bf16.msra.mxu0 %v6468
      %6656 = vmatpush.bf16.msra.mxu0 %v6459
      %6657 = vmatpush.bf16.msra.mxu0 %v6450
      %6658 = vmatmul.bf16.gmra.mxu0 %v6139
      %v6659 = vpop.f32.mrf.mxu0
      %v6660 = vadd.f32 0.0, %v6659
      %v6661 = vpop.f32.mrf.mxu0
      %v6662 = vadd.f32 0.0, %v6661
      %6663 = vmatmul.bf16.gmra.mxu0 %v6140
      %v6664 = vpop.f32.mrf.mxu0
      %v6665 = vadd.f32 0.0, %v6664
      %v6666 = vpop.f32.mrf.mxu0
      %v6667 = vadd.f32 0.0, %v6666
      %6668 = vmatmul.bf16.gmra.mxu0 %v6141
      %v6669 = vpop.f32.mrf.mxu0
      %v6670 = vadd.f32 0.0, %v6669
      %v6671 = vpop.f32.mrf.mxu0
      %v6672 = vadd.f32 0.0, %v6671
      %6673 = vmatmul.bf16.gmra.mxu0 %v6142
      %v6674 = vpop.f32.mrf.mxu0
      %v6675 = vadd.f32 0.0, %v6674
      %v6676 = vpop.f32.mrf.mxu0
      %v6677 = vadd.f32 0.0, %v6676
      %6678 = vdwg.mxu0
      %6679 = vmatpush.bf16.msra.mxu0 %v6514
      %6680 = vmatpush.bf16.msra.mxu0 %v6505
      %6681 = vmatpush.bf16.msra.mxu0 %v6496
      %6682 = vmatpush.bf16.msra.mxu0 %v6487
      %6683 = vmatpush.bf16.msra.mxu0 %v6478
      %6684 = vmatpush.bf16.msra.mxu0 %v6469
      %6685 = vmatpush.bf16.msra.mxu0 %v6460
      %6686 = vmatpush.bf16.msra.mxu0 %v6451
      %6687 = vmatmul.bf16.gmra.mxu0 %v6139
      %v6688 = vpop.f32.mrf.mxu0
      %v6689 = vadd.f32 0.0, %v6688
      %v6690 = vpop.f32.mrf.mxu0
      %v6691 = vadd.f32 0.0, %v6690
      %6692 = vmatmul.bf16.gmra.mxu0 %v6140
      %v6693 = vpop.f32.mrf.mxu0
      %v6694 = vadd.f32 0.0, %v6693
      %v6695 = vpop.f32.mrf.mxu0
      %v6696 = vadd.f32 0.0, %v6695
      %6697 = vmatmul.bf16.gmra.mxu0 %v6141
      %v6698 = vpop.f32.mrf.mxu0
      %v6699 = vadd.f32 0.0, %v6698
      %v6700 = vpop.f32.mrf.mxu0
      %v6701 = vadd.f32 0.0, %v6700
      %6702 = vmatmul.bf16.gmra.mxu0 %v6142
      %v6703 = vpop.f32.mrf.mxu0
      %v6704 = vadd.f32 0.0, %v6703
      %v6705 = vpop.f32.mrf.mxu0
      %v6706 = vadd.f32 0.0, %v6705
      %6707 = vdwg.mxu0
      %6708 = vmatpush.bf16.msra.mxu0 %v6515
      %6709 = vmatpush.bf16.msra.mxu0 %v6506
      %6710 = vmatpush.bf16.msra.mxu0 %v6497
      %6711 = vmatpush.bf16.msra.mxu0 %v6488
      %6712 = vmatpush.bf16.msra.mxu0 %v6479
      %6713 = vmatpush.bf16.msra.mxu0 %v6470
      %6714 = vmatpush.bf16.msra.mxu0 %v6461
      %6715 = vmatpush.bf16.msra.mxu0 %v6452
      %6716 = vmatmul.bf16.gmra.mxu0 %v6139
      %v6717 = vpop.f32.mrf.mxu0
      %v6718 = vadd.f32 0.0, %v6717
      %v6719 = vpop.f32.mrf.mxu0
      %v6720 = vadd.f32 0.0, %v6719
      %6721 = vmatmul.bf16.gmra.mxu0 %v6140
      %v6722 = vpop.f32.mrf.mxu0
      %v6723 = vadd.f32 0.0, %v6722
      %v6724 = vpop.f32.mrf.mxu0
      %v6725 = vadd.f32 0.0, %v6724
      %6726 = vmatmul.bf16.gmra.mxu0 %v6141
      %v6727 = vpop.f32.mrf.mxu0
      %v6728 = vadd.f32 0.0, %v6727
      %v6729 = vpop.f32.mrf.mxu0
      %v6730 = vadd.f32 0.0, %v6729
      %6731 = vmatmul.bf16.gmra.mxu0 %v6142
      %v6732 = vpop.f32.mrf.mxu0
      %v6733 = vadd.f32 0.0, %v6732
      %v6734 = vpop.f32.mrf.mxu0
      %v6735 = vadd.f32 0.0, %v6734
      %6736 = vdwg.mxu0
      %6737 = vmatpush.bf16.msra.mxu0 %v6516
      %6738 = vmatpush.bf16.msra.mxu0 %v6507
      %6739 = vmatpush.bf16.msra.mxu0 %v6498
      %6740 = vmatpush.bf16.msra.mxu0 %v6489
      %6741 = vmatpush.bf16.msra.mxu0 %v6480
      %6742 = vmatpush.bf16.msra.mxu0 %v6471
      %6743 = vmatpush.bf16.msra.mxu0 %v6462
      %6744 = vmatpush.bf16.msra.mxu0 %v6453
      %6745 = vmatmul.bf16.gmra.mxu0 %v6139
      %v6746 = vpop.f32.mrf.mxu0
      %v6747 = vadd.f32 0.0, %v6746
      %v6748 = vpop.f32.mrf.mxu0
      %v6749 = vadd.f32 0.0, %v6748
      %6750 = vmatmul.bf16.gmra.mxu0 %v6140
      %v6751 = vpop.f32.mrf.mxu0
      %v6752 = vadd.f32 0.0, %v6751
      %v6753 = vpop.f32.mrf.mxu0
      %v6754 = vadd.f32 0.0, %v6753
      %6755 = vmatmul.bf16.gmra.mxu0 %v6141
      %v6756 = vpop.f32.mrf.mxu0
      %v6757 = vadd.f32 0.0, %v6756
      %v6758 = vpop.f32.mrf.mxu0
      %v6759 = vadd.f32 0.0, %v6758
      %6760 = vmatmul.bf16.gmra.mxu0 %v6142
      %v6761 = vpop.f32.mrf.mxu0
      %v6762 = vadd.f32 0.0, %v6761
      %v6763 = vpop.f32.mrf.mxu0
      %v6764 = vadd.f32 0.0, %v6763
      %6765 = vdwg.mxu0
      %6766 = vmatpush.bf16.msra.mxu0 %v6517
      %6767 = vmatpush.bf16.msra.mxu0 %v6508
      %6768 = vmatpush.bf16.msra.mxu0 %v6499
      %6769 = vmatpush.bf16.msra.mxu0 %v6490
      %6770 = vmatpush.bf16.msra.mxu0 %v6481
      %6771 = vmatpush.bf16.msra.mxu0 %v6472
      %6772 = vmatpush.bf16.msra.mxu0 %v6463
      %6773 = vmatpush.bf16.msra.mxu0 %v6454
      %6774 = vmatmul.bf16.gmra.mxu0 %v6139
      %v6775 = vpop.f32.mrf.mxu0
      %v6776 = vpop.f32.mrf.mxu0
      %v6777 = vadd.f32 0.0, %v6776
      %6778 = vmatmul.bf16.gmra.mxu0 %v6140
      %v6779 = vpop.f32.mrf.mxu0
      %v6780 = vadd.f32 0.0, %v6779
      %v6781 = vpop.f32.mrf.mxu0
      %v6782 = vadd.f32 0.0, %v6781
      %6783 = vmatmul.bf16.gmra.mxu0 %v6141
      %v6784 = vpop.f32.mrf.mxu0
      %v6785 = vadd.f32 0.0, %v6784
      %v6786 = vpop.f32.mrf.mxu0
      %v6787 = vadd.f32 0.0, %v6786
      %6788 = vmatmul.bf16.gmra.mxu0 %v6142
      %v6789 = vpop.f32.mrf.mxu0
      %v6790 = vadd.f32 0.0, %v6789
      %v6791 = vpop.f32.mrf.mxu0
      %v6792 = vadd.f32 0.0, %v6791
      %6793 = vdwg.mxu0
      %6794 = vmatpush.bf16.msra.mxu0 %v6518
      %6795 = vmatpush.bf16.msra.mxu0 %v6509
      %6796 = vmatpush.bf16.msra.mxu0 %v6500
      %6797 = vmatpush.bf16.msra.mxu0 %v6491
      %6798 = vmatpush.bf16.msra.mxu0 %v6482
      %6799 = vmatpush.bf16.msra.mxu0 %v6473
      %6800 = vmatpush.bf16.msra.mxu0 %v6464
      %6801 = vmatpush.bf16.msra.mxu0 %v6455
      %6802 = vmatmul.bf16.gmra.mxu0 %v6139
      %v6803 = vpop.f32.mrf.mxu0
      %v6804 = vpop.f32.mrf.mxu0
      %v6805 = vadd.f32 0.0, %v6804
      %6806 = vmatmul.bf16.gmra.mxu0 %v6140
      %v6807 = vpop.f32.mrf.mxu0
      %v6808 = vadd.f32 0.0, %v6807
      %v6809 = vpop.f32.mrf.mxu0
      %v6810 = vadd.f32 0.0, %v6809
      %6811 = vmatmul.bf16.gmra.mxu0 %v6141
      %v6812 = vpop.f32.mrf.mxu0
      %v6813 = vadd.f32 0.0, %v6812
      %v6814 = vpop.f32.mrf.mxu0
      %v6815 = vadd.f32 0.0, %v6814
      %6816 = vmatmul.bf16.gmra.mxu0 %v6142
      %v6817 = vpop.f32.mrf.mxu0
      %v6818 = vadd.f32 0.0, %v6817
      %v6819 = vpop.f32.mrf.mxu0
      %v6820 = vadd.f32 0.0, %v6819
      %6821 = vdwg.mxu0
      %6822 = vmatpush.bf16.msra.mxu0 %v6519
      %6823 = vmatpush.bf16.msra.mxu0 %v6510
      %6824 = vmatpush.bf16.msra.mxu0 %v6501
      %6825 = vmatpush.bf16.msra.mxu0 %v6492
      %6826 = vmatpush.bf16.msra.mxu0 %v6483
      %6827 = vmatpush.bf16.msra.mxu0 %v6474
      %6828 = vmatpush.bf16.msra.mxu0 %v6465
      %6829 = vmatpush.bf16.msra.mxu0 %v6456
      %6830 = vmatmul.bf16.gmra.mxu0 %v6139
      %v6831 = vpop.f32.mrf.mxu0
      %v6832 = vpop.f32.mrf.mxu0
      %v6833 = vadd.f32 0.0, %v6832
      %6834 = vmatmul.bf16.gmra.mxu0 %v6140
      %v6835 = vpop.f32.mrf.mxu0
      %v6836 = vadd.f32 0.0, %v6835
      %v6837 = vpop.f32.mrf.mxu0
      %v6838 = vadd.f32 0.0, %v6837
      %6839 = vmatmul.bf16.gmra.mxu0 %v6141
      %v6840 = vpop.f32.mrf.mxu0
      %v6841 = vadd.f32 0.0, %v6840
      %v6842 = vpop.f32.mrf.mxu0
      %v6843 = vadd.f32 0.0, %v6842
      %6844 = vmatmul.bf16.gmra.mxu0 %v6142
      %v6845 = vpop.f32.mrf.mxu0
      %v6846 = vadd.f32 0.0, %v6845
      %v6847 = vpop.f32.mrf.mxu0
      %v6848 = vadd.f32 0.0, %v6847
      %6849 = vdwg.mxu0
      %v6850 = vlaneseq
      %v6851 = vshrl.u32 %v6850, 7
      %v6852 = vadd.s32 %v6851, 8
      %v6853 = vadd.s32 %v6851, 16
      %v6854 = vadd.s32 %v6851, 24
      %v6855 = vadd.s32 %v6851, 32
      %v6856 = vadd.s32 %v6851, 40
      %v6857 = vadd.s32 %v6851, 48
      %v6858 = vadd.s32 %v6851, 56
      %vm6859 = vcmp.lt.s32.totalorder %v6851, 0
      %v6860 = vsub.s32 0, %v6851
      %v6861 = vsel %vm6859, %v6860, %v6851
      %v6862 = vshrl.u32 %v6861, 3
      %v6863 = vand.u32 %v6861, 7
      %v6864 = vsub.s32 0, %v6863
      %v6865 = vsel %vm6859, %v6864, %v6863
      %vm6866 = vcmp.lt.s32.totalorder %v6852, 0
      %v6867 = vsub.s32 0, %v6852
      %v6868 = vsel %vm6866, %v6867, %v6852
      %v6869 = vshrl.u32 %v6868, 3
      %v6870 = vand.u32 %v6868, 7
      %v6871 = vsub.s32 0, %v6870
      %v6872 = vsel %vm6866, %v6871, %v6870
      %vm6873 = vcmp.lt.s32.totalorder %v6853, 0
      %v6874 = vsub.s32 0, %v6853
      %v6875 = vsel %vm6873, %v6874, %v6853
      %v6876 = vshrl.u32 %v6875, 3
      %v6877 = vand.u32 %v6875, 7
      %v6878 = vsub.s32 0, %v6877
      %v6879 = vsel %vm6873, %v6878, %v6877
      %vm6880 = vcmp.lt.s32.totalorder %v6854, 0
      %v6881 = vsub.s32 0, %v6854
      %v6882 = vsel %vm6880, %v6881, %v6854
      %v6883 = vshrl.u32 %v6882, 3
      %v6884 = vand.u32 %v6882, 7
      %v6885 = vsub.s32 0, %v6884
      %v6886 = vsel %vm6880, %v6885, %v6884
      %vm6887 = vcmp.lt.s32.totalorder %v6855, 0
      %v6888 = vsub.s32 0, %v6855
      %v6889 = vsel %vm6887, %v6888, %v6855
      %v6890 = vshrl.u32 %v6889, 3
      %v6891 = vand.u32 %v6889, 7
      %v6892 = vsub.s32 0, %v6891
      %v6893 = vsel %vm6887, %v6892, %v6891
      %vm6894 = vcmp.lt.s32.totalorder %v6856, 0
      %v6895 = vsub.s32 0, %v6856
      %v6896 = vsel %vm6894, %v6895, %v6856
      %v6897 = vshrl.u32 %v6896, 3
      %v6898 = vand.u32 %v6896, 7
      %v6899 = vsub.s32 0, %v6898
      %v6900 = vsel %vm6894, %v6899, %v6898
      %vm6901 = vcmp.lt.s32.totalorder %v6857, 0
      %v6902 = vsub.s32 0, %v6857
      %v6903 = vsel %vm6901, %v6902, %v6857
      %v6904 = vshrl.u32 %v6903, 3
      %v6905 = vand.u32 %v6903, 7
      %v6906 = vsub.s32 0, %v6905
      %v6907 = vsel %vm6901, %v6906, %v6905
      %vm6908 = vcmp.lt.s32.totalorder %v6858, 0
      %v6909 = vsub.s32 0, %v6858
      %v6910 = vsel %vm6908, %v6909, %v6858
      %v6911 = vshrl.u32 %v6910, 3
      %v6912 = vand.u32 %v6910, 7
      %v6913 = vsub.s32 0, %v6912
      %v6914 = vsel %vm6908, %v6913, %v6912
      %vm6915 = vcmp.ne.s32.totalorder %v6865, 0
      %vm6916 = vcmp.ne.s32.totalorder %v6872, 0
      %vm6917 = vcmp.ne.s32.totalorder %v6879, 0
      %vm6918 = vcmp.ne.s32.totalorder %v6886, 0
      %vm6919 = vcmp.ne.s32.totalorder %v6893, 0
      %vm6920 = vcmp.ne.s32.totalorder %v6900, 0
      %vm6921 = vcmp.ne.s32.totalorder %v6907, 0
      %vm6922 = vcmp.ne.s32.totalorder %v6914, 0
      %vm6923 = vcmp.lt.s32.totalorder %v6865, 0
      %vm6924 = vcmp.lt.s32.totalorder %v6872, 0
      %vm6925 = vcmp.lt.s32.totalorder %v6879, 0
      %vm6926 = vcmp.lt.s32.totalorder %v6886, 0
      %vm6927 = vcmp.lt.s32.totalorder %v6893, 0
      %vm6928 = vcmp.lt.s32.totalorder %v6900, 0
      %vm6929 = vcmp.lt.s32.totalorder %v6907, 0
      %vm6930 = vcmp.lt.s32.totalorder %v6914, 0
      %vm6931 = vmand %vm6923, %vm6915
      %vm6932 = vmand %vm6924, %vm6916
      %vm6933 = vmand %vm6925, %vm6917
      %vm6934 = vmand %vm6926, %vm6918
      %vm6935 = vmand %vm6927, %vm6919
      %vm6936 = vmand %vm6928, %vm6920
      %vm6937 = vmand %vm6929, %vm6921
      %vm6938 = vmand %vm6930, %vm6922
      %v6939 = vadd.s32 %v6865, 8
      %v6940 = vadd.s32 %v6872, 8
      %v6941 = vadd.s32 %v6879, 8
      %v6942 = vadd.s32 %v6886, 8
      %v6943 = vadd.s32 %v6893, 8
      %v6944 = vadd.s32 %v6900, 8
      %v6945 = vadd.s32 %v6907, 8
      %v6946 = vadd.s32 %v6914, 8
      %v6947 = vsel %vm6931, %v6939, %v6865
      %v6948 = vsel %vm6932, %v6940, %v6872
      %v6949 = vsel %vm6933, %v6941, %v6879
      %v6950 = vsel %vm6934, %v6942, %v6886
      %v6951 = vsel %vm6935, %v6943, %v6893
      %v6952 = vsel %vm6936, %v6944, %v6900
      %v6953 = vsel %vm6937, %v6945, %v6907
      %v6954 = vsel %vm6938, %v6946, %v6914
      %vm6955 = vcmp.eq.s32.totalorder %v6947, 7
      %vm6956 = vcmp.eq.s32.totalorder %v6948, 7
      %vm6957 = vcmp.eq.s32.totalorder %v6949, 7
      %vm6958 = vcmp.eq.s32.totalorder %v6950, 7
      %vm6959 = vcmp.eq.s32.totalorder %v6951, 7
      %vm6960 = vcmp.eq.s32.totalorder %v6952, 7
      %vm6961 = vcmp.eq.s32.totalorder %v6953, 7
      %vm6962 = vcmp.eq.s32.totalorder %v6954, 7
      %vm6971 = vcmask 1046528
      %v6972 = vrot.slane %v6747, 1
      %v6973 = vrot.slane %v6749, 1
      %v6974 = vsel %vm6971, %v6972, %v6973
      %v6975 = vrot.slane %v6752, 1
      %v6976 = vsel %vm6971, %v6973, %v6975
      %v6977 = vrot.slane %v6754, 1
      %v6978 = vsel %vm6971, %v6975, %v6977
      %v6979 = vrot.slane %v6757, 1
      %v6980 = vsel %vm6971, %v6977, %v6979
      %v6981 = vrot.slane %v6759, 1
      %v6982 = vsel %vm6971, %v6979, %v6981
      %v6983 = vrot.slane %v6762, 1
      %v6984 = vsel %vm6971, %v6981, %v6983
      %v6985 = vrot.slane %v6764, 1
      %v6986 = vsel %vm6971, %v6983, %v6985
      %v6995 = vsel %vm6971, %v6985, 0.0
      %v6996 = vsel %vm6955, 0.0, %v6974
      %v6997 = vsel %vm6956, 0.0, %v6976
      %v6998 = vsel %vm6957, 0.0, %v6978
      %v6999 = vsel %vm6958, 0.0, %v6980
      %v7000 = vsel %vm6959, 0.0, %v6982
      %v7001 = vsel %vm6960, 0.0, %v6984
      %v7002 = vsel %vm6961, 0.0, %v6986
      %v7003 = vsel %vm6962, 0.0, %v6995
      %v7004 = vadd.f32 %v6689, %v6996
      %v7005 = vadd.f32 %v6691, %v6997
      %v7006 = vadd.f32 %v6694, %v6998
      %v7007 = vadd.f32 %v6696, %v6999
      %v7008 = vadd.f32 %v6699, %v7000
      %v7009 = vadd.f32 %v6701, %v7001
      %v7010 = vadd.f32 %v6704, %v7002
      %v7011 = vadd.f32 %v6706, %v7003
      %v7012 = vadd.f32 %v6631, %v6805
      %v7013 = vadd.f32 %v6633, %v6808
      %v7014 = vadd.f32 %v6636, %v6810
      %v7015 = vadd.f32 %v6638, %v6813
      %v7016 = vadd.f32 %v6641, %v6815
      %v7017 = vadd.f32 %v6643, %v6818
      %v7018 = vadd.f32 %v6646, %v6820
      %v7019 = vadd.f32 %v6648, 0.0
      %v7028 = vrot.slane %v6660, 1
      %v7029 = vrot.slane %v6662, 1
      %v7030 = vsel %vm6971, %v7028, %v7029
      %v7031 = vrot.slane %v6665, 1
      %v7032 = vsel %vm6971, %v7029, %v7031
      %v7033 = vrot.slane %v6667, 1
      %v7034 = vsel %vm6971, %v7031, %v7033
      %v7035 = vrot.slane %v6670, 1
      %v7036 = vsel %vm6971, %v7033, %v7035
      %v7037 = vrot.slane %v6672, 1
      %v7038 = vsel %vm6971, %v7035, %v7037
      %v7039 = vrot.slane %v6675, 1
      %v7040 = vsel %vm6971, %v7037, %v7039
      %v7041 = vrot.slane %v6677, 1
      %v7042 = vsel %vm6971, %v7039, %v7041
      %v7051 = vsel %vm6971, %v7041, 0.0
      %v7052 = vsel %vm6955, 0.0, %v7030
      %v7053 = vsel %vm6956, 0.0, %v7032
      %v7054 = vsel %vm6957, 0.0, %v7034
      %v7055 = vsel %vm6958, 0.0, %v7036
      %v7056 = vsel %vm6959, 0.0, %v7038
      %v7057 = vsel %vm6960, 0.0, %v7040
      %v7058 = vsel %vm6961, 0.0, %v7042
      %v7059 = vsel %vm6962, 0.0, %v7051
      %v7060 = vadd.f32 %v6602, %v7052
      %v7061 = vadd.f32 %v6604, %v7053
      %v7062 = vadd.f32 %v6607, %v7054
      %v7063 = vadd.f32 %v6609, %v7055
      %v7064 = vadd.f32 %v6612, %v7056
      %v7065 = vadd.f32 %v6614, %v7057
      %v7066 = vadd.f32 %v6617, %v7058
      %v7067 = vadd.f32 %v6619, %v7059
      %v7068 = vadd.f32 %v7060, %v6777
      %v7069 = vadd.f32 %v7061, %v6780
      %v7070 = vadd.f32 %v7062, %v6782
      %v7071 = vadd.f32 %v7063, %v6785
      %v7072 = vadd.f32 %v7064, %v6787
      %v7073 = vadd.f32 %v7065, %v6790
      %v7074 = vadd.f32 %v7066, %v6792
      %v7075 = vadd.f32 %v7067, 0.0
      %v7083 = vrot.slane %v6833, 1
      %v7084 = vrot.slane %v6836, 1
      %v7085 = vsel %vm6971, %v7083, %v7084
      %v7086 = vrot.slane %v6838, 1
      %v7087 = vsel %vm6971, %v7084, %v7086
      %v7088 = vrot.slane %v6841, 1
      %v7089 = vsel %vm6971, %v7086, %v7088
      %v7090 = vrot.slane %v6843, 1
      %v7091 = vsel %vm6971, %v7088, %v7090
      %v7092 = vrot.slane %v6846, 1
      %v7093 = vsel %vm6971, %v7090, %v7092
      %v7094 = vrot.slane %v6848, 1
      %v7095 = vsel %vm6971, %v7092, %v7094
      %v7103 = vsel %vm6971, %v7094, 0.0
      %v7104 = vsel %vm6956, 0.0, %v7085
      %v7105 = vsel %vm6957, 0.0, %v7087
      %v7106 = vsel %vm6958, 0.0, %v7089
      %v7107 = vsel %vm6959, 0.0, %v7091
      %v7108 = vsel %vm6960, 0.0, %v7093
      %v7109 = vsel %vm6961, 0.0, %v7095
      %v7110 = vsel %vm6962, 0.0, %v7103
      %v7111 = vadd.f32 %v7068, %v7104
      %v7112 = vadd.f32 %v7069, %v7105
      %v7113 = vadd.f32 %v7070, %v7106
      %v7114 = vadd.f32 %v7071, %v7107
      %v7115 = vadd.f32 %v7072, %v7108
      %v7116 = vadd.f32 %v7073, %v7109
      %v7117 = vadd.f32 %v7074, %v7110
      %v7118 = vadd.f32 %v7075, 0.0
      %v7119 = vperm.slane %v391, 7
      %v7120 = vadd.f32 %v6718, %v7119
      %v7121 = vadd.f32 %v6720, %v7119
      %v7122 = vadd.f32 %v6723, %v7119
      %v7123 = vadd.f32 %v6725, %v7119
      %v7124 = vadd.f32 %v6728, %v7119
      %v7125 = vadd.f32 %v6730, %v7119
      %v7126 = vadd.f32 %v6733, %v7119
      %v7127 = vadd.f32 %v6735, %v7119
      %v7128 = vsub.f32 0.0, %v7120
      %v7129 = vsub.f32 0.0, %v7121
      %v7130 = vsub.f32 0.0, %v7122
      %v7131 = vsub.f32 0.0, %v7123
      %v7132 = vsub.f32 0.0, %v7124
      %v7133 = vsub.f32 0.0, %v7125
      %v7134 = vsub.f32 0.0, %v7126
      %v7135 = vsub.f32 0.0, %v7127
      %v7136 = vmul.f32 %v7128, 1.442695
      %v7137 = vpow.pop %v7136
      %v7138 = vmul.f32 %v7129, 1.442695
      %v7139 = vpow.pop %v7138
      %v7140 = vmul.f32 %v7130, 1.442695
      %v7141 = vpow.pop %v7140
      %v7142 = vmul.f32 %v7131, 1.442695
      %v7143 = vpow.pop %v7142
      %v7144 = vmul.f32 %v7132, 1.442695
      %v7145 = vpow.pop %v7144
      %v7146 = vmul.f32 %v7133, 1.442695
      %v7147 = vpow.pop %v7146
      %v7148 = vmul.f32 %v7134, 1.442695
      %v7149 = vpow.pop %v7148
      %v7150 = vmul.f32 %v7135, 1.442695
      %v7151 = vpow.pop %v7150
      %v7152 = vadd.f32 %v7137, 1.0
      %v7153 = vadd.f32 %v7139, 1.0
      %v7154 = vadd.f32 %v7141, 1.0
      %v7155 = vadd.f32 %v7143, 1.0
      %v7156 = vadd.f32 %v7145, 1.0
      %v7157 = vadd.f32 %v7147, 1.0
      %v7158 = vadd.f32 %v7149, 1.0
      %v7159 = vadd.f32 %v7151, 1.0
      %v7160 = vrcp.pop %v7152
      %v7161 = vmul.f32 %v7152, %v7160
      %v7162 = vsub.f32 1.0, %v7161
      %v7163 = vmul.f32 %v7160, %v7162
      %v7164 = vadd.f32 %v7160, %v7163
      %vm7165 = vweird.f32 %v7152
      %vm7166 = vweird.f32 %v7160
      %vm7167 = vmor %vm7165, %vm7166
      %v7168 = vsel %vm7167, %v7160, %v7164
      %v7169 = vand.u32 2147483647, %v7152
      %vm7170 = vcmp.eq.f32.partialorder %v7169, 8.507059e+37
      %v7171 = vand.u32 %v7152, 2147483648
      %v7172 = vor.u32 1.1754944e-38, %v7171
      %v7173 = vsel %vm7170, %v7172, %v7168
      %v7174 = vrcp.pop %v7153
      %v7175 = vmul.f32 %v7153, %v7174
      %v7176 = vsub.f32 1.0, %v7175
      %v7177 = vmul.f32 %v7174, %v7176
      %v7178 = vadd.f32 %v7174, %v7177
      %vm7179 = vweird.f32 %v7153
      %vm7180 = vweird.f32 %v7174
      %vm7181 = vmor %vm7179, %vm7180
      %v7182 = vsel %vm7181, %v7174, %v7178
      %v7183 = vand.u32 2147483647, %v7153
      %vm7184 = vcmp.eq.f32.partialorder %v7183, 8.507059e+37
      %v7185 = vand.u32 %v7153, 2147483648
      %v7186 = vor.u32 1.1754944e-38, %v7185
      %v7187 = vsel %vm7184, %v7186, %v7182
      %v7188 = vrcp.pop %v7154
      %v7189 = vmul.f32 %v7154, %v7188
      %v7190 = vsub.f32 1.0, %v7189
      %v7191 = vmul.f32 %v7188, %v7190
      %v7192 = vadd.f32 %v7188, %v7191
      %vm7193 = vweird.f32 %v7154
      %vm7194 = vweird.f32 %v7188
      %vm7195 = vmor %vm7193, %vm7194
      %v7196 = vsel %vm7195, %v7188, %v7192
      %v7197 = vand.u32 2147483647, %v7154
      %vm7198 = vcmp.eq.f32.partialorder %v7197, 8.507059e+37
      %v7199 = vand.u32 %v7154, 2147483648
      %v7200 = vor.u32 1.1754944e-38, %v7199
      %v7201 = vsel %vm7198, %v7200, %v7196
      %v7202 = vrcp.pop %v7155
      %v7203 = vmul.f32 %v7155, %v7202
      %v7204 = vsub.f32 1.0, %v7203
      %v7205 = vmul.f32 %v7202, %v7204
      %v7206 = vadd.f32 %v7202, %v7205
      %vm7207 = vweird.f32 %v7155
      %vm7208 = vweird.f32 %v7202
      %vm7209 = vmor %vm7207, %vm7208
      %v7210 = vsel %vm7209, %v7202, %v7206
      %v7211 = vand.u32 2147483647, %v7155
      %vm7212 = vcmp.eq.f32.partialorder %v7211, 8.507059e+37
      %v7213 = vand.u32 %v7155, 2147483648
      %v7214 = vor.u32 1.1754944e-38, %v7213
      %v7215 = vsel %vm7212, %v7214, %v7210
      %v7216 = vrcp.pop %v7156
      %v7217 = vmul.f32 %v7156, %v7216
      %v7218 = vsub.f32 1.0, %v7217
      %v7219 = vmul.f32 %v7216, %v7218
      %v7220 = vadd.f32 %v7216, %v7219
      %vm7221 = vweird.f32 %v7156
      %vm7222 = vweird.f32 %v7216
      %vm7223 = vmor %vm7221, %vm7222
      %v7224 = vsel %vm7223, %v7216, %v7220
      %v7225 = vand.u32 2147483647, %v7156
      %vm7226 = vcmp.eq.f32.partialorder %v7225, 8.507059e+37
      %v7227 = vand.u32 %v7156, 2147483648
      %v7228 = vor.u32 1.1754944e-38, %v7227
      %v7229 = vsel %vm7226, %v7228, %v7224
      %v7230 = vrcp.pop %v7157
      %v7231 = vmul.f32 %v7157, %v7230
      %v7232 = vsub.f32 1.0, %v7231
      %v7233 = vmul.f32 %v7230, %v7232
      %v7234 = vadd.f32 %v7230, %v7233
      %vm7235 = vweird.f32 %v7157
      %vm7236 = vweird.f32 %v7230
      %vm7237 = vmor %vm7235, %vm7236
      %v7238 = vsel %vm7237, %v7230, %v7234
      %v7239 = vand.u32 2147483647, %v7157
      %vm7240 = vcmp.eq.f32.partialorder %v7239, 8.507059e+37
      %v7241 = vand.u32 %v7157, 2147483648
      %v7242 = vor.u32 1.1754944e-38, %v7241
      %v7243 = vsel %vm7240, %v7242, %v7238
      %v7244 = vrcp.pop %v7158
      %v7245 = vmul.f32 %v7158, %v7244
      %v7246 = vsub.f32 1.0, %v7245
      %v7247 = vmul.f32 %v7244, %v7246
      %v7248 = vadd.f32 %v7244, %v7247
      %vm7249 = vweird.f32 %v7158
      %vm7250 = vweird.f32 %v7244
      %vm7251 = vmor %vm7249, %vm7250
      %v7252 = vsel %vm7251, %v7244, %v7248
      %v7253 = vand.u32 2147483647, %v7158
      %vm7254 = vcmp.eq.f32.partialorder %v7253, 8.507059e+37
      %v7255 = vand.u32 %v7158, 2147483648
      %v7256 = vor.u32 1.1754944e-38, %v7255
      %v7257 = vsel %vm7254, %v7256, %v7252
      %v7258 = vrcp.pop %v7159
      %v7259 = vmul.f32 %v7159, %v7258
      %v7260 = vsub.f32 1.0, %v7259
      %v7261 = vmul.f32 %v7258, %v7260
      %v7262 = vadd.f32 %v7258, %v7261
      %vm7263 = vweird.f32 %v7159
      %vm7264 = vweird.f32 %v7258
      %vm7265 = vmor %vm7263, %vm7264
      %v7266 = vsel %vm7265, %v7258, %v7262
      %v7267 = vand.u32 2147483647, %v7159
      %vm7268 = vcmp.eq.f32.partialorder %v7267, 8.507059e+37
      %v7269 = vand.u32 %v7159, 2147483648
      %v7270 = vor.u32 1.1754944e-38, %v7269
      %v7271 = vsel %vm7268, %v7270, %v7266
      %v7272 = vpack.c.bf16 %v7173, %v7173
      %v7273 = vpack.c.bf16 %v7187, %v7187
      %v7274 = vpack.c.bf16 %v7201, %v7201
      %v7275 = vpack.c.bf16 %v7215, %v7215
      %v7276 = vpack.c.bf16 %v7229, %v7229
      %v7277 = vpack.c.bf16 %v7243, %v7243
      %v7278 = vpack.c.bf16 %v7257, %v7257
      %v7279 = vpack.c.bf16 %v7271, %v7271
      %vm7280 = vcmask 60416
      %7281 = vst.msk [vmem:[%s388] sm:$0xf] %vm7280, %v7272
      %7282 = vst.msk [vmem:[%s388 + $0x4] sm:$0xf] %vm7280, %v7273
      %7283 = vst.msk [vmem:[%s388 + $0x8] sm:$0xf] %vm7280, %v7274
      %7284 = vst.msk [vmem:[%s388 + $0xc] sm:$0xf] %vm7280, %v7275
      %7285 = vst.msk [vmem:[%s388 + $0x10] sm:$0xf] %vm7280, %v7276
      %7286 = vst.msk [vmem:[%s388 + $0x14] sm:$0xf] %vm7280, %v7277
      %7287 = vst.msk [vmem:[%s388 + $0x18] sm:$0xf] %vm7280, %v7278
      %7288 = vst.msk [vmem:[%s388 + $0x1c] sm:$0xf] %vm7280, %v7279
      %v7289 = vadd.f32 %v7004, %v7119
      %v7290 = vadd.f32 %v7005, %v7119
      %v7291 = vadd.f32 %v7006, %v7119
      %v7292 = vadd.f32 %v7007, %v7119
      %v7293 = vadd.f32 %v7008, %v7119
      %v7294 = vadd.f32 %v7009, %v7119
      %v7295 = vadd.f32 %v7010, %v7119
      %v7296 = vadd.f32 %v7011, %v7119
      %v7297 = vsub.f32 0.0, %v7289
      %v7298 = vsub.f32 0.0, %v7290
      %v7299 = vsub.f32 0.0, %v7291
      %v7300 = vsub.f32 0.0, %v7292
      %v7301 = vsub.f32 0.0, %v7293
      %v7302 = vsub.f32 0.0, %v7294
      %v7303 = vsub.f32 0.0, %v7295
      %v7304 = vsub.f32 0.0, %v7296
      %v7305 = vmul.f32 %v7297, 1.442695
      %v7306 = vpow.pop %v7305
      %v7307 = vmul.f32 %v7298, 1.442695
      %v7308 = vpow.pop %v7307
      %v7309 = vmul.f32 %v7299, 1.442695
      %v7310 = vpow.pop %v7309
      %v7311 = vmul.f32 %v7300, 1.442695
      %v7312 = vpow.pop %v7311
      %v7313 = vmul.f32 %v7301, 1.442695
      %v7314 = vpow.pop %v7313
      %v7315 = vmul.f32 %v7302, 1.442695
      %v7316 = vpow.pop %v7315
      %v7317 = vmul.f32 %v7303, 1.442695
      %v7318 = vpow.pop %v7317
      %v7319 = vmul.f32 %v7304, 1.442695
      %v7320 = vpow.pop %v7319
      %v7321 = vadd.f32 %v7306, 1.0
      %v7322 = vadd.f32 %v7308, 1.0
      %v7323 = vadd.f32 %v7310, 1.0
      %v7324 = vadd.f32 %v7312, 1.0
      %v7325 = vadd.f32 %v7314, 1.0
      %v7326 = vadd.f32 %v7316, 1.0
      %v7327 = vadd.f32 %v7318, 1.0
      %v7328 = vadd.f32 %v7320, 1.0
      %v7329 = vrcp.pop %v7321
      %v7330 = vmul.f32 %v7321, %v7329
      %v7331 = vsub.f32 1.0, %v7330
      %v7332 = vmul.f32 %v7329, %v7331
      %v7333 = vadd.f32 %v7329, %v7332
      %vm7334 = vweird.f32 %v7321
      %vm7335 = vweird.f32 %v7329
      %vm7336 = vmor %vm7334, %vm7335
      %v7337 = vsel %vm7336, %v7329, %v7333
      %v7338 = vand.u32 2147483647, %v7321
      %vm7339 = vcmp.eq.f32.partialorder %v7338, 8.507059e+37
      %v7340 = vand.u32 %v7321, 2147483648
      %v7341 = vor.u32 1.1754944e-38, %v7340
      %v7342 = vsel %vm7339, %v7341, %v7337
      %v7343 = vrcp.pop %v7322
      %v7344 = vmul.f32 %v7322, %v7343
      %v7345 = vsub.f32 1.0, %v7344
      %v7346 = vmul.f32 %v7343, %v7345
      %v7347 = vadd.f32 %v7343, %v7346
      %vm7348 = vweird.f32 %v7322
      %vm7349 = vweird.f32 %v7343
      %vm7350 = vmor %vm7348, %vm7349
      %v7351 = vsel %vm7350, %v7343, %v7347
      %v7352 = vand.u32 2147483647, %v7322
      %vm7353 = vcmp.eq.f32.partialorder %v7352, 8.507059e+37
      %v7354 = vand.u32 %v7322, 2147483648
      %v7355 = vor.u32 1.1754944e-38, %v7354
      %v7356 = vsel %vm7353, %v7355, %v7351
      %v7357 = vrcp.pop %v7323
      %v7358 = vmul.f32 %v7323, %v7357
      %v7359 = vsub.f32 1.0, %v7358
      %v7360 = vmul.f32 %v7357, %v7359
      %v7361 = vadd.f32 %v7357, %v7360
      %vm7362 = vweird.f32 %v7323
      %vm7363 = vweird.f32 %v7357
      %vm7364 = vmor %vm7362, %vm7363
      %v7365 = vsel %vm7364, %v7357, %v7361
      %v7366 = vand.u32 2147483647, %v7323
      %vm7367 = vcmp.eq.f32.partialorder %v7366, 8.507059e+37
      %v7368 = vand.u32 %v7323, 2147483648
      %v7369 = vor.u32 1.1754944e-38, %v7368
      %v7370 = vsel %vm7367, %v7369, %v7365
      %v7371 = vrcp.pop %v7324
      %v7372 = vmul.f32 %v7324, %v7371
      %v7373 = vsub.f32 1.0, %v7372
      %v7374 = vmul.f32 %v7371, %v7373
      %v7375 = vadd.f32 %v7371, %v7374
      %vm7376 = vweird.f32 %v7324
      %vm7377 = vweird.f32 %v7371
      %vm7378 = vmor %vm7376, %vm7377
      %v7379 = vsel %vm7378, %v7371, %v7375
      %v7380 = vand.u32 2147483647, %v7324
      %vm7381 = vcmp.eq.f32.partialorder %v7380, 8.507059e+37
      %v7382 = vand.u32 %v7324, 2147483648
      %v7383 = vor.u32 1.1754944e-38, %v7382
      %v7384 = vsel %vm7381, %v7383, %v7379
      %v7385 = vrcp.pop %v7325
      %v7386 = vmul.f32 %v7325, %v7385
      %v7387 = vsub.f32 1.0, %v7386
      %v7388 = vmul.f32 %v7385, %v7387
      %v7389 = vadd.f32 %v7385, %v7388
      %vm7390 = vweird.f32 %v7325
      %vm7391 = vweird.f32 %v7385
      %vm7392 = vmor %vm7390, %vm7391
      %v7393 = vsel %vm7392, %v7385, %v7389
      %v7394 = vand.u32 2147483647, %v7325
      %vm7395 = vcmp.eq.f32.partialorder %v7394, 8.507059e+37
      %v7396 = vand.u32 %v7325, 2147483648
      %v7397 = vor.u32 1.1754944e-38, %v7396
      %v7398 = vsel %vm7395, %v7397, %v7393
      %v7399 = vrcp.pop %v7326
      %v7400 = vmul.f32 %v7326, %v7399
      %v7401 = vsub.f32 1.0, %v7400
      %v7402 = vmul.f32 %v7399, %v7401
      %v7403 = vadd.f32 %v7399, %v7402
      %vm7404 = vweird.f32 %v7326
      %vm7405 = vweird.f32 %v7399
      %vm7406 = vmor %vm7404, %vm7405
      %v7407 = vsel %vm7406, %v7399, %v7403
      %v7408 = vand.u32 2147483647, %v7326
      %vm7409 = vcmp.eq.f32.partialorder %v7408, 8.507059e+37
      %v7410 = vand.u32 %v7326, 2147483648
      %v7411 = vor.u32 1.1754944e-38, %v7410
      %v7412 = vsel %vm7409, %v7411, %v7407
      %v7413 = vrcp.pop %v7327
      %v7414 = vmul.f32 %v7327, %v7413
      %v7415 = vsub.f32 1.0, %v7414
      %v7416 = vmul.f32 %v7413, %v7415
      %v7417 = vadd.f32 %v7413, %v7416
      %vm7418 = vweird.f32 %v7327
      %vm7419 = vweird.f32 %v7413
      %vm7420 = vmor %vm7418, %vm7419
      %v7421 = vsel %vm7420, %v7413, %v7417
      %v7422 = vand.u32 2147483647, %v7327
      %vm7423 = vcmp.eq.f32.partialorder %v7422, 8.507059e+37
      %v7424 = vand.u32 %v7327, 2147483648
      %v7425 = vor.u32 1.1754944e-38, %v7424
      %v7426 = vsel %vm7423, %v7425, %v7421
      %v7427 = vrcp.pop %v7328
      %v7428 = vmul.f32 %v7328, %v7427
      %v7429 = vsub.f32 1.0, %v7428
      %v7430 = vmul.f32 %v7427, %v7429
      %v7431 = vadd.f32 %v7427, %v7430
      %vm7432 = vweird.f32 %v7328
      %vm7433 = vweird.f32 %v7427
      %vm7434 = vmor %vm7432, %vm7433
      %v7435 = vsel %vm7434, %v7427, %v7431
      %v7436 = vand.u32 2147483647, %v7328
      %vm7437 = vcmp.eq.f32.partialorder %v7436, 8.507059e+37
      %v7438 = vand.u32 %v7328, 2147483648
      %v7439 = vor.u32 1.1754944e-38, %v7438
      %v7440 = vsel %vm7437, %v7439, %v7435
      %v7441 = vpack.c.bf16 %v7342, %v7342
      %v7442 = vpack.c.bf16 %v7356, %v7356
      %v7443 = vpack.c.bf16 %v7370, %v7370
      %v7444 = vpack.c.bf16 %v7384, %v7384
      %v7445 = vpack.c.bf16 %v7398, %v7398
      %v7446 = vpack.c.bf16 %v7412, %v7412
      %v7447 = vpack.c.bf16 %v7426, %v7426
      %v7448 = vpack.c.bf16 %v7440, %v7440
      %7449 = vst.msk [vmem:[%s388 + $0x20] sm:$0xf] %vm7280, %v7441
      %7450 = vst.msk [vmem:[%s388 + $0x24] sm:$0xf] %vm7280, %v7442
      %7451 = vst.msk [vmem:[%s388 + $0x28] sm:$0xf] %vm7280, %v7443
      %7452 = vst.msk [vmem:[%s388 + $0x2c] sm:$0xf] %vm7280, %v7444
      %7453 = vst.msk [vmem:[%s388 + $0x30] sm:$0xf] %vm7280, %v7445
      %7454 = vst.msk [vmem:[%s388 + $0x34] sm:$0xf] %vm7280, %v7446
      %7455 = vst.msk [vmem:[%s388 + $0x38] sm:$0xf] %vm7280, %v7447
      %7456 = vst.msk [vmem:[%s388 + $0x3c] sm:$0xf] %vm7280, %v7448
      %v7457 = vadd.f32 %v7012, %v7119
      %v7458 = vadd.f32 %v7013, %v7119
      %v7459 = vadd.f32 %v7014, %v7119
      %v7460 = vadd.f32 %v7015, %v7119
      %v7461 = vadd.f32 %v7016, %v7119
      %v7462 = vadd.f32 %v7017, %v7119
      %v7463 = vadd.f32 %v7018, %v7119
      %v7464 = vadd.f32 %v7019, %v7119
      %v7465 = vsub.f32 0.0, %v7457
      %v7466 = vsub.f32 0.0, %v7458
      %v7467 = vsub.f32 0.0, %v7459
      %v7468 = vsub.f32 0.0, %v7460
      %v7469 = vsub.f32 0.0, %v7461
      %v7470 = vsub.f32 0.0, %v7462
      %v7471 = vsub.f32 0.0, %v7463
      %v7472 = vsub.f32 0.0, %v7464
      %v7473 = vmul.f32 %v7465, 1.442695
      %v7474 = vpow.pop %v7473
      %v7475 = vmul.f32 %v7466, 1.442695
      %v7476 = vpow.pop %v7475
      %v7477 = vmul.f32 %v7467, 1.442695
      %v7478 = vpow.pop %v7477
      %v7479 = vmul.f32 %v7468, 1.442695
      %v7480 = vpow.pop %v7479
      %v7481 = vmul.f32 %v7469, 1.442695
      %v7482 = vpow.pop %v7481
      %v7483 = vmul.f32 %v7470, 1.442695
      %v7484 = vpow.pop %v7483
      %v7485 = vmul.f32 %v7471, 1.442695
      %v7486 = vpow.pop %v7485
      %v7487 = vmul.f32 %v7472, 1.442695
      %v7488 = vpow.pop %v7487
      %v7489 = vadd.f32 %v7474, 1.0
      %v7490 = vadd.f32 %v7476, 1.0
      %v7491 = vadd.f32 %v7478, 1.0
      %v7492 = vadd.f32 %v7480, 1.0
      %v7493 = vadd.f32 %v7482, 1.0
      %v7494 = vadd.f32 %v7484, 1.0
      %v7495 = vadd.f32 %v7486, 1.0
      %v7496 = vadd.f32 %v7488, 1.0
      %v7497 = vrcp.pop %v7489
      %v7498 = vmul.f32 %v7489, %v7497
      %v7499 = vsub.f32 1.0, %v7498
      %v7500 = vmul.f32 %v7497, %v7499
      %v7501 = vadd.f32 %v7497, %v7500
      %vm7502 = vweird.f32 %v7489
      %vm7503 = vweird.f32 %v7497
      %vm7504 = vmor %vm7502, %vm7503
      %v7505 = vsel %vm7504, %v7497, %v7501
      %v7506 = vand.u32 2147483647, %v7489
      %vm7507 = vcmp.eq.f32.partialorder %v7506, 8.507059e+37
      %v7508 = vand.u32 %v7489, 2147483648
      %v7509 = vor.u32 1.1754944e-38, %v7508
      %v7510 = vsel %vm7507, %v7509, %v7505
      %v7511 = vrcp.pop %v7490
      %v7512 = vmul.f32 %v7490, %v7511
      %v7513 = vsub.f32 1.0, %v7512
      %v7514 = vmul.f32 %v7511, %v7513
      %v7515 = vadd.f32 %v7511, %v7514
      %vm7516 = vweird.f32 %v7490
      %vm7517 = vweird.f32 %v7511
      %vm7518 = vmor %vm7516, %vm7517
      %v7519 = vsel %vm7518, %v7511, %v7515
      %v7520 = vand.u32 2147483647, %v7490
      %vm7521 = vcmp.eq.f32.partialorder %v7520, 8.507059e+37
      %v7522 = vand.u32 %v7490, 2147483648
      %v7523 = vor.u32 1.1754944e-38, %v7522
      %v7524 = vsel %vm7521, %v7523, %v7519
      %v7525 = vrcp.pop %v7491
      %v7526 = vmul.f32 %v7491, %v7525
      %v7527 = vsub.f32 1.0, %v7526
      %v7528 = vmul.f32 %v7525, %v7527
      %v7529 = vadd.f32 %v7525, %v7528
      %vm7530 = vweird.f32 %v7491
      %vm7531 = vweird.f32 %v7525
      %vm7532 = vmor %vm7530, %vm7531
      %v7533 = vsel %vm7532, %v7525, %v7529
      %v7534 = vand.u32 2147483647, %v7491
      %vm7535 = vcmp.eq.f32.partialorder %v7534, 8.507059e+37
      %v7536 = vand.u32 %v7491, 2147483648
      %v7537 = vor.u32 1.1754944e-38, %v7536
      %v7538 = vsel %vm7535, %v7537, %v7533
      %v7539 = vrcp.pop %v7492
      %v7540 = vmul.f32 %v7492, %v7539
      %v7541 = vsub.f32 1.0, %v7540
      %v7542 = vmul.f32 %v7539, %v7541
      %v7543 = vadd.f32 %v7539, %v7542
      %vm7544 = vweird.f32 %v7492
      %vm7545 = vweird.f32 %v7539
      %vm7546 = vmor %vm7544, %vm7545
      %v7547 = vsel %vm7546, %v7539, %v7543
      %v7548 = vand.u32 2147483647, %v7492
      %vm7549 = vcmp.eq.f32.partialorder %v7548, 8.507059e+37
      %v7550 = vand.u32 %v7492, 2147483648
      %v7551 = vor.u32 1.1754944e-38, %v7550
      %v7552 = vsel %vm7549, %v7551, %v7547
      %v7553 = vrcp.pop %v7493
      %v7554 = vmul.f32 %v7493, %v7553
      %v7555 = vsub.f32 1.0, %v7554
      %v7556 = vmul.f32 %v7553, %v7555
      %v7557 = vadd.f32 %v7553, %v7556
      %vm7558 = vweird.f32 %v7493
      %vm7559 = vweird.f32 %v7553
      %vm7560 = vmor %vm7558, %vm7559
      %v7561 = vsel %vm7560, %v7553, %v7557
      %v7562 = vand.u32 2147483647, %v7493
      %vm7563 = vcmp.eq.f32.partialorder %v7562, 8.507059e+37
      %v7564 = vand.u32 %v7493, 2147483648
      %v7565 = vor.u32 1.1754944e-38, %v7564
      %v7566 = vsel %vm7563, %v7565, %v7561
      %v7567 = vrcp.pop %v7494
      %v7568 = vmul.f32 %v7494, %v7567
      %v7569 = vsub.f32 1.0, %v7568
      %v7570 = vmul.f32 %v7567, %v7569
      %v7571 = vadd.f32 %v7567, %v7570
      %vm7572 = vweird.f32 %v7494
      %vm7573 = vweird.f32 %v7567
      %vm7574 = vmor %vm7572, %vm7573
      %v7575 = vsel %vm7574, %v7567, %v7571
      %v7576 = vand.u32 2147483647, %v7494
      %vm7577 = vcmp.eq.f32.partialorder %v7576, 8.507059e+37
      %v7578 = vand.u32 %v7494, 2147483648
      %v7579 = vor.u32 1.1754944e-38, %v7578
      %v7580 = vsel %vm7577, %v7579, %v7575
      %v7581 = vrcp.pop %v7495
      %v7582 = vmul.f32 %v7495, %v7581
      %v7583 = vsub.f32 1.0, %v7582
      %v7584 = vmul.f32 %v7581, %v7583
      %v7585 = vadd.f32 %v7581, %v7584
      %vm7586 = vweird.f32 %v7495
      %vm7587 = vweird.f32 %v7581
      %vm7588 = vmor %vm7586, %vm7587
      %v7589 = vsel %vm7588, %v7581, %v7585
      %v7590 = vand.u32 2147483647, %v7495
      %vm7591 = vcmp.eq.f32.partialorder %v7590, 8.507059e+37
      %v7592 = vand.u32 %v7495, 2147483648
      %v7593 = vor.u32 1.1754944e-38, %v7592
      %v7594 = vsel %vm7591, %v7593, %v7589
      %v7595 = vrcp.pop %v7496
      %v7596 = vmul.f32 %v7496, %v7595
      %v7597 = vsub.f32 1.0, %v7596
      %v7598 = vmul.f32 %v7595, %v7597
      %v7599 = vadd.f32 %v7595, %v7598
      %vm7600 = vweird.f32 %v7496
      %vm7601 = vweird.f32 %v7595
      %vm7602 = vmor %vm7600, %vm7601
      %v7603 = vsel %vm7602, %v7595, %v7599
      %v7604 = vand.u32 2147483647, %v7496
      %vm7605 = vcmp.eq.f32.partialorder %v7604, 8.507059e+37
      %v7606 = vand.u32 %v7496, 2147483648
      %v7607 = vor.u32 1.1754944e-38, %v7606
      %v7608 = vsel %vm7605, %v7607, %v7603
      %v7609 = vpack.c.bf16 %v7510, %v7510
      %v7610 = vpack.c.bf16 %v7524, %v7524
      %v7611 = vpack.c.bf16 %v7538, %v7538
      %v7612 = vpack.c.bf16 %v7552, %v7552
      %v7613 = vpack.c.bf16 %v7566, %v7566
      %v7614 = vpack.c.bf16 %v7580, %v7580
      %v7615 = vpack.c.bf16 %v7594, %v7594
      %v7616 = vpack.c.bf16 %v7608, %v7608
      %7617 = vst.msk [vmem:[%s388 + $0x40] sm:$0xf] %vm7280, %v7609
      %7618 = vst.msk [vmem:[%s388 + $0x44] sm:$0xf] %vm7280, %v7610
      %7619 = vst.msk [vmem:[%s388 + $0x48] sm:$0xf] %vm7280, %v7611
      %7620 = vst.msk [vmem:[%s388 + $0x4c] sm:$0xf] %vm7280, %v7612
      %7621 = vst.msk [vmem:[%s388 + $0x50] sm:$0xf] %vm7280, %v7613
      %7622 = vst.msk [vmem:[%s388 + $0x54] sm:$0xf] %vm7280, %v7614
      %7623 = vst.msk [vmem:[%s388 + $0x58] sm:$0xf] %vm7280, %v7615
      %7624 = vst.msk [vmem:[%s388 + $0x5c] sm:$0xf] %vm7280, %v7616
      %v7625 = vadd.f32 %v7111, %v7119
      %v7626 = vadd.f32 %v7112, %v7119
      %v7627 = vadd.f32 %v7113, %v7119
      %v7628 = vadd.f32 %v7114, %v7119
      %v7629 = vadd.f32 %v7115, %v7119
      %v7630 = vadd.f32 %v7116, %v7119
      %v7631 = vadd.f32 %v7117, %v7119
      %v7632 = vadd.f32 %v7118, %v7119
      %v7633 = vsub.f32 0.0, %v7625
      %v7634 = vsub.f32 0.0, %v7626
      %v7635 = vsub.f32 0.0, %v7627
      %v7636 = vsub.f32 0.0, %v7628
      %v7637 = vsub.f32 0.0, %v7629
      %v7638 = vsub.f32 0.0, %v7630
      %v7639 = vsub.f32 0.0, %v7631
      %v7640 = vsub.f32 0.0, %v7632
      %v7641 = vmul.f32 %v7633, 1.442695
      %v7642 = vpow.pop %v7641
      %v7643 = vmul.f32 %v7634, 1.442695
      %v7644 = vpow.pop %v7643
      %v7645 = vmul.f32 %v7635, 1.442695
      %v7646 = vpow.pop %v7645
      %v7647 = vmul.f32 %v7636, 1.442695
      %v7648 = vpow.pop %v7647
      %v7649 = vmul.f32 %v7637, 1.442695
      %v7650 = vpow.pop %v7649
      %v7651 = vmul.f32 %v7638, 1.442695
      %v7652 = vpow.pop %v7651
      %v7653 = vmul.f32 %v7639, 1.442695
      %v7654 = vpow.pop %v7653
      %v7655 = vmul.f32 %v7640, 1.442695
      %v7656 = vpow.pop %v7655
      %v7657 = vadd.f32 %v7642, 1.0
      %v7658 = vadd.f32 %v7644, 1.0
      %v7659 = vadd.f32 %v7646, 1.0
      %v7660 = vadd.f32 %v7648, 1.0
      %v7661 = vadd.f32 %v7650, 1.0
      %v7662 = vadd.f32 %v7652, 1.0
      %v7663 = vadd.f32 %v7654, 1.0
      %v7664 = vadd.f32 %v7656, 1.0
      %v7665 = vrcp.pop %v7657
      %v7666 = vmul.f32 %v7657, %v7665
      %v7667 = vsub.f32 1.0, %v7666
      %v7668 = vmul.f32 %v7665, %v7667
      %v7669 = vadd.f32 %v7665, %v7668
      %vm7670 = vweird.f32 %v7657
      %vm7671 = vweird.f32 %v7665
      %vm7672 = vmor %vm7670, %vm7671
      %v7673 = vsel %vm7672, %v7665, %v7669
      %v7674 = vand.u32 2147483647, %v7657
      %vm7675 = vcmp.eq.f32.partialorder %v7674, 8.507059e+37
      %v7676 = vand.u32 %v7657, 2147483648
      %v7677 = vor.u32 1.1754944e-38, %v7676
      %v7678 = vsel %vm7675, %v7677, %v7673
      %v7679 = vrcp.pop %v7658
      %v7680 = vmul.f32 %v7658, %v7679
      %v7681 = vsub.f32 1.0, %v7680
      %v7682 = vmul.f32 %v7679, %v7681
      %v7683 = vadd.f32 %v7679, %v7682
      %vm7684 = vweird.f32 %v7658
      %vm7685 = vweird.f32 %v7679
      %vm7686 = vmor %vm7684, %vm7685
      %v7687 = vsel %vm7686, %v7679, %v7683
      %v7688 = vand.u32 2147483647, %v7658
      %vm7689 = vcmp.eq.f32.partialorder %v7688, 8.507059e+37
      %v7690 = vand.u32 %v7658, 2147483648
      %v7691 = vor.u32 1.1754944e-38, %v7690
      %v7692 = vsel %vm7689, %v7691, %v7687
      %v7693 = vrcp.pop %v7659
      %v7694 = vmul.f32 %v7659, %v7693
      %v7695 = vsub.f32 1.0, %v7694
      %v7696 = vmul.f32 %v7693, %v7695
      %v7697 = vadd.f32 %v7693, %v7696
      %vm7698 = vweird.f32 %v7659
      %vm7699 = vweird.f32 %v7693
      %vm7700 = vmor %vm7698, %vm7699
      %v7701 = vsel %vm7700, %v7693, %v7697
      %v7702 = vand.u32 2147483647, %v7659
      %vm7703 = vcmp.eq.f32.partialorder %v7702, 8.507059e+37
      %v7704 = vand.u32 %v7659, 2147483648
      %v7705 = vor.u32 1.1754944e-38, %v7704
      %v7706 = vsel %vm7703, %v7705, %v7701
      %v7707 = vrcp.pop %v7660
      %v7708 = vmul.f32 %v7660, %v7707
      %v7709 = vsub.f32 1.0, %v7708
      %v7710 = vmul.f32 %v7707, %v7709
      %v7711 = vadd.f32 %v7707, %v7710
      %vm7712 = vweird.f32 %v7660
      %vm7713 = vweird.f32 %v7707
      %vm7714 = vmor %vm7712, %vm7713
      %v7715 = vsel %vm7714, %v7707, %v7711
      %v7716 = vand.u32 2147483647, %v7660
      %vm7717 = vcmp.eq.f32.partialorder %v7716, 8.507059e+37
      %v7718 = vand.u32 %v7660, 2147483648
      %v7719 = vor.u32 1.1754944e-38, %v7718
      %v7720 = vsel %vm7717, %v7719, %v7715
      %v7721 = vrcp.pop %v7661
      %v7722 = vmul.f32 %v7661, %v7721
      %v7723 = vsub.f32 1.0, %v7722
      %v7724 = vmul.f32 %v7721, %v7723
      %v7725 = vadd.f32 %v7721, %v7724
      %vm7726 = vweird.f32 %v7661
      %vm7727 = vweird.f32 %v7721
      %vm7728 = vmor %vm7726, %vm7727
      %v7729 = vsel %vm7728, %v7721, %v7725
      %v7730 = vand.u32 2147483647, %v7661
      %vm7731 = vcmp.eq.f32.partialorder %v7730, 8.507059e+37
      %v7732 = vand.u32 %v7661, 2147483648
      %v7733 = vor.u32 1.1754944e-38, %v7732
      %v7734 = vsel %vm7731, %v7733, %v7729
      %v7735 = vrcp.pop %v7662
      %v7736 = vmul.f32 %v7662, %v7735
      %v7737 = vsub.f32 1.0, %v7736
      %v7738 = vmul.f32 %v7735, %v7737
      %v7739 = vadd.f32 %v7735, %v7738
      %vm7740 = vweird.f32 %v7662
      %vm7741 = vweird.f32 %v7735
      %vm7742 = vmor %vm7740, %vm7741
      %v7743 = vsel %vm7742, %v7735, %v7739
      %v7744 = vand.u32 2147483647, %v7662
      %vm7745 = vcmp.eq.f32.partialorder %v7744, 8.507059e+37
      %v7746 = vand.u32 %v7662, 2147483648
      %v7747 = vor.u32 1.1754944e-38, %v7746
      %v7748 = vsel %vm7745, %v7747, %v7743
      %v7749 = vrcp.pop %v7663
      %v7750 = vmul.f32 %v7663, %v7749
      %v7751 = vsub.f32 1.0, %v7750
      %v7752 = vmul.f32 %v7749, %v7751
      %v7753 = vadd.f32 %v7749, %v7752
      %vm7754 = vweird.f32 %v7663
      %vm7755 = vweird.f32 %v7749
      %vm7756 = vmor %vm7754, %vm7755
      %v7757 = vsel %vm7756, %v7749, %v7753
      %v7758 = vand.u32 2147483647, %v7663
      %vm7759 = vcmp.eq.f32.partialorder %v7758, 8.507059e+37
      %v7760 = vand.u32 %v7663, 2147483648
      %v7761 = vor.u32 1.1754944e-38, %v7760
      %v7762 = vsel %vm7759, %v7761, %v7757
      %v7763 = vrcp.pop %v7664
      %v7764 = vmul.f32 %v7664, %v7763
      %v7765 = vsub.f32 1.0, %v7764
      %v7766 = vmul.f32 %v7763, %v7765
      %v7767 = vadd.f32 %v7763, %v7766
      %vm7768 = vweird.f32 %v7664
      %vm7769 = vweird.f32 %v7763
      %vm7770 = vmor %vm7768, %vm7769
      %v7771 = vsel %vm7770, %v7763, %v7767
      %v7772 = vand.u32 2147483647, %v7664
      %vm7773 = vcmp.eq.f32.partialorder %v7772, 8.507059e+37
      %v7774 = vand.u32 %v7664, 2147483648
      %v7775 = vor.u32 1.1754944e-38, %v7774
      %v7776 = vsel %vm7773, %v7775, %v7771
      %v7777 = vpack.c.bf16 %v7678, %v7678
      %v7778 = vpack.c.bf16 %v7692, %v7692
      %v7779 = vpack.c.bf16 %v7706, %v7706
      %v7780 = vpack.c.bf16 %v7720, %v7720
      %v7781 = vpack.c.bf16 %v7734, %v7734
      %v7782 = vpack.c.bf16 %v7748, %v7748
      %v7783 = vpack.c.bf16 %v7762, %v7762
      %v7784 = vpack.c.bf16 %v7776, %v7776
      %7785 = vst.msk [vmem:[%s388 + $0x60] sm:$0xf] %vm7280, %v7777
      %7786 = vst.msk [vmem:[%s388 + $0x64] sm:$0xf] %vm7280, %v7778
      %7787 = vst.msk [vmem:[%s388 + $0x68] sm:$0xf] %vm7280, %v7779
      %7788 = vst.msk [vmem:[%s388 + $0x6c] sm:$0xf] %vm7280, %v7780
      %7789 = vst.msk [vmem:[%s388 + $0x70] sm:$0xf] %vm7280, %v7781
      %7790 = vst.msk [vmem:[%s388 + $0x74] sm:$0xf] %vm7280, %v7782
      %7791 = vst.msk [vmem:[%s388 + $0x78] sm:$0xf] %vm7280, %v7783
      %7792 = vst.msk [vmem:[%s388 + $0x7c] sm:$0xf] %vm7280, %v7784
      %s7793 = smul.u32 32, %s22
      %p7794 = scmp.lt.s32.totalorder %s7793, 63
      %s7795 = scalar_select %p7794, %s7793, 63
      %s7796 = smul.addr %s7795, 4
      %s7797 = scalar_lea.vmem %s11, %s7796
      // Predicated region
      $region65: #{autoencoder_forward.1} parent=63 // pred_check
        %p7798 = pneg %p276
      $region66: #{autoencoder_forward.1} parent=63 // pred_check_branch
        %7800 = sbr.rel (%p7798) target = $region68
      $region67: #{autoencoder_forward.1} parent=63 // pred_region
        %s7801 = smul.u32 32, %s22
      $region68: #{autoencoder_forward.1} parent=63 // pred_fallthru
        _
    $region64: #{autoencoder_forward.1} parent=5 // pred_fallthru
      _
    %p7802 = scmp.le.s32.totalorder 2, %s17
    // Predicated region
    $region69: #{autoencoder_forward.1} parent=5 // pred_check
      %p7803 = pneg %p7802
    $region70: #{autoencoder_forward.1} parent=5 // pred_check_branch
      %7805 = sbr.rel (%p7803) target = $region72
    $region71: #{autoencoder_forward.1} parent=5 // pred_region
      %s7806 = ssub.s32 %s17, 2
      // Predicated region
      $region73: #{autoencoder_forward.1} parent=71 // pred_check
        %p7807 = pneg %p282
      $region74: #{autoencoder_forward.1} parent=71 // pred_check_branch
        %7809 = sbr.rel (%p7807) target = $region76
      $region75: #{autoencoder_forward.1} parent=71 // pred_region
        %s7810 = smul.u32 32, %s23
        %p7811 = scmp.lt.s32.totalorder %s7810, 63
        %s7812 = scalar_select %p7811, %s7810, 63
        %s7813 = smul.addr %s7812, 4
        %s7814 = scalar_lea.vmem %s11, %s7813
      $region76: #{autoencoder_forward.1} parent=71 // pred_fallthru
        _
    $region72: #{autoencoder_forward.1} parent=5 // pred_fallthru
      _
  $region6: #{autoencoder_forward.1} parent=0 // loop_footer
    %s21 = sadd.s32 1, %s17
  $region7: #{autoencoder_forward.1} parent=0 // loop_footer_branch
    %16 = sbr.rel target = $region3
  $region8: #{autoencoder_forward.1} parent=0 // loop_exit
    _

</llo_original>
